<compile_context>
chip_gen: v7x
topology: tpu7x:2x2x1
jax: 0.10.0
libtpu: 0.0.40
codegen_flags: <defaults>
</compile_context>

<pallas_src>
import numpy as np
import jax
import jax.numpy as jnp
from jax.experimental import pallas as pl
from jax.experimental.pallas import tpu as pltpu


# ----------------------------------------------------------------------------
# Kernel: one block of BB batch elements per grid step.
# ----------------------------------------------------------------------------
def _ob_kernel(fit_ref, x_ref, attn_ref, f123_ref, w1_ref, b1_ref, w2_ref,
               b2_ref, scal_ref, out_ref):
    BB, N, D = x_ref.shape
    x = x_ref[...]                                        # (BB, N, D) f32
    fit = fit_ref[...]                                    # (BB, N)    f32

    # fitx = softmax(xfit, dim=-1) over the population axis (exact reciprocal).
    fmax = jnp.max(fit, axis=-1, keepdims=True)
    fe = jnp.exp(fit - fmax)
    fitx = fe / jnp.sum(fe, axis=-1, keepdims=True)       # (BB, N)

    # Fitness attention, algebraically reduced (no q/k, no MXU):
    #   scores_eff[b,n,m] = (A*fitx[b,n] + C) * fitx[b,m]
    # (row-constant terms of the full expansion cancel inside softmax over m).
    A = scal_ref[0]
    C = scal_ref[1]
    F1 = scal_ref[2]
    coef = (A * fitx + C)[:, :, None]                     # (BB, N, 1)
    scores = coef * fitx[:, None, :]                      # (BB, N, N)
    smax = jnp.max(scores, axis=-1, keepdims=True)
    es = jnp.exp(scores - smax)
    # F1 (= softmax(F)[1]) folded into the normalization.
    fitattn = es * (F1 / jnp.sum(es, axis=-1, keepdims=True))   # (BB, N, N)

    # attn_ref already holds F0 * softmax(attn)  (batch-invariant, wrapper).
    a = attn_ref[...][None, :, :] + fitattn               # (BB, N, N) f32

    # crosspop = a @ x as an unrolled VPU broadcast-MAC (K = M = N = 8 is far too
    # small for the MXU); stays f32 for accuracy.
    crosspop = a[:, :, 0:1] * x[:, 0:1, :]                # (BB, N, D)
    for mm in range(1, N):
        crosspop = crosspop + a[:, :, mm:mm + 1] * x[:, mm:mm + 1, :]

    # mut MLP: Linear(D,D) -> ReLU -> Linear(D,D), flattened to (BB*N, D) rows so
    # the MXU sees a real M; bf16 operands, f32 accumulation.
    cp2 = crosspop.reshape(BB * N, D)
    h = jnp.maximum(
        jnp.dot(cp2.astype(jnp.bfloat16), w1_ref[...],
                preferred_element_type=jnp.float32) + b1_ref[...], 0.0)
    off2 = (jnp.dot(h.astype(jnp.bfloat16), w2_ref[...],
                    preferred_element_type=jnp.float32) + b2_ref[...])
    offpop = off2.reshape(BB, N, D)

    # off = f1 * x + f2 * crosspop + f3 * offpop   (f1/f2/f3 resident (N,3) operand)
    f123 = f123_ref[...]                                   # (N, 3)
    f1 = f123[:, 0:1][None, :, :]                          # (1, N, 1)
    f2 = f123[:, 1:2][None, :, :]
    f3 = f123[:, 2:3][None, :, :]
    out_ref[...] = (f1 * x + f2 * crosspop + f3 * offpop).astype(out_ref.dtype)


# ----------------------------------------------------------------------------
# Wrapper: one pallas_call per OB forward.
# ----------------------------------------------------------------------------
def _default_num_blocks():
    """1 grid step on single-TC chips (v5e/v6e); 2 on v7x (2 TensorCores/chip)."""
    try:
        kind = jax.devices()[0].device_kind.lower()
    except Exception:
        return 1
    return 2 if ("v7" in kind or "7x" in kind) else 1


def ob_forward(x, cost, p, num_blocks=None):
    x = x.astype(jnp.float32)
    B, N, D = x.shape
    scale = float(D) ** (-0.5)

    if num_blocks is None:
        num_blocks = _default_num_blocks()
    num_blocks = max(1, min(num_blocks, B))
    BB = -(-B // num_blocks)                 # ceil(B / num_blocks)
    Bp = BB * num_blocks

    fit = cost.astype(jnp.float32).reshape(B, N)
    if Bp != B:
        pad = Bp - B
        x = jnp.pad(x, ((0, pad), (0, 0), (0, 0)))
        fit = jnp.pad(fit, ((0, pad), (0, 0)))   # zeros -> uniform softmax, no NaN

    # ---- batch-invariant parameter math, hoisted out of the kernel ------------
    F_sm = jax.nn.softmax(p["F"].reshape(-1))                         # (2,)
    attn_f0 = (F_sm[0] * jax.nn.softmax(p["attn"][0], axis=-1)
               ).astype(jnp.float32)                                   # (N, N)
    wq = p["wq_t"].reshape(-1)
    bq = p["bq"].reshape(-1)
    wk = p["wk_t"].reshape(-1)
    bk = p["bk"].reshape(-1)
    del bk  # only enters score terms that are constant over the softmax axis
    A = scale * jnp.dot(wq, wk)
    C = scale * jnp.dot(bq, wk)
    scal = jnp.stack([A, C, F_sm[1]]).astype(jnp.float32)              # f32[3] SMEM

    f123 = jnp.concatenate([p["f1"][0], p["f2"][0], p["f3"][0]], axis=-1)  # (N, 3)

    # bf16 MXU weights for the mut MLP (accumulation stays f32 in the kernel).
    w1 = p["w1_t"].astype(jnp.bfloat16)
    w2 = p["w2_t"].astype(jnp.bfloat16)

    # VMEM per step at (BB<=64, N=8, D=128): x+out double-buffered ~1 MiB plus
    # ~100 KiB of resident weights -> far below the scoped default on v5e/v6e/v7x.
    # Re-budget before scaling BB/N/D up (v7x: 64 MiB physical / ~32 MiB scoped).
    out = pl.pallas_call(
        _ob_kernel,
        out_shape=jax.ShapeDtypeStruct((Bp, N, D), jnp.float32),
        grid_spec=pltpu.PrefetchScalarGridSpec(
            num_scalar_prefetch=0,
            grid=(num_blocks,),
            in_specs=[
                pl.BlockSpec((BB, N), lambda b: (b, 0)),           # fitness
                pl.BlockSpec((BB, N, D), lambda b: (b, 0, 0)),     # x
                pl.BlockSpec((N, N), lambda b: (0, 0)),            # F0*softmax(attn)
                pl.BlockSpec((N, 3), lambda b: (0, 0)),            # f1|f2|f3 (resident)
                pl.BlockSpec((D, D), lambda b: (0, 0)),            # w1_t (bf16)
                pl.BlockSpec((1, D), lambda b: (0, 0)),            # b1
                pl.BlockSpec((D, D), lambda b: (0, 0)),            # w2_t (bf16)
                pl.BlockSpec((1, D), lambda b: (0, 0)),            # b2
                pl.BlockSpec(memory_space=pltpu.MemorySpace.SMEM), # [A, C, F1]
            ],
            out_specs=pl.BlockSpec((BB, N, D), lambda b: (b, 0, 0)),
        ),
        compiler_params=pltpu.CompilerParams(
            dimension_semantics=("parallel",)),   # batch blocks shard over v7x's 2 TCs
    )(fit, x, attn_f0, f123, w1, p["b1"], w2, p["b2"], scal)
    return out[:B]


# ----------------------------------------------------------------------------
# Deterministic parameter init (shapes from the PyTorch module __init__).
# ----------------------------------------------------------------------------
def init_ob_params(key, pop, dim, hidden):
    ks = jax.random.split(key, 13)

    def lin(kw, kb, fan_in, fan_out):
        bound = 1.0 / np.sqrt(fan_in)
        w = jax.random.uniform(kw, (fan_out, fan_in), jnp.float32, -bound, bound)
        b = jax.random.uniform(kb, (fan_out,), jnp.float32, -bound, bound)
        return w, b

    wq, bq = lin(ks[0], ks[1], 1, hidden)
    wk, bk = lin(ks[2], ks[3], 1, hidden)
    w1, b1 = lin(ks[4], ks[5], dim, dim)
    w2, b2 = lin(ks[6], ks[7], dim, dim)

    return dict(
        attn=jax.random.normal(ks[8], (1, pop, pop), jnp.float32),
        F=jax.random.normal(ks[9], (2,), jnp.float32).reshape(1, 2),
        wq_t=wq.T, bq=bq.reshape(1, hidden),
        wk_t=wk.T, bk=bk.reshape(1, hidden),
        w1_t=w1.T, b1=b1.reshape(1, dim),
        w2_t=w2.T, b2=b2.reshape(1, dim),
        f1=jax.random.normal(ks[10], (1, pop, 1), jnp.float32),
        f2=jax.random.normal(ks[11], (1, pop, 1), jnp.float32),
        f3=jax.random.normal(ks[12], (1, pop, 1), jnp.float32),
    )


class Policy:
    """JAX/Pallas analogue of the PyTorch Policy module (forward only)."""

    def __init__(self, popSize=10, dim=64, hidden_dim=100, ems=10, ws=False,
                 key=None):
        self.ems = ems
        self.ws = ws
        if ws:
            self.obs = [init_ob_params(key, popSize, dim, hidden_dim)]
        else:
            keys = jax.random.split(key, ems)
            self.obs = [init_ob_params(keys[i], popSize, dim, hidden_dim)
                        for i in range(ems)]

    def __call__(self, x, cost, pointer):
        p = self.obs[0] if self.ws else self.obs[pointer]
        return ob_forward(x, cost, p)


# ----------------------------------------------------------------------------
# Pure-JAX f32 reference (faithful to the PyTorch forward), for correctness.
# ----------------------------------------------------------------------------
def ob_reference(x, xfit, p):
    B, N, D = x.shape
    fitx = jax.nn.softmax(xfit, axis=-1)[..., None]               # (B, N, 1)
    q = fitx * p["wq_t"] + p["bq"]                                # (B, N, H)
    k = fitx * p["wk_t"] + p["bk"]
    scores = jnp.einsum("bnh,bmh->bnm", q, k) * (D ** -0.5)
    fitattn = jax.nn.softmax(scores, axis=-1)
    attn_sm = jax.nn.softmax(p["attn"][0], axis=-1)               # (N, N)
    y1 = jnp.einsum("nm,bmd->bnd", attn_sm, x)
    y2 = jnp.einsum("bnm,bmd->bnd", fitattn, x)
    F_sm = jax.nn.softmax(p["F"], axis=-1)[0]
    crosspop = y1 * F_sm[0] + y2 * F_sm[1]
    h = jax.nn.relu(crosspop @ p["w1_t"] + p["b1"])
    offpop = h @ p["w2_t"] + p["b2"]
    return p["f1"] * x + p["f2"] * crosspop + p["f3"] * offpop


if __name__ == "__main__":
    # popSize=8, dim=128, hidden=128; batch 64 -> one grid step on v5e/v6e
    # (BB*N = 512 MXU rows), two "parallel" steps of 32 on v7x.
    B, N, D, H, EMS = 64, 8, 128, 128, 3

    key = jax.random.PRNGKey(0)
    kx, kf, kp = jax.random.split(key, 3)
    x = jax.random.normal(kx, (B, N, D), jnp.float32)
    cost = jax.random.normal(kf, (B, N), jnp.float32)

    policy = Policy(popSize=N, dim=D, hidden_dim=H, ems=EMS, ws=False, key=kp)
    pointer = 1

    out = policy(x, cost, pointer)
    out = jax.block_until_ready(out)

    ref = ob_reference(x, cost, policy.obs[pointer])
    # Only the mut-MLP uses bf16 operands (f32 accumulation); everything else is f32.
    np.testing.assert_allclose(np.asarray(out), np.asarray(ref),
                               rtol=3e-2, atol=3e-2)
    assert out.shape == (B, N, D) and out.dtype == jnp.float32

    print("KERNEL_OK")
</pallas_src>

<mosaic_0001>
module attributes {stable_mosaic.version = 11 : i64} {
  func.func @_ob_kernel(%arg0: i32, %arg1: memref<64x8xf32, #tpu.memory_space<vmem>>, %arg2: memref<64x8x128xf32, #tpu.memory_space<vmem>>, %arg3: memref<8x8xf32, #tpu.memory_space<vmem>>, %arg4: memref<8x3xf32, #tpu.memory_space<vmem>>, %arg5: memref<128x128xbf16, #tpu.memory_space<vmem>>, %arg6: memref<1x128xf32, #tpu.memory_space<vmem>>, %arg7: memref<128x128xbf16, #tpu.memory_space<vmem>>, %arg8: memref<1x128xf32, #tpu.memory_space<vmem>>, %arg9: memref<3xf32, #tpu.memory_space<smem>>, %arg10: memref<64x8x128xf32, #tpu.memory_space<vmem>>) attributes {dimension_semantics = [#tpu.dimension_semantics<parallel>], iteration_bounds = array<i64: 1>, scalar_prefetch = 0 : i64, scratch_operands = 0 : i64, tpu.core_type = #tpu.core_type<tc>, window_params = [{transform_indices = @transform_0, window_bounds = array<i64: 64, 8>}, {transform_indices = @transform_1, window_bounds = array<i64: 64, 8, 128>}, {pipeline_mode = #tpu.pipeline_mode<synchronous>, transform_indices = @transform_2, window_bounds = array<i64: 8, 8>}, {pipeline_mode = #tpu.pipeline_mode<synchronous>, transform_indices = @transform_3, window_bounds = array<i64: 8, 3>}, {pipeline_mode = #tpu.pipeline_mode<synchronous>, transform_indices = @transform_4, window_bounds = array<i64: 128, 128>}, {pipeline_mode = #tpu.pipeline_mode<synchronous>, transform_indices = @transform_5, window_bounds = array<i64: 1, 128>}, {pipeline_mode = #tpu.pipeline_mode<synchronous>, transform_indices = @transform_6, window_bounds = array<i64: 128, 128>}, {pipeline_mode = #tpu.pipeline_mode<synchronous>, transform_indices = @transform_7, window_bounds = array<i64: 1, 128>}, {transform_indices = @transform_8, window_bounds = array<i64: 3>}, {transform_indices = @transform_9, window_bounds = array<i64: 64, 8, 128>}]} {
    %c0 = arith.constant 0 : index
    %c0_0 = arith.constant 0 : index
    %c0_1 = arith.constant 0 : index
    %0 = vector.load %arg2[%c0, %c0_0, %c0_1] : memref<64x8x128xf32, #tpu.memory_space<vmem>>, vector<64x8x128xf32>
    %c0_2 = arith.constant 0 : index
    %c0_3 = arith.constant 0 : index
    %1 = vector.load %arg1[%c0_2, %c0_3] : memref<64x8xf32, #tpu.memory_space<vmem>>, vector<64x8xf32>
    %cst = arith.constant dense<0xFF800000> : vector<64xf32>
    %2 = vector.multi_reduction <maximumf>, %1, %cst [1] : vector<64x8xf32> to vector<64xf32>
    %3 = vector.shape_cast %2 : vector<64xf32> to vector<64x1xf32>
    %4 = vector.broadcast %3 : vector<64x1xf32> to vector<64x8xf32>
    %5 = arith.subf %1, %4 : vector<64x8xf32>
    %6 = math.exp %5 : vector<64x8xf32>
    %cst_4 = arith.constant dense<0.000000e+00> : vector<64xf32>
    %7 = vector.multi_reduction <add>, %6, %cst_4 [1] : vector<64x8xf32> to vector<64xf32>
    %8 = vector.shape_cast %7 : vector<64xf32> to vector<64x1xf32>
    %9 = vector.broadcast %8 : vector<64x1xf32> to vector<64x8xf32>
    %10 = arith.divf %6, %9 : vector<64x8xf32>
    %c0_5 = arith.constant 0 : index
    %11 = memref.load %arg9[%c0_5] : memref<3xf32, #tpu.memory_space<smem>>
    %c1 = arith.constant 1 : index
    %12 = memref.load %arg9[%c1] : memref<3xf32, #tpu.memory_space<smem>>
    %c2 = arith.constant 2 : index
    %13 = memref.load %arg9[%c2] : memref<3xf32, #tpu.memory_space<smem>>
    %14 = vector.broadcast %11 : f32 to vector<64x8xf32>
    %15 = arith.mulf %14, %10 : vector<64x8xf32>
    %16 = vector.broadcast %12 : f32 to vector<64x8xf32>
    %17 = arith.addf %15, %16 : vector<64x8xf32>
    %18 = vector.shape_cast %17 : vector<64x8xf32> to vector<64x8x1xf32>
    %19 = vector.shape_cast %10 : vector<64x8xf32> to vector<64x1x8xf32>
    %20 = vector.broadcast %18 : vector<64x8x1xf32> to vector<64x8x8xf32>
    %21 = vector.broadcast %19 : vector<64x1x8xf32> to vector<64x8x8xf32>
    %22 = arith.mulf %20, %21 : vector<64x8x8xf32>
    %cst_6 = arith.constant dense<0xFF800000> : vector<64x8xf32>
    %23 = vector.multi_reduction <maximumf>, %22, %cst_6 [2] : vector<64x8x8xf32> to vector<64x8xf32>
    %24 = vector.shape_cast %23 : vector<64x8xf32> to vector<64x8x1xf32>
    %25 = vector.broadcast %24 : vector<64x8x1xf32> to vector<64x8x8xf32>
    %26 = arith.subf %22, %25 : vector<64x8x8xf32>
    %27 = math.exp %26 : vector<64x8x8xf32>
    %cst_7 = arith.constant dense<0.000000e+00> : vector<64x8xf32>
    %28 = vector.multi_reduction <add>, %27, %cst_7 [2] : vector<64x8x8xf32> to vector<64x8xf32>
    %29 = vector.shape_cast %28 : vector<64x8xf32> to vector<64x8x1xf32>
    %30 = vector.broadcast %13 : f32 to vector<64x8x1xf32>
    %31 = arith.divf %30, %29 : vector<64x8x1xf32>
    %32 = vector.broadcast %31 : vector<64x8x1xf32> to vector<64x8x8xf32>
    %33 = arith.mulf %27, %32 : vector<64x8x8xf32>
    %c0_8 = arith.constant 0 : index
    %c0_9 = arith.constant 0 : index
    %34 = vector.load %arg3[%c0_8, %c0_9] : memref<8x8xf32, #tpu.memory_space<vmem>>, vector<8x8xf32>
    %35 = vector.shape_cast %34 : vector<8x8xf32> to vector<1x8x8xf32>
    %36 = vector.broadcast %35 : vector<1x8x8xf32> to vector<64x8x8xf32>
    %37 = arith.addf %36, %33 : vector<64x8x8xf32>
    %38 = vector.extract_strided_slice %37 {offsets = [0, 0, 0], sizes = [64, 8, 1], strides = [1, 1, 1]} : vector<64x8x8xf32> to vector<64x8x1xf32>
    %39 = vector.extract_strided_slice %0 {offsets = [0, 0, 0], sizes = [64, 1, 128], strides = [1, 1, 1]} : vector<64x8x128xf32> to vector<64x1x128xf32>
    %40 = vector.broadcast %38 : vector<64x8x1xf32> to vector<64x8x128xf32>
    %41 = vector.broadcast %39 : vector<64x1x128xf32> to vector<64x8x128xf32>
    %42 = arith.mulf %40, %41 : vector<64x8x128xf32>
    %43 = vector.extract_strided_slice %37 {offsets = [0, 0, 1], sizes = [64, 8, 1], strides = [1, 1, 1]} : vector<64x8x8xf32> to vector<64x8x1xf32>
    %44 = vector.extract_strided_slice %0 {offsets = [0, 1, 0], sizes = [64, 1, 128], strides = [1, 1, 1]} : vector<64x8x128xf32> to vector<64x1x128xf32>
    %45 = vector.broadcast %43 : vector<64x8x1xf32> to vector<64x8x128xf32>
    %46 = vector.broadcast %44 : vector<64x1x128xf32> to vector<64x8x128xf32>
    %47 = arith.mulf %45, %46 : vector<64x8x128xf32>
    %48 = arith.addf %42, %47 : vector<64x8x128xf32>
    %49 = vector.extract_strided_slice %37 {offsets = [0, 0, 2], sizes = [64, 8, 1], strides = [1, 1, 1]} : vector<64x8x8xf32> to vector<64x8x1xf32>
    %50 = vector.extract_strided_slice %0 {offsets = [0, 2, 0], sizes = [64, 1, 128], strides = [1, 1, 1]} : vector<64x8x128xf32> to vector<64x1x128xf32>
    %51 = vector.broadcast %49 : vector<64x8x1xf32> to vector<64x8x128xf32>
    %52 = vector.broadcast %50 : vector<64x1x128xf32> to vector<64x8x128xf32>
    %53 = arith.mulf %51, %52 : vector<64x8x128xf32>
    %54 = arith.addf %48, %53 : vector<64x8x128xf32>
    %55 = vector.extract_strided_slice %37 {offsets = [0, 0, 3], sizes = [64, 8, 1], strides = [1, 1, 1]} : vector<64x8x8xf32> to vector<64x8x1xf32>
    %56 = vector.extract_strided_slice %0 {offsets = [0, 3, 0], sizes = [64, 1, 128], strides = [1, 1, 1]} : vector<64x8x128xf32> to vector<64x1x128xf32>
    %57 = vector.broadcast %55 : vector<64x8x1xf32> to vector<64x8x128xf32>
    %58 = vector.broadcast %56 : vector<64x1x128xf32> to vector<64x8x128xf32>
    %59 = arith.mulf %57, %58 : vector<64x8x128xf32>
    %60 = arith.addf %54, %59 : vector<64x8x128xf32>
    %61 = vector.extract_strided_slice %37 {offsets = [0, 0, 4], sizes = [64, 8, 1], strides = [1, 1, 1]} : vector<64x8x8xf32> to vector<64x8x1xf32>
    %62 = vector.extract_strided_slice %0 {offsets = [0, 4, 0], sizes = [64, 1, 128], strides = [1, 1, 1]} : vector<64x8x128xf32> to vector<64x1x128xf32>
    %63 = vector.broadcast %61 : vector<64x8x1xf32> to vector<64x8x128xf32>
    %64 = vector.broadcast %62 : vector<64x1x128xf32> to vector<64x8x128xf32>
    %65 = arith.mulf %63, %64 : vector<64x8x128xf32>
    %66 = arith.addf %60, %65 : vector<64x8x128xf32>
    %67 = vector.extract_strided_slice %37 {offsets = [0, 0, 5], sizes = [64, 8, 1], strides = [1, 1, 1]} : vector<64x8x8xf32> to vector<64x8x1xf32>
    %68 = vector.extract_strided_slice %0 {offsets = [0, 5, 0], sizes = [64, 1, 128], strides = [1, 1, 1]} : vector<64x8x128xf32> to vector<64x1x128xf32>
    %69 = vector.broadcast %67 : vector<64x8x1xf32> to vector<64x8x128xf32>
    %70 = vector.broadcast %68 : vector<64x1x128xf32> to vector<64x8x128xf32>
    %71 = arith.mulf %69, %70 : vector<64x8x128xf32>
    %72 = arith.addf %66, %71 : vector<64x8x128xf32>
    %73 = vector.extract_strided_slice %37 {offsets = [0, 0, 6], sizes = [64, 8, 1], strides = [1, 1, 1]} : vector<64x8x8xf32> to vector<64x8x1xf32>
    %74 = vector.extract_strided_slice %0 {offsets = [0, 6, 0], sizes = [64, 1, 128], strides = [1, 1, 1]} : vector<64x8x128xf32> to vector<64x1x128xf32>
    %75 = vector.broadcast %73 : vector<64x8x1xf32> to vector<64x8x128xf32>
    %76 = vector.broadcast %74 : vector<64x1x128xf32> to vector<64x8x128xf32>
    %77 = arith.mulf %75, %76 : vector<64x8x128xf32>
    %78 = arith.addf %72, %77 : vector<64x8x128xf32>
    %79 = vector.extract_strided_slice %37 {offsets = [0, 0, 7], sizes = [64, 8, 1], strides = [1, 1, 1]} : vector<64x8x8xf32> to vector<64x8x1xf32>
    %80 = vector.extract_strided_slice %0 {offsets = [0, 7, 0], sizes = [64, 1, 128], strides = [1, 1, 1]} : vector<64x8x128xf32> to vector<64x1x128xf32>
    %81 = vector.broadcast %79 : vector<64x8x1xf32> to vector<64x8x128xf32>
    %82 = vector.broadcast %80 : vector<64x1x128xf32> to vector<64x8x128xf32>
    %83 = arith.mulf %81, %82 : vector<64x8x128xf32>
    %84 = arith.addf %78, %83 : vector<64x8x128xf32>
    %85 = vector.shape_cast %84 : vector<64x8x128xf32> to vector<512x128xf32>
    %86 = arith.truncf %85 : vector<512x128xf32> to vector<512x128xbf16>
    %c0_10 = arith.constant 0 : index
    %c0_11 = arith.constant 0 : index
    %87 = vector.load %arg5[%c0_10, %c0_11] : memref<128x128xbf16, #tpu.memory_space<vmem>>, vector<128x128xbf16>
    %cst_12 = arith.constant dense<0.000000e+00> : vector<512x128xf32>
    %88 = tpu.matmul %86, %87, %cst_12 {dimension_numbers = #tpu.dot_dimension_numbers<[1], [0], [0], [1], [0, 0, 1, 1], [], []>} : vector<512x128xbf16>, vector<128x128xbf16>, vector<512x128xf32> -> vector<512x128xf32>
    %c0_13 = arith.constant 0 : index
    %c0_14 = arith.constant 0 : index
    %89 = vector.load %arg6[%c0_13, %c0_14] : memref<1x128xf32, #tpu.memory_space<vmem>>, vector<1x128xf32>
    %90 = vector.broadcast %89 : vector<1x128xf32> to vector<512x128xf32>
    %91 = arith.addf %88, %90 : vector<512x128xf32>
    %cst_15 = arith.constant 0.000000e+00 : f32
    %92 = vector.broadcast %cst_15 : f32 to vector<512x128xf32>
    %93 = arith.maximumf %91, %92 : vector<512x128xf32>
    %94 = arith.truncf %93 : vector<512x128xf32> to vector<512x128xbf16>
    %c0_16 = arith.constant 0 : index
    %c0_17 = arith.constant 0 : index
    %95 = vector.load %arg7[%c0_16, %c0_17] : memref<128x128xbf16, #tpu.memory_space<vmem>>, vector<128x128xbf16>
    %cst_18 = arith.constant dense<0.000000e+00> : vector<512x128xf32>
    %96 = tpu.matmul %94, %95, %cst_18 {dimension_numbers = #tpu.dot_dimension_numbers<[1], [0], [0], [1], [0, 0, 1, 1], [], []>} : vector<512x128xbf16>, vector<128x128xbf16>, vector<512x128xf32> -> vector<512x128xf32>
    %c0_19 = arith.constant 0 : index
    %c0_20 = arith.constant 0 : index
    %97 = vector.load %arg8[%c0_19, %c0_20] : memref<1x128xf32, #tpu.memory_space<vmem>>, vector<1x128xf32>
    %98 = vector.broadcast %97 : vector<1x128xf32> to vector<512x128xf32>
    %99 = arith.addf %96, %98 : vector<512x128xf32>
    %100 = vector.shape_cast %99 : vector<512x128xf32> to vector<64x8x128xf32>
    %c0_21 = arith.constant 0 : index
    %c0_22 = arith.constant 0 : index
    %101 = vector.load %arg4[%c0_21, %c0_22] : memref<8x3xf32, #tpu.memory_space<vmem>>, vector<8x3xf32>
    %102 = vector.extract_strided_slice %101 {offsets = [0, 0], sizes = [8, 1], strides = [1, 1]} : vector<8x3xf32> to vector<8x1xf32>
    %103 = vector.shape_cast %102 : vector<8x1xf32> to vector<1x8x1xf32>
    %104 = vector.extract_strided_slice %101 {offsets = [0, 1], sizes = [8, 1], strides = [1, 1]} : vector<8x3xf32> to vector<8x1xf32>
    %105 = vector.shape_cast %104 : vector<8x1xf32> to vector<1x8x1xf32>
    %106 = vector.extract_strided_slice %101 {offsets = [0, 2], sizes = [8, 1], strides = [1, 1]} : vector<8x3xf32> to vector<8x1xf32>
    %107 = vector.shape_cast %106 : vector<8x1xf32> to vector<1x8x1xf32>
    %108 = vector.broadcast %103 : vector<1x8x1xf32> to vector<64x8x128xf32>
    %109 = arith.mulf %108, %0 : vector<64x8x128xf32>
    %110 = vector.broadcast %105 : vector<1x8x1xf32> to vector<64x8x128xf32>
    %111 = arith.mulf %110, %84 : vector<64x8x128xf32>
    %112 = arith.addf %109, %111 : vector<64x8x128xf32>
    %113 = vector.broadcast %107 : vector<1x8x1xf32> to vector<64x8x128xf32>
    %114 = arith.mulf %113, %100 : vector<64x8x128xf32>
    %115 = arith.addf %112, %114 : vector<64x8x128xf32>
    %c0_23 = arith.constant 0 : index
    %c0_24 = arith.constant 0 : index
    %c0_25 = arith.constant 0 : index
    %116 = vector.load %arg10[%c0_23, %c0_24, %c0_25] : memref<64x8x128xf32, #tpu.memory_space<vmem>>, vector<64x8x128xf32>
    tpu.vector_store %arg10[%c0_23, %c0_24, %c0_25], %115 {strides = array<i32>} : memref<64x8x128xf32, #tpu.memory_space<vmem>>, vector<64x8x128xf32>,
    return
  }
  func.func @transform_0(%arg0: i32) -> (i32, i32) {
    %c0_i32 = arith.constant 0 : i32
    %c0_i32_0 = arith.constant 0 : i32
    return %arg0, %c0_i32 : i32, i32
  }
  func.func @transform_1(%arg0: i32) -> (i32, i32, i32) {
    %c0_i32 = arith.constant 0 : i32
    %c0_i32_0 = arith.constant 0 : i32
    %c0_i32_1 = arith.constant 0 : i32
    return %arg0, %c0_i32, %c0_i32_0 : i32, i32, i32
  }
  func.func @transform_2(%arg0: i32) -> (i32, i32) {
    %c0_i32 = arith.constant 0 : i32
    %c0_i32_0 = arith.constant 0 : i32
    %c0_i32_1 = arith.constant 0 : i32
    return %c0_i32, %c0_i32_0 : i32, i32
  }
  func.func @transform_3(%arg0: i32) -> (i32, i32) {
    %c0_i32 = arith.constant 0 : i32
    %c0_i32_0 = arith.constant 0 : i32
    %c0_i32_1 = arith.constant 0 : i32
    return %c0_i32, %c0_i32_0 : i32, i32
  }
  func.func @transform_4(%arg0: i32) -> (i32, i32) {
    %c0_i32 = arith.constant 0 : i32
    %c0_i32_0 = arith.constant 0 : i32
    %c0_i32_1 = arith.constant 0 : i32
    return %c0_i32, %c0_i32_0 : i32, i32
  }
  func.func @transform_5(%arg0: i32) -> (i32, i32) {
    %c0_i32 = arith.constant 0 : i32
    %c0_i32_0 = arith.constant 0 : i32
    %c0_i32_1 = arith.constant 0 : i32
    return %c0_i32, %c0_i32_0 : i32, i32
  }
  func.func @transform_6(%arg0: i32) -> (i32, i32) {
    %c0_i32 = arith.constant 0 : i32
    %c0_i32_0 = arith.constant 0 : i32
    %c0_i32_1 = arith.constant 0 : i32
    return %c0_i32, %c0_i32_0 : i32, i32
  }
  func.func @transform_7(%arg0: i32) -> (i32, i32) {
    %c0_i32 = arith.constant 0 : i32
    %c0_i32_0 = arith.constant 0 : i32
    %c0_i32_1 = arith.constant 0 : i32
    return %c0_i32, %c0_i32_0 : i32, i32
  }
  func.func @transform_8(%arg0: i32) -> i32 {
    %c0_i32 = arith.constant 0 : i32
    %c0_i32_0 = arith.constant 0 : i32
    return %c0_i32 : i32
  }
  func.func @transform_9(%arg0: i32) -> (i32, i32, i32) {
    %c0_i32 = arith.constant 0 : i32
    %c0_i32_0 = arith.constant 0 : i32
    %c0_i32_1 = arith.constant 0 : i32
    return %arg0, %c0_i32, %c0_i32_0 : i32, i32, i32
  }
}

</mosaic_0001>

<llo_original>
// kernel: tpu_custom_call.1
$region0: #{tpu_custom_call.1}
  #allocation0 [shape = 'u32[]', space=smem, size = 0x4, offset = 0x4, fixed_abs, tag = 'smem constant byte address 0x4 - core index']
  #allocation1 [shape = 'u32[144,128]{1,0:T(1,128)}', space=vmem, size = 0x12000, scoped, tag = 'internal scratch']
  %s0 = inlined_call_operand.vmem [shape: f32[64,8], index: 0, kind: input, shape index: {}]
  %s1 = inlined_call_operand.hbm [shape: f32[64,8,128], index: 1, kind: input, shape index: {}]
  %s2 = inlined_call_operand.vmem [shape: f32[8,8], index: 2, kind: input, shape index: {}]
  %s3 = inlined_call_operand.vmem [shape: f32[8,3], index: 3, kind: input, shape index: {}]
  %s4 = inlined_call_operand.vmem [shape: bf16[128,128], index: 4, kind: input, shape index: {}]
  %s5 = inlined_call_operand.vmem [shape: f32[1,128], index: 5, kind: input, shape index: {}]
  %s6 = inlined_call_operand.hbm [shape: bf16[128,128], index: 6, kind: input, shape index: {}]
  %s7 = inlined_call_operand.vmem [shape: f32[1,128], index: 7, kind: input, shape index: {}]
  %s8 = inlined_call_operand.vmem [shape: f32[3], index: 8, kind: input, shape index: {}]
  %s9 = inlined_call_operand.hbm [shape: f32[64,8,128], index: 9, kind: output, shape index: {}]
  %s10 = sld [smem:[#allocation0]]
  $region58: #{tpu_custom_call.1} parent=0
    _
  %s12 = ssub.s32 1, %s10
  %s13 = scalar_select 0, %s12, %s10
  $region1: #{tpu_custom_call.1} parent=0
    #allocation2 [shape = 'u8[262144]{0}', space=vmem, size = 0x40000, scoped, tag = 'input window, operand 1, single buffered']
    #allocation3 [shape = 's32[1]{0}', space=sflag, size = 0x4, scoped, tag = 'scoped memory for tpu_custom_call.1']
    #allocation4 [shape = 's32[1]{0}', space=sflag, size = 0x4, scoped, tag = 'scoped memory for tpu_custom_call.1']
    #allocation5 [shape = 's32[1]{0}', space=sflag, size = 0x4, scoped, tag = 'scoped memory for tpu_custom_call.1']
    #allocation6 [shape = 'u8[32768]{0}', space=vmem, size = 0x8000, scoped, tag = 'input window, operand 6, single buffered']
    #allocation7 [shape = 's32[1]{0}', space=sflag, size = 0x4, scoped, tag = 'scoped memory for tpu_custom_call.1']
    #allocation8 [shape = 'u8[512]{0}', space=smem, size = 0x200, scoped, tag = 'input window, operand 8, single buffered']
    #allocation9 [shape = 'u8[262144]{0}', space=vmem, size = 0x40000, scoped, tag = 'output window, operand 0, single buffered']
    %14 = vsyncpa [#allocation3], 0
    %15 = vsyncpa [#allocation7], 0
    %16 = vsyncpa [#allocation5], 0
    %17 = vsyncpa [#allocation4], 0
    // Predicated region
    $region2: #{tpu_custom_call.1} parent=1 // pred_check
      _
    $region3: #{tpu_custom_call.1} parent=1 // pred_check_branch
      %19 = sbr.rel (0) target = $region5
    $region4: #{tpu_custom_call.1} parent=1 // pred_region
      _
    $region5: #{tpu_custom_call.1} parent=1 // pred_fallthru
      _
    // Predicated region
    $region6: #{tpu_custom_call.1} parent=1 // pred_check
      _
    $region7: #{tpu_custom_call.1} parent=1 // pred_check_branch
      %21 = sbr.rel (0) target = $region9
    $region8: #{tpu_custom_call.1} parent=1 // pred_region
      %s23 = ssub.s32 8192, 8192
      %24 = vsyncadd [#allocation3], %s23
      %s25 = sshll.u32 [#allocation2], 4
      %s26 = int_to_ptr.vmem [resolvable:$true] %s25
      %31 = dma.hbm_to_vmem [thread:$0]  %s1, 8192, %s26, [#allocation3], 128, 128, 8
    $region9: #{tpu_custom_call.1} parent=1 // pred_fallthru
      _
    // Predicated region
    $region10: #{tpu_custom_call.1} parent=1 // pred_check
      _
    $region11: #{tpu_custom_call.1} parent=1 // pred_check_branch
      %33 = sbr.rel (0) target = $region13
    $region12: #{tpu_custom_call.1} parent=1 // pred_region
      _
    $region13: #{tpu_custom_call.1} parent=1 // pred_fallthru
      _
    // Predicated region
    $region14: #{tpu_custom_call.1} parent=1 // pred_check
      _
    $region15: #{tpu_custom_call.1} parent=1 // pred_check_branch
      %35 = sbr.rel (0) target = $region17
    $region16: #{tpu_custom_call.1} parent=1 // pred_region
      _
    $region17: #{tpu_custom_call.1} parent=1 // pred_fallthru
      _
    // Predicated region
    $region18: #{tpu_custom_call.1} parent=1 // pred_check
      _
    $region19: #{tpu_custom_call.1} parent=1 // pred_check_branch
      %37 = sbr.rel (0) target = $region21
    $region20: #{tpu_custom_call.1} parent=1 // pred_region
      _
    $region21: #{tpu_custom_call.1} parent=1 // pred_fallthru
      _
    // Predicated region
    $region22: #{tpu_custom_call.1} parent=1 // pred_check
      _
    $region23: #{tpu_custom_call.1} parent=1 // pred_check_branch
      %39 = sbr.rel (0) target = $region25
    $region24: #{tpu_custom_call.1} parent=1 // pred_region
      _
    $region25: #{tpu_custom_call.1} parent=1 // pred_fallthru
      _
    // Predicated region
    $region26: #{tpu_custom_call.1} parent=1 // pred_check
      _
    $region27: #{tpu_custom_call.1} parent=1 // pred_check_branch
      %41 = sbr.rel (0) target = $region29
    $region28: #{tpu_custom_call.1} parent=1 // pred_region
      %s43 = ssub.s32 1024, 1024
      %44 = vsyncadd [#allocation7], %s43
      %s45 = sshll.u32 [#allocation6], 4
      %s46 = int_to_ptr.vmem [resolvable:$true] %s45
      %51 = dma.hbm_to_vmem [thread:$0]  %s6, 1024, %s46, [#allocation7], 64, 64, 4
    $region29: #{tpu_custom_call.1} parent=1 // pred_fallthru
      _
    // Predicated region
    $region30: #{tpu_custom_call.1} parent=1 // pred_check
      _
    $region31: #{tpu_custom_call.1} parent=1 // pred_check_branch
      %53 = sbr.rel (0) target = $region33
    $region32: #{tpu_custom_call.1} parent=1 // pred_region
      _
    $region33: #{tpu_custom_call.1} parent=1 // pred_fallthru
      _
    // Predicated region
    $region34: #{tpu_custom_call.1} parent=1 // pred_check
      _
    $region35: #{tpu_custom_call.1} parent=1 // pred_check_branch
      %55 = sbr.rel (0) target = $region37
    $region36: #{tpu_custom_call.1} parent=1 // pred_region
      %s57 = ssub.s32 16, 16
      %58 = vsyncadd [#allocation5], %s57
      %s60 = sshll.u32 %s8, 4
      %s61 = int_to_ptr.vmem [resolvable:$true] %s60
      %63 = dma.vmem_to_smem %s61, 16, [#allocation8], [#allocation5]
    $region37: #{tpu_custom_call.1} parent=1 // pred_fallthru
      _
    // Predicated region
    $region38: #{tpu_custom_call.1} parent=1 // pred_check
      _
    $region39: #{tpu_custom_call.1} parent=1 // pred_check_branch
      %65 = sbr.rel (0) target = $region41
    $region40: #{tpu_custom_call.1} parent=1 // pred_region
      %66 = dma.done [#allocation3], 8192
    $region41: #{tpu_custom_call.1} parent=1 // pred_fallthru
      _
    // Predicated region
    $region42: #{tpu_custom_call.1} parent=1 // pred_check
      _
    $region43: #{tpu_custom_call.1} parent=1 // pred_check_branch
      %68 = sbr.rel (0) target = $region45
    $region44: #{tpu_custom_call.1} parent=1 // pred_region
      %69 = dma.done [#allocation7], 1024
    $region45: #{tpu_custom_call.1} parent=1 // pred_fallthru
      _
    // Predicated region
    $region46: #{tpu_custom_call.1} parent=1 // pred_check
      _
    $region47: #{tpu_custom_call.1} parent=1 // pred_check_branch
      %71 = sbr.rel (0) target = $region49
    $region48: #{tpu_custom_call.1} parent=1 // pred_region
      %72 = dma.done [#allocation5], 16
    $region49: #{tpu_custom_call.1} parent=1 // pred_fallthru
      _
    %73 = sfence
    %v75 = vld [vmem:[#allocation2] sm:$0xff]
    %v76 = vld [vmem:[#allocation2 + $0x8] sm:$0xff]
    %v77 = vld [vmem:[#allocation2 + $0x10] sm:$0xff]
    %v78 = vld [vmem:[#allocation2 + $0x18] sm:$0xff]
    %v79 = vld [vmem:[#allocation2 + $0x20] sm:$0xff]
    %v80 = vld [vmem:[#allocation2 + $0x28] sm:$0xff]
    %v81 = vld [vmem:[#allocation2 + $0x30] sm:$0xff]
    %v82 = vld [vmem:[#allocation2 + $0x38] sm:$0xff]
    %v83 = vld [vmem:[#allocation2 + $0x40] sm:$0xff]
    %v84 = vld [vmem:[#allocation2 + $0x48] sm:$0xff]
    %v85 = vld [vmem:[#allocation2 + $0x50] sm:$0xff]
    %v86 = vld [vmem:[#allocation2 + $0x58] sm:$0xff]
    %v87 = vld [vmem:[#allocation2 + $0x60] sm:$0xff]
    %v88 = vld [vmem:[#allocation2 + $0x68] sm:$0xff]
    %v89 = vld [vmem:[#allocation2 + $0x70] sm:$0xff]
    %v90 = vld [vmem:[#allocation2 + $0x78] sm:$0xff]
    %v91 = vld [vmem:[#allocation2 + $0x80] sm:$0xff]
    %v92 = vld [vmem:[#allocation2 + $0x88] sm:$0xff]
    %v93 = vld [vmem:[#allocation2 + $0x90] sm:$0xff]
    %v94 = vld [vmem:[#allocation2 + $0x98] sm:$0xff]
    %v95 = vld [vmem:[#allocation2 + $0xa0] sm:$0xff]
    %v96 = vld [vmem:[#allocation2 + $0xa8] sm:$0xff]
    %v97 = vld [vmem:[#allocation2 + $0xb0] sm:$0xff]
    %v98 = vld [vmem:[#allocation2 + $0xb8] sm:$0xff]
    %v99 = vld [vmem:[#allocation2 + $0xc0] sm:$0xff]
    %v100 = vld [vmem:[#allocation2 + $0xc8] sm:$0xff]
    %v101 = vld [vmem:[#allocation2 + $0xd0] sm:$0xff]
    %v102 = vld [vmem:[#allocation2 + $0xd8] sm:$0xff]
    %v103 = vld [vmem:[#allocation2 + $0xe0] sm:$0xff]
    %v104 = vld [vmem:[#allocation2 + $0xe8] sm:$0xff]
    %v105 = vld [vmem:[#allocation2 + $0xf0] sm:$0xff]
    %v106 = vld [vmem:[#allocation2 + $0xf8] sm:$0xff]
    %v107 = vld [vmem:[#allocation2 + $0x100] sm:$0xff]
    %v108 = vld [vmem:[#allocation2 + $0x108] sm:$0xff]
    %v109 = vld [vmem:[#allocation2 + $0x110] sm:$0xff]
    %v110 = vld [vmem:[#allocation2 + $0x118] sm:$0xff]
    %v111 = vld [vmem:[#allocation2 + $0x120] sm:$0xff]
    %v112 = vld [vmem:[#allocation2 + $0x128] sm:$0xff]
    %v113 = vld [vmem:[#allocation2 + $0x130] sm:$0xff]
    %v114 = vld [vmem:[#allocation2 + $0x138] sm:$0xff]
    %v115 = vld [vmem:[#allocation2 + $0x140] sm:$0xff]
    %v116 = vld [vmem:[#allocation2 + $0x148] sm:$0xff]
    %v117 = vld [vmem:[#allocation2 + $0x150] sm:$0xff]
    %v118 = vld [vmem:[#allocation2 + $0x158] sm:$0xff]
    %v119 = vld [vmem:[#allocation2 + $0x160] sm:$0xff]
    %v120 = vld [vmem:[#allocation2 + $0x168] sm:$0xff]
    %v121 = vld [vmem:[#allocation2 + $0x170] sm:$0xff]
    %v122 = vld [vmem:[#allocation2 + $0x178] sm:$0xff]
    %v123 = vld [vmem:[#allocation2 + $0x180] sm:$0xff]
    %v124 = vld [vmem:[#allocation2 + $0x188] sm:$0xff]
    %v125 = vld [vmem:[#allocation2 + $0x190] sm:$0xff]
    %v126 = vld [vmem:[#allocation2 + $0x198] sm:$0xff]
    %v127 = vld [vmem:[#allocation2 + $0x1a0] sm:$0xff]
    %v128 = vld [vmem:[#allocation2 + $0x1a8] sm:$0xff]
    %v129 = vld [vmem:[#allocation2 + $0x1b0] sm:$0xff]
    %v130 = vld [vmem:[#allocation2 + $0x1b8] sm:$0xff]
    %v131 = vld [vmem:[#allocation2 + $0x1c0] sm:$0xff]
    %v132 = vld [vmem:[#allocation2 + $0x1c8] sm:$0xff]
    %v133 = vld [vmem:[#allocation2 + $0x1d0] sm:$0xff]
    %v134 = vld [vmem:[#allocation2 + $0x1d8] sm:$0xff]
    %v135 = vld [vmem:[#allocation2 + $0x1e0] sm:$0xff]
    %v136 = vld [vmem:[#allocation2 + $0x1e8] sm:$0xff]
    %v137 = vld [vmem:[#allocation2 + $0x1f0] sm:$0xff]
    %v138 = vld [vmem:[#allocation2 + $0x1f8] sm:$0xff]
    %v139 = vld [vmem:[%s0] sm:$0xff]
    %v140 = vld [vmem:[%s0 + $0x8] sm:$0xff]
    %v141 = vld [vmem:[%s0 + $0x10] sm:$0xff]
    %v142 = vld [vmem:[%s0 + $0x18] sm:$0xff]
    %v143 = vld [vmem:[%s0 + $0x20] sm:$0xff]
    %v144 = vld [vmem:[%s0 + $0x28] sm:$0xff]
    %v145 = vld [vmem:[%s0 + $0x30] sm:$0xff]
    %v146 = vld [vmem:[%s0 + $0x38] sm:$0xff]
    %vm147 = vcmask 64512
    %v148 = vsel %vm147, %v139, -inf
    %149 = vmax.xlane.f32.xlu0 %v148
    %v150 = vpop.xlane.xlu0 %149
    %v151 = vsel %vm147, %v140, -inf
    %152 = vmax.xlane.f32.xlu0 %v151
    %v153 = vpop.xlane.xlu0 %152
    %v154 = vsel %vm147, %v141, -inf
    %155 = vmax.xlane.f32.xlu0 %v154
    %v156 = vpop.xlane.xlu0 %155
    %v157 = vsel %vm147, %v142, -inf
    %158 = vmax.xlane.f32.xlu0 %v157
    %v159 = vpop.xlane.xlu0 %158
    %v160 = vsel %vm147, %v143, -inf
    %161 = vmax.xlane.f32.xlu0 %v160
    %v162 = vpop.xlane.xlu0 %161
    %v163 = vsel %vm147, %v144, -inf
    %164 = vmax.xlane.f32.xlu0 %v163
    %v165 = vpop.xlane.xlu0 %164
    %v166 = vsel %vm147, %v145, -inf
    %167 = vmax.xlane.f32.xlu0 %v166
    %v168 = vpop.xlane.xlu0 %167
    %v169 = vsel %vm147, %v146, -inf
    %170 = vmax.xlane.f32.xlu0 %v169
    %v171 = vpop.xlane.xlu0 %170
    %v172 = vsub.f32 %v139, %v150
    %v173 = vsub.f32 %v140, %v153
    %v174 = vsub.f32 %v141, %v156
    %v175 = vsub.f32 %v142, %v159
    %v176 = vsub.f32 %v143, %v162
    %v177 = vsub.f32 %v144, %v165
    %v178 = vsub.f32 %v145, %v168
    %v179 = vsub.f32 %v146, %v171
    %v180 = vmul.f32 %v172, 1.442695
    %v181 = vpow.pop %v180
    %v182 = vmul.f32 %v173, 1.442695
    %v183 = vpow.pop %v182
    %v184 = vmul.f32 %v174, 1.442695
    %v185 = vpow.pop %v184
    %v186 = vmul.f32 %v175, 1.442695
    %v187 = vpow.pop %v186
    %v188 = vmul.f32 %v176, 1.442695
    %v189 = vpow.pop %v188
    %v190 = vmul.f32 %v177, 1.442695
    %v191 = vpow.pop %v190
    %v192 = vmul.f32 %v178, 1.442695
    %v193 = vpow.pop %v192
    %v194 = vmul.f32 %v179, 1.442695
    %v195 = vpow.pop %v194
    %v196 = vsel %vm147, %v181, 0.0
    %197 = vadd.xlane.f32.xlu0 %v196
    %v198 = vpop.xlane.xlu0 %197
    %v199 = vsel %vm147, %v183, 0.0
    %200 = vadd.xlane.f32.xlu0 %v199
    %v201 = vpop.xlane.xlu0 %200
    %v202 = vsel %vm147, %v185, 0.0
    %203 = vadd.xlane.f32.xlu0 %v202
    %v204 = vpop.xlane.xlu0 %203
    %v205 = vsel %vm147, %v187, 0.0
    %206 = vadd.xlane.f32.xlu0 %v205
    %v207 = vpop.xlane.xlu0 %206
    %v208 = vsel %vm147, %v189, 0.0
    %209 = vadd.xlane.f32.xlu0 %v208
    %v210 = vpop.xlane.xlu0 %209
    %v211 = vsel %vm147, %v191, 0.0
    %212 = vadd.xlane.f32.xlu0 %v211
    %v213 = vpop.xlane.xlu0 %212
    %v214 = vsel %vm147, %v193, 0.0
    %215 = vadd.xlane.f32.xlu0 %v214
    %v216 = vpop.xlane.xlu0 %215
    %v217 = vsel %vm147, %v195, 0.0
    %218 = vadd.xlane.f32.xlu0 %v217
    %v219 = vpop.xlane.xlu0 %218
    %v220 = vrcp.pop %v198
    %v221 = vmul.f32 %v181, %v220
    %v222 = vrcp.pop %v201
    %v223 = vmul.f32 %v183, %v222
    %v224 = vrcp.pop %v204
    %v225 = vmul.f32 %v185, %v224
    %v226 = vrcp.pop %v207
    %v227 = vmul.f32 %v187, %v226
    %v228 = vrcp.pop %v210
    %v229 = vmul.f32 %v189, %v228
    %v230 = vrcp.pop %v213
    %v231 = vmul.f32 %v191, %v230
    %v232 = vrcp.pop %v216
    %v233 = vmul.f32 %v193, %v232
    %v234 = vrcp.pop %v219
    %v235 = vmul.f32 %v195, %v234
    %s236 = sld [smem:[#allocation8]]
    %s237 = sld [smem:[#allocation8 + $0x1]]
    %s238 = sld [smem:[#allocation8 + $0x2]]
    %v239 = vstv %s236
    %v240 = vmul.f32 %v239, %v221
    %v241 = vmul.f32 %v239, %v223
    %v242 = vmul.f32 %v239, %v225
    %v243 = vmul.f32 %v239, %v227
    %v244 = vmul.f32 %v239, %v229
    %v245 = vmul.f32 %v239, %v231
    %v246 = vmul.f32 %v239, %v233
    %v247 = vmul.f32 %v239, %v235
    %v248 = vstv %s237
    %v249 = vadd.f32 %v240, %v248
    %v250 = vadd.f32 %v241, %v248
    %v251 = vadd.f32 %v242, %v248
    %v252 = vadd.f32 %v243, %v248
    %v253 = vadd.f32 %v244, %v248
    %v254 = vadd.f32 %v245, %v248
    %v255 = vadd.f32 %v246, %v248
    %v256 = vadd.f32 %v247, %v248
    %v257 = vlaneseq
    %v258 = vshrl.u32 %v257, 7
    %v259 = vsub.s32 0, %v258
    %v260 = vrot.slane %v249, %v259
    %262 = vbcast.lane.b32.xlu0 %v260, 256
    %v263 = vpop.permute.xlu0 %262
    %v264 = vlaneseq
    %v265 = vshrl.u32 %v264, 7
    %v266 = vsub.s32 1, %v265
    %v267 = vrot.slane %v249, %v266
    %269 = vbcast.lane.b32.xlu0 %v267, 256
    %v270 = vpop.permute.xlu0 %269
    %v271 = vlaneseq
    %v272 = vshrl.u32 %v271, 7
    %v273 = vsub.s32 2, %v272
    %v274 = vrot.slane %v249, %v273
    %276 = vbcast.lane.b32.xlu0 %v274, 256
    %v277 = vpop.permute.xlu0 %276
    %v278 = vlaneseq
    %v279 = vshrl.u32 %v278, 7
    %v280 = vsub.s32 3, %v279
    %v281 = vrot.slane %v249, %v280
    %283 = vbcast.lane.b32.xlu0 %v281, 256
    %v284 = vpop.permute.xlu0 %283
    %v285 = vlaneseq
    %v286 = vshrl.u32 %v285, 7
    %v287 = vsub.s32 4, %v286
    %v288 = vrot.slane %v249, %v287
    %290 = vbcast.lane.b32.xlu0 %v288, 256
    %v291 = vpop.permute.xlu0 %290
    %v292 = vlaneseq
    %v293 = vshrl.u32 %v292, 7
    %v294 = vsub.s32 5, %v293
    %v295 = vrot.slane %v249, %v294
    %297 = vbcast.lane.b32.xlu0 %v295, 256
    %v298 = vpop.permute.xlu0 %297
    %v299 = vlaneseq
    %v300 = vshrl.u32 %v299, 7
    %v301 = vsub.s32 6, %v300
    %v302 = vrot.slane %v249, %v301
    %304 = vbcast.lane.b32.xlu0 %v302, 256
    %v305 = vpop.permute.xlu0 %304
    %v306 = vlaneseq
    %v307 = vshrl.u32 %v306, 7
    %v308 = vsub.s32 7, %v307
    %v309 = vrot.slane %v249, %v308
    %311 = vbcast.lane.b32.xlu0 %v309, 256
    %v312 = vpop.permute.xlu0 %311
    %v313 = vlaneseq
    %v314 = vshrl.u32 %v313, 7
    %v315 = vsub.s32 0, %v314
    %v316 = vrot.slane %v250, %v315
    %318 = vbcast.lane.b32.xlu0 %v316, 256
    %v319 = vpop.permute.xlu0 %318
    %v320 = vlaneseq
    %v321 = vshrl.u32 %v320, 7
    %v322 = vsub.s32 1, %v321
    %v323 = vrot.slane %v250, %v322
    %325 = vbcast.lane.b32.xlu0 %v323, 256
    %v326 = vpop.permute.xlu0 %325
    %v327 = vlaneseq
    %v328 = vshrl.u32 %v327, 7
    %v329 = vsub.s32 2, %v328
    %v330 = vrot.slane %v250, %v329
    %332 = vbcast.lane.b32.xlu0 %v330, 256
    %v333 = vpop.permute.xlu0 %332
    %v334 = vlaneseq
    %v335 = vshrl.u32 %v334, 7
    %v336 = vsub.s32 3, %v335
    %v337 = vrot.slane %v250, %v336
    %339 = vbcast.lane.b32.xlu0 %v337, 256
    %v340 = vpop.permute.xlu0 %339
    %v341 = vlaneseq
    %v342 = vshrl.u32 %v341, 7
    %v343 = vsub.s32 4, %v342
    %v344 = vrot.slane %v250, %v343
    %346 = vbcast.lane.b32.xlu0 %v344, 256
    %v347 = vpop.permute.xlu0 %346
    %v348 = vlaneseq
    %v349 = vshrl.u32 %v348, 7
    %v350 = vsub.s32 5, %v349
    %v351 = vrot.slane %v250, %v350
    %353 = vbcast.lane.b32.xlu0 %v351, 256
    %v354 = vpop.permute.xlu0 %353
    %v355 = vlaneseq
    %v356 = vshrl.u32 %v355, 7
    %v357 = vsub.s32 6, %v356
    %v358 = vrot.slane %v250, %v357
    %360 = vbcast.lane.b32.xlu0 %v358, 256
    %v361 = vpop.permute.xlu0 %360
    %v362 = vlaneseq
    %v363 = vshrl.u32 %v362, 7
    %v364 = vsub.s32 7, %v363
    %v365 = vrot.slane %v250, %v364
    %367 = vbcast.lane.b32.xlu0 %v365, 256
    %v368 = vpop.permute.xlu0 %367
    %v369 = vlaneseq
    %v370 = vshrl.u32 %v369, 7
    %v371 = vsub.s32 0, %v370
    %v372 = vrot.slane %v251, %v371
    %374 = vbcast.lane.b32.xlu0 %v372, 256
    %v375 = vpop.permute.xlu0 %374
    %v376 = vlaneseq
    %v377 = vshrl.u32 %v376, 7
    %v378 = vsub.s32 1, %v377
    %v379 = vrot.slane %v251, %v378
    %381 = vbcast.lane.b32.xlu0 %v379, 256
    %v382 = vpop.permute.xlu0 %381
    %v383 = vlaneseq
    %v384 = vshrl.u32 %v383, 7
    %v385 = vsub.s32 2, %v384
    %v386 = vrot.slane %v251, %v385
    %388 = vbcast.lane.b32.xlu0 %v386, 256
    %v389 = vpop.permute.xlu0 %388
    %v390 = vlaneseq
    %v391 = vshrl.u32 %v390, 7
    %v392 = vsub.s32 3, %v391
    %v393 = vrot.slane %v251, %v392
    %395 = vbcast.lane.b32.xlu0 %v393, 256
    %v396 = vpop.permute.xlu0 %395
    %v397 = vlaneseq
    %v398 = vshrl.u32 %v397, 7
    %v399 = vsub.s32 4, %v398
    %v400 = vrot.slane %v251, %v399
    %402 = vbcast.lane.b32.xlu0 %v400, 256
    %v403 = vpop.permute.xlu0 %402
    %v404 = vlaneseq
    %v405 = vshrl.u32 %v404, 7
    %v406 = vsub.s32 5, %v405
    %v407 = vrot.slane %v251, %v406
    %409 = vbcast.lane.b32.xlu0 %v407, 256
    %v410 = vpop.permute.xlu0 %409
    %v411 = vlaneseq
    %v412 = vshrl.u32 %v411, 7
    %v413 = vsub.s32 6, %v412
    %v414 = vrot.slane %v251, %v413
    %416 = vbcast.lane.b32.xlu0 %v414, 256
    %v417 = vpop.permute.xlu0 %416
    %v418 = vlaneseq
    %v419 = vshrl.u32 %v418, 7
    %v420 = vsub.s32 7, %v419
    %v421 = vrot.slane %v251, %v420
    %423 = vbcast.lane.b32.xlu0 %v421, 256
    %v424 = vpop.permute.xlu0 %423
    %v425 = vlaneseq
    %v426 = vshrl.u32 %v425, 7
    %v427 = vsub.s32 0, %v426
    %v428 = vrot.slane %v252, %v427
    %430 = vbcast.lane.b32.xlu0 %v428, 256
    %v431 = vpop.permute.xlu0 %430
    %v432 = vlaneseq
    %v433 = vshrl.u32 %v432, 7
    %v434 = vsub.s32 1, %v433
    %v435 = vrot.slane %v252, %v434
    %437 = vbcast.lane.b32.xlu0 %v435, 256
    %v438 = vpop.permute.xlu0 %437
    %v439 = vlaneseq
    %v440 = vshrl.u32 %v439, 7
    %v441 = vsub.s32 2, %v440
    %v442 = vrot.slane %v252, %v441
    %444 = vbcast.lane.b32.xlu0 %v442, 256
    %v445 = vpop.permute.xlu0 %444
    %v446 = vlaneseq
    %v447 = vshrl.u32 %v446, 7
    %v448 = vsub.s32 3, %v447
    %v449 = vrot.slane %v252, %v448
    %451 = vbcast.lane.b32.xlu0 %v449, 256
    %v452 = vpop.permute.xlu0 %451
    %v453 = vlaneseq
    %v454 = vshrl.u32 %v453, 7
    %v455 = vsub.s32 4, %v454
    %v456 = vrot.slane %v252, %v455
    %458 = vbcast.lane.b32.xlu0 %v456, 256
    %v459 = vpop.permute.xlu0 %458
    %v460 = vlaneseq
    %v461 = vshrl.u32 %v460, 7
    %v462 = vsub.s32 5, %v461
    %v463 = vrot.slane %v252, %v462
    %465 = vbcast.lane.b32.xlu0 %v463, 256
    %v466 = vpop.permute.xlu0 %465
    %v467 = vlaneseq
    %v468 = vshrl.u32 %v467, 7
    %v469 = vsub.s32 6, %v468
    %v470 = vrot.slane %v252, %v469
    %472 = vbcast.lane.b32.xlu0 %v470, 256
    %v473 = vpop.permute.xlu0 %472
    %v474 = vlaneseq
    %v475 = vshrl.u32 %v474, 7
    %v476 = vsub.s32 7, %v475
    %v477 = vrot.slane %v252, %v476
    %479 = vbcast.lane.b32.xlu0 %v477, 256
    %v480 = vpop.permute.xlu0 %479
    %v481 = vlaneseq
    %v482 = vshrl.u32 %v481, 7
    %v483 = vsub.s32 0, %v482
    %v484 = vrot.slane %v253, %v483
    %486 = vbcast.lane.b32.xlu0 %v484, 256
    %v487 = vpop.permute.xlu0 %486
    %v488 = vlaneseq
    %v489 = vshrl.u32 %v488, 7
    %v490 = vsub.s32 1, %v489
    %v491 = vrot.slane %v253, %v490
    %493 = vbcast.lane.b32.xlu0 %v491, 256
    %v494 = vpop.permute.xlu0 %493
    %v495 = vlaneseq
    %v496 = vshrl.u32 %v495, 7
    %v497 = vsub.s32 2, %v496
    %v498 = vrot.slane %v253, %v497
    %500 = vbcast.lane.b32.xlu0 %v498, 256
    %v501 = vpop.permute.xlu0 %500
    %v502 = vlaneseq
    %v503 = vshrl.u32 %v502, 7
    %v504 = vsub.s32 3, %v503
    %v505 = vrot.slane %v253, %v504
    %507 = vbcast.lane.b32.xlu0 %v505, 256
    %v508 = vpop.permute.xlu0 %507
    %v509 = vlaneseq
    %v510 = vshrl.u32 %v509, 7
    %v511 = vsub.s32 4, %v510
    %v512 = vrot.slane %v253, %v511
    %514 = vbcast.lane.b32.xlu0 %v512, 256
    %v515 = vpop.permute.xlu0 %514
    %v516 = vlaneseq
    %v517 = vshrl.u32 %v516, 7
    %v518 = vsub.s32 5, %v517
    %v519 = vrot.slane %v253, %v518
    %521 = vbcast.lane.b32.xlu0 %v519, 256
    %v522 = vpop.permute.xlu0 %521
    %v523 = vlaneseq
    %v524 = vshrl.u32 %v523, 7
    %v525 = vsub.s32 6, %v524
    %v526 = vrot.slane %v253, %v525
    %528 = vbcast.lane.b32.xlu0 %v526, 256
    %v529 = vpop.permute.xlu0 %528
    %v530 = vlaneseq
    %v531 = vshrl.u32 %v530, 7
    %v532 = vsub.s32 7, %v531
    %v533 = vrot.slane %v253, %v532
    %535 = vbcast.lane.b32.xlu0 %v533, 256
    %v536 = vpop.permute.xlu0 %535
    %v537 = vlaneseq
    %v538 = vshrl.u32 %v537, 7
    %v539 = vsub.s32 0, %v538
    %v540 = vrot.slane %v254, %v539
    %542 = vbcast.lane.b32.xlu0 %v540, 256
    %v543 = vpop.permute.xlu0 %542
    %v544 = vlaneseq
    %v545 = vshrl.u32 %v544, 7
    %v546 = vsub.s32 1, %v545
    %v547 = vrot.slane %v254, %v546
    %549 = vbcast.lane.b32.xlu0 %v547, 256
    %v550 = vpop.permute.xlu0 %549
    %v551 = vlaneseq
    %v552 = vshrl.u32 %v551, 7
    %v553 = vsub.s32 2, %v552
    %v554 = vrot.slane %v254, %v553
    %556 = vbcast.lane.b32.xlu0 %v554, 256
    %v557 = vpop.permute.xlu0 %556
    %v558 = vlaneseq
    %v559 = vshrl.u32 %v558, 7
    %v560 = vsub.s32 3, %v559
    %v561 = vrot.slane %v254, %v560
    %563 = vbcast.lane.b32.xlu0 %v561, 256
    %v564 = vpop.permute.xlu0 %563
    %v565 = vlaneseq
    %v566 = vshrl.u32 %v565, 7
    %v567 = vsub.s32 4, %v566
    %v568 = vrot.slane %v254, %v567
    %570 = vbcast.lane.b32.xlu0 %v568, 256
    %v571 = vpop.permute.xlu0 %570
    %v572 = vlaneseq
    %v573 = vshrl.u32 %v572, 7
    %v574 = vsub.s32 5, %v573
    %v575 = vrot.slane %v254, %v574
    %577 = vbcast.lane.b32.xlu0 %v575, 256
    %v578 = vpop.permute.xlu0 %577
    %v579 = vlaneseq
    %v580 = vshrl.u32 %v579, 7
    %v581 = vsub.s32 6, %v580
    %v582 = vrot.slane %v254, %v581
    %584 = vbcast.lane.b32.xlu0 %v582, 256
    %v585 = vpop.permute.xlu0 %584
    %v586 = vlaneseq
    %v587 = vshrl.u32 %v586, 7
    %v588 = vsub.s32 7, %v587
    %v589 = vrot.slane %v254, %v588
    %591 = vbcast.lane.b32.xlu0 %v589, 256
    %v592 = vpop.permute.xlu0 %591
    %v593 = vlaneseq
    %v594 = vshrl.u32 %v593, 7
    %v595 = vsub.s32 0, %v594
    %v596 = vrot.slane %v255, %v595
    %598 = vbcast.lane.b32.xlu0 %v596, 256
    %v599 = vpop.permute.xlu0 %598
    %v600 = vlaneseq
    %v601 = vshrl.u32 %v600, 7
    %v602 = vsub.s32 1, %v601
    %v603 = vrot.slane %v255, %v602
    %605 = vbcast.lane.b32.xlu0 %v603, 256
    %v606 = vpop.permute.xlu0 %605
    %v607 = vlaneseq
    %v608 = vshrl.u32 %v607, 7
    %v609 = vsub.s32 2, %v608
    %v610 = vrot.slane %v255, %v609
    %612 = vbcast.lane.b32.xlu0 %v610, 256
    %v613 = vpop.permute.xlu0 %612
    %v614 = vlaneseq
    %v615 = vshrl.u32 %v614, 7
    %v616 = vsub.s32 3, %v615
    %v617 = vrot.slane %v255, %v616
    %619 = vbcast.lane.b32.xlu0 %v617, 256
    %v620 = vpop.permute.xlu0 %619
    %v621 = vlaneseq
    %v622 = vshrl.u32 %v621, 7
    %v623 = vsub.s32 4, %v622
    %v624 = vrot.slane %v255, %v623
    %626 = vbcast.lane.b32.xlu0 %v624, 256
    %v627 = vpop.permute.xlu0 %626
    %v628 = vlaneseq
    %v629 = vshrl.u32 %v628, 7
    %v630 = vsub.s32 5, %v629
    %v631 = vrot.slane %v255, %v630
    %633 = vbcast.lane.b32.xlu0 %v631, 256
    %v634 = vpop.permute.xlu0 %633
    %v635 = vlaneseq
    %v636 = vshrl.u32 %v635, 7
    %v637 = vsub.s32 6, %v636
    %v638 = vrot.slane %v255, %v637
    %640 = vbcast.lane.b32.xlu0 %v638, 256
    %v641 = vpop.permute.xlu0 %640
    %v642 = vlaneseq
    %v643 = vshrl.u32 %v642, 7
    %v644 = vsub.s32 7, %v643
    %v645 = vrot.slane %v255, %v644
    %647 = vbcast.lane.b32.xlu0 %v645, 256
    %v648 = vpop.permute.xlu0 %647
    %v649 = vlaneseq
    %v650 = vshrl.u32 %v649, 7
    %v651 = vsub.s32 0, %v650
    %v652 = vrot.slane %v256, %v651
    %654 = vbcast.lane.b32.xlu0 %v652, 256
    %v655 = vpop.permute.xlu0 %654
    %v656 = vlaneseq
    %v657 = vshrl.u32 %v656, 7
    %v658 = vsub.s32 1, %v657
    %v659 = vrot.slane %v256, %v658
    %661 = vbcast.lane.b32.xlu0 %v659, 256
    %v662 = vpop.permute.xlu0 %661
    %v663 = vlaneseq
    %v664 = vshrl.u32 %v663, 7
    %v665 = vsub.s32 2, %v664
    %v666 = vrot.slane %v256, %v665
    %668 = vbcast.lane.b32.xlu0 %v666, 256
    %v669 = vpop.permute.xlu0 %668
    %v670 = vlaneseq
    %v671 = vshrl.u32 %v670, 7
    %v672 = vsub.s32 3, %v671
    %v673 = vrot.slane %v256, %v672
    %675 = vbcast.lane.b32.xlu0 %v673, 256
    %v676 = vpop.permute.xlu0 %675
    %v677 = vlaneseq
    %v678 = vshrl.u32 %v677, 7
    %v679 = vsub.s32 4, %v678
    %v680 = vrot.slane %v256, %v679
    %682 = vbcast.lane.b32.xlu0 %v680, 256
    %v683 = vpop.permute.xlu0 %682
    %v684 = vlaneseq
    %v685 = vshrl.u32 %v684, 7
    %v686 = vsub.s32 5, %v685
    %v687 = vrot.slane %v256, %v686
    %689 = vbcast.lane.b32.xlu0 %v687, 256
    %v690 = vpop.permute.xlu0 %689
    %v691 = vlaneseq
    %v692 = vshrl.u32 %v691, 7
    %v693 = vsub.s32 6, %v692
    %v694 = vrot.slane %v256, %v693
    %696 = vbcast.lane.b32.xlu0 %v694, 256
    %v697 = vpop.permute.xlu0 %696
    %v698 = vlaneseq
    %v699 = vshrl.u32 %v698, 7
    %v700 = vsub.s32 7, %v699
    %v701 = vrot.slane %v256, %v700
    %703 = vbcast.lane.b32.xlu0 %v701, 256
    %v704 = vpop.permute.xlu0 %703
    %v713 = vcombine.high %v221, %v221
    %v715 = vunpack.c.l.s4 1966171168
    %v716 = vunpack.c.0.s8 %v715
    %v717 = vlaneseq
    %v718 = vshrl.u32 %v717, 7
    %v719 = vsub.s32 %v716, %v718
    %v720 = vrot.slane %v221, %v719
    %v722 = vunpack.c.l.s4 1966171168
    %v723 = vunpack.c.0.s8 %v722
    %v724 = vlaneseq
    %v725 = vshrl.u32 %v724, 7
    %v726 = vsub.s32 %v723, %v725
    %v727 = vrot.slane %v713, %v726
    %v728 = vcombine.high %v720, %v720
    %v729 = vcombine.high %v727, %v727
    %v731 = vunpack.c.l.s4 1966171168
    %v732 = vunpack.c.0.s8 %v731
    %v733 = vlaneseq
    %v734 = vshrl.u32 %v733, 7
    %v735 = vsub.s32 %v732, %v734
    %v736 = vrot.slane %v720, %v735
    %v738 = vunpack.c.l.s4 1966171168
    %v739 = vunpack.c.0.s8 %v738
    %v740 = vlaneseq
    %v741 = vshrl.u32 %v740, 7
    %v742 = vsub.s32 %v739, %v741
    %v743 = vrot.slane %v727, %v742
    %v745 = vunpack.c.l.s4 1966171168
    %v746 = vunpack.c.0.s8 %v745
    %v747 = vlaneseq
    %v748 = vshrl.u32 %v747, 7
    %v749 = vsub.s32 %v746, %v748
    %v750 = vrot.slane %v728, %v749
    %v752 = vunpack.c.l.s4 1966171168
    %v753 = vunpack.c.0.s8 %v752
    %v754 = vlaneseq
    %v755 = vshrl.u32 %v754, 7
    %v756 = vsub.s32 %v753, %v755
    %v757 = vrot.slane %v729, %v756
    %v758 = vcombine.high %v736, %v736
    %v759 = vcombine.high %v743, %v743
    %v760 = vcombine.high %v750, %v750
    %v761 = vcombine.high %v757, %v757
    %v762 = vcombine.high %v223, %v223
    %v764 = vunpack.c.l.s4 1966171168
    %v765 = vunpack.c.0.s8 %v764
    %v766 = vlaneseq
    %v767 = vshrl.u32 %v766, 7
    %v768 = vsub.s32 %v765, %v767
    %v769 = vrot.slane %v223, %v768
    %v771 = vunpack.c.l.s4 1966171168
    %v772 = vunpack.c.0.s8 %v771
    %v773 = vlaneseq
    %v774 = vshrl.u32 %v773, 7
    %v775 = vsub.s32 %v772, %v774
    %v776 = vrot.slane %v762, %v775
    %v777 = vcombine.high %v769, %v769
    %v778 = vcombine.high %v776, %v776
    %v780 = vunpack.c.l.s4 1966171168
    %v781 = vunpack.c.0.s8 %v780
    %v782 = vlaneseq
    %v783 = vshrl.u32 %v782, 7
    %v784 = vsub.s32 %v781, %v783
    %v785 = vrot.slane %v769, %v784
    %v787 = vunpack.c.l.s4 1966171168
    %v788 = vunpack.c.0.s8 %v787
    %v789 = vlaneseq
    %v790 = vshrl.u32 %v789, 7
    %v791 = vsub.s32 %v788, %v790
    %v792 = vrot.slane %v776, %v791
    %v794 = vunpack.c.l.s4 1966171168
    %v795 = vunpack.c.0.s8 %v794
    %v796 = vlaneseq
    %v797 = vshrl.u32 %v796, 7
    %v798 = vsub.s32 %v795, %v797
    %v799 = vrot.slane %v777, %v798
    %v801 = vunpack.c.l.s4 1966171168
    %v802 = vunpack.c.0.s8 %v801
    %v803 = vlaneseq
    %v804 = vshrl.u32 %v803, 7
    %v805 = vsub.s32 %v802, %v804
    %v806 = vrot.slane %v778, %v805
    %v807 = vcombine.high %v785, %v785
    %v808 = vcombine.high %v792, %v792
    %v809 = vcombine.high %v799, %v799
    %v810 = vcombine.high %v806, %v806
    %v811 = vcombine.high %v225, %v225
    %v813 = vunpack.c.l.s4 1966171168
    %v814 = vunpack.c.0.s8 %v813
    %v815 = vlaneseq
    %v816 = vshrl.u32 %v815, 7
    %v817 = vsub.s32 %v814, %v816
    %v818 = vrot.slane %v225, %v817
    %v820 = vunpack.c.l.s4 1966171168
    %v821 = vunpack.c.0.s8 %v820
    %v822 = vlaneseq
    %v823 = vshrl.u32 %v822, 7
    %v824 = vsub.s32 %v821, %v823
    %v825 = vrot.slane %v811, %v824
    %v826 = vcombine.high %v818, %v818
    %v827 = vcombine.high %v825, %v825
    %v829 = vunpack.c.l.s4 1966171168
    %v830 = vunpack.c.0.s8 %v829
    %v831 = vlaneseq
    %v832 = vshrl.u32 %v831, 7
    %v833 = vsub.s32 %v830, %v832
    %v834 = vrot.slane %v818, %v833
    %v836 = vunpack.c.l.s4 1966171168
    %v837 = vunpack.c.0.s8 %v836
    %v838 = vlaneseq
    %v839 = vshrl.u32 %v838, 7
    %v840 = vsub.s32 %v837, %v839
    %v841 = vrot.slane %v825, %v840
    %v843 = vunpack.c.l.s4 1966171168
    %v844 = vunpack.c.0.s8 %v843
    %v845 = vlaneseq
    %v846 = vshrl.u32 %v845, 7
    %v847 = vsub.s32 %v844, %v846
    %v848 = vrot.slane %v826, %v847
    %v850 = vunpack.c.l.s4 1966171168
    %v851 = vunpack.c.0.s8 %v850
    %v852 = vlaneseq
    %v853 = vshrl.u32 %v852, 7
    %v854 = vsub.s32 %v851, %v853
    %v855 = vrot.slane %v827, %v854
    %v856 = vcombine.high %v834, %v834
    %v857 = vcombine.high %v841, %v841
    %v858 = vcombine.high %v848, %v848
    %v859 = vcombine.high %v855, %v855
    %v860 = vcombine.high %v227, %v227
    %v862 = vunpack.c.l.s4 1966171168
    %v863 = vunpack.c.0.s8 %v862
    %v864 = vlaneseq
    %v865 = vshrl.u32 %v864, 7
    %v866 = vsub.s32 %v863, %v865
    %v867 = vrot.slane %v227, %v866
    %v869 = vunpack.c.l.s4 1966171168
    %v870 = vunpack.c.0.s8 %v869
    %v871 = vlaneseq
    %v872 = vshrl.u32 %v871, 7
    %v873 = vsub.s32 %v870, %v872
    %v874 = vrot.slane %v860, %v873
    %v875 = vcombine.high %v867, %v867
    %v876 = vcombine.high %v874, %v874
    %v878 = vunpack.c.l.s4 1966171168
    %v879 = vunpack.c.0.s8 %v878
    %v880 = vlaneseq
    %v881 = vshrl.u32 %v880, 7
    %v882 = vsub.s32 %v879, %v881
    %v883 = vrot.slane %v867, %v882
    %v885 = vunpack.c.l.s4 1966171168
    %v886 = vunpack.c.0.s8 %v885
    %v887 = vlaneseq
    %v888 = vshrl.u32 %v887, 7
    %v889 = vsub.s32 %v886, %v888
    %v890 = vrot.slane %v874, %v889
    %v892 = vunpack.c.l.s4 1966171168
    %v893 = vunpack.c.0.s8 %v892
    %v894 = vlaneseq
    %v895 = vshrl.u32 %v894, 7
    %v896 = vsub.s32 %v893, %v895
    %v897 = vrot.slane %v875, %v896
    %v899 = vunpack.c.l.s4 1966171168
    %v900 = vunpack.c.0.s8 %v899
    %v901 = vlaneseq
    %v902 = vshrl.u32 %v901, 7
    %v903 = vsub.s32 %v900, %v902
    %v904 = vrot.slane %v876, %v903
    %v905 = vcombine.high %v883, %v883
    %v906 = vcombine.high %v890, %v890
    %v907 = vcombine.high %v897, %v897
    %v908 = vcombine.high %v904, %v904
    %v909 = vcombine.high %v229, %v229
    %v911 = vunpack.c.l.s4 1966171168
    %v912 = vunpack.c.0.s8 %v911
    %v913 = vlaneseq
    %v914 = vshrl.u32 %v913, 7
    %v915 = vsub.s32 %v912, %v914
    %v916 = vrot.slane %v229, %v915
    %v918 = vunpack.c.l.s4 1966171168
    %v919 = vunpack.c.0.s8 %v918
    %v920 = vlaneseq
    %v921 = vshrl.u32 %v920, 7
    %v922 = vsub.s32 %v919, %v921
    %v923 = vrot.slane %v909, %v922
    %v924 = vcombine.high %v916, %v916
    %v925 = vcombine.high %v923, %v923
    %v927 = vunpack.c.l.s4 1966171168
    %v928 = vunpack.c.0.s8 %v927
    %v929 = vlaneseq
    %v930 = vshrl.u32 %v929, 7
    %v931 = vsub.s32 %v928, %v930
    %v932 = vrot.slane %v916, %v931
    %v934 = vunpack.c.l.s4 1966171168
    %v935 = vunpack.c.0.s8 %v934
    %v936 = vlaneseq
    %v937 = vshrl.u32 %v936, 7
    %v938 = vsub.s32 %v935, %v937
    %v939 = vrot.slane %v923, %v938
    %v941 = vunpack.c.l.s4 1966171168
    %v942 = vunpack.c.0.s8 %v941
    %v943 = vlaneseq
    %v944 = vshrl.u32 %v943, 7
    %v945 = vsub.s32 %v942, %v944
    %v946 = vrot.slane %v924, %v945
    %v948 = vunpack.c.l.s4 1966171168
    %v949 = vunpack.c.0.s8 %v948
    %v950 = vlaneseq
    %v951 = vshrl.u32 %v950, 7
    %v952 = vsub.s32 %v949, %v951
    %v953 = vrot.slane %v925, %v952
    %v954 = vcombine.high %v932, %v932
    %v955 = vcombine.high %v939, %v939
    %v956 = vcombine.high %v946, %v946
    %v957 = vcombine.high %v953, %v953
    %v958 = vcombine.high %v231, %v231
    %v960 = vunpack.c.l.s4 1966171168
    %v961 = vunpack.c.0.s8 %v960
    %v962 = vlaneseq
    %v963 = vshrl.u32 %v962, 7
    %v964 = vsub.s32 %v961, %v963
    %v965 = vrot.slane %v231, %v964
    %v967 = vunpack.c.l.s4 1966171168
    %v968 = vunpack.c.0.s8 %v967
    %v969 = vlaneseq
    %v970 = vshrl.u32 %v969, 7
    %v971 = vsub.s32 %v968, %v970
    %v972 = vrot.slane %v958, %v971
    %v973 = vcombine.high %v965, %v965
    %v974 = vcombine.high %v972, %v972
    %v976 = vunpack.c.l.s4 1966171168
    %v977 = vunpack.c.0.s8 %v976
    %v978 = vlaneseq
    %v979 = vshrl.u32 %v978, 7
    %v980 = vsub.s32 %v977, %v979
    %v981 = vrot.slane %v965, %v980
    %v983 = vunpack.c.l.s4 1966171168
    %v984 = vunpack.c.0.s8 %v983
    %v985 = vlaneseq
    %v986 = vshrl.u32 %v985, 7
    %v987 = vsub.s32 %v984, %v986
    %v988 = vrot.slane %v972, %v987
    %v990 = vunpack.c.l.s4 1966171168
    %v991 = vunpack.c.0.s8 %v990
    %v992 = vlaneseq
    %v993 = vshrl.u32 %v992, 7
    %v994 = vsub.s32 %v991, %v993
    %v995 = vrot.slane %v973, %v994
    %v997 = vunpack.c.l.s4 1966171168
    %v998 = vunpack.c.0.s8 %v997
    %v999 = vlaneseq
    %v1000 = vshrl.u32 %v999, 7
    %v1001 = vsub.s32 %v998, %v1000
    %v1002 = vrot.slane %v974, %v1001
    %v1003 = vcombine.high %v981, %v981
    %v1004 = vcombine.high %v988, %v988
    %v1005 = vcombine.high %v995, %v995
    %v1006 = vcombine.high %v1002, %v1002
    %v1007 = vcombine.high %v233, %v233
    %v1009 = vunpack.c.l.s4 1966171168
    %v1010 = vunpack.c.0.s8 %v1009
    %v1011 = vlaneseq
    %v1012 = vshrl.u32 %v1011, 7
    %v1013 = vsub.s32 %v1010, %v1012
    %v1014 = vrot.slane %v233, %v1013
    %v1016 = vunpack.c.l.s4 1966171168
    %v1017 = vunpack.c.0.s8 %v1016
    %v1018 = vlaneseq
    %v1019 = vshrl.u32 %v1018, 7
    %v1020 = vsub.s32 %v1017, %v1019
    %v1021 = vrot.slane %v1007, %v1020
    %v1022 = vcombine.high %v1014, %v1014
    %v1023 = vcombine.high %v1021, %v1021
    %v1025 = vunpack.c.l.s4 1966171168
    %v1026 = vunpack.c.0.s8 %v1025
    %v1027 = vlaneseq
    %v1028 = vshrl.u32 %v1027, 7
    %v1029 = vsub.s32 %v1026, %v1028
    %v1030 = vrot.slane %v1014, %v1029
    %v1032 = vunpack.c.l.s4 1966171168
    %v1033 = vunpack.c.0.s8 %v1032
    %v1034 = vlaneseq
    %v1035 = vshrl.u32 %v1034, 7
    %v1036 = vsub.s32 %v1033, %v1035
    %v1037 = vrot.slane %v1021, %v1036
    %v1039 = vunpack.c.l.s4 1966171168
    %v1040 = vunpack.c.0.s8 %v1039
    %v1041 = vlaneseq
    %v1042 = vshrl.u32 %v1041, 7
    %v1043 = vsub.s32 %v1040, %v1042
    %v1044 = vrot.slane %v1022, %v1043
    %v1046 = vunpack.c.l.s4 1966171168
    %v1047 = vunpack.c.0.s8 %v1046
    %v1048 = vlaneseq
    %v1049 = vshrl.u32 %v1048, 7
    %v1050 = vsub.s32 %v1047, %v1049
    %v1051 = vrot.slane %v1023, %v1050
    %v1052 = vcombine.high %v1030, %v1030
    %v1053 = vcombine.high %v1037, %v1037
    %v1054 = vcombine.high %v1044, %v1044
    %v1055 = vcombine.high %v1051, %v1051
    %v1056 = vcombine.high %v235, %v235
    %v1058 = vunpack.c.l.s4 1966171168
    %v1059 = vunpack.c.0.s8 %v1058
    %v1060 = vlaneseq
    %v1061 = vshrl.u32 %v1060, 7
    %v1062 = vsub.s32 %v1059, %v1061
    %v1063 = vrot.slane %v235, %v1062
    %v1065 = vunpack.c.l.s4 1966171168
    %v1066 = vunpack.c.0.s8 %v1065
    %v1067 = vlaneseq
    %v1068 = vshrl.u32 %v1067, 7
    %v1069 = vsub.s32 %v1066, %v1068
    %v1070 = vrot.slane %v1056, %v1069
    %v1071 = vcombine.high %v1063, %v1063
    %v1072 = vcombine.high %v1070, %v1070
    %v1074 = vunpack.c.l.s4 1966171168
    %v1075 = vunpack.c.0.s8 %v1074
    %v1076 = vlaneseq
    %v1077 = vshrl.u32 %v1076, 7
    %v1078 = vsub.s32 %v1075, %v1077
    %v1079 = vrot.slane %v1063, %v1078
    %v1081 = vunpack.c.l.s4 1966171168
    %v1082 = vunpack.c.0.s8 %v1081
    %v1083 = vlaneseq
    %v1084 = vshrl.u32 %v1083, 7
    %v1085 = vsub.s32 %v1082, %v1084
    %v1086 = vrot.slane %v1070, %v1085
    %v1088 = vunpack.c.l.s4 1966171168
    %v1089 = vunpack.c.0.s8 %v1088
    %v1090 = vlaneseq
    %v1091 = vshrl.u32 %v1090, 7
    %v1092 = vsub.s32 %v1089, %v1091
    %v1093 = vrot.slane %v1071, %v1092
    %v1095 = vunpack.c.l.s4 1966171168
    %v1096 = vunpack.c.0.s8 %v1095
    %v1097 = vlaneseq
    %v1098 = vshrl.u32 %v1097, 7
    %v1099 = vsub.s32 %v1096, %v1098
    %v1100 = vrot.slane %v1072, %v1099
    %v1101 = vcombine.high %v1079, %v1079
    %v1102 = vcombine.high %v1086, %v1086
    %v1103 = vcombine.high %v1093, %v1093
    %v1104 = vcombine.high %v1100, %v1100
    %v1105 = vlaneseq
    %v1106 = vshrl.u32 %v1105, 7
    %v1107 = vsub.s32 0, %v1106
    %v1108 = vrot.slane %v736, %v1107
    %v1109 = vlaneseq
    %v1110 = vshrl.u32 %v1109, 7
    %v1111 = vsub.s32 0, %v1110
    %v1112 = vrot.slane %v750, %v1111
    %v1113 = vlaneseq
    %v1114 = vshrl.u32 %v1113, 7
    %v1115 = vsub.s32 0, %v1114
    %v1116 = vrot.slane %v758, %v1115
    %v1117 = vlaneseq
    %v1118 = vshrl.u32 %v1117, 7
    %v1119 = vsub.s32 0, %v1118
    %v1120 = vrot.slane %v760, %v1119
    %v1121 = vlaneseq
    %v1122 = vshrl.u32 %v1121, 7
    %v1123 = vsub.s32 0, %v1122
    %v1124 = vrot.slane %v743, %v1123
    %v1125 = vlaneseq
    %v1126 = vshrl.u32 %v1125, 7
    %v1127 = vsub.s32 0, %v1126
    %v1128 = vrot.slane %v757, %v1127
    %v1129 = vlaneseq
    %v1130 = vshrl.u32 %v1129, 7
    %v1131 = vsub.s32 0, %v1130
    %v1132 = vrot.slane %v759, %v1131
    %v1133 = vlaneseq
    %v1134 = vshrl.u32 %v1133, 7
    %v1135 = vsub.s32 0, %v1134
    %v1136 = vrot.slane %v761, %v1135
    %v1137 = vlaneseq
    %v1138 = vshrl.u32 %v1137, 7
    %v1139 = vsub.s32 0, %v1138
    %v1140 = vrot.slane %v785, %v1139
    %v1141 = vlaneseq
    %v1142 = vshrl.u32 %v1141, 7
    %v1143 = vsub.s32 0, %v1142
    %v1144 = vrot.slane %v799, %v1143
    %v1145 = vlaneseq
    %v1146 = vshrl.u32 %v1145, 7
    %v1147 = vsub.s32 0, %v1146
    %v1148 = vrot.slane %v807, %v1147
    %v1149 = vlaneseq
    %v1150 = vshrl.u32 %v1149, 7
    %v1151 = vsub.s32 0, %v1150
    %v1152 = vrot.slane %v809, %v1151
    %v1153 = vlaneseq
    %v1154 = vshrl.u32 %v1153, 7
    %v1155 = vsub.s32 0, %v1154
    %v1156 = vrot.slane %v792, %v1155
    %v1157 = vlaneseq
    %v1158 = vshrl.u32 %v1157, 7
    %v1159 = vsub.s32 0, %v1158
    %v1160 = vrot.slane %v806, %v1159
    %v1161 = vlaneseq
    %v1162 = vshrl.u32 %v1161, 7
    %v1163 = vsub.s32 0, %v1162
    %v1164 = vrot.slane %v808, %v1163
    %v1165 = vlaneseq
    %v1166 = vshrl.u32 %v1165, 7
    %v1167 = vsub.s32 0, %v1166
    %v1168 = vrot.slane %v810, %v1167
    %v1169 = vlaneseq
    %v1170 = vshrl.u32 %v1169, 7
    %v1171 = vsub.s32 0, %v1170
    %v1172 = vrot.slane %v834, %v1171
    %v1173 = vlaneseq
    %v1174 = vshrl.u32 %v1173, 7
    %v1175 = vsub.s32 0, %v1174
    %v1176 = vrot.slane %v848, %v1175
    %v1177 = vlaneseq
    %v1178 = vshrl.u32 %v1177, 7
    %v1179 = vsub.s32 0, %v1178
    %v1180 = vrot.slane %v856, %v1179
    %v1181 = vlaneseq
    %v1182 = vshrl.u32 %v1181, 7
    %v1183 = vsub.s32 0, %v1182
    %v1184 = vrot.slane %v858, %v1183
    %v1185 = vlaneseq
    %v1186 = vshrl.u32 %v1185, 7
    %v1187 = vsub.s32 0, %v1186
    %v1188 = vrot.slane %v841, %v1187
    %v1189 = vlaneseq
    %v1190 = vshrl.u32 %v1189, 7
    %v1191 = vsub.s32 0, %v1190
    %v1192 = vrot.slane %v855, %v1191
    %v1193 = vlaneseq
    %v1194 = vshrl.u32 %v1193, 7
    %v1195 = vsub.s32 0, %v1194
    %v1196 = vrot.slane %v857, %v1195
    %v1197 = vlaneseq
    %v1198 = vshrl.u32 %v1197, 7
    %v1199 = vsub.s32 0, %v1198
    %v1200 = vrot.slane %v859, %v1199
    %v1201 = vlaneseq
    %v1202 = vshrl.u32 %v1201, 7
    %v1203 = vsub.s32 0, %v1202
    %v1204 = vrot.slane %v883, %v1203
    %v1205 = vlaneseq
    %v1206 = vshrl.u32 %v1205, 7
    %v1207 = vsub.s32 0, %v1206
    %v1208 = vrot.slane %v897, %v1207
    %v1209 = vlaneseq
    %v1210 = vshrl.u32 %v1209, 7
    %v1211 = vsub.s32 0, %v1210
    %v1212 = vrot.slane %v905, %v1211
    %v1213 = vlaneseq
    %v1214 = vshrl.u32 %v1213, 7
    %v1215 = vsub.s32 0, %v1214
    %v1216 = vrot.slane %v907, %v1215
    %v1217 = vlaneseq
    %v1218 = vshrl.u32 %v1217, 7
    %v1219 = vsub.s32 0, %v1218
    %v1220 = vrot.slane %v890, %v1219
    %v1221 = vlaneseq
    %v1222 = vshrl.u32 %v1221, 7
    %v1223 = vsub.s32 0, %v1222
    %v1224 = vrot.slane %v904, %v1223
    %v1225 = vlaneseq
    %v1226 = vshrl.u32 %v1225, 7
    %v1227 = vsub.s32 0, %v1226
    %v1228 = vrot.slane %v906, %v1227
    %v1229 = vlaneseq
    %v1230 = vshrl.u32 %v1229, 7
    %v1231 = vsub.s32 0, %v1230
    %v1232 = vrot.slane %v908, %v1231
    %v1233 = vlaneseq
    %v1234 = vshrl.u32 %v1233, 7
    %v1235 = vsub.s32 0, %v1234
    %v1236 = vrot.slane %v932, %v1235
    %v1237 = vlaneseq
    %v1238 = vshrl.u32 %v1237, 7
    %v1239 = vsub.s32 0, %v1238
    %v1240 = vrot.slane %v946, %v1239
    %v1241 = vlaneseq
    %v1242 = vshrl.u32 %v1241, 7
    %v1243 = vsub.s32 0, %v1242
    %v1244 = vrot.slane %v954, %v1243
    %v1245 = vlaneseq
    %v1246 = vshrl.u32 %v1245, 7
    %v1247 = vsub.s32 0, %v1246
    %v1248 = vrot.slane %v956, %v1247
    %v1249 = vlaneseq
    %v1250 = vshrl.u32 %v1249, 7
    %v1251 = vsub.s32 0, %v1250
    %v1252 = vrot.slane %v939, %v1251
    %v1253 = vlaneseq
    %v1254 = vshrl.u32 %v1253, 7
    %v1255 = vsub.s32 0, %v1254
    %v1256 = vrot.slane %v953, %v1255
    %v1257 = vlaneseq
    %v1258 = vshrl.u32 %v1257, 7
    %v1259 = vsub.s32 0, %v1258
    %v1260 = vrot.slane %v955, %v1259
    %v1261 = vlaneseq
    %v1262 = vshrl.u32 %v1261, 7
    %v1263 = vsub.s32 0, %v1262
    %v1264 = vrot.slane %v957, %v1263
    %v1265 = vlaneseq
    %v1266 = vshrl.u32 %v1265, 7
    %v1267 = vsub.s32 0, %v1266
    %v1268 = vrot.slane %v981, %v1267
    %v1269 = vlaneseq
    %v1270 = vshrl.u32 %v1269, 7
    %v1271 = vsub.s32 0, %v1270
    %v1272 = vrot.slane %v995, %v1271
    %v1273 = vlaneseq
    %v1274 = vshrl.u32 %v1273, 7
    %v1275 = vsub.s32 0, %v1274
    %v1276 = vrot.slane %v1003, %v1275
    %v1277 = vlaneseq
    %v1278 = vshrl.u32 %v1277, 7
    %v1279 = vsub.s32 0, %v1278
    %v1280 = vrot.slane %v1005, %v1279
    %v1281 = vlaneseq
    %v1282 = vshrl.u32 %v1281, 7
    %v1283 = vsub.s32 0, %v1282
    %v1284 = vrot.slane %v988, %v1283
    %v1285 = vlaneseq
    %v1286 = vshrl.u32 %v1285, 7
    %v1287 = vsub.s32 0, %v1286
    %v1288 = vrot.slane %v1002, %v1287
    %v1289 = vlaneseq
    %v1290 = vshrl.u32 %v1289, 7
    %v1291 = vsub.s32 0, %v1290
    %v1292 = vrot.slane %v1004, %v1291
    %v1293 = vlaneseq
    %v1294 = vshrl.u32 %v1293, 7
    %v1295 = vsub.s32 0, %v1294
    %v1296 = vrot.slane %v1006, %v1295
    %v1297 = vlaneseq
    %v1298 = vshrl.u32 %v1297, 7
    %v1299 = vsub.s32 0, %v1298
    %v1300 = vrot.slane %v1030, %v1299
    %v1301 = vlaneseq
    %v1302 = vshrl.u32 %v1301, 7
    %v1303 = vsub.s32 0, %v1302
    %v1304 = vrot.slane %v1044, %v1303
    %v1305 = vlaneseq
    %v1306 = vshrl.u32 %v1305, 7
    %v1307 = vsub.s32 0, %v1306
    %v1308 = vrot.slane %v1052, %v1307
    %v1309 = vlaneseq
    %v1310 = vshrl.u32 %v1309, 7
    %v1311 = vsub.s32 0, %v1310
    %v1312 = vrot.slane %v1054, %v1311
    %v1313 = vlaneseq
    %v1314 = vshrl.u32 %v1313, 7
    %v1315 = vsub.s32 0, %v1314
    %v1316 = vrot.slane %v1037, %v1315
    %v1317 = vlaneseq
    %v1318 = vshrl.u32 %v1317, 7
    %v1319 = vsub.s32 0, %v1318
    %v1320 = vrot.slane %v1051, %v1319
    %v1321 = vlaneseq
    %v1322 = vshrl.u32 %v1321, 7
    %v1323 = vsub.s32 0, %v1322
    %v1324 = vrot.slane %v1053, %v1323
    %v1325 = vlaneseq
    %v1326 = vshrl.u32 %v1325, 7
    %v1327 = vsub.s32 0, %v1326
    %v1328 = vrot.slane %v1055, %v1327
    %v1329 = vlaneseq
    %v1330 = vshrl.u32 %v1329, 7
    %v1331 = vsub.s32 0, %v1330
    %v1332 = vrot.slane %v1079, %v1331
    %v1333 = vlaneseq
    %v1334 = vshrl.u32 %v1333, 7
    %v1335 = vsub.s32 0, %v1334
    %v1336 = vrot.slane %v1093, %v1335
    %v1337 = vlaneseq
    %v1338 = vshrl.u32 %v1337, 7
    %v1339 = vsub.s32 0, %v1338
    %v1340 = vrot.slane %v1101, %v1339
    %v1341 = vlaneseq
    %v1342 = vshrl.u32 %v1341, 7
    %v1343 = vsub.s32 0, %v1342
    %v1344 = vrot.slane %v1103, %v1343
    %v1345 = vlaneseq
    %v1346 = vshrl.u32 %v1345, 7
    %v1347 = vsub.s32 0, %v1346
    %v1348 = vrot.slane %v1086, %v1347
    %v1349 = vlaneseq
    %v1350 = vshrl.u32 %v1349, 7
    %v1351 = vsub.s32 0, %v1350
    %v1352 = vrot.slane %v1100, %v1351
    %v1353 = vlaneseq
    %v1354 = vshrl.u32 %v1353, 7
    %v1355 = vsub.s32 0, %v1354
    %v1356 = vrot.slane %v1102, %v1355
    %v1357 = vlaneseq
    %v1358 = vshrl.u32 %v1357, 7
    %v1359 = vsub.s32 0, %v1358
    %v1360 = vrot.slane %v1104, %v1359
    %v1425 = vmul.f32 %v263, %v1108
    %v1426 = vmul.f32 %v270, %v1112
    %v1427 = vmul.f32 %v277, %v1116
    %v1428 = vmul.f32 %v284, %v1120
    %v1429 = vmul.f32 %v291, %v1124
    %v1430 = vmul.f32 %v298, %v1128
    %v1431 = vmul.f32 %v305, %v1132
    %v1432 = vmul.f32 %v312, %v1136
    %v1433 = vmul.f32 %v319, %v1140
    %v1434 = vmul.f32 %v326, %v1144
    %v1435 = vmul.f32 %v333, %v1148
    %v1436 = vmul.f32 %v340, %v1152
    %v1437 = vmul.f32 %v347, %v1156
    %v1438 = vmul.f32 %v354, %v1160
    %v1439 = vmul.f32 %v361, %v1164
    %v1440 = vmul.f32 %v368, %v1168
    %v1441 = vmul.f32 %v375, %v1172
    %v1442 = vmul.f32 %v382, %v1176
    %v1443 = vmul.f32 %v389, %v1180
    %v1444 = vmul.f32 %v396, %v1184
    %v1445 = vmul.f32 %v403, %v1188
    %v1446 = vmul.f32 %v410, %v1192
    %v1447 = vmul.f32 %v417, %v1196
    %v1448 = vmul.f32 %v424, %v1200
    %v1449 = vmul.f32 %v431, %v1204
    %v1450 = vmul.f32 %v438, %v1208
    %v1451 = vmul.f32 %v445, %v1212
    %v1452 = vmul.f32 %v452, %v1216
    %v1453 = vmul.f32 %v459, %v1220
    %v1454 = vmul.f32 %v466, %v1224
    %v1455 = vmul.f32 %v473, %v1228
    %v1456 = vmul.f32 %v480, %v1232
    %v1457 = vmul.f32 %v487, %v1236
    %v1458 = vmul.f32 %v494, %v1240
    %v1459 = vmul.f32 %v501, %v1244
    %v1460 = vmul.f32 %v508, %v1248
    %v1461 = vmul.f32 %v515, %v1252
    %v1462 = vmul.f32 %v522, %v1256
    %v1463 = vmul.f32 %v529, %v1260
    %v1464 = vmul.f32 %v536, %v1264
    %v1465 = vmul.f32 %v543, %v1268
    %v1466 = vmul.f32 %v550, %v1272
    %v1467 = vmul.f32 %v557, %v1276
    %v1468 = vmul.f32 %v564, %v1280
    %v1469 = vmul.f32 %v571, %v1284
    %v1470 = vmul.f32 %v578, %v1288
    %v1471 = vmul.f32 %v585, %v1292
    %v1472 = vmul.f32 %v592, %v1296
    %v1473 = vmul.f32 %v599, %v1300
    %v1474 = vmul.f32 %v606, %v1304
    %v1475 = vmul.f32 %v613, %v1308
    %v1476 = vmul.f32 %v620, %v1312
    %v1477 = vmul.f32 %v627, %v1316
    %v1478 = vmul.f32 %v634, %v1320
    %v1479 = vmul.f32 %v641, %v1324
    %v1480 = vmul.f32 %v648, %v1328
    %v1481 = vmul.f32 %v655, %v1332
    %v1482 = vmul.f32 %v662, %v1336
    %v1483 = vmul.f32 %v669, %v1340
    %v1484 = vmul.f32 %v676, %v1344
    %v1485 = vmul.f32 %v683, %v1348
    %v1486 = vmul.f32 %v690, %v1352
    %v1487 = vmul.f32 %v697, %v1356
    %v1488 = vmul.f32 %v704, %v1360
    %v1489 = vsel %vm147, %v1425, -inf
    %1490 = vmax.xlane.f32.xlu0 %v1489
    %v1491 = vpop.xlane.xlu0 %1490
    %v1492 = vsel %vm147, %v1426, -inf
    %1493 = vmax.xlane.f32.xlu0 %v1492
    %v1494 = vpop.xlane.xlu0 %1493
    %v1495 = vsel %vm147, %v1427, -inf
    %1496 = vmax.xlane.f32.xlu0 %v1495
    %v1497 = vpop.xlane.xlu0 %1496
    %v1498 = vsel %vm147, %v1428, -inf
    %1499 = vmax.xlane.f32.xlu0 %v1498
    %v1500 = vpop.xlane.xlu0 %1499
    %v1501 = vsel %vm147, %v1429, -inf
    %1502 = vmax.xlane.f32.xlu0 %v1501
    %v1503 = vpop.xlane.xlu0 %1502
    %v1504 = vsel %vm147, %v1430, -inf
    %1505 = vmax.xlane.f32.xlu0 %v1504
    %v1506 = vpop.xlane.xlu0 %1505
    %v1507 = vsel %vm147, %v1431, -inf
    %1508 = vmax.xlane.f32.xlu0 %v1507
    %v1509 = vpop.xlane.xlu0 %1508
    %v1510 = vsel %vm147, %v1432, -inf
    %1511 = vmax.xlane.f32.xlu0 %v1510
    %v1512 = vpop.xlane.xlu0 %1511
    %v1513 = vsel %vm147, %v1433, -inf
    %1514 = vmax.xlane.f32.xlu0 %v1513
    %v1515 = vpop.xlane.xlu0 %1514
    %v1516 = vsel %vm147, %v1434, -inf
    %1517 = vmax.xlane.f32.xlu0 %v1516
    %v1518 = vpop.xlane.xlu0 %1517
    %v1519 = vsel %vm147, %v1435, -inf
    %1520 = vmax.xlane.f32.xlu0 %v1519
    %v1521 = vpop.xlane.xlu0 %1520
    %v1522 = vsel %vm147, %v1436, -inf
    %1523 = vmax.xlane.f32.xlu0 %v1522
    %v1524 = vpop.xlane.xlu0 %1523
    %v1525 = vsel %vm147, %v1437, -inf
    %1526 = vmax.xlane.f32.xlu0 %v1525
    %v1527 = vpop.xlane.xlu0 %1526
    %v1528 = vsel %vm147, %v1438, -inf
    %1529 = vmax.xlane.f32.xlu0 %v1528
    %v1530 = vpop.xlane.xlu0 %1529
    %v1531 = vsel %vm147, %v1439, -inf
    %1532 = vmax.xlane.f32.xlu0 %v1531
    %v1533 = vpop.xlane.xlu0 %1532
    %v1534 = vsel %vm147, %v1440, -inf
    %1535 = vmax.xlane.f32.xlu0 %v1534
    %v1536 = vpop.xlane.xlu0 %1535
    %v1537 = vsel %vm147, %v1441, -inf
    %1538 = vmax.xlane.f32.xlu0 %v1537
    %v1539 = vpop.xlane.xlu0 %1538
    %v1540 = vsel %vm147, %v1442, -inf
    %1541 = vmax.xlane.f32.xlu0 %v1540
    %v1542 = vpop.xlane.xlu0 %1541
    %v1543 = vsel %vm147, %v1443, -inf
    %1544 = vmax.xlane.f32.xlu0 %v1543
    %v1545 = vpop.xlane.xlu0 %1544
    %v1546 = vsel %vm147, %v1444, -inf
    %1547 = vmax.xlane.f32.xlu0 %v1546
    %v1548 = vpop.xlane.xlu0 %1547
    %v1549 = vsel %vm147, %v1445, -inf
    %1550 = vmax.xlane.f32.xlu0 %v1549
    %v1551 = vpop.xlane.xlu0 %1550
    %v1552 = vsel %vm147, %v1446, -inf
    %1553 = vmax.xlane.f32.xlu0 %v1552
    %v1554 = vpop.xlane.xlu0 %1553
    %v1555 = vsel %vm147, %v1447, -inf
    %1556 = vmax.xlane.f32.xlu0 %v1555
    %v1557 = vpop.xlane.xlu0 %1556
    %v1558 = vsel %vm147, %v1448, -inf
    %1559 = vmax.xlane.f32.xlu0 %v1558
    %v1560 = vpop.xlane.xlu0 %1559
    %v1561 = vsel %vm147, %v1449, -inf
    %1562 = vmax.xlane.f32.xlu0 %v1561
    %v1563 = vpop.xlane.xlu0 %1562
    %v1564 = vsel %vm147, %v1450, -inf
    %1565 = vmax.xlane.f32.xlu0 %v1564
    %v1566 = vpop.xlane.xlu0 %1565
    %v1567 = vsel %vm147, %v1451, -inf
    %1568 = vmax.xlane.f32.xlu0 %v1567
    %v1569 = vpop.xlane.xlu0 %1568
    %v1570 = vsel %vm147, %v1452, -inf
    %1571 = vmax.xlane.f32.xlu0 %v1570
    %v1572 = vpop.xlane.xlu0 %1571
    %v1573 = vsel %vm147, %v1453, -inf
    %1574 = vmax.xlane.f32.xlu0 %v1573
    %v1575 = vpop.xlane.xlu0 %1574
    %v1576 = vsel %vm147, %v1454, -inf
    %1577 = vmax.xlane.f32.xlu0 %v1576
    %v1578 = vpop.xlane.xlu0 %1577
    %v1579 = vsel %vm147, %v1455, -inf
    %1580 = vmax.xlane.f32.xlu0 %v1579
    %v1581 = vpop.xlane.xlu0 %1580
    %v1582 = vsel %vm147, %v1456, -inf
    %1583 = vmax.xlane.f32.xlu0 %v1582
    %v1584 = vpop.xlane.xlu0 %1583
    %v1585 = vsel %vm147, %v1457, -inf
    %1586 = vmax.xlane.f32.xlu0 %v1585
    %v1587 = vpop.xlane.xlu0 %1586
    %v1588 = vsel %vm147, %v1458, -inf
    %1589 = vmax.xlane.f32.xlu0 %v1588
    %v1590 = vpop.xlane.xlu0 %1589
    %v1591 = vsel %vm147, %v1459, -inf
    %1592 = vmax.xlane.f32.xlu0 %v1591
    %v1593 = vpop.xlane.xlu0 %1592
    %v1594 = vsel %vm147, %v1460, -inf
    %1595 = vmax.xlane.f32.xlu0 %v1594
    %v1596 = vpop.xlane.xlu0 %1595
    %v1597 = vsel %vm147, %v1461, -inf
    %1598 = vmax.xlane.f32.xlu0 %v1597
    %v1599 = vpop.xlane.xlu0 %1598
    %v1600 = vsel %vm147, %v1462, -inf
    %1601 = vmax.xlane.f32.xlu0 %v1600
    %v1602 = vpop.xlane.xlu0 %1601
    %v1603 = vsel %vm147, %v1463, -inf
    %1604 = vmax.xlane.f32.xlu0 %v1603
    %v1605 = vpop.xlane.xlu0 %1604
    %v1606 = vsel %vm147, %v1464, -inf
    %1607 = vmax.xlane.f32.xlu0 %v1606
    %v1608 = vpop.xlane.xlu0 %1607
    %v1609 = vsel %vm147, %v1465, -inf
    %1610 = vmax.xlane.f32.xlu0 %v1609
    %v1611 = vpop.xlane.xlu0 %1610
    %v1612 = vsel %vm147, %v1466, -inf
    %1613 = vmax.xlane.f32.xlu0 %v1612
    %v1614 = vpop.xlane.xlu0 %1613
    %v1615 = vsel %vm147, %v1467, -inf
    %1616 = vmax.xlane.f32.xlu0 %v1615
    %v1617 = vpop.xlane.xlu0 %1616
    %v1618 = vsel %vm147, %v1468, -inf
    %1619 = vmax.xlane.f32.xlu0 %v1618
    %v1620 = vpop.xlane.xlu0 %1619
    %v1621 = vsel %vm147, %v1469, -inf
    %1622 = vmax.xlane.f32.xlu0 %v1621
    %v1623 = vpop.xlane.xlu0 %1622
    %v1624 = vsel %vm147, %v1470, -inf
    %1625 = vmax.xlane.f32.xlu0 %v1624
    %v1626 = vpop.xlane.xlu0 %1625
    %v1627 = vsel %vm147, %v1471, -inf
    %1628 = vmax.xlane.f32.xlu0 %v1627
    %v1629 = vpop.xlane.xlu0 %1628
    %v1630 = vsel %vm147, %v1472, -inf
    %1631 = vmax.xlane.f32.xlu0 %v1630
    %v1632 = vpop.xlane.xlu0 %1631
    %v1633 = vsel %vm147, %v1473, -inf
    %1634 = vmax.xlane.f32.xlu0 %v1633
    %v1635 = vpop.xlane.xlu0 %1634
    %v1636 = vsel %vm147, %v1474, -inf
    %1637 = vmax.xlane.f32.xlu0 %v1636
    %v1638 = vpop.xlane.xlu0 %1637
    %v1639 = vsel %vm147, %v1475, -inf
    %1640 = vmax.xlane.f32.xlu0 %v1639
    %v1641 = vpop.xlane.xlu0 %1640
    %v1642 = vsel %vm147, %v1476, -inf
    %1643 = vmax.xlane.f32.xlu0 %v1642
    %v1644 = vpop.xlane.xlu0 %1643
    %v1645 = vsel %vm147, %v1477, -inf
    %1646 = vmax.xlane.f32.xlu0 %v1645
    %v1647 = vpop.xlane.xlu0 %1646
    %v1648 = vsel %vm147, %v1478, -inf
    %1649 = vmax.xlane.f32.xlu0 %v1648
    %v1650 = vpop.xlane.xlu0 %1649
    %v1651 = vsel %vm147, %v1479, -inf
    %1652 = vmax.xlane.f32.xlu0 %v1651
    %v1653 = vpop.xlane.xlu0 %1652
    %v1654 = vsel %vm147, %v1480, -inf
    %1655 = vmax.xlane.f32.xlu0 %v1654
    %v1656 = vpop.xlane.xlu0 %1655
    %v1657 = vsel %vm147, %v1481, -inf
    %1658 = vmax.xlane.f32.xlu0 %v1657
    %v1659 = vpop.xlane.xlu0 %1658
    %v1660 = vsel %vm147, %v1482, -inf
    %1661 = vmax.xlane.f32.xlu0 %v1660
    %v1662 = vpop.xlane.xlu0 %1661
    %v1663 = vsel %vm147, %v1483, -inf
    %1664 = vmax.xlane.f32.xlu0 %v1663
    %v1665 = vpop.xlane.xlu0 %1664
    %v1666 = vsel %vm147, %v1484, -inf
    %1667 = vmax.xlane.f32.xlu0 %v1666
    %v1668 = vpop.xlane.xlu0 %1667
    %v1669 = vsel %vm147, %v1485, -inf
    %1670 = vmax.xlane.f32.xlu0 %v1669
    %v1671 = vpop.xlane.xlu0 %1670
    %v1672 = vsel %vm147, %v1486, -inf
    %1673 = vmax.xlane.f32.xlu0 %v1672
    %v1674 = vpop.xlane.xlu0 %1673
    %v1675 = vsel %vm147, %v1487, -inf
    %1676 = vmax.xlane.f32.xlu0 %v1675
    %v1677 = vpop.xlane.xlu0 %1676
    %v1678 = vsel %vm147, %v1488, -inf
    %1679 = vmax.xlane.f32.xlu0 %v1678
    %v1680 = vpop.xlane.xlu0 %1679
    %v1681 = vsub.f32 %v1425, %v1491
    %v1682 = vsub.f32 %v1426, %v1494
    %v1683 = vsub.f32 %v1427, %v1497
    %v1684 = vsub.f32 %v1428, %v1500
    %v1685 = vsub.f32 %v1429, %v1503
    %v1686 = vsub.f32 %v1430, %v1506
    %v1687 = vsub.f32 %v1431, %v1509
    %v1688 = vsub.f32 %v1432, %v1512
    %v1689 = vsub.f32 %v1433, %v1515
    %v1690 = vsub.f32 %v1434, %v1518
    %v1691 = vsub.f32 %v1435, %v1521
    %v1692 = vsub.f32 %v1436, %v1524
    %v1693 = vsub.f32 %v1437, %v1527
    %v1694 = vsub.f32 %v1438, %v1530
    %v1695 = vsub.f32 %v1439, %v1533
    %v1696 = vsub.f32 %v1440, %v1536
    %v1697 = vsub.f32 %v1441, %v1539
    %v1698 = vsub.f32 %v1442, %v1542
    %v1699 = vsub.f32 %v1443, %v1545
    %v1700 = vsub.f32 %v1444, %v1548
    %v1701 = vsub.f32 %v1445, %v1551
    %v1702 = vsub.f32 %v1446, %v1554
    %v1703 = vsub.f32 %v1447, %v1557
    %v1704 = vsub.f32 %v1448, %v1560
    %v1705 = vsub.f32 %v1449, %v1563
    %v1706 = vsub.f32 %v1450, %v1566
    %v1707 = vsub.f32 %v1451, %v1569
    %v1708 = vsub.f32 %v1452, %v1572
    %v1709 = vsub.f32 %v1453, %v1575
    %v1710 = vsub.f32 %v1454, %v1578
    %v1711 = vsub.f32 %v1455, %v1581
    %v1712 = vsub.f32 %v1456, %v1584
    %v1713 = vsub.f32 %v1457, %v1587
    %v1714 = vsub.f32 %v1458, %v1590
    %v1715 = vsub.f32 %v1459, %v1593
    %v1716 = vsub.f32 %v1460, %v1596
    %v1717 = vsub.f32 %v1461, %v1599
    %v1718 = vsub.f32 %v1462, %v1602
    %v1719 = vsub.f32 %v1463, %v1605
    %v1720 = vsub.f32 %v1464, %v1608
    %v1721 = vsub.f32 %v1465, %v1611
    %v1722 = vsub.f32 %v1466, %v1614
    %v1723 = vsub.f32 %v1467, %v1617
    %v1724 = vsub.f32 %v1468, %v1620
    %v1725 = vsub.f32 %v1469, %v1623
    %v1726 = vsub.f32 %v1470, %v1626
    %v1727 = vsub.f32 %v1471, %v1629
    %v1728 = vsub.f32 %v1472, %v1632
    %v1729 = vsub.f32 %v1473, %v1635
    %v1730 = vsub.f32 %v1474, %v1638
    %v1731 = vsub.f32 %v1475, %v1641
    %v1732 = vsub.f32 %v1476, %v1644
    %v1733 = vsub.f32 %v1477, %v1647
    %v1734 = vsub.f32 %v1478, %v1650
    %v1735 = vsub.f32 %v1479, %v1653
    %v1736 = vsub.f32 %v1480, %v1656
    %v1737 = vsub.f32 %v1481, %v1659
    %v1738 = vsub.f32 %v1482, %v1662
    %v1739 = vsub.f32 %v1483, %v1665
    %v1740 = vsub.f32 %v1484, %v1668
    %v1741 = vsub.f32 %v1485, %v1671
    %v1742 = vsub.f32 %v1486, %v1674
    %v1743 = vsub.f32 %v1487, %v1677
    %v1744 = vsub.f32 %v1488, %v1680
    %v1745 = vmul.f32 %v1681, 1.442695
    %v1746 = vpow.pop %v1745
    %v1747 = vmul.f32 %v1682, 1.442695
    %v1748 = vpow.pop %v1747
    %v1749 = vmul.f32 %v1683, 1.442695
    %v1750 = vpow.pop %v1749
    %v1751 = vmul.f32 %v1684, 1.442695
    %v1752 = vpow.pop %v1751
    %v1753 = vmul.f32 %v1685, 1.442695
    %v1754 = vpow.pop %v1753
    %v1755 = vmul.f32 %v1686, 1.442695
    %v1756 = vpow.pop %v1755
    %v1757 = vmul.f32 %v1687, 1.442695
    %v1758 = vpow.pop %v1757
    %v1759 = vmul.f32 %v1688, 1.442695
    %v1760 = vpow.pop %v1759
    %v1761 = vmul.f32 %v1689, 1.442695
    %v1762 = vpow.pop %v1761
    %v1763 = vmul.f32 %v1690, 1.442695
    %v1764 = vpow.pop %v1763
    %v1765 = vmul.f32 %v1691, 1.442695
    %v1766 = vpow.pop %v1765
    %v1767 = vmul.f32 %v1692, 1.442695
    %v1768 = vpow.pop %v1767
    %v1769 = vmul.f32 %v1693, 1.442695
    %v1770 = vpow.pop %v1769
    %v1771 = vmul.f32 %v1694, 1.442695
    %v1772 = vpow.pop %v1771
    %v1773 = vmul.f32 %v1695, 1.442695
    %v1774 = vpow.pop %v1773
    %v1775 = vmul.f32 %v1696, 1.442695
    %v1776 = vpow.pop %v1775
    %v1777 = vmul.f32 %v1697, 1.442695
    %v1778 = vpow.pop %v1777
    %v1779 = vmul.f32 %v1698, 1.442695
    %v1780 = vpow.pop %v1779
    %v1781 = vmul.f32 %v1699, 1.442695
    %v1782 = vpow.pop %v1781
    %v1783 = vmul.f32 %v1700, 1.442695
    %v1784 = vpow.pop %v1783
    %v1785 = vmul.f32 %v1701, 1.442695
    %v1786 = vpow.pop %v1785
    %v1787 = vmul.f32 %v1702, 1.442695
    %v1788 = vpow.pop %v1787
    %v1789 = vmul.f32 %v1703, 1.442695
    %v1790 = vpow.pop %v1789
    %v1791 = vmul.f32 %v1704, 1.442695
    %v1792 = vpow.pop %v1791
    %v1793 = vmul.f32 %v1705, 1.442695
    %v1794 = vpow.pop %v1793
    %v1795 = vmul.f32 %v1706, 1.442695
    %v1796 = vpow.pop %v1795
    %v1797 = vmul.f32 %v1707, 1.442695
    %v1798 = vpow.pop %v1797
    %v1799 = vmul.f32 %v1708, 1.442695
    %v1800 = vpow.pop %v1799
    %v1801 = vmul.f32 %v1709, 1.442695
    %v1802 = vpow.pop %v1801
    %v1803 = vmul.f32 %v1710, 1.442695
    %v1804 = vpow.pop %v1803
    %v1805 = vmul.f32 %v1711, 1.442695
    %v1806 = vpow.pop %v1805
    %v1807 = vmul.f32 %v1712, 1.442695
    %v1808 = vpow.pop %v1807
    %v1809 = vmul.f32 %v1713, 1.442695
    %v1810 = vpow.pop %v1809
    %v1811 = vmul.f32 %v1714, 1.442695
    %v1812 = vpow.pop %v1811
    %v1813 = vmul.f32 %v1715, 1.442695
    %v1814 = vpow.pop %v1813
    %v1815 = vmul.f32 %v1716, 1.442695
    %v1816 = vpow.pop %v1815
    %v1817 = vmul.f32 %v1717, 1.442695
    %v1818 = vpow.pop %v1817
    %v1819 = vmul.f32 %v1718, 1.442695
    %v1820 = vpow.pop %v1819
    %v1821 = vmul.f32 %v1719, 1.442695
    %v1822 = vpow.pop %v1821
    %v1823 = vmul.f32 %v1720, 1.442695
    %v1824 = vpow.pop %v1823
    %v1825 = vmul.f32 %v1721, 1.442695
    %v1826 = vpow.pop %v1825
    %v1827 = vmul.f32 %v1722, 1.442695
    %v1828 = vpow.pop %v1827
    %v1829 = vmul.f32 %v1723, 1.442695
    %v1830 = vpow.pop %v1829
    %v1831 = vmul.f32 %v1724, 1.442695
    %v1832 = vpow.pop %v1831
    %v1833 = vmul.f32 %v1725, 1.442695
    %v1834 = vpow.pop %v1833
    %v1835 = vmul.f32 %v1726, 1.442695
    %v1836 = vpow.pop %v1835
    %v1837 = vmul.f32 %v1727, 1.442695
    %v1838 = vpow.pop %v1837
    %v1839 = vmul.f32 %v1728, 1.442695
    %v1840 = vpow.pop %v1839
    %v1841 = vmul.f32 %v1729, 1.442695
    %v1842 = vpow.pop %v1841
    %v1843 = vmul.f32 %v1730, 1.442695
    %v1844 = vpow.pop %v1843
    %v1845 = vmul.f32 %v1731, 1.442695
    %v1846 = vpow.pop %v1845
    %v1847 = vmul.f32 %v1732, 1.442695
    %v1848 = vpow.pop %v1847
    %v1849 = vmul.f32 %v1733, 1.442695
    %v1850 = vpow.pop %v1849
    %v1851 = vmul.f32 %v1734, 1.442695
    %v1852 = vpow.pop %v1851
    %v1853 = vmul.f32 %v1735, 1.442695
    %v1854 = vpow.pop %v1853
    %v1855 = vmul.f32 %v1736, 1.442695
    %v1856 = vpow.pop %v1855
    %v1857 = vmul.f32 %v1737, 1.442695
    %v1858 = vpow.pop %v1857
    %v1859 = vmul.f32 %v1738, 1.442695
    %v1860 = vpow.pop %v1859
    %v1861 = vmul.f32 %v1739, 1.442695
    %v1862 = vpow.pop %v1861
    %v1863 = vmul.f32 %v1740, 1.442695
    %v1864 = vpow.pop %v1863
    %v1865 = vmul.f32 %v1741, 1.442695
    %v1866 = vpow.pop %v1865
    %v1867 = vmul.f32 %v1742, 1.442695
    %v1868 = vpow.pop %v1867
    %v1869 = vmul.f32 %v1743, 1.442695
    %v1870 = vpow.pop %v1869
    %v1871 = vmul.f32 %v1744, 1.442695
    %v1872 = vpow.pop %v1871
    %v1873 = vsel %vm147, %v1746, 0.0
    %1874 = vadd.xlane.f32.xlu0 %v1873
    %v1875 = vpop.xlane.xlu0 %1874
    %v1876 = vsel %vm147, %v1748, 0.0
    %1877 = vadd.xlane.f32.xlu0 %v1876
    %v1878 = vpop.xlane.xlu0 %1877
    %v1879 = vsel %vm147, %v1750, 0.0
    %1880 = vadd.xlane.f32.xlu0 %v1879
    %v1881 = vpop.xlane.xlu0 %1880
    %v1882 = vsel %vm147, %v1752, 0.0
    %1883 = vadd.xlane.f32.xlu0 %v1882
    %v1884 = vpop.xlane.xlu0 %1883
    %v1885 = vsel %vm147, %v1754, 0.0
    %1886 = vadd.xlane.f32.xlu0 %v1885
    %v1887 = vpop.xlane.xlu0 %1886
    %v1888 = vsel %vm147, %v1756, 0.0
    %1889 = vadd.xlane.f32.xlu0 %v1888
    %v1890 = vpop.xlane.xlu0 %1889
    %v1891 = vsel %vm147, %v1758, 0.0
    %1892 = vadd.xlane.f32.xlu0 %v1891
    %v1893 = vpop.xlane.xlu0 %1892
    %v1894 = vsel %vm147, %v1760, 0.0
    %1895 = vadd.xlane.f32.xlu0 %v1894
    %v1896 = vpop.xlane.xlu0 %1895
    %v1897 = vsel %vm147, %v1762, 0.0
    %1898 = vadd.xlane.f32.xlu0 %v1897
    %v1899 = vpop.xlane.xlu0 %1898
    %v1900 = vsel %vm147, %v1764, 0.0
    %1901 = vadd.xlane.f32.xlu0 %v1900
    %v1902 = vpop.xlane.xlu0 %1901
    %v1903 = vsel %vm147, %v1766, 0.0
    %1904 = vadd.xlane.f32.xlu0 %v1903
    %v1905 = vpop.xlane.xlu0 %1904
    %v1906 = vsel %vm147, %v1768, 0.0
    %1907 = vadd.xlane.f32.xlu0 %v1906
    %v1908 = vpop.xlane.xlu0 %1907
    %v1909 = vsel %vm147, %v1770, 0.0
    %1910 = vadd.xlane.f32.xlu0 %v1909
    %v1911 = vpop.xlane.xlu0 %1910
    %v1912 = vsel %vm147, %v1772, 0.0
    %1913 = vadd.xlane.f32.xlu0 %v1912
    %v1914 = vpop.xlane.xlu0 %1913
    %v1915 = vsel %vm147, %v1774, 0.0
    %1916 = vadd.xlane.f32.xlu0 %v1915
    %v1917 = vpop.xlane.xlu0 %1916
    %v1918 = vsel %vm147, %v1776, 0.0
    %1919 = vadd.xlane.f32.xlu0 %v1918
    %v1920 = vpop.xlane.xlu0 %1919
    %v1921 = vsel %vm147, %v1778, 0.0
    %1922 = vadd.xlane.f32.xlu0 %v1921
    %v1923 = vpop.xlane.xlu0 %1922
    %v1924 = vsel %vm147, %v1780, 0.0
    %1925 = vadd.xlane.f32.xlu0 %v1924
    %v1926 = vpop.xlane.xlu0 %1925
    %v1927 = vsel %vm147, %v1782, 0.0
    %1928 = vadd.xlane.f32.xlu0 %v1927
    %v1929 = vpop.xlane.xlu0 %1928
    %v1930 = vsel %vm147, %v1784, 0.0
    %1931 = vadd.xlane.f32.xlu0 %v1930
    %v1932 = vpop.xlane.xlu0 %1931
    %v1933 = vsel %vm147, %v1786, 0.0
    %1934 = vadd.xlane.f32.xlu0 %v1933
    %v1935 = vpop.xlane.xlu0 %1934
    %v1936 = vsel %vm147, %v1788, 0.0
    %1937 = vadd.xlane.f32.xlu0 %v1936
    %v1938 = vpop.xlane.xlu0 %1937
    %v1939 = vsel %vm147, %v1790, 0.0
    %1940 = vadd.xlane.f32.xlu0 %v1939
    %v1941 = vpop.xlane.xlu0 %1940
    %v1942 = vsel %vm147, %v1792, 0.0
    %1943 = vadd.xlane.f32.xlu0 %v1942
    %v1944 = vpop.xlane.xlu0 %1943
    %v1945 = vsel %vm147, %v1794, 0.0
    %1946 = vadd.xlane.f32.xlu0 %v1945
    %v1947 = vpop.xlane.xlu0 %1946
    %v1948 = vsel %vm147, %v1796, 0.0
    %1949 = vadd.xlane.f32.xlu0 %v1948
    %v1950 = vpop.xlane.xlu0 %1949
    %v1951 = vsel %vm147, %v1798, 0.0
    %1952 = vadd.xlane.f32.xlu0 %v1951
    %v1953 = vpop.xlane.xlu0 %1952
    %v1954 = vsel %vm147, %v1800, 0.0
    %1955 = vadd.xlane.f32.xlu0 %v1954
    %v1956 = vpop.xlane.xlu0 %1955
    %v1957 = vsel %vm147, %v1802, 0.0
    %1958 = vadd.xlane.f32.xlu0 %v1957
    %v1959 = vpop.xlane.xlu0 %1958
    %v1960 = vsel %vm147, %v1804, 0.0
    %1961 = vadd.xlane.f32.xlu0 %v1960
    %v1962 = vpop.xlane.xlu0 %1961
    %v1963 = vsel %vm147, %v1806, 0.0
    %1964 = vadd.xlane.f32.xlu0 %v1963
    %v1965 = vpop.xlane.xlu0 %1964
    %v1966 = vsel %vm147, %v1808, 0.0
    %1967 = vadd.xlane.f32.xlu0 %v1966
    %v1968 = vpop.xlane.xlu0 %1967
    %v1969 = vsel %vm147, %v1810, 0.0
    %1970 = vadd.xlane.f32.xlu0 %v1969
    %v1971 = vpop.xlane.xlu0 %1970
    %v1972 = vsel %vm147, %v1812, 0.0
    %1973 = vadd.xlane.f32.xlu0 %v1972
    %v1974 = vpop.xlane.xlu0 %1973
    %v1975 = vsel %vm147, %v1814, 0.0
    %1976 = vadd.xlane.f32.xlu0 %v1975
    %v1977 = vpop.xlane.xlu0 %1976
    %v1978 = vsel %vm147, %v1816, 0.0
    %1979 = vadd.xlane.f32.xlu0 %v1978
    %v1980 = vpop.xlane.xlu0 %1979
    %v1981 = vsel %vm147, %v1818, 0.0
    %1982 = vadd.xlane.f32.xlu0 %v1981
    %v1983 = vpop.xlane.xlu0 %1982
    %v1984 = vsel %vm147, %v1820, 0.0
    %1985 = vadd.xlane.f32.xlu0 %v1984
    %v1986 = vpop.xlane.xlu0 %1985
    %v1987 = vsel %vm147, %v1822, 0.0
    %1988 = vadd.xlane.f32.xlu0 %v1987
    %v1989 = vpop.xlane.xlu0 %1988
    %v1990 = vsel %vm147, %v1824, 0.0
    %1991 = vadd.xlane.f32.xlu0 %v1990
    %v1992 = vpop.xlane.xlu0 %1991
    %v1993 = vsel %vm147, %v1826, 0.0
    %1994 = vadd.xlane.f32.xlu0 %v1993
    %v1995 = vpop.xlane.xlu0 %1994
    %v1996 = vsel %vm147, %v1828, 0.0
    %1997 = vadd.xlane.f32.xlu0 %v1996
    %v1998 = vpop.xlane.xlu0 %1997
    %v1999 = vsel %vm147, %v1830, 0.0
    %2000 = vadd.xlane.f32.xlu0 %v1999
    %v2001 = vpop.xlane.xlu0 %2000
    %v2002 = vsel %vm147, %v1832, 0.0
    %2003 = vadd.xlane.f32.xlu0 %v2002
    %v2004 = vpop.xlane.xlu0 %2003
    %v2005 = vsel %vm147, %v1834, 0.0
    %2006 = vadd.xlane.f32.xlu0 %v2005
    %v2007 = vpop.xlane.xlu0 %2006
    %v2008 = vsel %vm147, %v1836, 0.0
    %2009 = vadd.xlane.f32.xlu0 %v2008
    %v2010 = vpop.xlane.xlu0 %2009
    %v2011 = vsel %vm147, %v1838, 0.0
    %2012 = vadd.xlane.f32.xlu0 %v2011
    %v2013 = vpop.xlane.xlu0 %2012
    %v2014 = vsel %vm147, %v1840, 0.0
    %2015 = vadd.xlane.f32.xlu0 %v2014
    %v2016 = vpop.xlane.xlu0 %2015
    %v2017 = vsel %vm147, %v1842, 0.0
    %2018 = vadd.xlane.f32.xlu0 %v2017
    %v2019 = vpop.xlane.xlu0 %2018
    %v2020 = vsel %vm147, %v1844, 0.0
    %2021 = vadd.xlane.f32.xlu0 %v2020
    %v2022 = vpop.xlane.xlu0 %2021
    %v2023 = vsel %vm147, %v1846, 0.0
    %2024 = vadd.xlane.f32.xlu0 %v2023
    %v2025 = vpop.xlane.xlu0 %2024
    %v2026 = vsel %vm147, %v1848, 0.0
    %2027 = vadd.xlane.f32.xlu0 %v2026
    %v2028 = vpop.xlane.xlu0 %2027
    %v2029 = vsel %vm147, %v1850, 0.0
    %2030 = vadd.xlane.f32.xlu0 %v2029
    %v2031 = vpop.xlane.xlu0 %2030
    %v2032 = vsel %vm147, %v1852, 0.0
    %2033 = vadd.xlane.f32.xlu0 %v2032
    %v2034 = vpop.xlane.xlu0 %2033
    %v2035 = vsel %vm147, %v1854, 0.0
    %2036 = vadd.xlane.f32.xlu0 %v2035
    %v2037 = vpop.xlane.xlu0 %2036
    %v2038 = vsel %vm147, %v1856, 0.0
    %2039 = vadd.xlane.f32.xlu0 %v2038
    %v2040 = vpop.xlane.xlu0 %2039
    %v2041 = vsel %vm147, %v1858, 0.0
    %2042 = vadd.xlane.f32.xlu0 %v2041
    %v2043 = vpop.xlane.xlu0 %2042
    %v2044 = vsel %vm147, %v1860, 0.0
    %2045 = vadd.xlane.f32.xlu0 %v2044
    %v2046 = vpop.xlane.xlu0 %2045
    %v2047 = vsel %vm147, %v1862, 0.0
    %2048 = vadd.xlane.f32.xlu0 %v2047
    %v2049 = vpop.xlane.xlu0 %2048
    %v2050 = vsel %vm147, %v1864, 0.0
    %2051 = vadd.xlane.f32.xlu0 %v2050
    %v2052 = vpop.xlane.xlu0 %2051
    %v2053 = vsel %vm147, %v1866, 0.0
    %2054 = vadd.xlane.f32.xlu0 %v2053
    %v2055 = vpop.xlane.xlu0 %2054
    %v2056 = vsel %vm147, %v1868, 0.0
    %2057 = vadd.xlane.f32.xlu0 %v2056
    %v2058 = vpop.xlane.xlu0 %2057
    %v2059 = vsel %vm147, %v1870, 0.0
    %2060 = vadd.xlane.f32.xlu0 %v2059
    %v2061 = vpop.xlane.xlu0 %2060
    %v2062 = vsel %vm147, %v1872, 0.0
    %2063 = vadd.xlane.f32.xlu0 %v2062
    %v2064 = vpop.xlane.xlu0 %2063
    %v2065 = vstv %s238
    %v2066 = vrcp.pop %v1875
    %v2067 = vmul.f32 %v2065, %v2066
    %v2068 = vrcp.pop %v1878
    %v2069 = vmul.f32 %v2065, %v2068
    %v2070 = vrcp.pop %v1881
    %v2071 = vmul.f32 %v2065, %v2070
    %v2072 = vrcp.pop %v1884
    %v2073 = vmul.f32 %v2065, %v2072
    %v2074 = vrcp.pop %v1887
    %v2075 = vmul.f32 %v2065, %v2074
    %v2076 = vrcp.pop %v1890
    %v2077 = vmul.f32 %v2065, %v2076
    %v2078 = vrcp.pop %v1893
    %v2079 = vmul.f32 %v2065, %v2078
    %v2080 = vrcp.pop %v1896
    %v2081 = vmul.f32 %v2065, %v2080
    %v2082 = vrcp.pop %v1899
    %v2083 = vmul.f32 %v2065, %v2082
    %v2084 = vrcp.pop %v1902
    %v2085 = vmul.f32 %v2065, %v2084
    %v2086 = vrcp.pop %v1905
    %v2087 = vmul.f32 %v2065, %v2086
    %v2088 = vrcp.pop %v1908
    %v2089 = vmul.f32 %v2065, %v2088
    %v2090 = vrcp.pop %v1911
    %v2091 = vmul.f32 %v2065, %v2090
    %v2092 = vrcp.pop %v1914
    %v2093 = vmul.f32 %v2065, %v2092
    %v2094 = vrcp.pop %v1917
    %v2095 = vmul.f32 %v2065, %v2094
    %v2096 = vrcp.pop %v1920
    %v2097 = vmul.f32 %v2065, %v2096
    %v2098 = vrcp.pop %v1923
    %v2099 = vmul.f32 %v2065, %v2098
    %v2100 = vrcp.pop %v1926
    %v2101 = vmul.f32 %v2065, %v2100
    %v2102 = vrcp.pop %v1929
    %v2103 = vmul.f32 %v2065, %v2102
    %v2104 = vrcp.pop %v1932
    %v2105 = vmul.f32 %v2065, %v2104
    %v2106 = vrcp.pop %v1935
    %v2107 = vmul.f32 %v2065, %v2106
    %v2108 = vrcp.pop %v1938
    %v2109 = vmul.f32 %v2065, %v2108
    %v2110 = vrcp.pop %v1941
    %v2111 = vmul.f32 %v2065, %v2110
    %v2112 = vrcp.pop %v1944
    %v2113 = vmul.f32 %v2065, %v2112
    %v2114 = vrcp.pop %v1947
    %v2115 = vmul.f32 %v2065, %v2114
    %v2116 = vrcp.pop %v1950
    %v2117 = vmul.f32 %v2065, %v2116
    %v2118 = vrcp.pop %v1953
    %v2119 = vmul.f32 %v2065, %v2118
    %v2120 = vrcp.pop %v1956
    %v2121 = vmul.f32 %v2065, %v2120
    %v2122 = vrcp.pop %v1959
    %v2123 = vmul.f32 %v2065, %v2122
    %v2124 = vrcp.pop %v1962
    %v2125 = vmul.f32 %v2065, %v2124
    %v2126 = vrcp.pop %v1965
    %v2127 = vmul.f32 %v2065, %v2126
    %v2128 = vrcp.pop %v1968
    %v2129 = vmul.f32 %v2065, %v2128
    %v2130 = vrcp.pop %v1971
    %v2131 = vmul.f32 %v2065, %v2130
    %v2132 = vrcp.pop %v1974
    %v2133 = vmul.f32 %v2065, %v2132
    %v2134 = vrcp.pop %v1977
    %v2135 = vmul.f32 %v2065, %v2134
    %v2136 = vrcp.pop %v1980
    %v2137 = vmul.f32 %v2065, %v2136
    %v2138 = vrcp.pop %v1983
    %v2139 = vmul.f32 %v2065, %v2138
    %v2140 = vrcp.pop %v1986
    %v2141 = vmul.f32 %v2065, %v2140
    %v2142 = vrcp.pop %v1989
    %v2143 = vmul.f32 %v2065, %v2142
    %v2144 = vrcp.pop %v1992
    %v2145 = vmul.f32 %v2065, %v2144
    %v2146 = vrcp.pop %v1995
    %v2147 = vmul.f32 %v2065, %v2146
    %v2148 = vrcp.pop %v1998
    %v2149 = vmul.f32 %v2065, %v2148
    %v2150 = vrcp.pop %v2001
    %v2151 = vmul.f32 %v2065, %v2150
    %v2152 = vrcp.pop %v2004
    %v2153 = vmul.f32 %v2065, %v2152
    %v2154 = vrcp.pop %v2007
    %v2155 = vmul.f32 %v2065, %v2154
    %v2156 = vrcp.pop %v2010
    %v2157 = vmul.f32 %v2065, %v2156
    %v2158 = vrcp.pop %v2013
    %v2159 = vmul.f32 %v2065, %v2158
    %v2160 = vrcp.pop %v2016
    %v2161 = vmul.f32 %v2065, %v2160
    %v2162 = vrcp.pop %v2019
    %v2163 = vmul.f32 %v2065, %v2162
    %v2164 = vrcp.pop %v2022
    %v2165 = vmul.f32 %v2065, %v2164
    %v2166 = vrcp.pop %v2025
    %v2167 = vmul.f32 %v2065, %v2166
    %v2168 = vrcp.pop %v2028
    %v2169 = vmul.f32 %v2065, %v2168
    %v2170 = vrcp.pop %v2031
    %v2171 = vmul.f32 %v2065, %v2170
    %v2172 = vrcp.pop %v2034
    %v2173 = vmul.f32 %v2065, %v2172
    %v2174 = vrcp.pop %v2037
    %v2175 = vmul.f32 %v2065, %v2174
    %v2176 = vrcp.pop %v2040
    %v2177 = vmul.f32 %v2065, %v2176
    %v2178 = vrcp.pop %v2043
    %v2179 = vmul.f32 %v2065, %v2178
    %v2180 = vrcp.pop %v2046
    %v2181 = vmul.f32 %v2065, %v2180
    %v2182 = vrcp.pop %v2049
    %v2183 = vmul.f32 %v2065, %v2182
    %v2184 = vrcp.pop %v2052
    %v2185 = vmul.f32 %v2065, %v2184
    %v2186 = vrcp.pop %v2055
    %v2187 = vmul.f32 %v2065, %v2186
    %v2188 = vrcp.pop %v2058
    %v2189 = vmul.f32 %v2065, %v2188
    %v2190 = vrcp.pop %v2061
    %v2191 = vmul.f32 %v2065, %v2190
    %v2192 = vrcp.pop %v2064
    %v2193 = vmul.f32 %v2065, %v2192
    %v2194 = vmul.f32 %v1746, %v2067
    %v2195 = vmul.f32 %v1748, %v2069
    %v2196 = vmul.f32 %v1750, %v2071
    %v2197 = vmul.f32 %v1752, %v2073
    %v2198 = vmul.f32 %v1754, %v2075
    %v2199 = vmul.f32 %v1756, %v2077
    %v2200 = vmul.f32 %v1758, %v2079
    %v2201 = vmul.f32 %v1760, %v2081
    %v2202 = vmul.f32 %v1762, %v2083
    %v2203 = vmul.f32 %v1764, %v2085
    %v2204 = vmul.f32 %v1766, %v2087
    %v2205 = vmul.f32 %v1768, %v2089
    %v2206 = vmul.f32 %v1770, %v2091
    %v2207 = vmul.f32 %v1772, %v2093
    %v2208 = vmul.f32 %v1774, %v2095
    %v2209 = vmul.f32 %v1776, %v2097
    %v2210 = vmul.f32 %v1778, %v2099
    %v2211 = vmul.f32 %v1780, %v2101
    %v2212 = vmul.f32 %v1782, %v2103
    %v2213 = vmul.f32 %v1784, %v2105
    %v2214 = vmul.f32 %v1786, %v2107
    %v2215 = vmul.f32 %v1788, %v2109
    %v2216 = vmul.f32 %v1790, %v2111
    %v2217 = vmul.f32 %v1792, %v2113
    %v2218 = vmul.f32 %v1794, %v2115
    %v2219 = vmul.f32 %v1796, %v2117
    %v2220 = vmul.f32 %v1798, %v2119
    %v2221 = vmul.f32 %v1800, %v2121
    %v2222 = vmul.f32 %v1802, %v2123
    %v2223 = vmul.f32 %v1804, %v2125
    %v2224 = vmul.f32 %v1806, %v2127
    %v2225 = vmul.f32 %v1808, %v2129
    %v2226 = vmul.f32 %v1810, %v2131
    %v2227 = vmul.f32 %v1812, %v2133
    %v2228 = vmul.f32 %v1814, %v2135
    %v2229 = vmul.f32 %v1816, %v2137
    %v2230 = vmul.f32 %v1818, %v2139
    %v2231 = vmul.f32 %v1820, %v2141
    %v2232 = vmul.f32 %v1822, %v2143
    %v2233 = vmul.f32 %v1824, %v2145
    %v2234 = vmul.f32 %v1826, %v2147
    %v2235 = vmul.f32 %v1828, %v2149
    %v2236 = vmul.f32 %v1830, %v2151
    %v2237 = vmul.f32 %v1832, %v2153
    %v2238 = vmul.f32 %v1834, %v2155
    %v2239 = vmul.f32 %v1836, %v2157
    %v2240 = vmul.f32 %v1838, %v2159
    %v2241 = vmul.f32 %v1840, %v2161
    %v2242 = vmul.f32 %v1842, %v2163
    %v2243 = vmul.f32 %v1844, %v2165
    %v2244 = vmul.f32 %v1846, %v2167
    %v2245 = vmul.f32 %v1848, %v2169
    %v2246 = vmul.f32 %v1850, %v2171
    %v2247 = vmul.f32 %v1852, %v2173
    %v2248 = vmul.f32 %v1854, %v2175
    %v2249 = vmul.f32 %v1856, %v2177
    %v2250 = vmul.f32 %v1858, %v2179
    %v2251 = vmul.f32 %v1860, %v2181
    %v2252 = vmul.f32 %v1862, %v2183
    %v2253 = vmul.f32 %v1864, %v2185
    %v2254 = vmul.f32 %v1866, %v2187
    %v2255 = vmul.f32 %v1868, %v2189
    %v2256 = vmul.f32 %v1870, %v2191
    %v2257 = vmul.f32 %v1872, %v2193
    %v2258 = vld [vmem:[%s2] sm:$0xff]
    %v2259 = vadd.f32 %v2258, %v2194
    %v2260 = vadd.f32 %v2258, %v2195
    %v2261 = vadd.f32 %v2258, %v2196
    %v2262 = vadd.f32 %v2258, %v2197
    %v2263 = vadd.f32 %v2258, %v2198
    %v2264 = vadd.f32 %v2258, %v2199
    %v2265 = vadd.f32 %v2258, %v2200
    %v2266 = vadd.f32 %v2258, %v2201
    %v2267 = vadd.f32 %v2258, %v2202
    %v2268 = vadd.f32 %v2258, %v2203
    %v2269 = vadd.f32 %v2258, %v2204
    %v2270 = vadd.f32 %v2258, %v2205
    %v2271 = vadd.f32 %v2258, %v2206
    %v2272 = vadd.f32 %v2258, %v2207
    %v2273 = vadd.f32 %v2258, %v2208
    %v2274 = vadd.f32 %v2258, %v2209
    %v2275 = vadd.f32 %v2258, %v2210
    %v2276 = vadd.f32 %v2258, %v2211
    %v2277 = vadd.f32 %v2258, %v2212
    %v2278 = vadd.f32 %v2258, %v2213
    %v2279 = vadd.f32 %v2258, %v2214
    %v2280 = vadd.f32 %v2258, %v2215
    %v2281 = vadd.f32 %v2258, %v2216
    %v2282 = vadd.f32 %v2258, %v2217
    %v2283 = vadd.f32 %v2258, %v2218
    %v2284 = vadd.f32 %v2258, %v2219
    %v2285 = vadd.f32 %v2258, %v2220
    %v2286 = vadd.f32 %v2258, %v2221
    %v2287 = vadd.f32 %v2258, %v2222
    %v2288 = vadd.f32 %v2258, %v2223
    %v2289 = vadd.f32 %v2258, %v2224
    %v2290 = vadd.f32 %v2258, %v2225
    %v2291 = vadd.f32 %v2258, %v2226
    %v2292 = vadd.f32 %v2258, %v2227
    %v2293 = vadd.f32 %v2258, %v2228
    %v2294 = vadd.f32 %v2258, %v2229
    %v2295 = vadd.f32 %v2258, %v2230
    %v2296 = vadd.f32 %v2258, %v2231
    %v2297 = vadd.f32 %v2258, %v2232
    %v2298 = vadd.f32 %v2258, %v2233
    %v2299 = vadd.f32 %v2258, %v2234
    %v2300 = vadd.f32 %v2258, %v2235
    %v2301 = vadd.f32 %v2258, %v2236
    %v2302 = vadd.f32 %v2258, %v2237
    %v2303 = vadd.f32 %v2258, %v2238
    %v2304 = vadd.f32 %v2258, %v2239
    %v2305 = vadd.f32 %v2258, %v2240
    %v2306 = vadd.f32 %v2258, %v2241
    %v2307 = vadd.f32 %v2258, %v2242
    %v2308 = vadd.f32 %v2258, %v2243
    %v2309 = vadd.f32 %v2258, %v2244
    %v2310 = vadd.f32 %v2258, %v2245
    %v2311 = vadd.f32 %v2258, %v2246
    %v2312 = vadd.f32 %v2258, %v2247
    %v2313 = vadd.f32 %v2258, %v2248
    %v2314 = vadd.f32 %v2258, %v2249
    %v2315 = vadd.f32 %v2258, %v2250
    %v2316 = vadd.f32 %v2258, %v2251
    %v2317 = vadd.f32 %v2258, %v2252
    %v2318 = vadd.f32 %v2258, %v2253
    %v2319 = vadd.f32 %v2258, %v2254
    %v2320 = vadd.f32 %v2258, %v2255
    %v2321 = vadd.f32 %v2258, %v2256
    %v2322 = vadd.f32 %v2258, %v2257
    %2324 = vset.pattern.permute.xlu0 0
    %2325 = vperm.xlu0 %2324, %v2259
    %v2326 = vpop.permute.xlu0 %2325
    %2329 = vset.pattern.permute.xlu0 0
    %2330 = vperm.xlu0 %2329, %v2260
    %v2331 = vpop.permute.xlu0 %2330
    %2334 = vset.pattern.permute.xlu0 0
    %2335 = vperm.xlu0 %2334, %v2261
    %v2336 = vpop.permute.xlu0 %2335
    %2339 = vset.pattern.permute.xlu0 0
    %2340 = vperm.xlu0 %2339, %v2262
    %v2341 = vpop.permute.xlu0 %2340
    %2344 = vset.pattern.permute.xlu0 0
    %2345 = vperm.xlu0 %2344, %v2263
    %v2346 = vpop.permute.xlu0 %2345
    %2349 = vset.pattern.permute.xlu0 0
    %2350 = vperm.xlu0 %2349, %v2264
    %v2351 = vpop.permute.xlu0 %2350
    %2354 = vset.pattern.permute.xlu0 0
    %2355 = vperm.xlu0 %2354, %v2265
    %v2356 = vpop.permute.xlu0 %2355
    %2359 = vset.pattern.permute.xlu0 0
    %2360 = vperm.xlu0 %2359, %v2266
    %v2361 = vpop.permute.xlu0 %2360
    %2364 = vset.pattern.permute.xlu0 0
    %2365 = vperm.xlu0 %2364, %v2267
    %v2366 = vpop.permute.xlu0 %2365
    %2369 = vset.pattern.permute.xlu0 0
    %2370 = vperm.xlu0 %2369, %v2268
    %v2371 = vpop.permute.xlu0 %2370
    %2374 = vset.pattern.permute.xlu0 0
    %2375 = vperm.xlu0 %2374, %v2269
    %v2376 = vpop.permute.xlu0 %2375
    %2379 = vset.pattern.permute.xlu0 0
    %2380 = vperm.xlu0 %2379, %v2270
    %v2381 = vpop.permute.xlu0 %2380
    %2384 = vset.pattern.permute.xlu0 0
    %2385 = vperm.xlu0 %2384, %v2271
    %v2386 = vpop.permute.xlu0 %2385
    %2389 = vset.pattern.permute.xlu0 0
    %2390 = vperm.xlu0 %2389, %v2272
    %v2391 = vpop.permute.xlu0 %2390
    %2394 = vset.pattern.permute.xlu0 0
    %2395 = vperm.xlu0 %2394, %v2273
    %v2396 = vpop.permute.xlu0 %2395
    %2399 = vset.pattern.permute.xlu0 0
    %2400 = vperm.xlu0 %2399, %v2274
    %v2401 = vpop.permute.xlu0 %2400
    %2404 = vset.pattern.permute.xlu0 0
    %2405 = vperm.xlu0 %2404, %v2275
    %v2406 = vpop.permute.xlu0 %2405
    %2409 = vset.pattern.permute.xlu0 0
    %2410 = vperm.xlu0 %2409, %v2276
    %v2411 = vpop.permute.xlu0 %2410
    %2414 = vset.pattern.permute.xlu0 0
    %2415 = vperm.xlu0 %2414, %v2277
    %v2416 = vpop.permute.xlu0 %2415
    %2419 = vset.pattern.permute.xlu0 0
    %2420 = vperm.xlu0 %2419, %v2278
    %v2421 = vpop.permute.xlu0 %2420
    %2424 = vset.pattern.permute.xlu0 0
    %2425 = vperm.xlu0 %2424, %v2279
    %v2426 = vpop.permute.xlu0 %2425
    %2429 = vset.pattern.permute.xlu0 0
    %2430 = vperm.xlu0 %2429, %v2280
    %v2431 = vpop.permute.xlu0 %2430
    %2434 = vset.pattern.permute.xlu0 0
    %2435 = vperm.xlu0 %2434, %v2281
    %v2436 = vpop.permute.xlu0 %2435
    %2439 = vset.pattern.permute.xlu0 0
    %2440 = vperm.xlu0 %2439, %v2282
    %v2441 = vpop.permute.xlu0 %2440
    %2444 = vset.pattern.permute.xlu0 0
    %2445 = vperm.xlu0 %2444, %v2283
    %v2446 = vpop.permute.xlu0 %2445
    %2449 = vset.pattern.permute.xlu0 0
    %2450 = vperm.xlu0 %2449, %v2284
    %v2451 = vpop.permute.xlu0 %2450
    %2454 = vset.pattern.permute.xlu0 0
    %2455 = vperm.xlu0 %2454, %v2285
    %v2456 = vpop.permute.xlu0 %2455
    %2459 = vset.pattern.permute.xlu0 0
    %2460 = vperm.xlu0 %2459, %v2286
    %v2461 = vpop.permute.xlu0 %2460
    %2464 = vset.pattern.permute.xlu0 0
    %2465 = vperm.xlu0 %2464, %v2287
    %v2466 = vpop.permute.xlu0 %2465
    %2469 = vset.pattern.permute.xlu0 0
    %2470 = vperm.xlu0 %2469, %v2288
    %v2471 = vpop.permute.xlu0 %2470
    %2474 = vset.pattern.permute.xlu0 0
    %2475 = vperm.xlu0 %2474, %v2289
    %v2476 = vpop.permute.xlu0 %2475
    %2479 = vset.pattern.permute.xlu0 0
    %2480 = vperm.xlu0 %2479, %v2290
    %v2481 = vpop.permute.xlu0 %2480
    %2484 = vset.pattern.permute.xlu0 0
    %2485 = vperm.xlu0 %2484, %v2291
    %v2486 = vpop.permute.xlu0 %2485
    %2489 = vset.pattern.permute.xlu0 0
    %2490 = vperm.xlu0 %2489, %v2292
    %v2491 = vpop.permute.xlu0 %2490
    %2494 = vset.pattern.permute.xlu0 0
    %2495 = vperm.xlu0 %2494, %v2293
    %v2496 = vpop.permute.xlu0 %2495
    %2499 = vset.pattern.permute.xlu0 0
    %2500 = vperm.xlu0 %2499, %v2294
    %v2501 = vpop.permute.xlu0 %2500
    %2504 = vset.pattern.permute.xlu0 0
    %2505 = vperm.xlu0 %2504, %v2295
    %v2506 = vpop.permute.xlu0 %2505
    %2509 = vset.pattern.permute.xlu0 0
    %2510 = vperm.xlu0 %2509, %v2296
    %v2511 = vpop.permute.xlu0 %2510
    %2514 = vset.pattern.permute.xlu0 0
    %2515 = vperm.xlu0 %2514, %v2297
    %v2516 = vpop.permute.xlu0 %2515
    %2519 = vset.pattern.permute.xlu0 0
    %2520 = vperm.xlu0 %2519, %v2298
    %v2521 = vpop.permute.xlu0 %2520
    %2524 = vset.pattern.permute.xlu0 0
    %2525 = vperm.xlu0 %2524, %v2299
    %v2526 = vpop.permute.xlu0 %2525
    %2529 = vset.pattern.permute.xlu0 0
    %2530 = vperm.xlu0 %2529, %v2300
    %v2531 = vpop.permute.xlu0 %2530
    %2534 = vset.pattern.permute.xlu0 0
    %2535 = vperm.xlu0 %2534, %v2301
    %v2536 = vpop.permute.xlu0 %2535
    %2539 = vset.pattern.permute.xlu0 0
    %2540 = vperm.xlu0 %2539, %v2302
    %v2541 = vpop.permute.xlu0 %2540
    %2544 = vset.pattern.permute.xlu0 0
    %2545 = vperm.xlu0 %2544, %v2303
    %v2546 = vpop.permute.xlu0 %2545
    %2549 = vset.pattern.permute.xlu0 0
    %2550 = vperm.xlu0 %2549, %v2304
    %v2551 = vpop.permute.xlu0 %2550
    %2554 = vset.pattern.permute.xlu0 0
    %2555 = vperm.xlu0 %2554, %v2305
    %v2556 = vpop.permute.xlu0 %2555
    %2559 = vset.pattern.permute.xlu0 0
    %2560 = vperm.xlu0 %2559, %v2306
    %v2561 = vpop.permute.xlu0 %2560
    %2564 = vset.pattern.permute.xlu0 0
    %2565 = vperm.xlu0 %2564, %v2307
    %v2566 = vpop.permute.xlu0 %2565
    %2569 = vset.pattern.permute.xlu0 0
    %2570 = vperm.xlu0 %2569, %v2308
    %v2571 = vpop.permute.xlu0 %2570
    %2574 = vset.pattern.permute.xlu0 0
    %2575 = vperm.xlu0 %2574, %v2309
    %v2576 = vpop.permute.xlu0 %2575
    %2579 = vset.pattern.permute.xlu0 0
    %2580 = vperm.xlu0 %2579, %v2310
    %v2581 = vpop.permute.xlu0 %2580
    %2584 = vset.pattern.permute.xlu0 0
    %2585 = vperm.xlu0 %2584, %v2311
    %v2586 = vpop.permute.xlu0 %2585
    %2589 = vset.pattern.permute.xlu0 0
    %2590 = vperm.xlu0 %2589, %v2312
    %v2591 = vpop.permute.xlu0 %2590
    %2594 = vset.pattern.permute.xlu0 0
    %2595 = vperm.xlu0 %2594, %v2313
    %v2596 = vpop.permute.xlu0 %2595
    %2599 = vset.pattern.permute.xlu0 0
    %2600 = vperm.xlu0 %2599, %v2314
    %v2601 = vpop.permute.xlu0 %2600
    %2604 = vset.pattern.permute.xlu0 0
    %2605 = vperm.xlu0 %2604, %v2315
    %v2606 = vpop.permute.xlu0 %2605
    %2609 = vset.pattern.permute.xlu0 0
    %2610 = vperm.xlu0 %2609, %v2316
    %v2611 = vpop.permute.xlu0 %2610
    %2614 = vset.pattern.permute.xlu0 0
    %2615 = vperm.xlu0 %2614, %v2317
    %v2616 = vpop.permute.xlu0 %2615
    %2619 = vset.pattern.permute.xlu0 0
    %2620 = vperm.xlu0 %2619, %v2318
    %v2621 = vpop.permute.xlu0 %2620
    %2624 = vset.pattern.permute.xlu0 0
    %2625 = vperm.xlu0 %2624, %v2319
    %v2626 = vpop.permute.xlu0 %2625
    %2629 = vset.pattern.permute.xlu0 0
    %2630 = vperm.xlu0 %2629, %v2320
    %v2631 = vpop.permute.xlu0 %2630
    %2634 = vset.pattern.permute.xlu0 0
    %2635 = vperm.xlu0 %2634, %v2321
    %v2636 = vpop.permute.xlu0 %2635
    %2639 = vset.pattern.permute.xlu0 0
    %2640 = vperm.xlu0 %2639, %v2322
    %v2641 = vpop.permute.xlu0 %2640
    %v2643 = vlaneseq
    %v2644 = vshrl.u32 %v2643, 7
    %v2645 = vsub.s32 0, %v2644
    %v2646 = vrot.slane %v75, %v2645
    %v2647 = vlaneseq
    %v2648 = vshrl.u32 %v2647, 7
    %v2649 = vsub.s32 0, %v2648
    %v2650 = vrot.slane %v76, %v2649
    %v2651 = vlaneseq
    %v2652 = vshrl.u32 %v2651, 7
    %v2653 = vsub.s32 0, %v2652
    %v2654 = vrot.slane %v77, %v2653
    %v2655 = vlaneseq
    %v2656 = vshrl.u32 %v2655, 7
    %v2657 = vsub.s32 0, %v2656
    %v2658 = vrot.slane %v78, %v2657
    %v2659 = vlaneseq
    %v2660 = vshrl.u32 %v2659, 7
    %v2661 = vsub.s32 0, %v2660
    %v2662 = vrot.slane %v79, %v2661
    %v2663 = vlaneseq
    %v2664 = vshrl.u32 %v2663, 7
    %v2665 = vsub.s32 0, %v2664
    %v2666 = vrot.slane %v80, %v2665
    %v2667 = vlaneseq
    %v2668 = vshrl.u32 %v2667, 7
    %v2669 = vsub.s32 0, %v2668
    %v2670 = vrot.slane %v81, %v2669
    %v2671 = vlaneseq
    %v2672 = vshrl.u32 %v2671, 7
    %v2673 = vsub.s32 0, %v2672
    %v2674 = vrot.slane %v82, %v2673
    %v2675 = vlaneseq
    %v2676 = vshrl.u32 %v2675, 7
    %v2677 = vsub.s32 0, %v2676
    %v2678 = vrot.slane %v83, %v2677
    %v2679 = vlaneseq
    %v2680 = vshrl.u32 %v2679, 7
    %v2681 = vsub.s32 0, %v2680
    %v2682 = vrot.slane %v84, %v2681
    %v2683 = vlaneseq
    %v2684 = vshrl.u32 %v2683, 7
    %v2685 = vsub.s32 0, %v2684
    %v2686 = vrot.slane %v85, %v2685
    %v2687 = vlaneseq
    %v2688 = vshrl.u32 %v2687, 7
    %v2689 = vsub.s32 0, %v2688
    %v2690 = vrot.slane %v86, %v2689
    %v2691 = vlaneseq
    %v2692 = vshrl.u32 %v2691, 7
    %v2693 = vsub.s32 0, %v2692
    %v2694 = vrot.slane %v87, %v2693
    %v2695 = vlaneseq
    %v2696 = vshrl.u32 %v2695, 7
    %v2697 = vsub.s32 0, %v2696
    %v2698 = vrot.slane %v88, %v2697
    %v2699 = vlaneseq
    %v2700 = vshrl.u32 %v2699, 7
    %v2701 = vsub.s32 0, %v2700
    %v2702 = vrot.slane %v89, %v2701
    %v2703 = vlaneseq
    %v2704 = vshrl.u32 %v2703, 7
    %v2705 = vsub.s32 0, %v2704
    %v2706 = vrot.slane %v90, %v2705
    %v2707 = vlaneseq
    %v2708 = vshrl.u32 %v2707, 7
    %v2709 = vsub.s32 0, %v2708
    %v2710 = vrot.slane %v91, %v2709
    %v2711 = vlaneseq
    %v2712 = vshrl.u32 %v2711, 7
    %v2713 = vsub.s32 0, %v2712
    %v2714 = vrot.slane %v92, %v2713
    %v2715 = vlaneseq
    %v2716 = vshrl.u32 %v2715, 7
    %v2717 = vsub.s32 0, %v2716
    %v2718 = vrot.slane %v93, %v2717
    %v2719 = vlaneseq
    %v2720 = vshrl.u32 %v2719, 7
    %v2721 = vsub.s32 0, %v2720
    %v2722 = vrot.slane %v94, %v2721
    %v2723 = vlaneseq
    %v2724 = vshrl.u32 %v2723, 7
    %v2725 = vsub.s32 0, %v2724
    %v2726 = vrot.slane %v95, %v2725
    %v2727 = vlaneseq
    %v2728 = vshrl.u32 %v2727, 7
    %v2729 = vsub.s32 0, %v2728
    %v2730 = vrot.slane %v96, %v2729
    %v2731 = vlaneseq
    %v2732 = vshrl.u32 %v2731, 7
    %v2733 = vsub.s32 0, %v2732
    %v2734 = vrot.slane %v97, %v2733
    %v2735 = vlaneseq
    %v2736 = vshrl.u32 %v2735, 7
    %v2737 = vsub.s32 0, %v2736
    %v2738 = vrot.slane %v98, %v2737
    %v2739 = vlaneseq
    %v2740 = vshrl.u32 %v2739, 7
    %v2741 = vsub.s32 0, %v2740
    %v2742 = vrot.slane %v99, %v2741
    %v2743 = vlaneseq
    %v2744 = vshrl.u32 %v2743, 7
    %v2745 = vsub.s32 0, %v2744
    %v2746 = vrot.slane %v100, %v2745
    %v2747 = vlaneseq
    %v2748 = vshrl.u32 %v2747, 7
    %v2749 = vsub.s32 0, %v2748
    %v2750 = vrot.slane %v101, %v2749
    %v2751 = vlaneseq
    %v2752 = vshrl.u32 %v2751, 7
    %v2753 = vsub.s32 0, %v2752
    %v2754 = vrot.slane %v102, %v2753
    %v2755 = vlaneseq
    %v2756 = vshrl.u32 %v2755, 7
    %v2757 = vsub.s32 0, %v2756
    %v2758 = vrot.slane %v103, %v2757
    %v2759 = vlaneseq
    %v2760 = vshrl.u32 %v2759, 7
    %v2761 = vsub.s32 0, %v2760
    %v2762 = vrot.slane %v104, %v2761
    %v2763 = vlaneseq
    %v2764 = vshrl.u32 %v2763, 7
    %v2765 = vsub.s32 0, %v2764
    %v2766 = vrot.slane %v105, %v2765
    %v2767 = vlaneseq
    %v2768 = vshrl.u32 %v2767, 7
    %v2769 = vsub.s32 0, %v2768
    %v2770 = vrot.slane %v106, %v2769
    %v2771 = vlaneseq
    %v2772 = vshrl.u32 %v2771, 7
    %v2773 = vsub.s32 0, %v2772
    %v2774 = vrot.slane %v107, %v2773
    %v2775 = vlaneseq
    %v2776 = vshrl.u32 %v2775, 7
    %v2777 = vsub.s32 0, %v2776
    %v2778 = vrot.slane %v108, %v2777
    %v2779 = vlaneseq
    %v2780 = vshrl.u32 %v2779, 7
    %v2781 = vsub.s32 0, %v2780
    %v2782 = vrot.slane %v109, %v2781
    %v2783 = vlaneseq
    %v2784 = vshrl.u32 %v2783, 7
    %v2785 = vsub.s32 0, %v2784
    %v2786 = vrot.slane %v110, %v2785
    %v2787 = vlaneseq
    %v2788 = vshrl.u32 %v2787, 7
    %v2789 = vsub.s32 0, %v2788
    %v2790 = vrot.slane %v111, %v2789
    %v2791 = vlaneseq
    %v2792 = vshrl.u32 %v2791, 7
    %v2793 = vsub.s32 0, %v2792
    %v2794 = vrot.slane %v112, %v2793
    %v2795 = vlaneseq
    %v2796 = vshrl.u32 %v2795, 7
    %v2797 = vsub.s32 0, %v2796
    %v2798 = vrot.slane %v113, %v2797
    %v2799 = vlaneseq
    %v2800 = vshrl.u32 %v2799, 7
    %v2801 = vsub.s32 0, %v2800
    %v2802 = vrot.slane %v114, %v2801
    %v2803 = vlaneseq
    %v2804 = vshrl.u32 %v2803, 7
    %v2805 = vsub.s32 0, %v2804
    %v2806 = vrot.slane %v115, %v2805
    %v2807 = vlaneseq
    %v2808 = vshrl.u32 %v2807, 7
    %v2809 = vsub.s32 0, %v2808
    %v2810 = vrot.slane %v116, %v2809
    %v2811 = vlaneseq
    %v2812 = vshrl.u32 %v2811, 7
    %v2813 = vsub.s32 0, %v2812
    %v2814 = vrot.slane %v117, %v2813
    %v2815 = vlaneseq
    %v2816 = vshrl.u32 %v2815, 7
    %v2817 = vsub.s32 0, %v2816
    %v2818 = vrot.slane %v118, %v2817
    %v2819 = vlaneseq
    %v2820 = vshrl.u32 %v2819, 7
    %v2821 = vsub.s32 0, %v2820
    %v2822 = vrot.slane %v119, %v2821
    %v2823 = vlaneseq
    %v2824 = vshrl.u32 %v2823, 7
    %v2825 = vsub.s32 0, %v2824
    %v2826 = vrot.slane %v120, %v2825
    %v2827 = vlaneseq
    %v2828 = vshrl.u32 %v2827, 7
    %v2829 = vsub.s32 0, %v2828
    %v2830 = vrot.slane %v121, %v2829
    %v2831 = vlaneseq
    %v2832 = vshrl.u32 %v2831, 7
    %v2833 = vsub.s32 0, %v2832
    %v2834 = vrot.slane %v122, %v2833
    %v2835 = vlaneseq
    %v2836 = vshrl.u32 %v2835, 7
    %v2837 = vsub.s32 0, %v2836
    %v2838 = vrot.slane %v123, %v2837
    %v2839 = vlaneseq
    %v2840 = vshrl.u32 %v2839, 7
    %v2841 = vsub.s32 0, %v2840
    %v2842 = vrot.slane %v124, %v2841
    %v2843 = vlaneseq
    %v2844 = vshrl.u32 %v2843, 7
    %v2845 = vsub.s32 0, %v2844
    %v2846 = vrot.slane %v125, %v2845
    %v2847 = vlaneseq
    %v2848 = vshrl.u32 %v2847, 7
    %v2849 = vsub.s32 0, %v2848
    %v2850 = vrot.slane %v126, %v2849
    %v2851 = vlaneseq
    %v2852 = vshrl.u32 %v2851, 7
    %v2853 = vsub.s32 0, %v2852
    %v2854 = vrot.slane %v127, %v2853
    %v2855 = vlaneseq
    %v2856 = vshrl.u32 %v2855, 7
    %v2857 = vsub.s32 0, %v2856
    %v2858 = vrot.slane %v128, %v2857
    %v2859 = vlaneseq
    %v2860 = vshrl.u32 %v2859, 7
    %v2861 = vsub.s32 0, %v2860
    %v2862 = vrot.slane %v129, %v2861
    %v2863 = vlaneseq
    %v2864 = vshrl.u32 %v2863, 7
    %v2865 = vsub.s32 0, %v2864
    %v2866 = vrot.slane %v130, %v2865
    %v2867 = vlaneseq
    %v2868 = vshrl.u32 %v2867, 7
    %v2869 = vsub.s32 0, %v2868
    %v2870 = vrot.slane %v131, %v2869
    %v2871 = vlaneseq
    %v2872 = vshrl.u32 %v2871, 7
    %v2873 = vsub.s32 0, %v2872
    %v2874 = vrot.slane %v132, %v2873
    %v2875 = vlaneseq
    %v2876 = vshrl.u32 %v2875, 7
    %v2877 = vsub.s32 0, %v2876
    %v2878 = vrot.slane %v133, %v2877
    %v2879 = vlaneseq
    %v2880 = vshrl.u32 %v2879, 7
    %v2881 = vsub.s32 0, %v2880
    %v2882 = vrot.slane %v134, %v2881
    %v2883 = vlaneseq
    %v2884 = vshrl.u32 %v2883, 7
    %v2885 = vsub.s32 0, %v2884
    %v2886 = vrot.slane %v135, %v2885
    %v2887 = vlaneseq
    %v2888 = vshrl.u32 %v2887, 7
    %v2889 = vsub.s32 0, %v2888
    %v2890 = vrot.slane %v136, %v2889
    %v2891 = vlaneseq
    %v2892 = vshrl.u32 %v2891, 7
    %v2893 = vsub.s32 0, %v2892
    %v2894 = vrot.slane %v137, %v2893
    %v2895 = vlaneseq
    %v2896 = vshrl.u32 %v2895, 7
    %v2897 = vsub.s32 0, %v2896
    %v2898 = vrot.slane %v138, %v2897
    %v2899 = vmul.f32 %v2326, %v2646
    %v2900 = vmul.f32 %v2331, %v2650
    %v2901 = vmul.f32 %v2336, %v2654
    %v2902 = vmul.f32 %v2341, %v2658
    %v2903 = vmul.f32 %v2346, %v2662
    %v2904 = vmul.f32 %v2351, %v2666
    %v2905 = vmul.f32 %v2356, %v2670
    %v2906 = vmul.f32 %v2361, %v2674
    %v2907 = vmul.f32 %v2366, %v2678
    %v2908 = vmul.f32 %v2371, %v2682
    %v2909 = vmul.f32 %v2376, %v2686
    %v2910 = vmul.f32 %v2381, %v2690
    %v2911 = vmul.f32 %v2386, %v2694
    %v2912 = vmul.f32 %v2391, %v2698
    %v2913 = vmul.f32 %v2396, %v2702
    %v2914 = vmul.f32 %v2401, %v2706
    %v2915 = vmul.f32 %v2406, %v2710
    %v2916 = vmul.f32 %v2411, %v2714
    %v2917 = vmul.f32 %v2416, %v2718
    %v2918 = vmul.f32 %v2421, %v2722
    %v2919 = vmul.f32 %v2426, %v2726
    %v2920 = vmul.f32 %v2431, %v2730
    %v2921 = vmul.f32 %v2436, %v2734
    %v2922 = vmul.f32 %v2441, %v2738
    %v2923 = vmul.f32 %v2446, %v2742
    %v2924 = vmul.f32 %v2451, %v2746
    %v2925 = vmul.f32 %v2456, %v2750
    %v2926 = vmul.f32 %v2461, %v2754
    %v2927 = vmul.f32 %v2466, %v2758
    %v2928 = vmul.f32 %v2471, %v2762
    %v2929 = vmul.f32 %v2476, %v2766
    %v2930 = vmul.f32 %v2481, %v2770
    %v2931 = vmul.f32 %v2486, %v2774
    %v2932 = vmul.f32 %v2491, %v2778
    %v2933 = vmul.f32 %v2496, %v2782
    %v2934 = vmul.f32 %v2501, %v2786
    %v2935 = vmul.f32 %v2506, %v2790
    %v2936 = vmul.f32 %v2511, %v2794
    %v2937 = vmul.f32 %v2516, %v2798
    %v2938 = vmul.f32 %v2521, %v2802
    %v2939 = vmul.f32 %v2526, %v2806
    %v2940 = vmul.f32 %v2531, %v2810
    %v2941 = vmul.f32 %v2536, %v2814
    %v2942 = vmul.f32 %v2541, %v2818
    %v2943 = vmul.f32 %v2546, %v2822
    %v2944 = vmul.f32 %v2551, %v2826
    %v2945 = vmul.f32 %v2556, %v2830
    %v2946 = vmul.f32 %v2561, %v2834
    %v2947 = vmul.f32 %v2566, %v2838
    %v2948 = vmul.f32 %v2571, %v2842
    %v2949 = vmul.f32 %v2576, %v2846
    %v2950 = vmul.f32 %v2581, %v2850
    %v2951 = vmul.f32 %v2586, %v2854
    %v2952 = vmul.f32 %v2591, %v2858
    %v2953 = vmul.f32 %v2596, %v2862
    %v2954 = vmul.f32 %v2601, %v2866
    %v2955 = vmul.f32 %v2606, %v2870
    %v2956 = vmul.f32 %v2611, %v2874
    %v2957 = vmul.f32 %v2616, %v2878
    %v2958 = vmul.f32 %v2621, %v2882
    %v2959 = vmul.f32 %v2626, %v2886
    %v2960 = vmul.f32 %v2631, %v2890
    %v2961 = vmul.f32 %v2636, %v2894
    %v2962 = vmul.f32 %v2641, %v2898
    %2963 = vset.pattern.permute.xlu0 1
    %2964 = vperm.xlu0 %2963, %v2259
    %v2965 = vpop.permute.xlu0 %2964
    %2967 = vset.pattern.permute.xlu0 1
    %2968 = vperm.xlu0 %2967, %v2260
    %v2969 = vpop.permute.xlu0 %2968
    %2971 = vset.pattern.permute.xlu0 1
    %2972 = vperm.xlu0 %2971, %v2261
    %v2973 = vpop.permute.xlu0 %2972
    %2975 = vset.pattern.permute.xlu0 1
    %2976 = vperm.xlu0 %2975, %v2262
    %v2977 = vpop.permute.xlu0 %2976
    %2979 = vset.pattern.permute.xlu0 1
    %2980 = vperm.xlu0 %2979, %v2263
    %v2981 = vpop.permute.xlu0 %2980
    %2983 = vset.pattern.permute.xlu0 1
    %2984 = vperm.xlu0 %2983, %v2264
    %v2985 = vpop.permute.xlu0 %2984
    %2987 = vset.pattern.permute.xlu0 1
    %2988 = vperm.xlu0 %2987, %v2265
    %v2989 = vpop.permute.xlu0 %2988
    %2991 = vset.pattern.permute.xlu0 1
    %2992 = vperm.xlu0 %2991, %v2266
    %v2993 = vpop.permute.xlu0 %2992
    %2995 = vset.pattern.permute.xlu0 1
    %2996 = vperm.xlu0 %2995, %v2267
    %v2997 = vpop.permute.xlu0 %2996
    %2999 = vset.pattern.permute.xlu0 1
    %3000 = vperm.xlu0 %2999, %v2268
    %v3001 = vpop.permute.xlu0 %3000
    %3003 = vset.pattern.permute.xlu0 1
    %3004 = vperm.xlu0 %3003, %v2269
    %v3005 = vpop.permute.xlu0 %3004
    %3007 = vset.pattern.permute.xlu0 1
    %3008 = vperm.xlu0 %3007, %v2270
    %v3009 = vpop.permute.xlu0 %3008
    %3011 = vset.pattern.permute.xlu0 1
    %3012 = vperm.xlu0 %3011, %v2271
    %v3013 = vpop.permute.xlu0 %3012
    %3015 = vset.pattern.permute.xlu0 1
    %3016 = vperm.xlu0 %3015, %v2272
    %v3017 = vpop.permute.xlu0 %3016
    %3019 = vset.pattern.permute.xlu0 1
    %3020 = vperm.xlu0 %3019, %v2273
    %v3021 = vpop.permute.xlu0 %3020
    %3023 = vset.pattern.permute.xlu0 1
    %3024 = vperm.xlu0 %3023, %v2274
    %v3025 = vpop.permute.xlu0 %3024
    %3027 = vset.pattern.permute.xlu0 1
    %3028 = vperm.xlu0 %3027, %v2275
    %v3029 = vpop.permute.xlu0 %3028
    %3031 = vset.pattern.permute.xlu0 1
    %3032 = vperm.xlu0 %3031, %v2276
    %v3033 = vpop.permute.xlu0 %3032
    %3035 = vset.pattern.permute.xlu0 1
    %3036 = vperm.xlu0 %3035, %v2277
    %v3037 = vpop.permute.xlu0 %3036
    %3039 = vset.pattern.permute.xlu0 1
    %3040 = vperm.xlu0 %3039, %v2278
    %v3041 = vpop.permute.xlu0 %3040
    %3043 = vset.pattern.permute.xlu0 1
    %3044 = vperm.xlu0 %3043, %v2279
    %v3045 = vpop.permute.xlu0 %3044
    %3047 = vset.pattern.permute.xlu0 1
    %3048 = vperm.xlu0 %3047, %v2280
    %v3049 = vpop.permute.xlu0 %3048
    %3051 = vset.pattern.permute.xlu0 1
    %3052 = vperm.xlu0 %3051, %v2281
    %v3053 = vpop.permute.xlu0 %3052
    %3055 = vset.pattern.permute.xlu0 1
    %3056 = vperm.xlu0 %3055, %v2282
    %v3057 = vpop.permute.xlu0 %3056
    %3059 = vset.pattern.permute.xlu0 1
    %3060 = vperm.xlu0 %3059, %v2283
    %v3061 = vpop.permute.xlu0 %3060
    %3063 = vset.pattern.permute.xlu0 1
    %3064 = vperm.xlu0 %3063, %v2284
    %v3065 = vpop.permute.xlu0 %3064
    %3067 = vset.pattern.permute.xlu0 1
    %3068 = vperm.xlu0 %3067, %v2285
    %v3069 = vpop.permute.xlu0 %3068
    %3071 = vset.pattern.permute.xlu0 1
    %3072 = vperm.xlu0 %3071, %v2286
    %v3073 = vpop.permute.xlu0 %3072
    %3075 = vset.pattern.permute.xlu0 1
    %3076 = vperm.xlu0 %3075, %v2287
    %v3077 = vpop.permute.xlu0 %3076
    %3079 = vset.pattern.permute.xlu0 1
    %3080 = vperm.xlu0 %3079, %v2288
    %v3081 = vpop.permute.xlu0 %3080
    %3083 = vset.pattern.permute.xlu0 1
    %3084 = vperm.xlu0 %3083, %v2289
    %v3085 = vpop.permute.xlu0 %3084
    %3087 = vset.pattern.permute.xlu0 1
    %3088 = vperm.xlu0 %3087, %v2290
    %v3089 = vpop.permute.xlu0 %3088
    %3091 = vset.pattern.permute.xlu0 1
    %3092 = vperm.xlu0 %3091, %v2291
    %v3093 = vpop.permute.xlu0 %3092
    %3095 = vset.pattern.permute.xlu0 1
    %3096 = vperm.xlu0 %3095, %v2292
    %v3097 = vpop.permute.xlu0 %3096
    %3099 = vset.pattern.permute.xlu0 1
    %3100 = vperm.xlu0 %3099, %v2293
    %v3101 = vpop.permute.xlu0 %3100
    %3103 = vset.pattern.permute.xlu0 1
    %3104 = vperm.xlu0 %3103, %v2294
    %v3105 = vpop.permute.xlu0 %3104
    %3107 = vset.pattern.permute.xlu0 1
    %3108 = vperm.xlu0 %3107, %v2295
    %v3109 = vpop.permute.xlu0 %3108
    %3111 = vset.pattern.permute.xlu0 1
    %3112 = vperm.xlu0 %3111, %v2296
    %v3113 = vpop.permute.xlu0 %3112
    %3115 = vset.pattern.permute.xlu0 1
    %3116 = vperm.xlu0 %3115, %v2297
    %v3117 = vpop.permute.xlu0 %3116
    %3119 = vset.pattern.permute.xlu0 1
    %3120 = vperm.xlu0 %3119, %v2298
    %v3121 = vpop.permute.xlu0 %3120
    %3123 = vset.pattern.permute.xlu0 1
    %3124 = vperm.xlu0 %3123, %v2299
    %v3125 = vpop.permute.xlu0 %3124
    %3127 = vset.pattern.permute.xlu0 1
    %3128 = vperm.xlu0 %3127, %v2300
    %v3129 = vpop.permute.xlu0 %3128
    %3131 = vset.pattern.permute.xlu0 1
    %3132 = vperm.xlu0 %3131, %v2301
    %v3133 = vpop.permute.xlu0 %3132
    %3135 = vset.pattern.permute.xlu0 1
    %3136 = vperm.xlu0 %3135, %v2302
    %v3137 = vpop.permute.xlu0 %3136
    %3139 = vset.pattern.permute.xlu0 1
    %3140 = vperm.xlu0 %3139, %v2303
    %v3141 = vpop.permute.xlu0 %3140
    %3143 = vset.pattern.permute.xlu0 1
    %3144 = vperm.xlu0 %3143, %v2304
    %v3145 = vpop.permute.xlu0 %3144
    %3147 = vset.pattern.permute.xlu0 1
    %3148 = vperm.xlu0 %3147, %v2305
    %v3149 = vpop.permute.xlu0 %3148
    %3151 = vset.pattern.permute.xlu0 1
    %3152 = vperm.xlu0 %3151, %v2306
    %v3153 = vpop.permute.xlu0 %3152
    %3155 = vset.pattern.permute.xlu0 1
    %3156 = vperm.xlu0 %3155, %v2307
    %v3157 = vpop.permute.xlu0 %3156
    %3159 = vset.pattern.permute.xlu0 1
    %3160 = vperm.xlu0 %3159, %v2308
    %v3161 = vpop.permute.xlu0 %3160
    %3163 = vset.pattern.permute.xlu0 1
    %3164 = vperm.xlu0 %3163, %v2309
    %v3165 = vpop.permute.xlu0 %3164
    %3167 = vset.pattern.permute.xlu0 1
    %3168 = vperm.xlu0 %3167, %v2310
    %v3169 = vpop.permute.xlu0 %3168
    %3171 = vset.pattern.permute.xlu0 1
    %3172 = vperm.xlu0 %3171, %v2311
    %v3173 = vpop.permute.xlu0 %3172
    %3175 = vset.pattern.permute.xlu0 1
    %3176 = vperm.xlu0 %3175, %v2312
    %v3177 = vpop.permute.xlu0 %3176
    %3179 = vset.pattern.permute.xlu0 1
    %3180 = vperm.xlu0 %3179, %v2313
    %v3181 = vpop.permute.xlu0 %3180
    %3183 = vset.pattern.permute.xlu0 1
    %3184 = vperm.xlu0 %3183, %v2314
    %v3185 = vpop.permute.xlu0 %3184
    %3187 = vset.pattern.permute.xlu0 1
    %3188 = vperm.xlu0 %3187, %v2315
    %v3189 = vpop.permute.xlu0 %3188
    %3191 = vset.pattern.permute.xlu0 1
    %3192 = vperm.xlu0 %3191, %v2316
    %v3193 = vpop.permute.xlu0 %3192
    %3195 = vset.pattern.permute.xlu0 1
    %3196 = vperm.xlu0 %3195, %v2317
    %v3197 = vpop.permute.xlu0 %3196
    %3199 = vset.pattern.permute.xlu0 1
    %3200 = vperm.xlu0 %3199, %v2318
    %v3201 = vpop.permute.xlu0 %3200
    %3203 = vset.pattern.permute.xlu0 1
    %3204 = vperm.xlu0 %3203, %v2319
    %v3205 = vpop.permute.xlu0 %3204
    %3207 = vset.pattern.permute.xlu0 1
    %3208 = vperm.xlu0 %3207, %v2320
    %v3209 = vpop.permute.xlu0 %3208
    %3211 = vset.pattern.permute.xlu0 1
    %3212 = vperm.xlu0 %3211, %v2321
    %v3213 = vpop.permute.xlu0 %3212
    %3215 = vset.pattern.permute.xlu0 1
    %3216 = vperm.xlu0 %3215, %v2322
    %v3217 = vpop.permute.xlu0 %3216
    %v3219 = vlaneseq
    %v3220 = vshrl.u32 %v3219, 7
    %v3221 = vsub.s32 1, %v3220
    %v3222 = vrot.slane %v75, %v3221
    %v3223 = vlaneseq
    %v3224 = vshrl.u32 %v3223, 7
    %v3225 = vsub.s32 1, %v3224
    %v3226 = vrot.slane %v76, %v3225
    %v3227 = vlaneseq
    %v3228 = vshrl.u32 %v3227, 7
    %v3229 = vsub.s32 1, %v3228
    %v3230 = vrot.slane %v77, %v3229
    %v3231 = vlaneseq
    %v3232 = vshrl.u32 %v3231, 7
    %v3233 = vsub.s32 1, %v3232
    %v3234 = vrot.slane %v78, %v3233
    %v3235 = vlaneseq
    %v3236 = vshrl.u32 %v3235, 7
    %v3237 = vsub.s32 1, %v3236
    %v3238 = vrot.slane %v79, %v3237
    %v3239 = vlaneseq
    %v3240 = vshrl.u32 %v3239, 7
    %v3241 = vsub.s32 1, %v3240
    %v3242 = vrot.slane %v80, %v3241
    %v3243 = vlaneseq
    %v3244 = vshrl.u32 %v3243, 7
    %v3245 = vsub.s32 1, %v3244
    %v3246 = vrot.slane %v81, %v3245
    %v3247 = vlaneseq
    %v3248 = vshrl.u32 %v3247, 7
    %v3249 = vsub.s32 1, %v3248
    %v3250 = vrot.slane %v82, %v3249
    %v3251 = vlaneseq
    %v3252 = vshrl.u32 %v3251, 7
    %v3253 = vsub.s32 1, %v3252
    %v3254 = vrot.slane %v83, %v3253
    %v3255 = vlaneseq
    %v3256 = vshrl.u32 %v3255, 7
    %v3257 = vsub.s32 1, %v3256
    %v3258 = vrot.slane %v84, %v3257
    %v3259 = vlaneseq
    %v3260 = vshrl.u32 %v3259, 7
    %v3261 = vsub.s32 1, %v3260
    %v3262 = vrot.slane %v85, %v3261
    %v3263 = vlaneseq
    %v3264 = vshrl.u32 %v3263, 7
    %v3265 = vsub.s32 1, %v3264
    %v3266 = vrot.slane %v86, %v3265
    %v3267 = vlaneseq
    %v3268 = vshrl.u32 %v3267, 7
    %v3269 = vsub.s32 1, %v3268
    %v3270 = vrot.slane %v87, %v3269
    %v3271 = vlaneseq
    %v3272 = vshrl.u32 %v3271, 7
    %v3273 = vsub.s32 1, %v3272
    %v3274 = vrot.slane %v88, %v3273
    %v3275 = vlaneseq
    %v3276 = vshrl.u32 %v3275, 7
    %v3277 = vsub.s32 1, %v3276
    %v3278 = vrot.slane %v89, %v3277
    %v3279 = vlaneseq
    %v3280 = vshrl.u32 %v3279, 7
    %v3281 = vsub.s32 1, %v3280
    %v3282 = vrot.slane %v90, %v3281
    %v3283 = vlaneseq
    %v3284 = vshrl.u32 %v3283, 7
    %v3285 = vsub.s32 1, %v3284
    %v3286 = vrot.slane %v91, %v3285
    %v3287 = vlaneseq
    %v3288 = vshrl.u32 %v3287, 7
    %v3289 = vsub.s32 1, %v3288
    %v3290 = vrot.slane %v92, %v3289
    %v3291 = vlaneseq
    %v3292 = vshrl.u32 %v3291, 7
    %v3293 = vsub.s32 1, %v3292
    %v3294 = vrot.slane %v93, %v3293
    %v3295 = vlaneseq
    %v3296 = vshrl.u32 %v3295, 7
    %v3297 = vsub.s32 1, %v3296
    %v3298 = vrot.slane %v94, %v3297
    %v3299 = vlaneseq
    %v3300 = vshrl.u32 %v3299, 7
    %v3301 = vsub.s32 1, %v3300
    %v3302 = vrot.slane %v95, %v3301
    %v3303 = vlaneseq
    %v3304 = vshrl.u32 %v3303, 7
    %v3305 = vsub.s32 1, %v3304
    %v3306 = vrot.slane %v96, %v3305
    %v3307 = vlaneseq
    %v3308 = vshrl.u32 %v3307, 7
    %v3309 = vsub.s32 1, %v3308
    %v3310 = vrot.slane %v97, %v3309
    %v3311 = vlaneseq
    %v3312 = vshrl.u32 %v3311, 7
    %v3313 = vsub.s32 1, %v3312
    %v3314 = vrot.slane %v98, %v3313
    %v3315 = vlaneseq
    %v3316 = vshrl.u32 %v3315, 7
    %v3317 = vsub.s32 1, %v3316
    %v3318 = vrot.slane %v99, %v3317
    %v3319 = vlaneseq
    %v3320 = vshrl.u32 %v3319, 7
    %v3321 = vsub.s32 1, %v3320
    %v3322 = vrot.slane %v100, %v3321
    %v3323 = vlaneseq
    %v3324 = vshrl.u32 %v3323, 7
    %v3325 = vsub.s32 1, %v3324
    %v3326 = vrot.slane %v101, %v3325
    %v3327 = vlaneseq
    %v3328 = vshrl.u32 %v3327, 7
    %v3329 = vsub.s32 1, %v3328
    %v3330 = vrot.slane %v102, %v3329
    %v3331 = vlaneseq
    %v3332 = vshrl.u32 %v3331, 7
    %v3333 = vsub.s32 1, %v3332
    %v3334 = vrot.slane %v103, %v3333
    %v3335 = vlaneseq
    %v3336 = vshrl.u32 %v3335, 7
    %v3337 = vsub.s32 1, %v3336
    %v3338 = vrot.slane %v104, %v3337
    %v3339 = vlaneseq
    %v3340 = vshrl.u32 %v3339, 7
    %v3341 = vsub.s32 1, %v3340
    %v3342 = vrot.slane %v105, %v3341
    %v3343 = vlaneseq
    %v3344 = vshrl.u32 %v3343, 7
    %v3345 = vsub.s32 1, %v3344
    %v3346 = vrot.slane %v106, %v3345
    %v3347 = vlaneseq
    %v3348 = vshrl.u32 %v3347, 7
    %v3349 = vsub.s32 1, %v3348
    %v3350 = vrot.slane %v107, %v3349
    %v3351 = vlaneseq
    %v3352 = vshrl.u32 %v3351, 7
    %v3353 = vsub.s32 1, %v3352
    %v3354 = vrot.slane %v108, %v3353
    %v3355 = vlaneseq
    %v3356 = vshrl.u32 %v3355, 7
    %v3357 = vsub.s32 1, %v3356
    %v3358 = vrot.slane %v109, %v3357
    %v3359 = vlaneseq
    %v3360 = vshrl.u32 %v3359, 7
    %v3361 = vsub.s32 1, %v3360
    %v3362 = vrot.slane %v110, %v3361
    %v3363 = vlaneseq
    %v3364 = vshrl.u32 %v3363, 7
    %v3365 = vsub.s32 1, %v3364
    %v3366 = vrot.slane %v111, %v3365
    %v3367 = vlaneseq
    %v3368 = vshrl.u32 %v3367, 7
    %v3369 = vsub.s32 1, %v3368
    %v3370 = vrot.slane %v112, %v3369
    %v3371 = vlaneseq
    %v3372 = vshrl.u32 %v3371, 7
    %v3373 = vsub.s32 1, %v3372
    %v3374 = vrot.slane %v113, %v3373
    %v3375 = vlaneseq
    %v3376 = vshrl.u32 %v3375, 7
    %v3377 = vsub.s32 1, %v3376
    %v3378 = vrot.slane %v114, %v3377
    %v3379 = vlaneseq
    %v3380 = vshrl.u32 %v3379, 7
    %v3381 = vsub.s32 1, %v3380
    %v3382 = vrot.slane %v115, %v3381
    %v3383 = vlaneseq
    %v3384 = vshrl.u32 %v3383, 7
    %v3385 = vsub.s32 1, %v3384
    %v3386 = vrot.slane %v116, %v3385
    %v3387 = vlaneseq
    %v3388 = vshrl.u32 %v3387, 7
    %v3389 = vsub.s32 1, %v3388
    %v3390 = vrot.slane %v117, %v3389
    %v3391 = vlaneseq
    %v3392 = vshrl.u32 %v3391, 7
    %v3393 = vsub.s32 1, %v3392
    %v3394 = vrot.slane %v118, %v3393
    %v3395 = vlaneseq
    %v3396 = vshrl.u32 %v3395, 7
    %v3397 = vsub.s32 1, %v3396
    %v3398 = vrot.slane %v119, %v3397
    %v3399 = vlaneseq
    %v3400 = vshrl.u32 %v3399, 7
    %v3401 = vsub.s32 1, %v3400
    %v3402 = vrot.slane %v120, %v3401
    %v3403 = vlaneseq
    %v3404 = vshrl.u32 %v3403, 7
    %v3405 = vsub.s32 1, %v3404
    %v3406 = vrot.slane %v121, %v3405
    %v3407 = vlaneseq
    %v3408 = vshrl.u32 %v3407, 7
    %v3409 = vsub.s32 1, %v3408
    %v3410 = vrot.slane %v122, %v3409
    %v3411 = vlaneseq
    %v3412 = vshrl.u32 %v3411, 7
    %v3413 = vsub.s32 1, %v3412
    %v3414 = vrot.slane %v123, %v3413
    %v3415 = vlaneseq
    %v3416 = vshrl.u32 %v3415, 7
    %v3417 = vsub.s32 1, %v3416
    %v3418 = vrot.slane %v124, %v3417
    %v3419 = vlaneseq
    %v3420 = vshrl.u32 %v3419, 7
    %v3421 = vsub.s32 1, %v3420
    %v3422 = vrot.slane %v125, %v3421
    %v3423 = vlaneseq
    %v3424 = vshrl.u32 %v3423, 7
    %v3425 = vsub.s32 1, %v3424
    %v3426 = vrot.slane %v126, %v3425
    %v3427 = vlaneseq
    %v3428 = vshrl.u32 %v3427, 7
    %v3429 = vsub.s32 1, %v3428
    %v3430 = vrot.slane %v127, %v3429
    %v3431 = vlaneseq
    %v3432 = vshrl.u32 %v3431, 7
    %v3433 = vsub.s32 1, %v3432
    %v3434 = vrot.slane %v128, %v3433
    %v3435 = vlaneseq
    %v3436 = vshrl.u32 %v3435, 7
    %v3437 = vsub.s32 1, %v3436
    %v3438 = vrot.slane %v129, %v3437
    %v3439 = vlaneseq
    %v3440 = vshrl.u32 %v3439, 7
    %v3441 = vsub.s32 1, %v3440
    %v3442 = vrot.slane %v130, %v3441
    %v3443 = vlaneseq
    %v3444 = vshrl.u32 %v3443, 7
    %v3445 = vsub.s32 1, %v3444
    %v3446 = vrot.slane %v131, %v3445
    %v3447 = vlaneseq
    %v3448 = vshrl.u32 %v3447, 7
    %v3449 = vsub.s32 1, %v3448
    %v3450 = vrot.slane %v132, %v3449
    %v3451 = vlaneseq
    %v3452 = vshrl.u32 %v3451, 7
    %v3453 = vsub.s32 1, %v3452
    %v3454 = vrot.slane %v133, %v3453
    %v3455 = vlaneseq
    %v3456 = vshrl.u32 %v3455, 7
    %v3457 = vsub.s32 1, %v3456
    %v3458 = vrot.slane %v134, %v3457
    %v3459 = vlaneseq
    %v3460 = vshrl.u32 %v3459, 7
    %v3461 = vsub.s32 1, %v3460
    %v3462 = vrot.slane %v135, %v3461
    %v3463 = vlaneseq
    %v3464 = vshrl.u32 %v3463, 7
    %v3465 = vsub.s32 1, %v3464
    %v3466 = vrot.slane %v136, %v3465
    %v3467 = vlaneseq
    %v3468 = vshrl.u32 %v3467, 7
    %v3469 = vsub.s32 1, %v3468
    %v3470 = vrot.slane %v137, %v3469
    %v3471 = vlaneseq
    %v3472 = vshrl.u32 %v3471, 7
    %v3473 = vsub.s32 1, %v3472
    %v3474 = vrot.slane %v138, %v3473
    %v3475 = vmul.f32 %v2965, %v3222
    %v3476 = vmul.f32 %v2969, %v3226
    %v3477 = vmul.f32 %v2973, %v3230
    %v3478 = vmul.f32 %v2977, %v3234
    %v3479 = vmul.f32 %v2981, %v3238
    %v3480 = vmul.f32 %v2985, %v3242
    %v3481 = vmul.f32 %v2989, %v3246
    %v3482 = vmul.f32 %v2993, %v3250
    %v3483 = vmul.f32 %v2997, %v3254
    %v3484 = vmul.f32 %v3001, %v3258
    %v3485 = vmul.f32 %v3005, %v3262
    %v3486 = vmul.f32 %v3009, %v3266
    %v3487 = vmul.f32 %v3013, %v3270
    %v3488 = vmul.f32 %v3017, %v3274
    %v3489 = vmul.f32 %v3021, %v3278
    %v3490 = vmul.f32 %v3025, %v3282
    %v3491 = vmul.f32 %v3029, %v3286
    %v3492 = vmul.f32 %v3033, %v3290
    %v3493 = vmul.f32 %v3037, %v3294
    %v3494 = vmul.f32 %v3041, %v3298
    %v3495 = vmul.f32 %v3045, %v3302
    %v3496 = vmul.f32 %v3049, %v3306
    %v3497 = vmul.f32 %v3053, %v3310
    %v3498 = vmul.f32 %v3057, %v3314
    %v3499 = vmul.f32 %v3061, %v3318
    %v3500 = vmul.f32 %v3065, %v3322
    %v3501 = vmul.f32 %v3069, %v3326
    %v3502 = vmul.f32 %v3073, %v3330
    %v3503 = vmul.f32 %v3077, %v3334
    %v3504 = vmul.f32 %v3081, %v3338
    %v3505 = vmul.f32 %v3085, %v3342
    %v3506 = vmul.f32 %v3089, %v3346
    %v3507 = vmul.f32 %v3093, %v3350
    %v3508 = vmul.f32 %v3097, %v3354
    %v3509 = vmul.f32 %v3101, %v3358
    %v3510 = vmul.f32 %v3105, %v3362
    %v3511 = vmul.f32 %v3109, %v3366
    %v3512 = vmul.f32 %v3113, %v3370
    %v3513 = vmul.f32 %v3117, %v3374
    %v3514 = vmul.f32 %v3121, %v3378
    %v3515 = vmul.f32 %v3125, %v3382
    %v3516 = vmul.f32 %v3129, %v3386
    %v3517 = vmul.f32 %v3133, %v3390
    %v3518 = vmul.f32 %v3137, %v3394
    %v3519 = vmul.f32 %v3141, %v3398
    %v3520 = vmul.f32 %v3145, %v3402
    %v3521 = vmul.f32 %v3149, %v3406
    %v3522 = vmul.f32 %v3153, %v3410
    %v3523 = vmul.f32 %v3157, %v3414
    %v3524 = vmul.f32 %v3161, %v3418
    %v3525 = vmul.f32 %v3165, %v3422
    %v3526 = vmul.f32 %v3169, %v3426
    %v3527 = vmul.f32 %v3173, %v3430
    %v3528 = vmul.f32 %v3177, %v3434
    %v3529 = vmul.f32 %v3181, %v3438
    %v3530 = vmul.f32 %v3185, %v3442
    %v3531 = vmul.f32 %v3189, %v3446
    %v3532 = vmul.f32 %v3193, %v3450
    %v3533 = vmul.f32 %v3197, %v3454
    %v3534 = vmul.f32 %v3201, %v3458
    %v3535 = vmul.f32 %v3205, %v3462
    %v3536 = vmul.f32 %v3209, %v3466
    %v3537 = vmul.f32 %v3213, %v3470
    %v3538 = vmul.f32 %v3217, %v3474
    %v3539 = vadd.f32 %v2899, %v3475
    %v3540 = vadd.f32 %v2900, %v3476
    %v3541 = vadd.f32 %v2901, %v3477
    %v3542 = vadd.f32 %v2902, %v3478
    %v3543 = vadd.f32 %v2903, %v3479
    %v3544 = vadd.f32 %v2904, %v3480
    %v3545 = vadd.f32 %v2905, %v3481
    %v3546 = vadd.f32 %v2906, %v3482
    %v3547 = vadd.f32 %v2907, %v3483
    %v3548 = vadd.f32 %v2908, %v3484
    %v3549 = vadd.f32 %v2909, %v3485
    %v3550 = vadd.f32 %v2910, %v3486
    %v3551 = vadd.f32 %v2911, %v3487
    %v3552 = vadd.f32 %v2912, %v3488
    %v3553 = vadd.f32 %v2913, %v3489
    %v3554 = vadd.f32 %v2914, %v3490
    %v3555 = vadd.f32 %v2915, %v3491
    %v3556 = vadd.f32 %v2916, %v3492
    %v3557 = vadd.f32 %v2917, %v3493
    %v3558 = vadd.f32 %v2918, %v3494
    %v3559 = vadd.f32 %v2919, %v3495
    %v3560 = vadd.f32 %v2920, %v3496
    %v3561 = vadd.f32 %v2921, %v3497
    %v3562 = vadd.f32 %v2922, %v3498
    %v3563 = vadd.f32 %v2923, %v3499
    %v3564 = vadd.f32 %v2924, %v3500
    %v3565 = vadd.f32 %v2925, %v3501
    %v3566 = vadd.f32 %v2926, %v3502
    %v3567 = vadd.f32 %v2927, %v3503
    %v3568 = vadd.f32 %v2928, %v3504
    %v3569 = vadd.f32 %v2929, %v3505
    %v3570 = vadd.f32 %v2930, %v3506
    %v3571 = vadd.f32 %v2931, %v3507
    %v3572 = vadd.f32 %v2932, %v3508
    %v3573 = vadd.f32 %v2933, %v3509
    %v3574 = vadd.f32 %v2934, %v3510
    %v3575 = vadd.f32 %v2935, %v3511
    %v3576 = vadd.f32 %v2936, %v3512
    %v3577 = vadd.f32 %v2937, %v3513
    %v3578 = vadd.f32 %v2938, %v3514
    %v3579 = vadd.f32 %v2939, %v3515
    %v3580 = vadd.f32 %v2940, %v3516
    %v3581 = vadd.f32 %v2941, %v3517
    %v3582 = vadd.f32 %v2942, %v3518
    %v3583 = vadd.f32 %v2943, %v3519
    %v3584 = vadd.f32 %v2944, %v3520
    %v3585 = vadd.f32 %v2945, %v3521
    %v3586 = vadd.f32 %v2946, %v3522
    %v3587 = vadd.f32 %v2947, %v3523
    %v3588 = vadd.f32 %v2948, %v3524
    %v3589 = vadd.f32 %v2949, %v3525
    %v3590 = vadd.f32 %v2950, %v3526
    %v3591 = vadd.f32 %v2951, %v3527
    %v3592 = vadd.f32 %v2952, %v3528
    %v3593 = vadd.f32 %v2953, %v3529
    %v3594 = vadd.f32 %v2954, %v3530
    %v3595 = vadd.f32 %v2955, %v3531
    %v3596 = vadd.f32 %v2956, %v3532
    %v3597 = vadd.f32 %v2957, %v3533
    %v3598 = vadd.f32 %v2958, %v3534
    %v3599 = vadd.f32 %v2959, %v3535
    %v3600 = vadd.f32 %v2960, %v3536
    %v3601 = vadd.f32 %v2961, %v3537
    %v3602 = vadd.f32 %v2962, %v3538
    %3603 = vset.pattern.permute.xlu0 2
    %3604 = vperm.xlu0 %3603, %v2259
    %v3605 = vpop.permute.xlu0 %3604
    %3607 = vset.pattern.permute.xlu0 2
    %3608 = vperm.xlu0 %3607, %v2260
    %v3609 = vpop.permute.xlu0 %3608
    %3611 = vset.pattern.permute.xlu0 2
    %3612 = vperm.xlu0 %3611, %v2261
    %v3613 = vpop.permute.xlu0 %3612
    %3615 = vset.pattern.permute.xlu0 2
    %3616 = vperm.xlu0 %3615, %v2262
    %v3617 = vpop.permute.xlu0 %3616
    %3619 = vset.pattern.permute.xlu0 2
    %3620 = vperm.xlu0 %3619, %v2263
    %v3621 = vpop.permute.xlu0 %3620
    %3623 = vset.pattern.permute.xlu0 2
    %3624 = vperm.xlu0 %3623, %v2264
    %v3625 = vpop.permute.xlu0 %3624
    %3627 = vset.pattern.permute.xlu0 2
    %3628 = vperm.xlu0 %3627, %v2265
    %v3629 = vpop.permute.xlu0 %3628
    %3631 = vset.pattern.permute.xlu0 2
    %3632 = vperm.xlu0 %3631, %v2266
    %v3633 = vpop.permute.xlu0 %3632
    %3635 = vset.pattern.permute.xlu0 2
    %3636 = vperm.xlu0 %3635, %v2267
    %v3637 = vpop.permute.xlu0 %3636
    %3639 = vset.pattern.permute.xlu0 2
    %3640 = vperm.xlu0 %3639, %v2268
    %v3641 = vpop.permute.xlu0 %3640
    %3643 = vset.pattern.permute.xlu0 2
    %3644 = vperm.xlu0 %3643, %v2269
    %v3645 = vpop.permute.xlu0 %3644
    %3647 = vset.pattern.permute.xlu0 2
    %3648 = vperm.xlu0 %3647, %v2270
    %v3649 = vpop.permute.xlu0 %3648
    %3651 = vset.pattern.permute.xlu0 2
    %3652 = vperm.xlu0 %3651, %v2271
    %v3653 = vpop.permute.xlu0 %3652
    %3655 = vset.pattern.permute.xlu0 2
    %3656 = vperm.xlu0 %3655, %v2272
    %v3657 = vpop.permute.xlu0 %3656
    %3659 = vset.pattern.permute.xlu0 2
    %3660 = vperm.xlu0 %3659, %v2273
    %v3661 = vpop.permute.xlu0 %3660
    %3663 = vset.pattern.permute.xlu0 2
    %3664 = vperm.xlu0 %3663, %v2274
    %v3665 = vpop.permute.xlu0 %3664
    %3667 = vset.pattern.permute.xlu0 2
    %3668 = vperm.xlu0 %3667, %v2275
    %v3669 = vpop.permute.xlu0 %3668
    %3671 = vset.pattern.permute.xlu0 2
    %3672 = vperm.xlu0 %3671, %v2276
    %v3673 = vpop.permute.xlu0 %3672
    %3675 = vset.pattern.permute.xlu0 2
    %3676 = vperm.xlu0 %3675, %v2277
    %v3677 = vpop.permute.xlu0 %3676
    %3679 = vset.pattern.permute.xlu0 2
    %3680 = vperm.xlu0 %3679, %v2278
    %v3681 = vpop.permute.xlu0 %3680
    %3683 = vset.pattern.permute.xlu0 2
    %3684 = vperm.xlu0 %3683, %v2279
    %v3685 = vpop.permute.xlu0 %3684
    %3687 = vset.pattern.permute.xlu0 2
    %3688 = vperm.xlu0 %3687, %v2280
    %v3689 = vpop.permute.xlu0 %3688
    %3691 = vset.pattern.permute.xlu0 2
    %3692 = vperm.xlu0 %3691, %v2281
    %v3693 = vpop.permute.xlu0 %3692
    %3695 = vset.pattern.permute.xlu0 2
    %3696 = vperm.xlu0 %3695, %v2282
    %v3697 = vpop.permute.xlu0 %3696
    %3699 = vset.pattern.permute.xlu0 2
    %3700 = vperm.xlu0 %3699, %v2283
    %v3701 = vpop.permute.xlu0 %3700
    %3703 = vset.pattern.permute.xlu0 2
    %3704 = vperm.xlu0 %3703, %v2284
    %v3705 = vpop.permute.xlu0 %3704
    %3707 = vset.pattern.permute.xlu0 2
    %3708 = vperm.xlu0 %3707, %v2285
    %v3709 = vpop.permute.xlu0 %3708
    %3711 = vset.pattern.permute.xlu0 2
    %3712 = vperm.xlu0 %3711, %v2286
    %v3713 = vpop.permute.xlu0 %3712
    %3715 = vset.pattern.permute.xlu0 2
    %3716 = vperm.xlu0 %3715, %v2287
    %v3717 = vpop.permute.xlu0 %3716
    %3719 = vset.pattern.permute.xlu0 2
    %3720 = vperm.xlu0 %3719, %v2288
    %v3721 = vpop.permute.xlu0 %3720
    %3723 = vset.pattern.permute.xlu0 2
    %3724 = vperm.xlu0 %3723, %v2289
    %v3725 = vpop.permute.xlu0 %3724
    %3727 = vset.pattern.permute.xlu0 2
    %3728 = vperm.xlu0 %3727, %v2290
    %v3729 = vpop.permute.xlu0 %3728
    %3731 = vset.pattern.permute.xlu0 2
    %3732 = vperm.xlu0 %3731, %v2291
    %v3733 = vpop.permute.xlu0 %3732
    %3735 = vset.pattern.permute.xlu0 2
    %3736 = vperm.xlu0 %3735, %v2292
    %v3737 = vpop.permute.xlu0 %3736
    %3739 = vset.pattern.permute.xlu0 2
    %3740 = vperm.xlu0 %3739, %v2293
    %v3741 = vpop.permute.xlu0 %3740
    %3743 = vset.pattern.permute.xlu0 2
    %3744 = vperm.xlu0 %3743, %v2294
    %v3745 = vpop.permute.xlu0 %3744
    %3747 = vset.pattern.permute.xlu0 2
    %3748 = vperm.xlu0 %3747, %v2295
    %v3749 = vpop.permute.xlu0 %3748
    %3751 = vset.pattern.permute.xlu0 2
    %3752 = vperm.xlu0 %3751, %v2296
    %v3753 = vpop.permute.xlu0 %3752
    %3755 = vset.pattern.permute.xlu0 2
    %3756 = vperm.xlu0 %3755, %v2297
    %v3757 = vpop.permute.xlu0 %3756
    %3759 = vset.pattern.permute.xlu0 2
    %3760 = vperm.xlu0 %3759, %v2298
    %v3761 = vpop.permute.xlu0 %3760
    %3763 = vset.pattern.permute.xlu0 2
    %3764 = vperm.xlu0 %3763, %v2299
    %v3765 = vpop.permute.xlu0 %3764
    %3767 = vset.pattern.permute.xlu0 2
    %3768 = vperm.xlu0 %3767, %v2300
    %v3769 = vpop.permute.xlu0 %3768
    %3771 = vset.pattern.permute.xlu0 2
    %3772 = vperm.xlu0 %3771, %v2301
    %v3773 = vpop.permute.xlu0 %3772
    %3775 = vset.pattern.permute.xlu0 2
    %3776 = vperm.xlu0 %3775, %v2302
    %v3777 = vpop.permute.xlu0 %3776
    %3779 = vset.pattern.permute.xlu0 2
    %3780 = vperm.xlu0 %3779, %v2303
    %v3781 = vpop.permute.xlu0 %3780
    %3783 = vset.pattern.permute.xlu0 2
    %3784 = vperm.xlu0 %3783, %v2304
    %v3785 = vpop.permute.xlu0 %3784
    %3787 = vset.pattern.permute.xlu0 2
    %3788 = vperm.xlu0 %3787, %v2305
    %v3789 = vpop.permute.xlu0 %3788
    %3791 = vset.pattern.permute.xlu0 2
    %3792 = vperm.xlu0 %3791, %v2306
    %v3793 = vpop.permute.xlu0 %3792
    %3795 = vset.pattern.permute.xlu0 2
    %3796 = vperm.xlu0 %3795, %v2307
    %v3797 = vpop.permute.xlu0 %3796
    %3799 = vset.pattern.permute.xlu0 2
    %3800 = vperm.xlu0 %3799, %v2308
    %v3801 = vpop.permute.xlu0 %3800
    %3803 = vset.pattern.permute.xlu0 2
    %3804 = vperm.xlu0 %3803, %v2309
    %v3805 = vpop.permute.xlu0 %3804
    %3807 = vset.pattern.permute.xlu0 2
    %3808 = vperm.xlu0 %3807, %v2310
    %v3809 = vpop.permute.xlu0 %3808
    %3811 = vset.pattern.permute.xlu0 2
    %3812 = vperm.xlu0 %3811, %v2311
    %v3813 = vpop.permute.xlu0 %3812
    %3815 = vset.pattern.permute.xlu0 2
    %3816 = vperm.xlu0 %3815, %v2312
    %v3817 = vpop.permute.xlu0 %3816
    %3819 = vset.pattern.permute.xlu0 2
    %3820 = vperm.xlu0 %3819, %v2313
    %v3821 = vpop.permute.xlu0 %3820
    %3823 = vset.pattern.permute.xlu0 2
    %3824 = vperm.xlu0 %3823, %v2314
    %v3825 = vpop.permute.xlu0 %3824
    %3827 = vset.pattern.permute.xlu0 2
    %3828 = vperm.xlu0 %3827, %v2315
    %v3829 = vpop.permute.xlu0 %3828
    %3831 = vset.pattern.permute.xlu0 2
    %3832 = vperm.xlu0 %3831, %v2316
    %v3833 = vpop.permute.xlu0 %3832
    %3835 = vset.pattern.permute.xlu0 2
    %3836 = vperm.xlu0 %3835, %v2317
    %v3837 = vpop.permute.xlu0 %3836
    %3839 = vset.pattern.permute.xlu0 2
    %3840 = vperm.xlu0 %3839, %v2318
    %v3841 = vpop.permute.xlu0 %3840
    %3843 = vset.pattern.permute.xlu0 2
    %3844 = vperm.xlu0 %3843, %v2319
    %v3845 = vpop.permute.xlu0 %3844
    %3847 = vset.pattern.permute.xlu0 2
    %3848 = vperm.xlu0 %3847, %v2320
    %v3849 = vpop.permute.xlu0 %3848
    %3851 = vset.pattern.permute.xlu0 2
    %3852 = vperm.xlu0 %3851, %v2321
    %v3853 = vpop.permute.xlu0 %3852
    %3855 = vset.pattern.permute.xlu0 2
    %3856 = vperm.xlu0 %3855, %v2322
    %v3857 = vpop.permute.xlu0 %3856
    %v3859 = vlaneseq
    %v3860 = vshrl.u32 %v3859, 7
    %v3861 = vsub.s32 2, %v3860
    %v3862 = vrot.slane %v75, %v3861
    %v3863 = vlaneseq
    %v3864 = vshrl.u32 %v3863, 7
    %v3865 = vsub.s32 2, %v3864
    %v3866 = vrot.slane %v76, %v3865
    %v3867 = vlaneseq
    %v3868 = vshrl.u32 %v3867, 7
    %v3869 = vsub.s32 2, %v3868
    %v3870 = vrot.slane %v77, %v3869
    %v3871 = vlaneseq
    %v3872 = vshrl.u32 %v3871, 7
    %v3873 = vsub.s32 2, %v3872
    %v3874 = vrot.slane %v78, %v3873
    %v3875 = vlaneseq
    %v3876 = vshrl.u32 %v3875, 7
    %v3877 = vsub.s32 2, %v3876
    %v3878 = vrot.slane %v79, %v3877
    %v3879 = vlaneseq
    %v3880 = vshrl.u32 %v3879, 7
    %v3881 = vsub.s32 2, %v3880
    %v3882 = vrot.slane %v80, %v3881
    %v3883 = vlaneseq
    %v3884 = vshrl.u32 %v3883, 7
    %v3885 = vsub.s32 2, %v3884
    %v3886 = vrot.slane %v81, %v3885
    %v3887 = vlaneseq
    %v3888 = vshrl.u32 %v3887, 7
    %v3889 = vsub.s32 2, %v3888
    %v3890 = vrot.slane %v82, %v3889
    %v3891 = vlaneseq
    %v3892 = vshrl.u32 %v3891, 7
    %v3893 = vsub.s32 2, %v3892
    %v3894 = vrot.slane %v83, %v3893
    %v3895 = vlaneseq
    %v3896 = vshrl.u32 %v3895, 7
    %v3897 = vsub.s32 2, %v3896
    %v3898 = vrot.slane %v84, %v3897
    %v3899 = vlaneseq
    %v3900 = vshrl.u32 %v3899, 7
    %v3901 = vsub.s32 2, %v3900
    %v3902 = vrot.slane %v85, %v3901
    %v3903 = vlaneseq
    %v3904 = vshrl.u32 %v3903, 7
    %v3905 = vsub.s32 2, %v3904
    %v3906 = vrot.slane %v86, %v3905
    %v3907 = vlaneseq
    %v3908 = vshrl.u32 %v3907, 7
    %v3909 = vsub.s32 2, %v3908
    %v3910 = vrot.slane %v87, %v3909
    %v3911 = vlaneseq
    %v3912 = vshrl.u32 %v3911, 7
    %v3913 = vsub.s32 2, %v3912
    %v3914 = vrot.slane %v88, %v3913
    %v3915 = vlaneseq
    %v3916 = vshrl.u32 %v3915, 7
    %v3917 = vsub.s32 2, %v3916
    %v3918 = vrot.slane %v89, %v3917
    %v3919 = vlaneseq
    %v3920 = vshrl.u32 %v3919, 7
    %v3921 = vsub.s32 2, %v3920
    %v3922 = vrot.slane %v90, %v3921
    %v3923 = vlaneseq
    %v3924 = vshrl.u32 %v3923, 7
    %v3925 = vsub.s32 2, %v3924
    %v3926 = vrot.slane %v91, %v3925
    %v3927 = vlaneseq
    %v3928 = vshrl.u32 %v3927, 7
    %v3929 = vsub.s32 2, %v3928
    %v3930 = vrot.slane %v92, %v3929
    %v3931 = vlaneseq
    %v3932 = vshrl.u32 %v3931, 7
    %v3933 = vsub.s32 2, %v3932
    %v3934 = vrot.slane %v93, %v3933
    %v3935 = vlaneseq
    %v3936 = vshrl.u32 %v3935, 7
    %v3937 = vsub.s32 2, %v3936
    %v3938 = vrot.slane %v94, %v3937
    %v3939 = vlaneseq
    %v3940 = vshrl.u32 %v3939, 7
    %v3941 = vsub.s32 2, %v3940
    %v3942 = vrot.slane %v95, %v3941
    %v3943 = vlaneseq
    %v3944 = vshrl.u32 %v3943, 7
    %v3945 = vsub.s32 2, %v3944
    %v3946 = vrot.slane %v96, %v3945
    %v3947 = vlaneseq
    %v3948 = vshrl.u32 %v3947, 7
    %v3949 = vsub.s32 2, %v3948
    %v3950 = vrot.slane %v97, %v3949
    %v3951 = vlaneseq
    %v3952 = vshrl.u32 %v3951, 7
    %v3953 = vsub.s32 2, %v3952
    %v3954 = vrot.slane %v98, %v3953
    %v3955 = vlaneseq
    %v3956 = vshrl.u32 %v3955, 7
    %v3957 = vsub.s32 2, %v3956
    %v3958 = vrot.slane %v99, %v3957
    %v3959 = vlaneseq
    %v3960 = vshrl.u32 %v3959, 7
    %v3961 = vsub.s32 2, %v3960
    %v3962 = vrot.slane %v100, %v3961
    %v3963 = vlaneseq
    %v3964 = vshrl.u32 %v3963, 7
    %v3965 = vsub.s32 2, %v3964
    %v3966 = vrot.slane %v101, %v3965
    %v3967 = vlaneseq
    %v3968 = vshrl.u32 %v3967, 7
    %v3969 = vsub.s32 2, %v3968
    %v3970 = vrot.slane %v102, %v3969
    %v3971 = vlaneseq
    %v3972 = vshrl.u32 %v3971, 7
    %v3973 = vsub.s32 2, %v3972
    %v3974 = vrot.slane %v103, %v3973
    %v3975 = vlaneseq
    %v3976 = vshrl.u32 %v3975, 7
    %v3977 = vsub.s32 2, %v3976
    %v3978 = vrot.slane %v104, %v3977
    %v3979 = vlaneseq
    %v3980 = vshrl.u32 %v3979, 7
    %v3981 = vsub.s32 2, %v3980
    %v3982 = vrot.slane %v105, %v3981
    %v3983 = vlaneseq
    %v3984 = vshrl.u32 %v3983, 7
    %v3985 = vsub.s32 2, %v3984
    %v3986 = vrot.slane %v106, %v3985
    %v3987 = vlaneseq
    %v3988 = vshrl.u32 %v3987, 7
    %v3989 = vsub.s32 2, %v3988
    %v3990 = vrot.slane %v107, %v3989
    %v3991 = vlaneseq
    %v3992 = vshrl.u32 %v3991, 7
    %v3993 = vsub.s32 2, %v3992
    %v3994 = vrot.slane %v108, %v3993
    %v3995 = vlaneseq
    %v3996 = vshrl.u32 %v3995, 7
    %v3997 = vsub.s32 2, %v3996
    %v3998 = vrot.slane %v109, %v3997
    %v3999 = vlaneseq
    %v4000 = vshrl.u32 %v3999, 7
    %v4001 = vsub.s32 2, %v4000
    %v4002 = vrot.slane %v110, %v4001
    %v4003 = vlaneseq
    %v4004 = vshrl.u32 %v4003, 7
    %v4005 = vsub.s32 2, %v4004
    %v4006 = vrot.slane %v111, %v4005
    %v4007 = vlaneseq
    %v4008 = vshrl.u32 %v4007, 7
    %v4009 = vsub.s32 2, %v4008
    %v4010 = vrot.slane %v112, %v4009
    %v4011 = vlaneseq
    %v4012 = vshrl.u32 %v4011, 7
    %v4013 = vsub.s32 2, %v4012
    %v4014 = vrot.slane %v113, %v4013
    %v4015 = vlaneseq
    %v4016 = vshrl.u32 %v4015, 7
    %v4017 = vsub.s32 2, %v4016
    %v4018 = vrot.slane %v114, %v4017
    %v4019 = vlaneseq
    %v4020 = vshrl.u32 %v4019, 7
    %v4021 = vsub.s32 2, %v4020
    %v4022 = vrot.slane %v115, %v4021
    %v4023 = vlaneseq
    %v4024 = vshrl.u32 %v4023, 7
    %v4025 = vsub.s32 2, %v4024
    %v4026 = vrot.slane %v116, %v4025
    %v4027 = vlaneseq
    %v4028 = vshrl.u32 %v4027, 7
    %v4029 = vsub.s32 2, %v4028
    %v4030 = vrot.slane %v117, %v4029
    %v4031 = vlaneseq
    %v4032 = vshrl.u32 %v4031, 7
    %v4033 = vsub.s32 2, %v4032
    %v4034 = vrot.slane %v118, %v4033
    %v4035 = vlaneseq
    %v4036 = vshrl.u32 %v4035, 7
    %v4037 = vsub.s32 2, %v4036
    %v4038 = vrot.slane %v119, %v4037
    %v4039 = vlaneseq
    %v4040 = vshrl.u32 %v4039, 7
    %v4041 = vsub.s32 2, %v4040
    %v4042 = vrot.slane %v120, %v4041
    %v4043 = vlaneseq
    %v4044 = vshrl.u32 %v4043, 7
    %v4045 = vsub.s32 2, %v4044
    %v4046 = vrot.slane %v121, %v4045
    %v4047 = vlaneseq
    %v4048 = vshrl.u32 %v4047, 7
    %v4049 = vsub.s32 2, %v4048
    %v4050 = vrot.slane %v122, %v4049
    %v4051 = vlaneseq
    %v4052 = vshrl.u32 %v4051, 7
    %v4053 = vsub.s32 2, %v4052
    %v4054 = vrot.slane %v123, %v4053
    %v4055 = vlaneseq
    %v4056 = vshrl.u32 %v4055, 7
    %v4057 = vsub.s32 2, %v4056
    %v4058 = vrot.slane %v124, %v4057
    %v4059 = vlaneseq
    %v4060 = vshrl.u32 %v4059, 7
    %v4061 = vsub.s32 2, %v4060
    %v4062 = vrot.slane %v125, %v4061
    %v4063 = vlaneseq
    %v4064 = vshrl.u32 %v4063, 7
    %v4065 = vsub.s32 2, %v4064
    %v4066 = vrot.slane %v126, %v4065
    %v4067 = vlaneseq
    %v4068 = vshrl.u32 %v4067, 7
    %v4069 = vsub.s32 2, %v4068
    %v4070 = vrot.slane %v127, %v4069
    %v4071 = vlaneseq
    %v4072 = vshrl.u32 %v4071, 7
    %v4073 = vsub.s32 2, %v4072
    %v4074 = vrot.slane %v128, %v4073
    %v4075 = vlaneseq
    %v4076 = vshrl.u32 %v4075, 7
    %v4077 = vsub.s32 2, %v4076
    %v4078 = vrot.slane %v129, %v4077
    %v4079 = vlaneseq
    %v4080 = vshrl.u32 %v4079, 7
    %v4081 = vsub.s32 2, %v4080
    %v4082 = vrot.slane %v130, %v4081
    %v4083 = vlaneseq
    %v4084 = vshrl.u32 %v4083, 7
    %v4085 = vsub.s32 2, %v4084
    %v4086 = vrot.slane %v131, %v4085
    %v4087 = vlaneseq
    %v4088 = vshrl.u32 %v4087, 7
    %v4089 = vsub.s32 2, %v4088
    %v4090 = vrot.slane %v132, %v4089
    %v4091 = vlaneseq
    %v4092 = vshrl.u32 %v4091, 7
    %v4093 = vsub.s32 2, %v4092
    %v4094 = vrot.slane %v133, %v4093
    %v4095 = vlaneseq
    %v4096 = vshrl.u32 %v4095, 7
    %v4097 = vsub.s32 2, %v4096
    %v4098 = vrot.slane %v134, %v4097
    %v4099 = vlaneseq
    %v4100 = vshrl.u32 %v4099, 7
    %v4101 = vsub.s32 2, %v4100
    %v4102 = vrot.slane %v135, %v4101
    %v4103 = vlaneseq
    %v4104 = vshrl.u32 %v4103, 7
    %v4105 = vsub.s32 2, %v4104
    %v4106 = vrot.slane %v136, %v4105
    %v4107 = vlaneseq
    %v4108 = vshrl.u32 %v4107, 7
    %v4109 = vsub.s32 2, %v4108
    %v4110 = vrot.slane %v137, %v4109
    %v4111 = vlaneseq
    %v4112 = vshrl.u32 %v4111, 7
    %v4113 = vsub.s32 2, %v4112
    %v4114 = vrot.slane %v138, %v4113
    %v4115 = vmul.f32 %v3605, %v3862
    %v4116 = vmul.f32 %v3609, %v3866
    %v4117 = vmul.f32 %v3613, %v3870
    %v4118 = vmul.f32 %v3617, %v3874
    %v4119 = vmul.f32 %v3621, %v3878
    %v4120 = vmul.f32 %v3625, %v3882
    %v4121 = vmul.f32 %v3629, %v3886
    %v4122 = vmul.f32 %v3633, %v3890
    %v4123 = vmul.f32 %v3637, %v3894
    %v4124 = vmul.f32 %v3641, %v3898
    %v4125 = vmul.f32 %v3645, %v3902
    %v4126 = vmul.f32 %v3649, %v3906
    %v4127 = vmul.f32 %v3653, %v3910
    %v4128 = vmul.f32 %v3657, %v3914
    %v4129 = vmul.f32 %v3661, %v3918
    %v4130 = vmul.f32 %v3665, %v3922
    %v4131 = vmul.f32 %v3669, %v3926
    %v4132 = vmul.f32 %v3673, %v3930
    %v4133 = vmul.f32 %v3677, %v3934
    %v4134 = vmul.f32 %v3681, %v3938
    %v4135 = vmul.f32 %v3685, %v3942
    %v4136 = vmul.f32 %v3689, %v3946
    %v4137 = vmul.f32 %v3693, %v3950
    %v4138 = vmul.f32 %v3697, %v3954
    %v4139 = vmul.f32 %v3701, %v3958
    %v4140 = vmul.f32 %v3705, %v3962
    %v4141 = vmul.f32 %v3709, %v3966
    %v4142 = vmul.f32 %v3713, %v3970
    %v4143 = vmul.f32 %v3717, %v3974
    %v4144 = vmul.f32 %v3721, %v3978
    %v4145 = vmul.f32 %v3725, %v3982
    %v4146 = vmul.f32 %v3729, %v3986
    %v4147 = vmul.f32 %v3733, %v3990
    %v4148 = vmul.f32 %v3737, %v3994
    %v4149 = vmul.f32 %v3741, %v3998
    %v4150 = vmul.f32 %v3745, %v4002
    %v4151 = vmul.f32 %v3749, %v4006
    %v4152 = vmul.f32 %v3753, %v4010
    %v4153 = vmul.f32 %v3757, %v4014
    %v4154 = vmul.f32 %v3761, %v4018
    %v4155 = vmul.f32 %v3765, %v4022
    %v4156 = vmul.f32 %v3769, %v4026
    %v4157 = vmul.f32 %v3773, %v4030
    %v4158 = vmul.f32 %v3777, %v4034
    %v4159 = vmul.f32 %v3781, %v4038
    %v4160 = vmul.f32 %v3785, %v4042
    %v4161 = vmul.f32 %v3789, %v4046
    %v4162 = vmul.f32 %v3793, %v4050
    %v4163 = vmul.f32 %v3797, %v4054
    %v4164 = vmul.f32 %v3801, %v4058
    %v4165 = vmul.f32 %v3805, %v4062
    %v4166 = vmul.f32 %v3809, %v4066
    %v4167 = vmul.f32 %v3813, %v4070
    %v4168 = vmul.f32 %v3817, %v4074
    %v4169 = vmul.f32 %v3821, %v4078
    %v4170 = vmul.f32 %v3825, %v4082
    %v4171 = vmul.f32 %v3829, %v4086
    %v4172 = vmul.f32 %v3833, %v4090
    %v4173 = vmul.f32 %v3837, %v4094
    %v4174 = vmul.f32 %v3841, %v4098
    %v4175 = vmul.f32 %v3845, %v4102
    %v4176 = vmul.f32 %v3849, %v4106
    %v4177 = vmul.f32 %v3853, %v4110
    %v4178 = vmul.f32 %v3857, %v4114
    %v4179 = vadd.f32 %v3539, %v4115
    %v4180 = vadd.f32 %v3540, %v4116
    %v4181 = vadd.f32 %v3541, %v4117
    %v4182 = vadd.f32 %v3542, %v4118
    %v4183 = vadd.f32 %v3543, %v4119
    %v4184 = vadd.f32 %v3544, %v4120
    %v4185 = vadd.f32 %v3545, %v4121
    %v4186 = vadd.f32 %v3546, %v4122
    %v4187 = vadd.f32 %v3547, %v4123
    %v4188 = vadd.f32 %v3548, %v4124
    %v4189 = vadd.f32 %v3549, %v4125
    %v4190 = vadd.f32 %v3550, %v4126
    %v4191 = vadd.f32 %v3551, %v4127
    %v4192 = vadd.f32 %v3552, %v4128
    %v4193 = vadd.f32 %v3553, %v4129
    %v4194 = vadd.f32 %v3554, %v4130
    %v4195 = vadd.f32 %v3555, %v4131
    %v4196 = vadd.f32 %v3556, %v4132
    %v4197 = vadd.f32 %v3557, %v4133
    %v4198 = vadd.f32 %v3558, %v4134
    %v4199 = vadd.f32 %v3559, %v4135
    %v4200 = vadd.f32 %v3560, %v4136
    %v4201 = vadd.f32 %v3561, %v4137
    %v4202 = vadd.f32 %v3562, %v4138
    %v4203 = vadd.f32 %v3563, %v4139
    %v4204 = vadd.f32 %v3564, %v4140
    %v4205 = vadd.f32 %v3565, %v4141
    %v4206 = vadd.f32 %v3566, %v4142
    %v4207 = vadd.f32 %v3567, %v4143
    %v4208 = vadd.f32 %v3568, %v4144
    %v4209 = vadd.f32 %v3569, %v4145
    %v4210 = vadd.f32 %v3570, %v4146
    %v4211 = vadd.f32 %v3571, %v4147
    %v4212 = vadd.f32 %v3572, %v4148
    %v4213 = vadd.f32 %v3573, %v4149
    %v4214 = vadd.f32 %v3574, %v4150
    %v4215 = vadd.f32 %v3575, %v4151
    %v4216 = vadd.f32 %v3576, %v4152
    %v4217 = vadd.f32 %v3577, %v4153
    %v4218 = vadd.f32 %v3578, %v4154
    %v4219 = vadd.f32 %v3579, %v4155
    %v4220 = vadd.f32 %v3580, %v4156
    %v4221 = vadd.f32 %v3581, %v4157
    %v4222 = vadd.f32 %v3582, %v4158
    %v4223 = vadd.f32 %v3583, %v4159
    %v4224 = vadd.f32 %v3584, %v4160
    %v4225 = vadd.f32 %v3585, %v4161
    %v4226 = vadd.f32 %v3586, %v4162
    %v4227 = vadd.f32 %v3587, %v4163
    %v4228 = vadd.f32 %v3588, %v4164
    %v4229 = vadd.f32 %v3589, %v4165
    %v4230 = vadd.f32 %v3590, %v4166
    %v4231 = vadd.f32 %v3591, %v4167
    %v4232 = vadd.f32 %v3592, %v4168
    %v4233 = vadd.f32 %v3593, %v4169
    %v4234 = vadd.f32 %v3594, %v4170
    %v4235 = vadd.f32 %v3595, %v4171
    %v4236 = vadd.f32 %v3596, %v4172
    %v4237 = vadd.f32 %v3597, %v4173
    %v4238 = vadd.f32 %v3598, %v4174
    %v4239 = vadd.f32 %v3599, %v4175
    %v4240 = vadd.f32 %v3600, %v4176
    %v4241 = vadd.f32 %v3601, %v4177
    %v4242 = vadd.f32 %v3602, %v4178
    %4243 = vset.pattern.permute.xlu0 3
    %4244 = vperm.xlu0 %4243, %v2259
    %v4245 = vpop.permute.xlu0 %4244
    %4247 = vset.pattern.permute.xlu0 3
    %4248 = vperm.xlu0 %4247, %v2260
    %v4249 = vpop.permute.xlu0 %4248
    %4251 = vset.pattern.permute.xlu0 3
    %4252 = vperm.xlu0 %4251, %v2261
    %v4253 = vpop.permute.xlu0 %4252
    %4255 = vset.pattern.permute.xlu0 3
    %4256 = vperm.xlu0 %4255, %v2262
    %v4257 = vpop.permute.xlu0 %4256
    %4259 = vset.pattern.permute.xlu0 3
    %4260 = vperm.xlu0 %4259, %v2263
    %v4261 = vpop.permute.xlu0 %4260
    %4263 = vset.pattern.permute.xlu0 3
    %4264 = vperm.xlu0 %4263, %v2264
    %v4265 = vpop.permute.xlu0 %4264
    %4267 = vset.pattern.permute.xlu0 3
    %4268 = vperm.xlu0 %4267, %v2265
    %v4269 = vpop.permute.xlu0 %4268
    %4271 = vset.pattern.permute.xlu0 3
    %4272 = vperm.xlu0 %4271, %v2266
    %v4273 = vpop.permute.xlu0 %4272
    %4275 = vset.pattern.permute.xlu0 3
    %4276 = vperm.xlu0 %4275, %v2267
    %v4277 = vpop.permute.xlu0 %4276
    %4279 = vset.pattern.permute.xlu0 3
    %4280 = vperm.xlu0 %4279, %v2268
    %v4281 = vpop.permute.xlu0 %4280
    %4283 = vset.pattern.permute.xlu0 3
    %4284 = vperm.xlu0 %4283, %v2269
    %v4285 = vpop.permute.xlu0 %4284
    %4287 = vset.pattern.permute.xlu0 3
    %4288 = vperm.xlu0 %4287, %v2270
    %v4289 = vpop.permute.xlu0 %4288
    %4291 = vset.pattern.permute.xlu0 3
    %4292 = vperm.xlu0 %4291, %v2271
    %v4293 = vpop.permute.xlu0 %4292
    %4295 = vset.pattern.permute.xlu0 3
    %4296 = vperm.xlu0 %4295, %v2272
    %v4297 = vpop.permute.xlu0 %4296
    %4299 = vset.pattern.permute.xlu0 3
    %4300 = vperm.xlu0 %4299, %v2273
    %v4301 = vpop.permute.xlu0 %4300
    %4303 = vset.pattern.permute.xlu0 3
    %4304 = vperm.xlu0 %4303, %v2274
    %v4305 = vpop.permute.xlu0 %4304
    %4307 = vset.pattern.permute.xlu0 3
    %4308 = vperm.xlu0 %4307, %v2275
    %v4309 = vpop.permute.xlu0 %4308
    %4311 = vset.pattern.permute.xlu0 3
    %4312 = vperm.xlu0 %4311, %v2276
    %v4313 = vpop.permute.xlu0 %4312
    %4315 = vset.pattern.permute.xlu0 3
    %4316 = vperm.xlu0 %4315, %v2277
    %v4317 = vpop.permute.xlu0 %4316
    %4319 = vset.pattern.permute.xlu0 3
    %4320 = vperm.xlu0 %4319, %v2278
    %v4321 = vpop.permute.xlu0 %4320
    %4323 = vset.pattern.permute.xlu0 3
    %4324 = vperm.xlu0 %4323, %v2279
    %v4325 = vpop.permute.xlu0 %4324
    %4327 = vset.pattern.permute.xlu0 3
    %4328 = vperm.xlu0 %4327, %v2280
    %v4329 = vpop.permute.xlu0 %4328
    %4331 = vset.pattern.permute.xlu0 3
    %4332 = vperm.xlu0 %4331, %v2281
    %v4333 = vpop.permute.xlu0 %4332
    %4335 = vset.pattern.permute.xlu0 3
    %4336 = vperm.xlu0 %4335, %v2282
    %v4337 = vpop.permute.xlu0 %4336
    %4339 = vset.pattern.permute.xlu0 3
    %4340 = vperm.xlu0 %4339, %v2283
    %v4341 = vpop.permute.xlu0 %4340
    %4343 = vset.pattern.permute.xlu0 3
    %4344 = vperm.xlu0 %4343, %v2284
    %v4345 = vpop.permute.xlu0 %4344
    %4347 = vset.pattern.permute.xlu0 3
    %4348 = vperm.xlu0 %4347, %v2285
    %v4349 = vpop.permute.xlu0 %4348
    %4351 = vset.pattern.permute.xlu0 3
    %4352 = vperm.xlu0 %4351, %v2286
    %v4353 = vpop.permute.xlu0 %4352
    %4355 = vset.pattern.permute.xlu0 3
    %4356 = vperm.xlu0 %4355, %v2287
    %v4357 = vpop.permute.xlu0 %4356
    %4359 = vset.pattern.permute.xlu0 3
    %4360 = vperm.xlu0 %4359, %v2288
    %v4361 = vpop.permute.xlu0 %4360
    %4363 = vset.pattern.permute.xlu0 3
    %4364 = vperm.xlu0 %4363, %v2289
    %v4365 = vpop.permute.xlu0 %4364
    %4367 = vset.pattern.permute.xlu0 3
    %4368 = vperm.xlu0 %4367, %v2290
    %v4369 = vpop.permute.xlu0 %4368
    %4371 = vset.pattern.permute.xlu0 3
    %4372 = vperm.xlu0 %4371, %v2291
    %v4373 = vpop.permute.xlu0 %4372
    %4375 = vset.pattern.permute.xlu0 3
    %4376 = vperm.xlu0 %4375, %v2292
    %v4377 = vpop.permute.xlu0 %4376
    %4379 = vset.pattern.permute.xlu0 3
    %4380 = vperm.xlu0 %4379, %v2293
    %v4381 = vpop.permute.xlu0 %4380
    %4383 = vset.pattern.permute.xlu0 3
    %4384 = vperm.xlu0 %4383, %v2294
    %v4385 = vpop.permute.xlu0 %4384
    %4387 = vset.pattern.permute.xlu0 3
    %4388 = vperm.xlu0 %4387, %v2295
    %v4389 = vpop.permute.xlu0 %4388
    %4391 = vset.pattern.permute.xlu0 3
    %4392 = vperm.xlu0 %4391, %v2296
    %v4393 = vpop.permute.xlu0 %4392
    %4395 = vset.pattern.permute.xlu0 3
    %4396 = vperm.xlu0 %4395, %v2297
    %v4397 = vpop.permute.xlu0 %4396
    %4399 = vset.pattern.permute.xlu0 3
    %4400 = vperm.xlu0 %4399, %v2298
    %v4401 = vpop.permute.xlu0 %4400
    %4403 = vset.pattern.permute.xlu0 3
    %4404 = vperm.xlu0 %4403, %v2299
    %v4405 = vpop.permute.xlu0 %4404
    %4407 = vset.pattern.permute.xlu0 3
    %4408 = vperm.xlu0 %4407, %v2300
    %v4409 = vpop.permute.xlu0 %4408
    %4411 = vset.pattern.permute.xlu0 3
    %4412 = vperm.xlu0 %4411, %v2301
    %v4413 = vpop.permute.xlu0 %4412
    %4415 = vset.pattern.permute.xlu0 3
    %4416 = vperm.xlu0 %4415, %v2302
    %v4417 = vpop.permute.xlu0 %4416
    %4419 = vset.pattern.permute.xlu0 3
    %4420 = vperm.xlu0 %4419, %v2303
    %v4421 = vpop.permute.xlu0 %4420
    %4423 = vset.pattern.permute.xlu0 3
    %4424 = vperm.xlu0 %4423, %v2304
    %v4425 = vpop.permute.xlu0 %4424
    %4427 = vset.pattern.permute.xlu0 3
    %4428 = vperm.xlu0 %4427, %v2305
    %v4429 = vpop.permute.xlu0 %4428
    %4431 = vset.pattern.permute.xlu0 3
    %4432 = vperm.xlu0 %4431, %v2306
    %v4433 = vpop.permute.xlu0 %4432
    %4435 = vset.pattern.permute.xlu0 3
    %4436 = vperm.xlu0 %4435, %v2307
    %v4437 = vpop.permute.xlu0 %4436
    %4439 = vset.pattern.permute.xlu0 3
    %4440 = vperm.xlu0 %4439, %v2308
    %v4441 = vpop.permute.xlu0 %4440
    %4443 = vset.pattern.permute.xlu0 3
    %4444 = vperm.xlu0 %4443, %v2309
    %v4445 = vpop.permute.xlu0 %4444
    %4447 = vset.pattern.permute.xlu0 3
    %4448 = vperm.xlu0 %4447, %v2310
    %v4449 = vpop.permute.xlu0 %4448
    %4451 = vset.pattern.permute.xlu0 3
    %4452 = vperm.xlu0 %4451, %v2311
    %v4453 = vpop.permute.xlu0 %4452
    %4455 = vset.pattern.permute.xlu0 3
    %4456 = vperm.xlu0 %4455, %v2312
    %v4457 = vpop.permute.xlu0 %4456
    %4459 = vset.pattern.permute.xlu0 3
    %4460 = vperm.xlu0 %4459, %v2313
    %v4461 = vpop.permute.xlu0 %4460
    %4463 = vset.pattern.permute.xlu0 3
    %4464 = vperm.xlu0 %4463, %v2314
    %v4465 = vpop.permute.xlu0 %4464
    %4467 = vset.pattern.permute.xlu0 3
    %4468 = vperm.xlu0 %4467, %v2315
    %v4469 = vpop.permute.xlu0 %4468
    %4471 = vset.pattern.permute.xlu0 3
    %4472 = vperm.xlu0 %4471, %v2316
    %v4473 = vpop.permute.xlu0 %4472
    %4475 = vset.pattern.permute.xlu0 3
    %4476 = vperm.xlu0 %4475, %v2317
    %v4477 = vpop.permute.xlu0 %4476
    %4479 = vset.pattern.permute.xlu0 3
    %4480 = vperm.xlu0 %4479, %v2318
    %v4481 = vpop.permute.xlu0 %4480
    %4483 = vset.pattern.permute.xlu0 3
    %4484 = vperm.xlu0 %4483, %v2319
    %v4485 = vpop.permute.xlu0 %4484
    %4487 = vset.pattern.permute.xlu0 3
    %4488 = vperm.xlu0 %4487, %v2320
    %v4489 = vpop.permute.xlu0 %4488
    %4491 = vset.pattern.permute.xlu0 3
    %4492 = vperm.xlu0 %4491, %v2321
    %v4493 = vpop.permute.xlu0 %4492
    %4495 = vset.pattern.permute.xlu0 3
    %4496 = vperm.xlu0 %4495, %v2322
    %v4497 = vpop.permute.xlu0 %4496
    %v4499 = vlaneseq
    %v4500 = vshrl.u32 %v4499, 7
    %v4501 = vsub.s32 3, %v4500
    %v4502 = vrot.slane %v75, %v4501
    %v4503 = vlaneseq
    %v4504 = vshrl.u32 %v4503, 7
    %v4505 = vsub.s32 3, %v4504
    %v4506 = vrot.slane %v76, %v4505
    %v4507 = vlaneseq
    %v4508 = vshrl.u32 %v4507, 7
    %v4509 = vsub.s32 3, %v4508
    %v4510 = vrot.slane %v77, %v4509
    %v4511 = vlaneseq
    %v4512 = vshrl.u32 %v4511, 7
    %v4513 = vsub.s32 3, %v4512
    %v4514 = vrot.slane %v78, %v4513
    %v4515 = vlaneseq
    %v4516 = vshrl.u32 %v4515, 7
    %v4517 = vsub.s32 3, %v4516
    %v4518 = vrot.slane %v79, %v4517
    %v4519 = vlaneseq
    %v4520 = vshrl.u32 %v4519, 7
    %v4521 = vsub.s32 3, %v4520
    %v4522 = vrot.slane %v80, %v4521
    %v4523 = vlaneseq
    %v4524 = vshrl.u32 %v4523, 7
    %v4525 = vsub.s32 3, %v4524
    %v4526 = vrot.slane %v81, %v4525
    %v4527 = vlaneseq
    %v4528 = vshrl.u32 %v4527, 7
    %v4529 = vsub.s32 3, %v4528
    %v4530 = vrot.slane %v82, %v4529
    %v4531 = vlaneseq
    %v4532 = vshrl.u32 %v4531, 7
    %v4533 = vsub.s32 3, %v4532
    %v4534 = vrot.slane %v83, %v4533
    %v4535 = vlaneseq
    %v4536 = vshrl.u32 %v4535, 7
    %v4537 = vsub.s32 3, %v4536
    %v4538 = vrot.slane %v84, %v4537
    %v4539 = vlaneseq
    %v4540 = vshrl.u32 %v4539, 7
    %v4541 = vsub.s32 3, %v4540
    %v4542 = vrot.slane %v85, %v4541
    %v4543 = vlaneseq
    %v4544 = vshrl.u32 %v4543, 7
    %v4545 = vsub.s32 3, %v4544
    %v4546 = vrot.slane %v86, %v4545
    %v4547 = vlaneseq
    %v4548 = vshrl.u32 %v4547, 7
    %v4549 = vsub.s32 3, %v4548
    %v4550 = vrot.slane %v87, %v4549
    %v4551 = vlaneseq
    %v4552 = vshrl.u32 %v4551, 7
    %v4553 = vsub.s32 3, %v4552
    %v4554 = vrot.slane %v88, %v4553
    %v4555 = vlaneseq
    %v4556 = vshrl.u32 %v4555, 7
    %v4557 = vsub.s32 3, %v4556
    %v4558 = vrot.slane %v89, %v4557
    %v4559 = vlaneseq
    %v4560 = vshrl.u32 %v4559, 7
    %v4561 = vsub.s32 3, %v4560
    %v4562 = vrot.slane %v90, %v4561
    %v4563 = vlaneseq
    %v4564 = vshrl.u32 %v4563, 7
    %v4565 = vsub.s32 3, %v4564
    %v4566 = vrot.slane %v91, %v4565
    %v4567 = vlaneseq
    %v4568 = vshrl.u32 %v4567, 7
    %v4569 = vsub.s32 3, %v4568
    %v4570 = vrot.slane %v92, %v4569
    %v4571 = vlaneseq
    %v4572 = vshrl.u32 %v4571, 7
    %v4573 = vsub.s32 3, %v4572
    %v4574 = vrot.slane %v93, %v4573
    %v4575 = vlaneseq
    %v4576 = vshrl.u32 %v4575, 7
    %v4577 = vsub.s32 3, %v4576
    %v4578 = vrot.slane %v94, %v4577
    %v4579 = vlaneseq
    %v4580 = vshrl.u32 %v4579, 7
    %v4581 = vsub.s32 3, %v4580
    %v4582 = vrot.slane %v95, %v4581
    %v4583 = vlaneseq
    %v4584 = vshrl.u32 %v4583, 7
    %v4585 = vsub.s32 3, %v4584
    %v4586 = vrot.slane %v96, %v4585
    %v4587 = vlaneseq
    %v4588 = vshrl.u32 %v4587, 7
    %v4589 = vsub.s32 3, %v4588
    %v4590 = vrot.slane %v97, %v4589
    %v4591 = vlaneseq
    %v4592 = vshrl.u32 %v4591, 7
    %v4593 = vsub.s32 3, %v4592
    %v4594 = vrot.slane %v98, %v4593
    %v4595 = vlaneseq
    %v4596 = vshrl.u32 %v4595, 7
    %v4597 = vsub.s32 3, %v4596
    %v4598 = vrot.slane %v99, %v4597
    %v4599 = vlaneseq
    %v4600 = vshrl.u32 %v4599, 7
    %v4601 = vsub.s32 3, %v4600
    %v4602 = vrot.slane %v100, %v4601
    %v4603 = vlaneseq
    %v4604 = vshrl.u32 %v4603, 7
    %v4605 = vsub.s32 3, %v4604
    %v4606 = vrot.slane %v101, %v4605
    %v4607 = vlaneseq
    %v4608 = vshrl.u32 %v4607, 7
    %v4609 = vsub.s32 3, %v4608
    %v4610 = vrot.slane %v102, %v4609
    %v4611 = vlaneseq
    %v4612 = vshrl.u32 %v4611, 7
    %v4613 = vsub.s32 3, %v4612
    %v4614 = vrot.slane %v103, %v4613
    %v4615 = vlaneseq
    %v4616 = vshrl.u32 %v4615, 7
    %v4617 = vsub.s32 3, %v4616
    %v4618 = vrot.slane %v104, %v4617
    %v4619 = vlaneseq
    %v4620 = vshrl.u32 %v4619, 7
    %v4621 = vsub.s32 3, %v4620
    %v4622 = vrot.slane %v105, %v4621
    %v4623 = vlaneseq
    %v4624 = vshrl.u32 %v4623, 7
    %v4625 = vsub.s32 3, %v4624
    %v4626 = vrot.slane %v106, %v4625
    %v4627 = vlaneseq
    %v4628 = vshrl.u32 %v4627, 7
    %v4629 = vsub.s32 3, %v4628
    %v4630 = vrot.slane %v107, %v4629
    %v4631 = vlaneseq
    %v4632 = vshrl.u32 %v4631, 7
    %v4633 = vsub.s32 3, %v4632
    %v4634 = vrot.slane %v108, %v4633
    %v4635 = vlaneseq
    %v4636 = vshrl.u32 %v4635, 7
    %v4637 = vsub.s32 3, %v4636
    %v4638 = vrot.slane %v109, %v4637
    %v4639 = vlaneseq
    %v4640 = vshrl.u32 %v4639, 7
    %v4641 = vsub.s32 3, %v4640
    %v4642 = vrot.slane %v110, %v4641
    %v4643 = vlaneseq
    %v4644 = vshrl.u32 %v4643, 7
    %v4645 = vsub.s32 3, %v4644
    %v4646 = vrot.slane %v111, %v4645
    %v4647 = vlaneseq
    %v4648 = vshrl.u32 %v4647, 7
    %v4649 = vsub.s32 3, %v4648
    %v4650 = vrot.slane %v112, %v4649
    %v4651 = vlaneseq
    %v4652 = vshrl.u32 %v4651, 7
    %v4653 = vsub.s32 3, %v4652
    %v4654 = vrot.slane %v113, %v4653
    %v4655 = vlaneseq
    %v4656 = vshrl.u32 %v4655, 7
    %v4657 = vsub.s32 3, %v4656
    %v4658 = vrot.slane %v114, %v4657
    %v4659 = vlaneseq
    %v4660 = vshrl.u32 %v4659, 7
    %v4661 = vsub.s32 3, %v4660
    %v4662 = vrot.slane %v115, %v4661
    %v4663 = vlaneseq
    %v4664 = vshrl.u32 %v4663, 7
    %v4665 = vsub.s32 3, %v4664
    %v4666 = vrot.slane %v116, %v4665
    %v4667 = vlaneseq
    %v4668 = vshrl.u32 %v4667, 7
    %v4669 = vsub.s32 3, %v4668
    %v4670 = vrot.slane %v117, %v4669
    %v4671 = vlaneseq
    %v4672 = vshrl.u32 %v4671, 7
    %v4673 = vsub.s32 3, %v4672
    %v4674 = vrot.slane %v118, %v4673
    %v4675 = vlaneseq
    %v4676 = vshrl.u32 %v4675, 7
    %v4677 = vsub.s32 3, %v4676
    %v4678 = vrot.slane %v119, %v4677
    %v4679 = vlaneseq
    %v4680 = vshrl.u32 %v4679, 7
    %v4681 = vsub.s32 3, %v4680
    %v4682 = vrot.slane %v120, %v4681
    %v4683 = vlaneseq
    %v4684 = vshrl.u32 %v4683, 7
    %v4685 = vsub.s32 3, %v4684
    %v4686 = vrot.slane %v121, %v4685
    %v4687 = vlaneseq
    %v4688 = vshrl.u32 %v4687, 7
    %v4689 = vsub.s32 3, %v4688
    %v4690 = vrot.slane %v122, %v4689
    %v4691 = vlaneseq
    %v4692 = vshrl.u32 %v4691, 7
    %v4693 = vsub.s32 3, %v4692
    %v4694 = vrot.slane %v123, %v4693
    %v4695 = vlaneseq
    %v4696 = vshrl.u32 %v4695, 7
    %v4697 = vsub.s32 3, %v4696
    %v4698 = vrot.slane %v124, %v4697
    %v4699 = vlaneseq
    %v4700 = vshrl.u32 %v4699, 7
    %v4701 = vsub.s32 3, %v4700
    %v4702 = vrot.slane %v125, %v4701
    %v4703 = vlaneseq
    %v4704 = vshrl.u32 %v4703, 7
    %v4705 = vsub.s32 3, %v4704
    %v4706 = vrot.slane %v126, %v4705
    %v4707 = vlaneseq
    %v4708 = vshrl.u32 %v4707, 7
    %v4709 = vsub.s32 3, %v4708
    %v4710 = vrot.slane %v127, %v4709
    %v4711 = vlaneseq
    %v4712 = vshrl.u32 %v4711, 7
    %v4713 = vsub.s32 3, %v4712
    %v4714 = vrot.slane %v128, %v4713
    %v4715 = vlaneseq
    %v4716 = vshrl.u32 %v4715, 7
    %v4717 = vsub.s32 3, %v4716
    %v4718 = vrot.slane %v129, %v4717
    %v4719 = vlaneseq
    %v4720 = vshrl.u32 %v4719, 7
    %v4721 = vsub.s32 3, %v4720
    %v4722 = vrot.slane %v130, %v4721
    %v4723 = vlaneseq
    %v4724 = vshrl.u32 %v4723, 7
    %v4725 = vsub.s32 3, %v4724
    %v4726 = vrot.slane %v131, %v4725
    %v4727 = vlaneseq
    %v4728 = vshrl.u32 %v4727, 7
    %v4729 = vsub.s32 3, %v4728
    %v4730 = vrot.slane %v132, %v4729
    %v4731 = vlaneseq
    %v4732 = vshrl.u32 %v4731, 7
    %v4733 = vsub.s32 3, %v4732
    %v4734 = vrot.slane %v133, %v4733
    %v4735 = vlaneseq
    %v4736 = vshrl.u32 %v4735, 7
    %v4737 = vsub.s32 3, %v4736
    %v4738 = vrot.slane %v134, %v4737
    %v4739 = vlaneseq
    %v4740 = vshrl.u32 %v4739, 7
    %v4741 = vsub.s32 3, %v4740
    %v4742 = vrot.slane %v135, %v4741
    %v4743 = vlaneseq
    %v4744 = vshrl.u32 %v4743, 7
    %v4745 = vsub.s32 3, %v4744
    %v4746 = vrot.slane %v136, %v4745
    %v4747 = vlaneseq
    %v4748 = vshrl.u32 %v4747, 7
    %v4749 = vsub.s32 3, %v4748
    %v4750 = vrot.slane %v137, %v4749
    %v4751 = vlaneseq
    %v4752 = vshrl.u32 %v4751, 7
    %v4753 = vsub.s32 3, %v4752
    %v4754 = vrot.slane %v138, %v4753
    %v4755 = vmul.f32 %v4245, %v4502
    %v4756 = vmul.f32 %v4249, %v4506
    %v4757 = vmul.f32 %v4253, %v4510
    %v4758 = vmul.f32 %v4257, %v4514
    %v4759 = vmul.f32 %v4261, %v4518
    %v4760 = vmul.f32 %v4265, %v4522
    %v4761 = vmul.f32 %v4269, %v4526
    %v4762 = vmul.f32 %v4273, %v4530
    %v4763 = vmul.f32 %v4277, %v4534
    %v4764 = vmul.f32 %v4281, %v4538
    %v4765 = vmul.f32 %v4285, %v4542
    %v4766 = vmul.f32 %v4289, %v4546
    %v4767 = vmul.f32 %v4293, %v4550
    %v4768 = vmul.f32 %v4297, %v4554
    %v4769 = vmul.f32 %v4301, %v4558
    %v4770 = vmul.f32 %v4305, %v4562
    %v4771 = vmul.f32 %v4309, %v4566
    %v4772 = vmul.f32 %v4313, %v4570
    %v4773 = vmul.f32 %v4317, %v4574
    %v4774 = vmul.f32 %v4321, %v4578
    %v4775 = vmul.f32 %v4325, %v4582
    %v4776 = vmul.f32 %v4329, %v4586
    %v4777 = vmul.f32 %v4333, %v4590
    %v4778 = vmul.f32 %v4337, %v4594
    %v4779 = vmul.f32 %v4341, %v4598
    %v4780 = vmul.f32 %v4345, %v4602
    %v4781 = vmul.f32 %v4349, %v4606
    %v4782 = vmul.f32 %v4353, %v4610
    %v4783 = vmul.f32 %v4357, %v4614
    %v4784 = vmul.f32 %v4361, %v4618
    %v4785 = vmul.f32 %v4365, %v4622
    %v4786 = vmul.f32 %v4369, %v4626
    %v4787 = vmul.f32 %v4373, %v4630
    %v4788 = vmul.f32 %v4377, %v4634
    %v4789 = vmul.f32 %v4381, %v4638
    %v4790 = vmul.f32 %v4385, %v4642
    %v4791 = vmul.f32 %v4389, %v4646
    %v4792 = vmul.f32 %v4393, %v4650
    %v4793 = vmul.f32 %v4397, %v4654
    %v4794 = vmul.f32 %v4401, %v4658
    %v4795 = vmul.f32 %v4405, %v4662
    %v4796 = vmul.f32 %v4409, %v4666
    %v4797 = vmul.f32 %v4413, %v4670
    %v4798 = vmul.f32 %v4417, %v4674
    %v4799 = vmul.f32 %v4421, %v4678
    %v4800 = vmul.f32 %v4425, %v4682
    %v4801 = vmul.f32 %v4429, %v4686
    %v4802 = vmul.f32 %v4433, %v4690
    %v4803 = vmul.f32 %v4437, %v4694
    %v4804 = vmul.f32 %v4441, %v4698
    %v4805 = vmul.f32 %v4445, %v4702
    %v4806 = vmul.f32 %v4449, %v4706
    %v4807 = vmul.f32 %v4453, %v4710
    %v4808 = vmul.f32 %v4457, %v4714
    %v4809 = vmul.f32 %v4461, %v4718
    %v4810 = vmul.f32 %v4465, %v4722
    %v4811 = vmul.f32 %v4469, %v4726
    %v4812 = vmul.f32 %v4473, %v4730
    %v4813 = vmul.f32 %v4477, %v4734
    %v4814 = vmul.f32 %v4481, %v4738
    %v4815 = vmul.f32 %v4485, %v4742
    %v4816 = vmul.f32 %v4489, %v4746
    %v4817 = vmul.f32 %v4493, %v4750
    %v4818 = vmul.f32 %v4497, %v4754
    %v4819 = vadd.f32 %v4179, %v4755
    %v4820 = vadd.f32 %v4180, %v4756
    %v4821 = vadd.f32 %v4181, %v4757
    %v4822 = vadd.f32 %v4182, %v4758
    %v4823 = vadd.f32 %v4183, %v4759
    %v4824 = vadd.f32 %v4184, %v4760
    %v4825 = vadd.f32 %v4185, %v4761
    %v4826 = vadd.f32 %v4186, %v4762
    %v4827 = vadd.f32 %v4187, %v4763
    %v4828 = vadd.f32 %v4188, %v4764
    %v4829 = vadd.f32 %v4189, %v4765
    %v4830 = vadd.f32 %v4190, %v4766
    %v4831 = vadd.f32 %v4191, %v4767
    %v4832 = vadd.f32 %v4192, %v4768
    %v4833 = vadd.f32 %v4193, %v4769
    %v4834 = vadd.f32 %v4194, %v4770
    %v4835 = vadd.f32 %v4195, %v4771
    %v4836 = vadd.f32 %v4196, %v4772
    %v4837 = vadd.f32 %v4197, %v4773
    %v4838 = vadd.f32 %v4198, %v4774
    %v4839 = vadd.f32 %v4199, %v4775
    %v4840 = vadd.f32 %v4200, %v4776
    %v4841 = vadd.f32 %v4201, %v4777
    %v4842 = vadd.f32 %v4202, %v4778
    %v4843 = vadd.f32 %v4203, %v4779
    %v4844 = vadd.f32 %v4204, %v4780
    %v4845 = vadd.f32 %v4205, %v4781
    %v4846 = vadd.f32 %v4206, %v4782
    %v4847 = vadd.f32 %v4207, %v4783
    %v4848 = vadd.f32 %v4208, %v4784
    %v4849 = vadd.f32 %v4209, %v4785
    %v4850 = vadd.f32 %v4210, %v4786
    %v4851 = vadd.f32 %v4211, %v4787
    %v4852 = vadd.f32 %v4212, %v4788
    %v4853 = vadd.f32 %v4213, %v4789
    %v4854 = vadd.f32 %v4214, %v4790
    %v4855 = vadd.f32 %v4215, %v4791
    %v4856 = vadd.f32 %v4216, %v4792
    %v4857 = vadd.f32 %v4217, %v4793
    %v4858 = vadd.f32 %v4218, %v4794
    %v4859 = vadd.f32 %v4219, %v4795
    %v4860 = vadd.f32 %v4220, %v4796
    %v4861 = vadd.f32 %v4221, %v4797
    %v4862 = vadd.f32 %v4222, %v4798
    %v4863 = vadd.f32 %v4223, %v4799
    %v4864 = vadd.f32 %v4224, %v4800
    %v4865 = vadd.f32 %v4225, %v4801
    %v4866 = vadd.f32 %v4226, %v4802
    %v4867 = vadd.f32 %v4227, %v4803
    %v4868 = vadd.f32 %v4228, %v4804
    %v4869 = vadd.f32 %v4229, %v4805
    %v4870 = vadd.f32 %v4230, %v4806
    %v4871 = vadd.f32 %v4231, %v4807
    %v4872 = vadd.f32 %v4232, %v4808
    %v4873 = vadd.f32 %v4233, %v4809
    %v4874 = vadd.f32 %v4234, %v4810
    %v4875 = vadd.f32 %v4235, %v4811
    %v4876 = vadd.f32 %v4236, %v4812
    %v4877 = vadd.f32 %v4237, %v4813
    %v4878 = vadd.f32 %v4238, %v4814
    %v4879 = vadd.f32 %v4239, %v4815
    %v4880 = vadd.f32 %v4240, %v4816
    %v4881 = vadd.f32 %v4241, %v4817
    %v4882 = vadd.f32 %v4242, %v4818
    %4883 = vset.pattern.permute.xlu0 4
    %4884 = vperm.xlu0 %4883, %v2259
    %v4885 = vpop.permute.xlu0 %4884
    %4887 = vset.pattern.permute.xlu0 4
    %4888 = vperm.xlu0 %4887, %v2260
    %v4889 = vpop.permute.xlu0 %4888
    %4891 = vset.pattern.permute.xlu0 4
    %4892 = vperm.xlu0 %4891, %v2261
    %v4893 = vpop.permute.xlu0 %4892
    %4895 = vset.pattern.permute.xlu0 4
    %4896 = vperm.xlu0 %4895, %v2262
    %v4897 = vpop.permute.xlu0 %4896
    %4899 = vset.pattern.permute.xlu0 4
    %4900 = vperm.xlu0 %4899, %v2263
    %v4901 = vpop.permute.xlu0 %4900
    %4903 = vset.pattern.permute.xlu0 4
    %4904 = vperm.xlu0 %4903, %v2264
    %v4905 = vpop.permute.xlu0 %4904
    %4907 = vset.pattern.permute.xlu0 4
    %4908 = vperm.xlu0 %4907, %v2265
    %v4909 = vpop.permute.xlu0 %4908
    %4911 = vset.pattern.permute.xlu0 4
    %4912 = vperm.xlu0 %4911, %v2266
    %v4913 = vpop.permute.xlu0 %4912
    %4915 = vset.pattern.permute.xlu0 4
    %4916 = vperm.xlu0 %4915, %v2267
    %v4917 = vpop.permute.xlu0 %4916
    %4919 = vset.pattern.permute.xlu0 4
    %4920 = vperm.xlu0 %4919, %v2268
    %v4921 = vpop.permute.xlu0 %4920
    %4923 = vset.pattern.permute.xlu0 4
    %4924 = vperm.xlu0 %4923, %v2269
    %v4925 = vpop.permute.xlu0 %4924
    %4927 = vset.pattern.permute.xlu0 4
    %4928 = vperm.xlu0 %4927, %v2270
    %v4929 = vpop.permute.xlu0 %4928
    %4931 = vset.pattern.permute.xlu0 4
    %4932 = vperm.xlu0 %4931, %v2271
    %v4933 = vpop.permute.xlu0 %4932
    %4935 = vset.pattern.permute.xlu0 4
    %4936 = vperm.xlu0 %4935, %v2272
    %v4937 = vpop.permute.xlu0 %4936
    %4939 = vset.pattern.permute.xlu0 4
    %4940 = vperm.xlu0 %4939, %v2273
    %v4941 = vpop.permute.xlu0 %4940
    %4943 = vset.pattern.permute.xlu0 4
    %4944 = vperm.xlu0 %4943, %v2274
    %v4945 = vpop.permute.xlu0 %4944
    %4947 = vset.pattern.permute.xlu0 4
    %4948 = vperm.xlu0 %4947, %v2275
    %v4949 = vpop.permute.xlu0 %4948
    %4951 = vset.pattern.permute.xlu0 4
    %4952 = vperm.xlu0 %4951, %v2276
    %v4953 = vpop.permute.xlu0 %4952
    %4955 = vset.pattern.permute.xlu0 4
    %4956 = vperm.xlu0 %4955, %v2277
    %v4957 = vpop.permute.xlu0 %4956
    %4959 = vset.pattern.permute.xlu0 4
    %4960 = vperm.xlu0 %4959, %v2278
    %v4961 = vpop.permute.xlu0 %4960
    %4963 = vset.pattern.permute.xlu0 4
    %4964 = vperm.xlu0 %4963, %v2279
    %v4965 = vpop.permute.xlu0 %4964
    %4967 = vset.pattern.permute.xlu0 4
    %4968 = vperm.xlu0 %4967, %v2280
    %v4969 = vpop.permute.xlu0 %4968
    %4971 = vset.pattern.permute.xlu0 4
    %4972 = vperm.xlu0 %4971, %v2281
    %v4973 = vpop.permute.xlu0 %4972
    %4975 = vset.pattern.permute.xlu0 4
    %4976 = vperm.xlu0 %4975, %v2282
    %v4977 = vpop.permute.xlu0 %4976
    %4979 = vset.pattern.permute.xlu0 4
    %4980 = vperm.xlu0 %4979, %v2283
    %v4981 = vpop.permute.xlu0 %4980
    %4983 = vset.pattern.permute.xlu0 4
    %4984 = vperm.xlu0 %4983, %v2284
    %v4985 = vpop.permute.xlu0 %4984
    %4987 = vset.pattern.permute.xlu0 4
    %4988 = vperm.xlu0 %4987, %v2285
    %v4989 = vpop.permute.xlu0 %4988
    %4991 = vset.pattern.permute.xlu0 4
    %4992 = vperm.xlu0 %4991, %v2286
    %v4993 = vpop.permute.xlu0 %4992
    %4995 = vset.pattern.permute.xlu0 4
    %4996 = vperm.xlu0 %4995, %v2287
    %v4997 = vpop.permute.xlu0 %4996
    %4999 = vset.pattern.permute.xlu0 4
    %5000 = vperm.xlu0 %4999, %v2288
    %v5001 = vpop.permute.xlu0 %5000
    %5003 = vset.pattern.permute.xlu0 4
    %5004 = vperm.xlu0 %5003, %v2289
    %v5005 = vpop.permute.xlu0 %5004
    %5007 = vset.pattern.permute.xlu0 4
    %5008 = vperm.xlu0 %5007, %v2290
    %v5009 = vpop.permute.xlu0 %5008
    %5011 = vset.pattern.permute.xlu0 4
    %5012 = vperm.xlu0 %5011, %v2291
    %v5013 = vpop.permute.xlu0 %5012
    %5015 = vset.pattern.permute.xlu0 4
    %5016 = vperm.xlu0 %5015, %v2292
    %v5017 = vpop.permute.xlu0 %5016
    %5019 = vset.pattern.permute.xlu0 4
    %5020 = vperm.xlu0 %5019, %v2293
    %v5021 = vpop.permute.xlu0 %5020
    %5023 = vset.pattern.permute.xlu0 4
    %5024 = vperm.xlu0 %5023, %v2294
    %v5025 = vpop.permute.xlu0 %5024
    %5027 = vset.pattern.permute.xlu0 4
    %5028 = vperm.xlu0 %5027, %v2295
    %v5029 = vpop.permute.xlu0 %5028
    %5031 = vset.pattern.permute.xlu0 4
    %5032 = vperm.xlu0 %5031, %v2296
    %v5033 = vpop.permute.xlu0 %5032
    %5035 = vset.pattern.permute.xlu0 4
    %5036 = vperm.xlu0 %5035, %v2297
    %v5037 = vpop.permute.xlu0 %5036
    %5039 = vset.pattern.permute.xlu0 4
    %5040 = vperm.xlu0 %5039, %v2298
    %v5041 = vpop.permute.xlu0 %5040
    %5043 = vset.pattern.permute.xlu0 4
    %5044 = vperm.xlu0 %5043, %v2299
    %v5045 = vpop.permute.xlu0 %5044
    %5047 = vset.pattern.permute.xlu0 4
    %5048 = vperm.xlu0 %5047, %v2300
    %v5049 = vpop.permute.xlu0 %5048
    %5051 = vset.pattern.permute.xlu0 4
    %5052 = vperm.xlu0 %5051, %v2301
    %v5053 = vpop.permute.xlu0 %5052
    %5055 = vset.pattern.permute.xlu0 4
    %5056 = vperm.xlu0 %5055, %v2302
    %v5057 = vpop.permute.xlu0 %5056
    %5059 = vset.pattern.permute.xlu0 4
    %5060 = vperm.xlu0 %5059, %v2303
    %v5061 = vpop.permute.xlu0 %5060
    %5063 = vset.pattern.permute.xlu0 4
    %5064 = vperm.xlu0 %5063, %v2304
    %v5065 = vpop.permute.xlu0 %5064
    %5067 = vset.pattern.permute.xlu0 4
    %5068 = vperm.xlu0 %5067, %v2305
    %v5069 = vpop.permute.xlu0 %5068
    %5071 = vset.pattern.permute.xlu0 4
    %5072 = vperm.xlu0 %5071, %v2306
    %v5073 = vpop.permute.xlu0 %5072
    %5075 = vset.pattern.permute.xlu0 4
    %5076 = vperm.xlu0 %5075, %v2307
    %v5077 = vpop.permute.xlu0 %5076
    %5079 = vset.pattern.permute.xlu0 4
    %5080 = vperm.xlu0 %5079, %v2308
    %v5081 = vpop.permute.xlu0 %5080
    %5083 = vset.pattern.permute.xlu0 4
    %5084 = vperm.xlu0 %5083, %v2309
    %v5085 = vpop.permute.xlu0 %5084
    %5087 = vset.pattern.permute.xlu0 4
    %5088 = vperm.xlu0 %5087, %v2310
    %v5089 = vpop.permute.xlu0 %5088
    %5091 = vset.pattern.permute.xlu0 4
    %5092 = vperm.xlu0 %5091, %v2311
    %v5093 = vpop.permute.xlu0 %5092
    %5095 = vset.pattern.permute.xlu0 4
    %5096 = vperm.xlu0 %5095, %v2312
    %v5097 = vpop.permute.xlu0 %5096
    %5099 = vset.pattern.permute.xlu0 4
    %5100 = vperm.xlu0 %5099, %v2313
    %v5101 = vpop.permute.xlu0 %5100
    %5103 = vset.pattern.permute.xlu0 4
    %5104 = vperm.xlu0 %5103, %v2314
    %v5105 = vpop.permute.xlu0 %5104
    %5107 = vset.pattern.permute.xlu0 4
    %5108 = vperm.xlu0 %5107, %v2315
    %v5109 = vpop.permute.xlu0 %5108
    %5111 = vset.pattern.permute.xlu0 4
    %5112 = vperm.xlu0 %5111, %v2316
    %v5113 = vpop.permute.xlu0 %5112
    %5115 = vset.pattern.permute.xlu0 4
    %5116 = vperm.xlu0 %5115, %v2317
    %v5117 = vpop.permute.xlu0 %5116
    %5119 = vset.pattern.permute.xlu0 4
    %5120 = vperm.xlu0 %5119, %v2318
    %v5121 = vpop.permute.xlu0 %5120
    %5123 = vset.pattern.permute.xlu0 4
    %5124 = vperm.xlu0 %5123, %v2319
    %v5125 = vpop.permute.xlu0 %5124
    %5127 = vset.pattern.permute.xlu0 4
    %5128 = vperm.xlu0 %5127, %v2320
    %v5129 = vpop.permute.xlu0 %5128
    %5131 = vset.pattern.permute.xlu0 4
    %5132 = vperm.xlu0 %5131, %v2321
    %v5133 = vpop.permute.xlu0 %5132
    %5135 = vset.pattern.permute.xlu0 4
    %5136 = vperm.xlu0 %5135, %v2322
    %v5137 = vpop.permute.xlu0 %5136
    %v5139 = vlaneseq
    %v5140 = vshrl.u32 %v5139, 7
    %v5141 = vsub.s32 4, %v5140
    %v5142 = vrot.slane %v75, %v5141
    %v5143 = vlaneseq
    %v5144 = vshrl.u32 %v5143, 7
    %v5145 = vsub.s32 4, %v5144
    %v5146 = vrot.slane %v76, %v5145
    %v5147 = vlaneseq
    %v5148 = vshrl.u32 %v5147, 7
    %v5149 = vsub.s32 4, %v5148
    %v5150 = vrot.slane %v77, %v5149
    %v5151 = vlaneseq
    %v5152 = vshrl.u32 %v5151, 7
    %v5153 = vsub.s32 4, %v5152
    %v5154 = vrot.slane %v78, %v5153
    %v5155 = vlaneseq
    %v5156 = vshrl.u32 %v5155, 7
    %v5157 = vsub.s32 4, %v5156
    %v5158 = vrot.slane %v79, %v5157
    %v5159 = vlaneseq
    %v5160 = vshrl.u32 %v5159, 7
    %v5161 = vsub.s32 4, %v5160
    %v5162 = vrot.slane %v80, %v5161
    %v5163 = vlaneseq
    %v5164 = vshrl.u32 %v5163, 7
    %v5165 = vsub.s32 4, %v5164
    %v5166 = vrot.slane %v81, %v5165
    %v5167 = vlaneseq
    %v5168 = vshrl.u32 %v5167, 7
    %v5169 = vsub.s32 4, %v5168
    %v5170 = vrot.slane %v82, %v5169
    %v5171 = vlaneseq
    %v5172 = vshrl.u32 %v5171, 7
    %v5173 = vsub.s32 4, %v5172
    %v5174 = vrot.slane %v83, %v5173
    %v5175 = vlaneseq
    %v5176 = vshrl.u32 %v5175, 7
    %v5177 = vsub.s32 4, %v5176
    %v5178 = vrot.slane %v84, %v5177
    %v5179 = vlaneseq
    %v5180 = vshrl.u32 %v5179, 7
    %v5181 = vsub.s32 4, %v5180
    %v5182 = vrot.slane %v85, %v5181
    %v5183 = vlaneseq
    %v5184 = vshrl.u32 %v5183, 7
    %v5185 = vsub.s32 4, %v5184
    %v5186 = vrot.slane %v86, %v5185
    %v5187 = vlaneseq
    %v5188 = vshrl.u32 %v5187, 7
    %v5189 = vsub.s32 4, %v5188
    %v5190 = vrot.slane %v87, %v5189
    %v5191 = vlaneseq
    %v5192 = vshrl.u32 %v5191, 7
    %v5193 = vsub.s32 4, %v5192
    %v5194 = vrot.slane %v88, %v5193
    %v5195 = vlaneseq
    %v5196 = vshrl.u32 %v5195, 7
    %v5197 = vsub.s32 4, %v5196
    %v5198 = vrot.slane %v89, %v5197
    %v5199 = vlaneseq
    %v5200 = vshrl.u32 %v5199, 7
    %v5201 = vsub.s32 4, %v5200
    %v5202 = vrot.slane %v90, %v5201
    %v5203 = vlaneseq
    %v5204 = vshrl.u32 %v5203, 7
    %v5205 = vsub.s32 4, %v5204
    %v5206 = vrot.slane %v91, %v5205
    %v5207 = vlaneseq
    %v5208 = vshrl.u32 %v5207, 7
    %v5209 = vsub.s32 4, %v5208
    %v5210 = vrot.slane %v92, %v5209
    %v5211 = vlaneseq
    %v5212 = vshrl.u32 %v5211, 7
    %v5213 = vsub.s32 4, %v5212
    %v5214 = vrot.slane %v93, %v5213
    %v5215 = vlaneseq
    %v5216 = vshrl.u32 %v5215, 7
    %v5217 = vsub.s32 4, %v5216
    %v5218 = vrot.slane %v94, %v5217
    %v5219 = vlaneseq
    %v5220 = vshrl.u32 %v5219, 7
    %v5221 = vsub.s32 4, %v5220
    %v5222 = vrot.slane %v95, %v5221
    %v5223 = vlaneseq
    %v5224 = vshrl.u32 %v5223, 7
    %v5225 = vsub.s32 4, %v5224
    %v5226 = vrot.slane %v96, %v5225
    %v5227 = vlaneseq
    %v5228 = vshrl.u32 %v5227, 7
    %v5229 = vsub.s32 4, %v5228
    %v5230 = vrot.slane %v97, %v5229
    %v5231 = vlaneseq
    %v5232 = vshrl.u32 %v5231, 7
    %v5233 = vsub.s32 4, %v5232
    %v5234 = vrot.slane %v98, %v5233
    %v5235 = vlaneseq
    %v5236 = vshrl.u32 %v5235, 7
    %v5237 = vsub.s32 4, %v5236
    %v5238 = vrot.slane %v99, %v5237
    %v5239 = vlaneseq
    %v5240 = vshrl.u32 %v5239, 7
    %v5241 = vsub.s32 4, %v5240
    %v5242 = vrot.slane %v100, %v5241
    %v5243 = vlaneseq
    %v5244 = vshrl.u32 %v5243, 7
    %v5245 = vsub.s32 4, %v5244
    %v5246 = vrot.slane %v101, %v5245
    %v5247 = vlaneseq
    %v5248 = vshrl.u32 %v5247, 7
    %v5249 = vsub.s32 4, %v5248
    %v5250 = vrot.slane %v102, %v5249
    %v5251 = vlaneseq
    %v5252 = vshrl.u32 %v5251, 7
    %v5253 = vsub.s32 4, %v5252
    %v5254 = vrot.slane %v103, %v5253
    %v5255 = vlaneseq
    %v5256 = vshrl.u32 %v5255, 7
    %v5257 = vsub.s32 4, %v5256
    %v5258 = vrot.slane %v104, %v5257
    %v5259 = vlaneseq
    %v5260 = vshrl.u32 %v5259, 7
    %v5261 = vsub.s32 4, %v5260
    %v5262 = vrot.slane %v105, %v5261
    %v5263 = vlaneseq
    %v5264 = vshrl.u32 %v5263, 7
    %v5265 = vsub.s32 4, %v5264
    %v5266 = vrot.slane %v106, %v5265
    %v5267 = vlaneseq
    %v5268 = vshrl.u32 %v5267, 7
    %v5269 = vsub.s32 4, %v5268
    %v5270 = vrot.slane %v107, %v5269
    %v5271 = vlaneseq
    %v5272 = vshrl.u32 %v5271, 7
    %v5273 = vsub.s32 4, %v5272
    %v5274 = vrot.slane %v108, %v5273
    %v5275 = vlaneseq
    %v5276 = vshrl.u32 %v5275, 7
    %v5277 = vsub.s32 4, %v5276
    %v5278 = vrot.slane %v109, %v5277
    %v5279 = vlaneseq
    %v5280 = vshrl.u32 %v5279, 7
    %v5281 = vsub.s32 4, %v5280
    %v5282 = vrot.slane %v110, %v5281
    %v5283 = vlaneseq
    %v5284 = vshrl.u32 %v5283, 7
    %v5285 = vsub.s32 4, %v5284
    %v5286 = vrot.slane %v111, %v5285
    %v5287 = vlaneseq
    %v5288 = vshrl.u32 %v5287, 7
    %v5289 = vsub.s32 4, %v5288
    %v5290 = vrot.slane %v112, %v5289
    %v5291 = vlaneseq
    %v5292 = vshrl.u32 %v5291, 7
    %v5293 = vsub.s32 4, %v5292
    %v5294 = vrot.slane %v113, %v5293
    %v5295 = vlaneseq
    %v5296 = vshrl.u32 %v5295, 7
    %v5297 = vsub.s32 4, %v5296
    %v5298 = vrot.slane %v114, %v5297
    %v5299 = vlaneseq
    %v5300 = vshrl.u32 %v5299, 7
    %v5301 = vsub.s32 4, %v5300
    %v5302 = vrot.slane %v115, %v5301
    %v5303 = vlaneseq
    %v5304 = vshrl.u32 %v5303, 7
    %v5305 = vsub.s32 4, %v5304
    %v5306 = vrot.slane %v116, %v5305
    %v5307 = vlaneseq
    %v5308 = vshrl.u32 %v5307, 7
    %v5309 = vsub.s32 4, %v5308
    %v5310 = vrot.slane %v117, %v5309
    %v5311 = vlaneseq
    %v5312 = vshrl.u32 %v5311, 7
    %v5313 = vsub.s32 4, %v5312
    %v5314 = vrot.slane %v118, %v5313
    %v5315 = vlaneseq
    %v5316 = vshrl.u32 %v5315, 7
    %v5317 = vsub.s32 4, %v5316
    %v5318 = vrot.slane %v119, %v5317
    %v5319 = vlaneseq
    %v5320 = vshrl.u32 %v5319, 7
    %v5321 = vsub.s32 4, %v5320
    %v5322 = vrot.slane %v120, %v5321
    %v5323 = vlaneseq
    %v5324 = vshrl.u32 %v5323, 7
    %v5325 = vsub.s32 4, %v5324
    %v5326 = vrot.slane %v121, %v5325
    %v5327 = vlaneseq
    %v5328 = vshrl.u32 %v5327, 7
    %v5329 = vsub.s32 4, %v5328
    %v5330 = vrot.slane %v122, %v5329
    %v5331 = vlaneseq
    %v5332 = vshrl.u32 %v5331, 7
    %v5333 = vsub.s32 4, %v5332
    %v5334 = vrot.slane %v123, %v5333
    %v5335 = vlaneseq
    %v5336 = vshrl.u32 %v5335, 7
    %v5337 = vsub.s32 4, %v5336
    %v5338 = vrot.slane %v124, %v5337
    %v5339 = vlaneseq
    %v5340 = vshrl.u32 %v5339, 7
    %v5341 = vsub.s32 4, %v5340
    %v5342 = vrot.slane %v125, %v5341
    %v5343 = vlaneseq
    %v5344 = vshrl.u32 %v5343, 7
    %v5345 = vsub.s32 4, %v5344
    %v5346 = vrot.slane %v126, %v5345
    %v5347 = vlaneseq
    %v5348 = vshrl.u32 %v5347, 7
    %v5349 = vsub.s32 4, %v5348
    %v5350 = vrot.slane %v127, %v5349
    %v5351 = vlaneseq
    %v5352 = vshrl.u32 %v5351, 7
    %v5353 = vsub.s32 4, %v5352
    %v5354 = vrot.slane %v128, %v5353
    %v5355 = vlaneseq
    %v5356 = vshrl.u32 %v5355, 7
    %v5357 = vsub.s32 4, %v5356
    %v5358 = vrot.slane %v129, %v5357
    %v5359 = vlaneseq
    %v5360 = vshrl.u32 %v5359, 7
    %v5361 = vsub.s32 4, %v5360
    %v5362 = vrot.slane %v130, %v5361
    %v5363 = vlaneseq
    %v5364 = vshrl.u32 %v5363, 7
    %v5365 = vsub.s32 4, %v5364
    %v5366 = vrot.slane %v131, %v5365
    %v5367 = vlaneseq
    %v5368 = vshrl.u32 %v5367, 7
    %v5369 = vsub.s32 4, %v5368
    %v5370 = vrot.slane %v132, %v5369
    %v5371 = vlaneseq
    %v5372 = vshrl.u32 %v5371, 7
    %v5373 = vsub.s32 4, %v5372
    %v5374 = vrot.slane %v133, %v5373
    %v5375 = vlaneseq
    %v5376 = vshrl.u32 %v5375, 7
    %v5377 = vsub.s32 4, %v5376
    %v5378 = vrot.slane %v134, %v5377
    %v5379 = vlaneseq
    %v5380 = vshrl.u32 %v5379, 7
    %v5381 = vsub.s32 4, %v5380
    %v5382 = vrot.slane %v135, %v5381
    %v5383 = vlaneseq
    %v5384 = vshrl.u32 %v5383, 7
    %v5385 = vsub.s32 4, %v5384
    %v5386 = vrot.slane %v136, %v5385
    %v5387 = vlaneseq
    %v5388 = vshrl.u32 %v5387, 7
    %v5389 = vsub.s32 4, %v5388
    %v5390 = vrot.slane %v137, %v5389
    %v5391 = vlaneseq
    %v5392 = vshrl.u32 %v5391, 7
    %v5393 = vsub.s32 4, %v5392
    %v5394 = vrot.slane %v138, %v5393
    %v5395 = vmul.f32 %v4885, %v5142
    %v5396 = vmul.f32 %v4889, %v5146
    %v5397 = vmul.f32 %v4893, %v5150
    %v5398 = vmul.f32 %v4897, %v5154
    %v5399 = vmul.f32 %v4901, %v5158
    %v5400 = vmul.f32 %v4905, %v5162
    %v5401 = vmul.f32 %v4909, %v5166
    %v5402 = vmul.f32 %v4913, %v5170
    %v5403 = vmul.f32 %v4917, %v5174
    %v5404 = vmul.f32 %v4921, %v5178
    %v5405 = vmul.f32 %v4925, %v5182
    %v5406 = vmul.f32 %v4929, %v5186
    %v5407 = vmul.f32 %v4933, %v5190
    %v5408 = vmul.f32 %v4937, %v5194
    %v5409 = vmul.f32 %v4941, %v5198
    %v5410 = vmul.f32 %v4945, %v5202
    %v5411 = vmul.f32 %v4949, %v5206
    %v5412 = vmul.f32 %v4953, %v5210
    %v5413 = vmul.f32 %v4957, %v5214
    %v5414 = vmul.f32 %v4961, %v5218
    %v5415 = vmul.f32 %v4965, %v5222
    %v5416 = vmul.f32 %v4969, %v5226
    %v5417 = vmul.f32 %v4973, %v5230
    %v5418 = vmul.f32 %v4977, %v5234
    %v5419 = vmul.f32 %v4981, %v5238
    %v5420 = vmul.f32 %v4985, %v5242
    %v5421 = vmul.f32 %v4989, %v5246
    %v5422 = vmul.f32 %v4993, %v5250
    %v5423 = vmul.f32 %v4997, %v5254
    %v5424 = vmul.f32 %v5001, %v5258
    %v5425 = vmul.f32 %v5005, %v5262
    %v5426 = vmul.f32 %v5009, %v5266
    %v5427 = vmul.f32 %v5013, %v5270
    %v5428 = vmul.f32 %v5017, %v5274
    %v5429 = vmul.f32 %v5021, %v5278
    %v5430 = vmul.f32 %v5025, %v5282
    %v5431 = vmul.f32 %v5029, %v5286
    %v5432 = vmul.f32 %v5033, %v5290
    %v5433 = vmul.f32 %v5037, %v5294
    %v5434 = vmul.f32 %v5041, %v5298
    %v5435 = vmul.f32 %v5045, %v5302
    %v5436 = vmul.f32 %v5049, %v5306
    %v5437 = vmul.f32 %v5053, %v5310
    %v5438 = vmul.f32 %v5057, %v5314
    %v5439 = vmul.f32 %v5061, %v5318
    %v5440 = vmul.f32 %v5065, %v5322
    %v5441 = vmul.f32 %v5069, %v5326
    %v5442 = vmul.f32 %v5073, %v5330
    %v5443 = vmul.f32 %v5077, %v5334
    %v5444 = vmul.f32 %v5081, %v5338
    %v5445 = vmul.f32 %v5085, %v5342
    %v5446 = vmul.f32 %v5089, %v5346
    %v5447 = vmul.f32 %v5093, %v5350
    %v5448 = vmul.f32 %v5097, %v5354
    %v5449 = vmul.f32 %v5101, %v5358
    %v5450 = vmul.f32 %v5105, %v5362
    %v5451 = vmul.f32 %v5109, %v5366
    %v5452 = vmul.f32 %v5113, %v5370
    %v5453 = vmul.f32 %v5117, %v5374
    %v5454 = vmul.f32 %v5121, %v5378
    %v5455 = vmul.f32 %v5125, %v5382
    %v5456 = vmul.f32 %v5129, %v5386
    %v5457 = vmul.f32 %v5133, %v5390
    %v5458 = vmul.f32 %v5137, %v5394
    %v5459 = vadd.f32 %v4819, %v5395
    %v5460 = vadd.f32 %v4820, %v5396
    %v5461 = vadd.f32 %v4821, %v5397
    %v5462 = vadd.f32 %v4822, %v5398
    %v5463 = vadd.f32 %v4823, %v5399
    %v5464 = vadd.f32 %v4824, %v5400
    %v5465 = vadd.f32 %v4825, %v5401
    %v5466 = vadd.f32 %v4826, %v5402
    %v5467 = vadd.f32 %v4827, %v5403
    %v5468 = vadd.f32 %v4828, %v5404
    %v5469 = vadd.f32 %v4829, %v5405
    %v5470 = vadd.f32 %v4830, %v5406
    %v5471 = vadd.f32 %v4831, %v5407
    %v5472 = vadd.f32 %v4832, %v5408
    %v5473 = vadd.f32 %v4833, %v5409
    %v5474 = vadd.f32 %v4834, %v5410
    %v5475 = vadd.f32 %v4835, %v5411
    %v5476 = vadd.f32 %v4836, %v5412
    %v5477 = vadd.f32 %v4837, %v5413
    %v5478 = vadd.f32 %v4838, %v5414
    %v5479 = vadd.f32 %v4839, %v5415
    %v5480 = vadd.f32 %v4840, %v5416
    %v5481 = vadd.f32 %v4841, %v5417
    %v5482 = vadd.f32 %v4842, %v5418
    %v5483 = vadd.f32 %v4843, %v5419
    %v5484 = vadd.f32 %v4844, %v5420
    %v5485 = vadd.f32 %v4845, %v5421
    %v5486 = vadd.f32 %v4846, %v5422
    %v5487 = vadd.f32 %v4847, %v5423
    %v5488 = vadd.f32 %v4848, %v5424
    %v5489 = vadd.f32 %v4849, %v5425
    %v5490 = vadd.f32 %v4850, %v5426
    %v5491 = vadd.f32 %v4851, %v5427
    %v5492 = vadd.f32 %v4852, %v5428
    %v5493 = vadd.f32 %v4853, %v5429
    %v5494 = vadd.f32 %v4854, %v5430
    %v5495 = vadd.f32 %v4855, %v5431
    %v5496 = vadd.f32 %v4856, %v5432
    %v5497 = vadd.f32 %v4857, %v5433
    %v5498 = vadd.f32 %v4858, %v5434
    %v5499 = vadd.f32 %v4859, %v5435
    %v5500 = vadd.f32 %v4860, %v5436
    %v5501 = vadd.f32 %v4861, %v5437
    %v5502 = vadd.f32 %v4862, %v5438
    %v5503 = vadd.f32 %v4863, %v5439
    %v5504 = vadd.f32 %v4864, %v5440
    %v5505 = vadd.f32 %v4865, %v5441
    %v5506 = vadd.f32 %v4866, %v5442
    %v5507 = vadd.f32 %v4867, %v5443
    %v5508 = vadd.f32 %v4868, %v5444
    %v5509 = vadd.f32 %v4869, %v5445
    %v5510 = vadd.f32 %v4870, %v5446
    %v5511 = vadd.f32 %v4871, %v5447
    %v5512 = vadd.f32 %v4872, %v5448
    %v5513 = vadd.f32 %v4873, %v5449
    %v5514 = vadd.f32 %v4874, %v5450
    %v5515 = vadd.f32 %v4875, %v5451
    %v5516 = vadd.f32 %v4876, %v5452
    %v5517 = vadd.f32 %v4877, %v5453
    %v5518 = vadd.f32 %v4878, %v5454
    %v5519 = vadd.f32 %v4879, %v5455
    %v5520 = vadd.f32 %v4880, %v5456
    %v5521 = vadd.f32 %v4881, %v5457
    %v5522 = vadd.f32 %v4882, %v5458
    %5523 = vset.pattern.permute.xlu0 5
    %5524 = vperm.xlu0 %5523, %v2259
    %v5525 = vpop.permute.xlu0 %5524
    %5527 = vset.pattern.permute.xlu0 5
    %5528 = vperm.xlu0 %5527, %v2260
    %v5529 = vpop.permute.xlu0 %5528
    %5531 = vset.pattern.permute.xlu0 5
    %5532 = vperm.xlu0 %5531, %v2261
    %v5533 = vpop.permute.xlu0 %5532
    %5535 = vset.pattern.permute.xlu0 5
    %5536 = vperm.xlu0 %5535, %v2262
    %v5537 = vpop.permute.xlu0 %5536
    %5539 = vset.pattern.permute.xlu0 5
    %5540 = vperm.xlu0 %5539, %v2263
    %v5541 = vpop.permute.xlu0 %5540
    %5543 = vset.pattern.permute.xlu0 5
    %5544 = vperm.xlu0 %5543, %v2264
    %v5545 = vpop.permute.xlu0 %5544
    %5547 = vset.pattern.permute.xlu0 5
    %5548 = vperm.xlu0 %5547, %v2265
    %v5549 = vpop.permute.xlu0 %5548
    %5551 = vset.pattern.permute.xlu0 5
    %5552 = vperm.xlu0 %5551, %v2266
    %v5553 = vpop.permute.xlu0 %5552
    %5555 = vset.pattern.permute.xlu0 5
    %5556 = vperm.xlu0 %5555, %v2267
    %v5557 = vpop.permute.xlu0 %5556
    %5559 = vset.pattern.permute.xlu0 5
    %5560 = vperm.xlu0 %5559, %v2268
    %v5561 = vpop.permute.xlu0 %5560
    %5563 = vset.pattern.permute.xlu0 5
    %5564 = vperm.xlu0 %5563, %v2269
    %v5565 = vpop.permute.xlu0 %5564
    %5567 = vset.pattern.permute.xlu0 5
    %5568 = vperm.xlu0 %5567, %v2270
    %v5569 = vpop.permute.xlu0 %5568
    %5571 = vset.pattern.permute.xlu0 5
    %5572 = vperm.xlu0 %5571, %v2271
    %v5573 = vpop.permute.xlu0 %5572
    %5575 = vset.pattern.permute.xlu0 5
    %5576 = vperm.xlu0 %5575, %v2272
    %v5577 = vpop.permute.xlu0 %5576
    %5579 = vset.pattern.permute.xlu0 5
    %5580 = vperm.xlu0 %5579, %v2273
    %v5581 = vpop.permute.xlu0 %5580
    %5583 = vset.pattern.permute.xlu0 5
    %5584 = vperm.xlu0 %5583, %v2274
    %v5585 = vpop.permute.xlu0 %5584
    %5587 = vset.pattern.permute.xlu0 5
    %5588 = vperm.xlu0 %5587, %v2275
    %v5589 = vpop.permute.xlu0 %5588
    %5591 = vset.pattern.permute.xlu0 5
    %5592 = vperm.xlu0 %5591, %v2276
    %v5593 = vpop.permute.xlu0 %5592
    %5595 = vset.pattern.permute.xlu0 5
    %5596 = vperm.xlu0 %5595, %v2277
    %v5597 = vpop.permute.xlu0 %5596
    %5599 = vset.pattern.permute.xlu0 5
    %5600 = vperm.xlu0 %5599, %v2278
    %v5601 = vpop.permute.xlu0 %5600
    %5603 = vset.pattern.permute.xlu0 5
    %5604 = vperm.xlu0 %5603, %v2279
    %v5605 = vpop.permute.xlu0 %5604
    %5607 = vset.pattern.permute.xlu0 5
    %5608 = vperm.xlu0 %5607, %v2280
    %v5609 = vpop.permute.xlu0 %5608
    %5611 = vset.pattern.permute.xlu0 5
    %5612 = vperm.xlu0 %5611, %v2281
    %v5613 = vpop.permute.xlu0 %5612
    %5615 = vset.pattern.permute.xlu0 5
    %5616 = vperm.xlu0 %5615, %v2282
    %v5617 = vpop.permute.xlu0 %5616
    %5619 = vset.pattern.permute.xlu0 5
    %5620 = vperm.xlu0 %5619, %v2283
    %v5621 = vpop.permute.xlu0 %5620
    %5623 = vset.pattern.permute.xlu0 5
    %5624 = vperm.xlu0 %5623, %v2284
    %v5625 = vpop.permute.xlu0 %5624
    %5627 = vset.pattern.permute.xlu0 5
    %5628 = vperm.xlu0 %5627, %v2285
    %v5629 = vpop.permute.xlu0 %5628
    %5631 = vset.pattern.permute.xlu0 5
    %5632 = vperm.xlu0 %5631, %v2286
    %v5633 = vpop.permute.xlu0 %5632
    %5635 = vset.pattern.permute.xlu0 5
    %5636 = vperm.xlu0 %5635, %v2287
    %v5637 = vpop.permute.xlu0 %5636
    %5639 = vset.pattern.permute.xlu0 5
    %5640 = vperm.xlu0 %5639, %v2288
    %v5641 = vpop.permute.xlu0 %5640
    %5643 = vset.pattern.permute.xlu0 5
    %5644 = vperm.xlu0 %5643, %v2289
    %v5645 = vpop.permute.xlu0 %5644
    %5647 = vset.pattern.permute.xlu0 5
    %5648 = vperm.xlu0 %5647, %v2290
    %v5649 = vpop.permute.xlu0 %5648
    %5651 = vset.pattern.permute.xlu0 5
    %5652 = vperm.xlu0 %5651, %v2291
    %v5653 = vpop.permute.xlu0 %5652
    %5655 = vset.pattern.permute.xlu0 5
    %5656 = vperm.xlu0 %5655, %v2292
    %v5657 = vpop.permute.xlu0 %5656
    %5659 = vset.pattern.permute.xlu0 5
    %5660 = vperm.xlu0 %5659, %v2293
    %v5661 = vpop.permute.xlu0 %5660
    %5663 = vset.pattern.permute.xlu0 5
    %5664 = vperm.xlu0 %5663, %v2294
    %v5665 = vpop.permute.xlu0 %5664
    %5667 = vset.pattern.permute.xlu0 5
    %5668 = vperm.xlu0 %5667, %v2295
    %v5669 = vpop.permute.xlu0 %5668
    %5671 = vset.pattern.permute.xlu0 5
    %5672 = vperm.xlu0 %5671, %v2296
    %v5673 = vpop.permute.xlu0 %5672
    %5675 = vset.pattern.permute.xlu0 5
    %5676 = vperm.xlu0 %5675, %v2297
    %v5677 = vpop.permute.xlu0 %5676
    %5679 = vset.pattern.permute.xlu0 5
    %5680 = vperm.xlu0 %5679, %v2298
    %v5681 = vpop.permute.xlu0 %5680
    %5683 = vset.pattern.permute.xlu0 5
    %5684 = vperm.xlu0 %5683, %v2299
    %v5685 = vpop.permute.xlu0 %5684
    %5687 = vset.pattern.permute.xlu0 5
    %5688 = vperm.xlu0 %5687, %v2300
    %v5689 = vpop.permute.xlu0 %5688
    %5691 = vset.pattern.permute.xlu0 5
    %5692 = vperm.xlu0 %5691, %v2301
    %v5693 = vpop.permute.xlu0 %5692
    %5695 = vset.pattern.permute.xlu0 5
    %5696 = vperm.xlu0 %5695, %v2302
    %v5697 = vpop.permute.xlu0 %5696
    %5699 = vset.pattern.permute.xlu0 5
    %5700 = vperm.xlu0 %5699, %v2303
    %v5701 = vpop.permute.xlu0 %5700
    %5703 = vset.pattern.permute.xlu0 5
    %5704 = vperm.xlu0 %5703, %v2304
    %v5705 = vpop.permute.xlu0 %5704
    %5707 = vset.pattern.permute.xlu0 5
    %5708 = vperm.xlu0 %5707, %v2305
    %v5709 = vpop.permute.xlu0 %5708
    %5711 = vset.pattern.permute.xlu0 5
    %5712 = vperm.xlu0 %5711, %v2306
    %v5713 = vpop.permute.xlu0 %5712
    %5715 = vset.pattern.permute.xlu0 5
    %5716 = vperm.xlu0 %5715, %v2307
    %v5717 = vpop.permute.xlu0 %5716
    %5719 = vset.pattern.permute.xlu0 5
    %5720 = vperm.xlu0 %5719, %v2308
    %v5721 = vpop.permute.xlu0 %5720
    %5723 = vset.pattern.permute.xlu0 5
    %5724 = vperm.xlu0 %5723, %v2309
    %v5725 = vpop.permute.xlu0 %5724
    %5727 = vset.pattern.permute.xlu0 5
    %5728 = vperm.xlu0 %5727, %v2310
    %v5729 = vpop.permute.xlu0 %5728
    %5731 = vset.pattern.permute.xlu0 5
    %5732 = vperm.xlu0 %5731, %v2311
    %v5733 = vpop.permute.xlu0 %5732
    %5735 = vset.pattern.permute.xlu0 5
    %5736 = vperm.xlu0 %5735, %v2312
    %v5737 = vpop.permute.xlu0 %5736
    %5739 = vset.pattern.permute.xlu0 5
    %5740 = vperm.xlu0 %5739, %v2313
    %v5741 = vpop.permute.xlu0 %5740
    %5743 = vset.pattern.permute.xlu0 5
    %5744 = vperm.xlu0 %5743, %v2314
    %v5745 = vpop.permute.xlu0 %5744
    %5747 = vset.pattern.permute.xlu0 5
    %5748 = vperm.xlu0 %5747, %v2315
    %v5749 = vpop.permute.xlu0 %5748
    %5751 = vset.pattern.permute.xlu0 5
    %5752 = vperm.xlu0 %5751, %v2316
    %v5753 = vpop.permute.xlu0 %5752
    %5755 = vset.pattern.permute.xlu0 5
    %5756 = vperm.xlu0 %5755, %v2317
    %v5757 = vpop.permute.xlu0 %5756
    %5759 = vset.pattern.permute.xlu0 5
    %5760 = vperm.xlu0 %5759, %v2318
    %v5761 = vpop.permute.xlu0 %5760
    %5763 = vset.pattern.permute.xlu0 5
    %5764 = vperm.xlu0 %5763, %v2319
    %v5765 = vpop.permute.xlu0 %5764
    %5767 = vset.pattern.permute.xlu0 5
    %5768 = vperm.xlu0 %5767, %v2320
    %v5769 = vpop.permute.xlu0 %5768
    %5771 = vset.pattern.permute.xlu0 5
    %5772 = vperm.xlu0 %5771, %v2321
    %v5773 = vpop.permute.xlu0 %5772
    %5775 = vset.pattern.permute.xlu0 5
    %5776 = vperm.xlu0 %5775, %v2322
    %v5777 = vpop.permute.xlu0 %5776
    %v5779 = vlaneseq
    %v5780 = vshrl.u32 %v5779, 7
    %v5781 = vsub.s32 5, %v5780
    %v5782 = vrot.slane %v75, %v5781
    %v5783 = vlaneseq
    %v5784 = vshrl.u32 %v5783, 7
    %v5785 = vsub.s32 5, %v5784
    %v5786 = vrot.slane %v76, %v5785
    %v5787 = vlaneseq
    %v5788 = vshrl.u32 %v5787, 7
    %v5789 = vsub.s32 5, %v5788
    %v5790 = vrot.slane %v77, %v5789
    %v5791 = vlaneseq
    %v5792 = vshrl.u32 %v5791, 7
    %v5793 = vsub.s32 5, %v5792
    %v5794 = vrot.slane %v78, %v5793
    %v5795 = vlaneseq
    %v5796 = vshrl.u32 %v5795, 7
    %v5797 = vsub.s32 5, %v5796
    %v5798 = vrot.slane %v79, %v5797
    %v5799 = vlaneseq
    %v5800 = vshrl.u32 %v5799, 7
    %v5801 = vsub.s32 5, %v5800
    %v5802 = vrot.slane %v80, %v5801
    %v5803 = vlaneseq
    %v5804 = vshrl.u32 %v5803, 7
    %v5805 = vsub.s32 5, %v5804
    %v5806 = vrot.slane %v81, %v5805
    %v5807 = vlaneseq
    %v5808 = vshrl.u32 %v5807, 7
    %v5809 = vsub.s32 5, %v5808
    %v5810 = vrot.slane %v82, %v5809
    %v5811 = vlaneseq
    %v5812 = vshrl.u32 %v5811, 7
    %v5813 = vsub.s32 5, %v5812
    %v5814 = vrot.slane %v83, %v5813
    %v5815 = vlaneseq
    %v5816 = vshrl.u32 %v5815, 7
    %v5817 = vsub.s32 5, %v5816
    %v5818 = vrot.slane %v84, %v5817
    %v5819 = vlaneseq
    %v5820 = vshrl.u32 %v5819, 7
    %v5821 = vsub.s32 5, %v5820
    %v5822 = vrot.slane %v85, %v5821
    %v5823 = vlaneseq
    %v5824 = vshrl.u32 %v5823, 7
    %v5825 = vsub.s32 5, %v5824
    %v5826 = vrot.slane %v86, %v5825
    %v5827 = vlaneseq
    %v5828 = vshrl.u32 %v5827, 7
    %v5829 = vsub.s32 5, %v5828
    %v5830 = vrot.slane %v87, %v5829
    %v5831 = vlaneseq
    %v5832 = vshrl.u32 %v5831, 7
    %v5833 = vsub.s32 5, %v5832
    %v5834 = vrot.slane %v88, %v5833
    %v5835 = vlaneseq
    %v5836 = vshrl.u32 %v5835, 7
    %v5837 = vsub.s32 5, %v5836
    %v5838 = vrot.slane %v89, %v5837
    %v5839 = vlaneseq
    %v5840 = vshrl.u32 %v5839, 7
    %v5841 = vsub.s32 5, %v5840
    %v5842 = vrot.slane %v90, %v5841
    %v5843 = vlaneseq
    %v5844 = vshrl.u32 %v5843, 7
    %v5845 = vsub.s32 5, %v5844
    %v5846 = vrot.slane %v91, %v5845
    %v5847 = vlaneseq
    %v5848 = vshrl.u32 %v5847, 7
    %v5849 = vsub.s32 5, %v5848
    %v5850 = vrot.slane %v92, %v5849
    %v5851 = vlaneseq
    %v5852 = vshrl.u32 %v5851, 7
    %v5853 = vsub.s32 5, %v5852
    %v5854 = vrot.slane %v93, %v5853
    %v5855 = vlaneseq
    %v5856 = vshrl.u32 %v5855, 7
    %v5857 = vsub.s32 5, %v5856
    %v5858 = vrot.slane %v94, %v5857
    %v5859 = vlaneseq
    %v5860 = vshrl.u32 %v5859, 7
    %v5861 = vsub.s32 5, %v5860
    %v5862 = vrot.slane %v95, %v5861
    %v5863 = vlaneseq
    %v5864 = vshrl.u32 %v5863, 7
    %v5865 = vsub.s32 5, %v5864
    %v5866 = vrot.slane %v96, %v5865
    %v5867 = vlaneseq
    %v5868 = vshrl.u32 %v5867, 7
    %v5869 = vsub.s32 5, %v5868
    %v5870 = vrot.slane %v97, %v5869
    %v5871 = vlaneseq
    %v5872 = vshrl.u32 %v5871, 7
    %v5873 = vsub.s32 5, %v5872
    %v5874 = vrot.slane %v98, %v5873
    %v5875 = vlaneseq
    %v5876 = vshrl.u32 %v5875, 7
    %v5877 = vsub.s32 5, %v5876
    %v5878 = vrot.slane %v99, %v5877
    %v5879 = vlaneseq
    %v5880 = vshrl.u32 %v5879, 7
    %v5881 = vsub.s32 5, %v5880
    %v5882 = vrot.slane %v100, %v5881
    %v5883 = vlaneseq
    %v5884 = vshrl.u32 %v5883, 7
    %v5885 = vsub.s32 5, %v5884
    %v5886 = vrot.slane %v101, %v5885
    %v5887 = vlaneseq
    %v5888 = vshrl.u32 %v5887, 7
    %v5889 = vsub.s32 5, %v5888
    %v5890 = vrot.slane %v102, %v5889
    %v5891 = vlaneseq
    %v5892 = vshrl.u32 %v5891, 7
    %v5893 = vsub.s32 5, %v5892
    %v5894 = vrot.slane %v103, %v5893
    %v5895 = vlaneseq
    %v5896 = vshrl.u32 %v5895, 7
    %v5897 = vsub.s32 5, %v5896
    %v5898 = vrot.slane %v104, %v5897
    %v5899 = vlaneseq
    %v5900 = vshrl.u32 %v5899, 7
    %v5901 = vsub.s32 5, %v5900
    %v5902 = vrot.slane %v105, %v5901
    %v5903 = vlaneseq
    %v5904 = vshrl.u32 %v5903, 7
    %v5905 = vsub.s32 5, %v5904
    %v5906 = vrot.slane %v106, %v5905
    %v5907 = vlaneseq
    %v5908 = vshrl.u32 %v5907, 7
    %v5909 = vsub.s32 5, %v5908
    %v5910 = vrot.slane %v107, %v5909
    %v5911 = vlaneseq
    %v5912 = vshrl.u32 %v5911, 7
    %v5913 = vsub.s32 5, %v5912
    %v5914 = vrot.slane %v108, %v5913
    %v5915 = vlaneseq
    %v5916 = vshrl.u32 %v5915, 7
    %v5917 = vsub.s32 5, %v5916
    %v5918 = vrot.slane %v109, %v5917
    %v5919 = vlaneseq
    %v5920 = vshrl.u32 %v5919, 7
    %v5921 = vsub.s32 5, %v5920
    %v5922 = vrot.slane %v110, %v5921
    %v5923 = vlaneseq
    %v5924 = vshrl.u32 %v5923, 7
    %v5925 = vsub.s32 5, %v5924
    %v5926 = vrot.slane %v111, %v5925
    %v5927 = vlaneseq
    %v5928 = vshrl.u32 %v5927, 7
    %v5929 = vsub.s32 5, %v5928
    %v5930 = vrot.slane %v112, %v5929
    %v5931 = vlaneseq
    %v5932 = vshrl.u32 %v5931, 7
    %v5933 = vsub.s32 5, %v5932
    %v5934 = vrot.slane %v113, %v5933
    %v5935 = vlaneseq
    %v5936 = vshrl.u32 %v5935, 7
    %v5937 = vsub.s32 5, %v5936
    %v5938 = vrot.slane %v114, %v5937
    %v5939 = vlaneseq
    %v5940 = vshrl.u32 %v5939, 7
    %v5941 = vsub.s32 5, %v5940
    %v5942 = vrot.slane %v115, %v5941
    %v5943 = vlaneseq
    %v5944 = vshrl.u32 %v5943, 7
    %v5945 = vsub.s32 5, %v5944
    %v5946 = vrot.slane %v116, %v5945
    %v5947 = vlaneseq
    %v5948 = vshrl.u32 %v5947, 7
    %v5949 = vsub.s32 5, %v5948
    %v5950 = vrot.slane %v117, %v5949
    %v5951 = vlaneseq
    %v5952 = vshrl.u32 %v5951, 7
    %v5953 = vsub.s32 5, %v5952
    %v5954 = vrot.slane %v118, %v5953
    %v5955 = vlaneseq
    %v5956 = vshrl.u32 %v5955, 7
    %v5957 = vsub.s32 5, %v5956
    %v5958 = vrot.slane %v119, %v5957
    %v5959 = vlaneseq
    %v5960 = vshrl.u32 %v5959, 7
    %v5961 = vsub.s32 5, %v5960
    %v5962 = vrot.slane %v120, %v5961
    %v5963 = vlaneseq
    %v5964 = vshrl.u32 %v5963, 7
    %v5965 = vsub.s32 5, %v5964
    %v5966 = vrot.slane %v121, %v5965
    %v5967 = vlaneseq
    %v5968 = vshrl.u32 %v5967, 7
    %v5969 = vsub.s32 5, %v5968
    %v5970 = vrot.slane %v122, %v5969
    %v5971 = vlaneseq
    %v5972 = vshrl.u32 %v5971, 7
    %v5973 = vsub.s32 5, %v5972
    %v5974 = vrot.slane %v123, %v5973
    %v5975 = vlaneseq
    %v5976 = vshrl.u32 %v5975, 7
    %v5977 = vsub.s32 5, %v5976
    %v5978 = vrot.slane %v124, %v5977
    %v5979 = vlaneseq
    %v5980 = vshrl.u32 %v5979, 7
    %v5981 = vsub.s32 5, %v5980
    %v5982 = vrot.slane %v125, %v5981
    %v5983 = vlaneseq
    %v5984 = vshrl.u32 %v5983, 7
    %v5985 = vsub.s32 5, %v5984
    %v5986 = vrot.slane %v126, %v5985
    %v5987 = vlaneseq
    %v5988 = vshrl.u32 %v5987, 7
    %v5989 = vsub.s32 5, %v5988
    %v5990 = vrot.slane %v127, %v5989
    %v5991 = vlaneseq
    %v5992 = vshrl.u32 %v5991, 7
    %v5993 = vsub.s32 5, %v5992
    %v5994 = vrot.slane %v128, %v5993
    %v5995 = vlaneseq
    %v5996 = vshrl.u32 %v5995, 7
    %v5997 = vsub.s32 5, %v5996
    %v5998 = vrot.slane %v129, %v5997
    %v5999 = vlaneseq
    %v6000 = vshrl.u32 %v5999, 7
    %v6001 = vsub.s32 5, %v6000
    %v6002 = vrot.slane %v130, %v6001
    %v6003 = vlaneseq
    %v6004 = vshrl.u32 %v6003, 7
    %v6005 = vsub.s32 5, %v6004
    %v6006 = vrot.slane %v131, %v6005
    %v6007 = vlaneseq
    %v6008 = vshrl.u32 %v6007, 7
    %v6009 = vsub.s32 5, %v6008
    %v6010 = vrot.slane %v132, %v6009
    %v6011 = vlaneseq
    %v6012 = vshrl.u32 %v6011, 7
    %v6013 = vsub.s32 5, %v6012
    %v6014 = vrot.slane %v133, %v6013
    %v6015 = vlaneseq
    %v6016 = vshrl.u32 %v6015, 7
    %v6017 = vsub.s32 5, %v6016
    %v6018 = vrot.slane %v134, %v6017
    %v6019 = vlaneseq
    %v6020 = vshrl.u32 %v6019, 7
    %v6021 = vsub.s32 5, %v6020
    %v6022 = vrot.slane %v135, %v6021
    %v6023 = vlaneseq
    %v6024 = vshrl.u32 %v6023, 7
    %v6025 = vsub.s32 5, %v6024
    %v6026 = vrot.slane %v136, %v6025
    %v6027 = vlaneseq
    %v6028 = vshrl.u32 %v6027, 7
    %v6029 = vsub.s32 5, %v6028
    %v6030 = vrot.slane %v137, %v6029
    %v6031 = vlaneseq
    %v6032 = vshrl.u32 %v6031, 7
    %v6033 = vsub.s32 5, %v6032
    %v6034 = vrot.slane %v138, %v6033
    %v6035 = vmul.f32 %v5525, %v5782
    %v6036 = vmul.f32 %v5529, %v5786
    %v6037 = vmul.f32 %v5533, %v5790
    %v6038 = vmul.f32 %v5537, %v5794
    %v6039 = vmul.f32 %v5541, %v5798
    %v6040 = vmul.f32 %v5545, %v5802
    %v6041 = vmul.f32 %v5549, %v5806
    %v6042 = vmul.f32 %v5553, %v5810
    %v6043 = vmul.f32 %v5557, %v5814
    %v6044 = vmul.f32 %v5561, %v5818
    %v6045 = vmul.f32 %v5565, %v5822
    %v6046 = vmul.f32 %v5569, %v5826
    %v6047 = vmul.f32 %v5573, %v5830
    %v6048 = vmul.f32 %v5577, %v5834
    %v6049 = vmul.f32 %v5581, %v5838
    %v6050 = vmul.f32 %v5585, %v5842
    %v6051 = vmul.f32 %v5589, %v5846
    %v6052 = vmul.f32 %v5593, %v5850
    %v6053 = vmul.f32 %v5597, %v5854
    %v6054 = vmul.f32 %v5601, %v5858
    %v6055 = vmul.f32 %v5605, %v5862
    %v6056 = vmul.f32 %v5609, %v5866
    %v6057 = vmul.f32 %v5613, %v5870
    %v6058 = vmul.f32 %v5617, %v5874
    %v6059 = vmul.f32 %v5621, %v5878
    %v6060 = vmul.f32 %v5625, %v5882
    %v6061 = vmul.f32 %v5629, %v5886
    %v6062 = vmul.f32 %v5633, %v5890
    %v6063 = vmul.f32 %v5637, %v5894
    %v6064 = vmul.f32 %v5641, %v5898
    %v6065 = vmul.f32 %v5645, %v5902
    %v6066 = vmul.f32 %v5649, %v5906
    %v6067 = vmul.f32 %v5653, %v5910
    %v6068 = vmul.f32 %v5657, %v5914
    %v6069 = vmul.f32 %v5661, %v5918
    %v6070 = vmul.f32 %v5665, %v5922
    %v6071 = vmul.f32 %v5669, %v5926
    %v6072 = vmul.f32 %v5673, %v5930
    %v6073 = vmul.f32 %v5677, %v5934
    %v6074 = vmul.f32 %v5681, %v5938
    %v6075 = vmul.f32 %v5685, %v5942
    %v6076 = vmul.f32 %v5689, %v5946
    %v6077 = vmul.f32 %v5693, %v5950
    %v6078 = vmul.f32 %v5697, %v5954
    %v6079 = vmul.f32 %v5701, %v5958
    %v6080 = vmul.f32 %v5705, %v5962
    %v6081 = vmul.f32 %v5709, %v5966
    %v6082 = vmul.f32 %v5713, %v5970
    %v6083 = vmul.f32 %v5717, %v5974
    %v6084 = vmul.f32 %v5721, %v5978
    %v6085 = vmul.f32 %v5725, %v5982
    %v6086 = vmul.f32 %v5729, %v5986
    %v6087 = vmul.f32 %v5733, %v5990
    %v6088 = vmul.f32 %v5737, %v5994
    %v6089 = vmul.f32 %v5741, %v5998
    %v6090 = vmul.f32 %v5745, %v6002
    %v6091 = vmul.f32 %v5749, %v6006
    %v6092 = vmul.f32 %v5753, %v6010
    %v6093 = vmul.f32 %v5757, %v6014
    %v6094 = vmul.f32 %v5761, %v6018
    %v6095 = vmul.f32 %v5765, %v6022
    %v6096 = vmul.f32 %v5769, %v6026
    %v6097 = vmul.f32 %v5773, %v6030
    %v6098 = vmul.f32 %v5777, %v6034
    %v6099 = vadd.f32 %v5459, %v6035
    %v6100 = vadd.f32 %v5460, %v6036
    %v6101 = vadd.f32 %v5461, %v6037
    %v6102 = vadd.f32 %v5462, %v6038
    %v6103 = vadd.f32 %v5463, %v6039
    %v6104 = vadd.f32 %v5464, %v6040
    %v6105 = vadd.f32 %v5465, %v6041
    %v6106 = vadd.f32 %v5466, %v6042
    %v6107 = vadd.f32 %v5467, %v6043
    %v6108 = vadd.f32 %v5468, %v6044
    %v6109 = vadd.f32 %v5469, %v6045
    %v6110 = vadd.f32 %v5470, %v6046
    %v6111 = vadd.f32 %v5471, %v6047
    %v6112 = vadd.f32 %v5472, %v6048
    %v6113 = vadd.f32 %v5473, %v6049
    %v6114 = vadd.f32 %v5474, %v6050
    %v6115 = vadd.f32 %v5475, %v6051
    %v6116 = vadd.f32 %v5476, %v6052
    %v6117 = vadd.f32 %v5477, %v6053
    %v6118 = vadd.f32 %v5478, %v6054
    %v6119 = vadd.f32 %v5479, %v6055
    %v6120 = vadd.f32 %v5480, %v6056
    %v6121 = vadd.f32 %v5481, %v6057
    %v6122 = vadd.f32 %v5482, %v6058
    %v6123 = vadd.f32 %v5483, %v6059
    %v6124 = vadd.f32 %v5484, %v6060
    %v6125 = vadd.f32 %v5485, %v6061
    %v6126 = vadd.f32 %v5486, %v6062
    %v6127 = vadd.f32 %v5487, %v6063
    %v6128 = vadd.f32 %v5488, %v6064
    %v6129 = vadd.f32 %v5489, %v6065
    %v6130 = vadd.f32 %v5490, %v6066
    %v6131 = vadd.f32 %v5491, %v6067
    %v6132 = vadd.f32 %v5492, %v6068
    %v6133 = vadd.f32 %v5493, %v6069
    %v6134 = vadd.f32 %v5494, %v6070
    %v6135 = vadd.f32 %v5495, %v6071
    %v6136 = vadd.f32 %v5496, %v6072
    %v6137 = vadd.f32 %v5497, %v6073
    %v6138 = vadd.f32 %v5498, %v6074
    %v6139 = vadd.f32 %v5499, %v6075
    %v6140 = vadd.f32 %v5500, %v6076
    %v6141 = vadd.f32 %v5501, %v6077
    %v6142 = vadd.f32 %v5502, %v6078
    %v6143 = vadd.f32 %v5503, %v6079
    %v6144 = vadd.f32 %v5504, %v6080
    %v6145 = vadd.f32 %v5505, %v6081
    %v6146 = vadd.f32 %v5506, %v6082
    %v6147 = vadd.f32 %v5507, %v6083
    %v6148 = vadd.f32 %v5508, %v6084
    %v6149 = vadd.f32 %v5509, %v6085
    %v6150 = vadd.f32 %v5510, %v6086
    %v6151 = vadd.f32 %v5511, %v6087
    %v6152 = vadd.f32 %v5512, %v6088
    %v6153 = vadd.f32 %v5513, %v6089
    %v6154 = vadd.f32 %v5514, %v6090
    %v6155 = vadd.f32 %v5515, %v6091
    %v6156 = vadd.f32 %v5516, %v6092
    %v6157 = vadd.f32 %v5517, %v6093
    %v6158 = vadd.f32 %v5518, %v6094
    %v6159 = vadd.f32 %v5519, %v6095
    %v6160 = vadd.f32 %v5520, %v6096
    %v6161 = vadd.f32 %v5521, %v6097
    %v6162 = vadd.f32 %v5522, %v6098
    %6163 = vset.pattern.permute.xlu0 6
    %6164 = vperm.xlu0 %6163, %v2259
    %v6165 = vpop.permute.xlu0 %6164
    %6167 = vset.pattern.permute.xlu0 6
    %6168 = vperm.xlu0 %6167, %v2260
    %v6169 = vpop.permute.xlu0 %6168
    %6171 = vset.pattern.permute.xlu0 6
    %6172 = vperm.xlu0 %6171, %v2261
    %v6173 = vpop.permute.xlu0 %6172
    %6175 = vset.pattern.permute.xlu0 6
    %6176 = vperm.xlu0 %6175, %v2262
    %v6177 = vpop.permute.xlu0 %6176
    %6179 = vset.pattern.permute.xlu0 6
    %6180 = vperm.xlu0 %6179, %v2263
    %v6181 = vpop.permute.xlu0 %6180
    %6183 = vset.pattern.permute.xlu0 6
    %6184 = vperm.xlu0 %6183, %v2264
    %v6185 = vpop.permute.xlu0 %6184
    %6187 = vset.pattern.permute.xlu0 6
    %6188 = vperm.xlu0 %6187, %v2265
    %v6189 = vpop.permute.xlu0 %6188
    %6191 = vset.pattern.permute.xlu0 6
    %6192 = vperm.xlu0 %6191, %v2266
    %v6193 = vpop.permute.xlu0 %6192
    %6195 = vset.pattern.permute.xlu0 6
    %6196 = vperm.xlu0 %6195, %v2267
    %v6197 = vpop.permute.xlu0 %6196
    %6199 = vset.pattern.permute.xlu0 6
    %6200 = vperm.xlu0 %6199, %v2268
    %v6201 = vpop.permute.xlu0 %6200
    %6203 = vset.pattern.permute.xlu0 6
    %6204 = vperm.xlu0 %6203, %v2269
    %v6205 = vpop.permute.xlu0 %6204
    %6207 = vset.pattern.permute.xlu0 6
    %6208 = vperm.xlu0 %6207, %v2270
    %v6209 = vpop.permute.xlu0 %6208
    %6211 = vset.pattern.permute.xlu0 6
    %6212 = vperm.xlu0 %6211, %v2271
    %v6213 = vpop.permute.xlu0 %6212
    %6215 = vset.pattern.permute.xlu0 6
    %6216 = vperm.xlu0 %6215, %v2272
    %v6217 = vpop.permute.xlu0 %6216
    %6219 = vset.pattern.permute.xlu0 6
    %6220 = vperm.xlu0 %6219, %v2273
    %v6221 = vpop.permute.xlu0 %6220
    %6223 = vset.pattern.permute.xlu0 6
    %6224 = vperm.xlu0 %6223, %v2274
    %v6225 = vpop.permute.xlu0 %6224
    %6227 = vset.pattern.permute.xlu0 6
    %6228 = vperm.xlu0 %6227, %v2275
    %v6229 = vpop.permute.xlu0 %6228
    %6231 = vset.pattern.permute.xlu0 6
    %6232 = vperm.xlu0 %6231, %v2276
    %v6233 = vpop.permute.xlu0 %6232
    %6235 = vset.pattern.permute.xlu0 6
    %6236 = vperm.xlu0 %6235, %v2277
    %v6237 = vpop.permute.xlu0 %6236
    %6239 = vset.pattern.permute.xlu0 6
    %6240 = vperm.xlu0 %6239, %v2278
    %v6241 = vpop.permute.xlu0 %6240
    %6243 = vset.pattern.permute.xlu0 6
    %6244 = vperm.xlu0 %6243, %v2279
    %v6245 = vpop.permute.xlu0 %6244
    %6247 = vset.pattern.permute.xlu0 6
    %6248 = vperm.xlu0 %6247, %v2280
    %v6249 = vpop.permute.xlu0 %6248
    %6251 = vset.pattern.permute.xlu0 6
    %6252 = vperm.xlu0 %6251, %v2281
    %v6253 = vpop.permute.xlu0 %6252
    %6255 = vset.pattern.permute.xlu0 6
    %6256 = vperm.xlu0 %6255, %v2282
    %v6257 = vpop.permute.xlu0 %6256
    %6259 = vset.pattern.permute.xlu0 6
    %6260 = vperm.xlu0 %6259, %v2283
    %v6261 = vpop.permute.xlu0 %6260
    %6263 = vset.pattern.permute.xlu0 6
    %6264 = vperm.xlu0 %6263, %v2284
    %v6265 = vpop.permute.xlu0 %6264
    %6267 = vset.pattern.permute.xlu0 6
    %6268 = vperm.xlu0 %6267, %v2285
    %v6269 = vpop.permute.xlu0 %6268
    %6271 = vset.pattern.permute.xlu0 6
    %6272 = vperm.xlu0 %6271, %v2286
    %v6273 = vpop.permute.xlu0 %6272
    %6275 = vset.pattern.permute.xlu0 6
    %6276 = vperm.xlu0 %6275, %v2287
    %v6277 = vpop.permute.xlu0 %6276
    %6279 = vset.pattern.permute.xlu0 6
    %6280 = vperm.xlu0 %6279, %v2288
    %v6281 = vpop.permute.xlu0 %6280
    %6283 = vset.pattern.permute.xlu0 6
    %6284 = vperm.xlu0 %6283, %v2289
    %v6285 = vpop.permute.xlu0 %6284
    %6287 = vset.pattern.permute.xlu0 6
    %6288 = vperm.xlu0 %6287, %v2290
    %v6289 = vpop.permute.xlu0 %6288
    %6291 = vset.pattern.permute.xlu0 6
    %6292 = vperm.xlu0 %6291, %v2291
    %v6293 = vpop.permute.xlu0 %6292
    %6295 = vset.pattern.permute.xlu0 6
    %6296 = vperm.xlu0 %6295, %v2292
    %v6297 = vpop.permute.xlu0 %6296
    %6299 = vset.pattern.permute.xlu0 6
    %6300 = vperm.xlu0 %6299, %v2293
    %v6301 = vpop.permute.xlu0 %6300
    %6303 = vset.pattern.permute.xlu0 6
    %6304 = vperm.xlu0 %6303, %v2294
    %v6305 = vpop.permute.xlu0 %6304
    %6307 = vset.pattern.permute.xlu0 6
    %6308 = vperm.xlu0 %6307, %v2295
    %v6309 = vpop.permute.xlu0 %6308
    %6311 = vset.pattern.permute.xlu0 6
    %6312 = vperm.xlu0 %6311, %v2296
    %v6313 = vpop.permute.xlu0 %6312
    %6315 = vset.pattern.permute.xlu0 6
    %6316 = vperm.xlu0 %6315, %v2297
    %v6317 = vpop.permute.xlu0 %6316
    %6319 = vset.pattern.permute.xlu0 6
    %6320 = vperm.xlu0 %6319, %v2298
    %v6321 = vpop.permute.xlu0 %6320
    %6323 = vset.pattern.permute.xlu0 6
    %6324 = vperm.xlu0 %6323, %v2299
    %v6325 = vpop.permute.xlu0 %6324
    %6327 = vset.pattern.permute.xlu0 6
    %6328 = vperm.xlu0 %6327, %v2300
    %v6329 = vpop.permute.xlu0 %6328
    %6331 = vset.pattern.permute.xlu0 6
    %6332 = vperm.xlu0 %6331, %v2301
    %v6333 = vpop.permute.xlu0 %6332
    %6335 = vset.pattern.permute.xlu0 6
    %6336 = vperm.xlu0 %6335, %v2302
    %v6337 = vpop.permute.xlu0 %6336
    %6339 = vset.pattern.permute.xlu0 6
    %6340 = vperm.xlu0 %6339, %v2303
    %v6341 = vpop.permute.xlu0 %6340
    %6343 = vset.pattern.permute.xlu0 6
    %6344 = vperm.xlu0 %6343, %v2304
    %v6345 = vpop.permute.xlu0 %6344
    %6347 = vset.pattern.permute.xlu0 6
    %6348 = vperm.xlu0 %6347, %v2305
    %v6349 = vpop.permute.xlu0 %6348
    %6351 = vset.pattern.permute.xlu0 6
    %6352 = vperm.xlu0 %6351, %v2306
    %v6353 = vpop.permute.xlu0 %6352
    %6355 = vset.pattern.permute.xlu0 6
    %6356 = vperm.xlu0 %6355, %v2307
    %v6357 = vpop.permute.xlu0 %6356
    %6359 = vset.pattern.permute.xlu0 6
    %6360 = vperm.xlu0 %6359, %v2308
    %v6361 = vpop.permute.xlu0 %6360
    %6363 = vset.pattern.permute.xlu0 6
    %6364 = vperm.xlu0 %6363, %v2309
    %v6365 = vpop.permute.xlu0 %6364
    %6367 = vset.pattern.permute.xlu0 6
    %6368 = vperm.xlu0 %6367, %v2310
    %v6369 = vpop.permute.xlu0 %6368
    %6371 = vset.pattern.permute.xlu0 6
    %6372 = vperm.xlu0 %6371, %v2311
    %v6373 = vpop.permute.xlu0 %6372
    %6375 = vset.pattern.permute.xlu0 6
    %6376 = vperm.xlu0 %6375, %v2312
    %v6377 = vpop.permute.xlu0 %6376
    %6379 = vset.pattern.permute.xlu0 6
    %6380 = vperm.xlu0 %6379, %v2313
    %v6381 = vpop.permute.xlu0 %6380
    %6383 = vset.pattern.permute.xlu0 6
    %6384 = vperm.xlu0 %6383, %v2314
    %v6385 = vpop.permute.xlu0 %6384
    %6387 = vset.pattern.permute.xlu0 6
    %6388 = vperm.xlu0 %6387, %v2315
    %v6389 = vpop.permute.xlu0 %6388
    %6391 = vset.pattern.permute.xlu0 6
    %6392 = vperm.xlu0 %6391, %v2316
    %v6393 = vpop.permute.xlu0 %6392
    %6395 = vset.pattern.permute.xlu0 6
    %6396 = vperm.xlu0 %6395, %v2317
    %v6397 = vpop.permute.xlu0 %6396
    %6399 = vset.pattern.permute.xlu0 6
    %6400 = vperm.xlu0 %6399, %v2318
    %v6401 = vpop.permute.xlu0 %6400
    %6403 = vset.pattern.permute.xlu0 6
    %6404 = vperm.xlu0 %6403, %v2319
    %v6405 = vpop.permute.xlu0 %6404
    %6407 = vset.pattern.permute.xlu0 6
    %6408 = vperm.xlu0 %6407, %v2320
    %v6409 = vpop.permute.xlu0 %6408
    %6411 = vset.pattern.permute.xlu0 6
    %6412 = vperm.xlu0 %6411, %v2321
    %v6413 = vpop.permute.xlu0 %6412
    %6415 = vset.pattern.permute.xlu0 6
    %6416 = vperm.xlu0 %6415, %v2322
    %v6417 = vpop.permute.xlu0 %6416
    %v6419 = vlaneseq
    %v6420 = vshrl.u32 %v6419, 7
    %v6421 = vsub.s32 6, %v6420
    %v6422 = vrot.slane %v75, %v6421
    %v6423 = vlaneseq
    %v6424 = vshrl.u32 %v6423, 7
    %v6425 = vsub.s32 6, %v6424
    %v6426 = vrot.slane %v76, %v6425
    %v6427 = vlaneseq
    %v6428 = vshrl.u32 %v6427, 7
    %v6429 = vsub.s32 6, %v6428
    %v6430 = vrot.slane %v77, %v6429
    %v6431 = vlaneseq
    %v6432 = vshrl.u32 %v6431, 7
    %v6433 = vsub.s32 6, %v6432
    %v6434 = vrot.slane %v78, %v6433
    %v6435 = vlaneseq
    %v6436 = vshrl.u32 %v6435, 7
    %v6437 = vsub.s32 6, %v6436
    %v6438 = vrot.slane %v79, %v6437
    %v6439 = vlaneseq
    %v6440 = vshrl.u32 %v6439, 7
    %v6441 = vsub.s32 6, %v6440
    %v6442 = vrot.slane %v80, %v6441
    %v6443 = vlaneseq
    %v6444 = vshrl.u32 %v6443, 7
    %v6445 = vsub.s32 6, %v6444
    %v6446 = vrot.slane %v81, %v6445
    %v6447 = vlaneseq
    %v6448 = vshrl.u32 %v6447, 7
    %v6449 = vsub.s32 6, %v6448
    %v6450 = vrot.slane %v82, %v6449
    %v6451 = vlaneseq
    %v6452 = vshrl.u32 %v6451, 7
    %v6453 = vsub.s32 6, %v6452
    %v6454 = vrot.slane %v83, %v6453
    %v6455 = vlaneseq
    %v6456 = vshrl.u32 %v6455, 7
    %v6457 = vsub.s32 6, %v6456
    %v6458 = vrot.slane %v84, %v6457
    %v6459 = vlaneseq
    %v6460 = vshrl.u32 %v6459, 7
    %v6461 = vsub.s32 6, %v6460
    %v6462 = vrot.slane %v85, %v6461
    %v6463 = vlaneseq
    %v6464 = vshrl.u32 %v6463, 7
    %v6465 = vsub.s32 6, %v6464
    %v6466 = vrot.slane %v86, %v6465
    %v6467 = vlaneseq
    %v6468 = vshrl.u32 %v6467, 7
    %v6469 = vsub.s32 6, %v6468
    %v6470 = vrot.slane %v87, %v6469
    %v6471 = vlaneseq
    %v6472 = vshrl.u32 %v6471, 7
    %v6473 = vsub.s32 6, %v6472
    %v6474 = vrot.slane %v88, %v6473
    %v6475 = vlaneseq
    %v6476 = vshrl.u32 %v6475, 7
    %v6477 = vsub.s32 6, %v6476
    %v6478 = vrot.slane %v89, %v6477
    %v6479 = vlaneseq
    %v6480 = vshrl.u32 %v6479, 7
    %v6481 = vsub.s32 6, %v6480
    %v6482 = vrot.slane %v90, %v6481
    %v6483 = vlaneseq
    %v6484 = vshrl.u32 %v6483, 7
    %v6485 = vsub.s32 6, %v6484
    %v6486 = vrot.slane %v91, %v6485
    %v6487 = vlaneseq
    %v6488 = vshrl.u32 %v6487, 7
    %v6489 = vsub.s32 6, %v6488
    %v6490 = vrot.slane %v92, %v6489
    %v6491 = vlaneseq
    %v6492 = vshrl.u32 %v6491, 7
    %v6493 = vsub.s32 6, %v6492
    %v6494 = vrot.slane %v93, %v6493
    %v6495 = vlaneseq
    %v6496 = vshrl.u32 %v6495, 7
    %v6497 = vsub.s32 6, %v6496
    %v6498 = vrot.slane %v94, %v6497
    %v6499 = vlaneseq
    %v6500 = vshrl.u32 %v6499, 7
    %v6501 = vsub.s32 6, %v6500
    %v6502 = vrot.slane %v95, %v6501
    %v6503 = vlaneseq
    %v6504 = vshrl.u32 %v6503, 7
    %v6505 = vsub.s32 6, %v6504
    %v6506 = vrot.slane %v96, %v6505
    %v6507 = vlaneseq
    %v6508 = vshrl.u32 %v6507, 7
    %v6509 = vsub.s32 6, %v6508
    %v6510 = vrot.slane %v97, %v6509
    %v6511 = vlaneseq
    %v6512 = vshrl.u32 %v6511, 7
    %v6513 = vsub.s32 6, %v6512
    %v6514 = vrot.slane %v98, %v6513
    %v6515 = vlaneseq
    %v6516 = vshrl.u32 %v6515, 7
    %v6517 = vsub.s32 6, %v6516
    %v6518 = vrot.slane %v99, %v6517
    %v6519 = vlaneseq
    %v6520 = vshrl.u32 %v6519, 7
    %v6521 = vsub.s32 6, %v6520
    %v6522 = vrot.slane %v100, %v6521
    %v6523 = vlaneseq
    %v6524 = vshrl.u32 %v6523, 7
    %v6525 = vsub.s32 6, %v6524
    %v6526 = vrot.slane %v101, %v6525
    %v6527 = vlaneseq
    %v6528 = vshrl.u32 %v6527, 7
    %v6529 = vsub.s32 6, %v6528
    %v6530 = vrot.slane %v102, %v6529
    %v6531 = vlaneseq
    %v6532 = vshrl.u32 %v6531, 7
    %v6533 = vsub.s32 6, %v6532
    %v6534 = vrot.slane %v103, %v6533
    %v6535 = vlaneseq
    %v6536 = vshrl.u32 %v6535, 7
    %v6537 = vsub.s32 6, %v6536
    %v6538 = vrot.slane %v104, %v6537
    %v6539 = vlaneseq
    %v6540 = vshrl.u32 %v6539, 7
    %v6541 = vsub.s32 6, %v6540
    %v6542 = vrot.slane %v105, %v6541
    %v6543 = vlaneseq
    %v6544 = vshrl.u32 %v6543, 7
    %v6545 = vsub.s32 6, %v6544
    %v6546 = vrot.slane %v106, %v6545
    %v6547 = vlaneseq
    %v6548 = vshrl.u32 %v6547, 7
    %v6549 = vsub.s32 6, %v6548
    %v6550 = vrot.slane %v107, %v6549
    %v6551 = vlaneseq
    %v6552 = vshrl.u32 %v6551, 7
    %v6553 = vsub.s32 6, %v6552
    %v6554 = vrot.slane %v108, %v6553
    %v6555 = vlaneseq
    %v6556 = vshrl.u32 %v6555, 7
    %v6557 = vsub.s32 6, %v6556
    %v6558 = vrot.slane %v109, %v6557
    %v6559 = vlaneseq
    %v6560 = vshrl.u32 %v6559, 7
    %v6561 = vsub.s32 6, %v6560
    %v6562 = vrot.slane %v110, %v6561
    %v6563 = vlaneseq
    %v6564 = vshrl.u32 %v6563, 7
    %v6565 = vsub.s32 6, %v6564
    %v6566 = vrot.slane %v111, %v6565
    %v6567 = vlaneseq
    %v6568 = vshrl.u32 %v6567, 7
    %v6569 = vsub.s32 6, %v6568
    %v6570 = vrot.slane %v112, %v6569
    %v6571 = vlaneseq
    %v6572 = vshrl.u32 %v6571, 7
    %v6573 = vsub.s32 6, %v6572
    %v6574 = vrot.slane %v113, %v6573
    %v6575 = vlaneseq
    %v6576 = vshrl.u32 %v6575, 7
    %v6577 = vsub.s32 6, %v6576
    %v6578 = vrot.slane %v114, %v6577
    %v6579 = vlaneseq
    %v6580 = vshrl.u32 %v6579, 7
    %v6581 = vsub.s32 6, %v6580
    %v6582 = vrot.slane %v115, %v6581
    %v6583 = vlaneseq
    %v6584 = vshrl.u32 %v6583, 7
    %v6585 = vsub.s32 6, %v6584
    %v6586 = vrot.slane %v116, %v6585
    %v6587 = vlaneseq
    %v6588 = vshrl.u32 %v6587, 7
    %v6589 = vsub.s32 6, %v6588
    %v6590 = vrot.slane %v117, %v6589
    %v6591 = vlaneseq
    %v6592 = vshrl.u32 %v6591, 7
    %v6593 = vsub.s32 6, %v6592
    %v6594 = vrot.slane %v118, %v6593
    %v6595 = vlaneseq
    %v6596 = vshrl.u32 %v6595, 7
    %v6597 = vsub.s32 6, %v6596
    %v6598 = vrot.slane %v119, %v6597
    %v6599 = vlaneseq
    %v6600 = vshrl.u32 %v6599, 7
    %v6601 = vsub.s32 6, %v6600
    %v6602 = vrot.slane %v120, %v6601
    %v6603 = vlaneseq
    %v6604 = vshrl.u32 %v6603, 7
    %v6605 = vsub.s32 6, %v6604
    %v6606 = vrot.slane %v121, %v6605
    %v6607 = vlaneseq
    %v6608 = vshrl.u32 %v6607, 7
    %v6609 = vsub.s32 6, %v6608
    %v6610 = vrot.slane %v122, %v6609
    %v6611 = vlaneseq
    %v6612 = vshrl.u32 %v6611, 7
    %v6613 = vsub.s32 6, %v6612
    %v6614 = vrot.slane %v123, %v6613
    %v6615 = vlaneseq
    %v6616 = vshrl.u32 %v6615, 7
    %v6617 = vsub.s32 6, %v6616
    %v6618 = vrot.slane %v124, %v6617
    %v6619 = vlaneseq
    %v6620 = vshrl.u32 %v6619, 7
    %v6621 = vsub.s32 6, %v6620
    %v6622 = vrot.slane %v125, %v6621
    %v6623 = vlaneseq
    %v6624 = vshrl.u32 %v6623, 7
    %v6625 = vsub.s32 6, %v6624
    %v6626 = vrot.slane %v126, %v6625
    %v6627 = vlaneseq
    %v6628 = vshrl.u32 %v6627, 7
    %v6629 = vsub.s32 6, %v6628
    %v6630 = vrot.slane %v127, %v6629
    %v6631 = vlaneseq
    %v6632 = vshrl.u32 %v6631, 7
    %v6633 = vsub.s32 6, %v6632
    %v6634 = vrot.slane %v128, %v6633
    %v6635 = vlaneseq
    %v6636 = vshrl.u32 %v6635, 7
    %v6637 = vsub.s32 6, %v6636
    %v6638 = vrot.slane %v129, %v6637
    %v6639 = vlaneseq
    %v6640 = vshrl.u32 %v6639, 7
    %v6641 = vsub.s32 6, %v6640
    %v6642 = vrot.slane %v130, %v6641
    %v6643 = vlaneseq
    %v6644 = vshrl.u32 %v6643, 7
    %v6645 = vsub.s32 6, %v6644
    %v6646 = vrot.slane %v131, %v6645
    %v6647 = vlaneseq
    %v6648 = vshrl.u32 %v6647, 7
    %v6649 = vsub.s32 6, %v6648
    %v6650 = vrot.slane %v132, %v6649
    %v6651 = vlaneseq
    %v6652 = vshrl.u32 %v6651, 7
    %v6653 = vsub.s32 6, %v6652
    %v6654 = vrot.slane %v133, %v6653
    %v6655 = vlaneseq
    %v6656 = vshrl.u32 %v6655, 7
    %v6657 = vsub.s32 6, %v6656
    %v6658 = vrot.slane %v134, %v6657
    %v6659 = vlaneseq
    %v6660 = vshrl.u32 %v6659, 7
    %v6661 = vsub.s32 6, %v6660
    %v6662 = vrot.slane %v135, %v6661
    %v6663 = vlaneseq
    %v6664 = vshrl.u32 %v6663, 7
    %v6665 = vsub.s32 6, %v6664
    %v6666 = vrot.slane %v136, %v6665
    %v6667 = vlaneseq
    %v6668 = vshrl.u32 %v6667, 7
    %v6669 = vsub.s32 6, %v6668
    %v6670 = vrot.slane %v137, %v6669
    %v6671 = vlaneseq
    %v6672 = vshrl.u32 %v6671, 7
    %v6673 = vsub.s32 6, %v6672
    %v6674 = vrot.slane %v138, %v6673
    %v6675 = vmul.f32 %v6165, %v6422
    %v6676 = vmul.f32 %v6169, %v6426
    %v6677 = vmul.f32 %v6173, %v6430
    %v6678 = vmul.f32 %v6177, %v6434
    %v6679 = vmul.f32 %v6181, %v6438
    %v6680 = vmul.f32 %v6185, %v6442
    %v6681 = vmul.f32 %v6189, %v6446
    %v6682 = vmul.f32 %v6193, %v6450
    %v6683 = vmul.f32 %v6197, %v6454
    %v6684 = vmul.f32 %v6201, %v6458
    %v6685 = vmul.f32 %v6205, %v6462
    %v6686 = vmul.f32 %v6209, %v6466
    %v6687 = vmul.f32 %v6213, %v6470
    %v6688 = vmul.f32 %v6217, %v6474
    %v6689 = vmul.f32 %v6221, %v6478
    %v6690 = vmul.f32 %v6225, %v6482
    %v6691 = vmul.f32 %v6229, %v6486
    %v6692 = vmul.f32 %v6233, %v6490
    %v6693 = vmul.f32 %v6237, %v6494
    %v6694 = vmul.f32 %v6241, %v6498
    %v6695 = vmul.f32 %v6245, %v6502
    %v6696 = vmul.f32 %v6249, %v6506
    %v6697 = vmul.f32 %v6253, %v6510
    %v6698 = vmul.f32 %v6257, %v6514
    %v6699 = vmul.f32 %v6261, %v6518
    %v6700 = vmul.f32 %v6265, %v6522
    %v6701 = vmul.f32 %v6269, %v6526
    %v6702 = vmul.f32 %v6273, %v6530
    %v6703 = vmul.f32 %v6277, %v6534
    %v6704 = vmul.f32 %v6281, %v6538
    %v6705 = vmul.f32 %v6285, %v6542
    %v6706 = vmul.f32 %v6289, %v6546
    %v6707 = vmul.f32 %v6293, %v6550
    %v6708 = vmul.f32 %v6297, %v6554
    %v6709 = vmul.f32 %v6301, %v6558
    %v6710 = vmul.f32 %v6305, %v6562
    %v6711 = vmul.f32 %v6309, %v6566
    %v6712 = vmul.f32 %v6313, %v6570
    %v6713 = vmul.f32 %v6317, %v6574
    %v6714 = vmul.f32 %v6321, %v6578
    %v6715 = vmul.f32 %v6325, %v6582
    %v6716 = vmul.f32 %v6329, %v6586
    %v6717 = vmul.f32 %v6333, %v6590
    %v6718 = vmul.f32 %v6337, %v6594
    %v6719 = vmul.f32 %v6341, %v6598
    %v6720 = vmul.f32 %v6345, %v6602
    %v6721 = vmul.f32 %v6349, %v6606
    %v6722 = vmul.f32 %v6353, %v6610
    %v6723 = vmul.f32 %v6357, %v6614
    %v6724 = vmul.f32 %v6361, %v6618
    %v6725 = vmul.f32 %v6365, %v6622
    %v6726 = vmul.f32 %v6369, %v6626
    %v6727 = vmul.f32 %v6373, %v6630
    %v6728 = vmul.f32 %v6377, %v6634
    %v6729 = vmul.f32 %v6381, %v6638
    %v6730 = vmul.f32 %v6385, %v6642
    %v6731 = vmul.f32 %v6389, %v6646
    %v6732 = vmul.f32 %v6393, %v6650
    %v6733 = vmul.f32 %v6397, %v6654
    %v6734 = vmul.f32 %v6401, %v6658
    %v6735 = vmul.f32 %v6405, %v6662
    %v6736 = vmul.f32 %v6409, %v6666
    %v6737 = vmul.f32 %v6413, %v6670
    %v6738 = vmul.f32 %v6417, %v6674
    %v6739 = vadd.f32 %v6099, %v6675
    %v6740 = vadd.f32 %v6100, %v6676
    %v6741 = vadd.f32 %v6101, %v6677
    %v6742 = vadd.f32 %v6102, %v6678
    %v6743 = vadd.f32 %v6103, %v6679
    %v6744 = vadd.f32 %v6104, %v6680
    %v6745 = vadd.f32 %v6105, %v6681
    %v6746 = vadd.f32 %v6106, %v6682
    %v6747 = vadd.f32 %v6107, %v6683
    %v6748 = vadd.f32 %v6108, %v6684
    %v6749 = vadd.f32 %v6109, %v6685
    %v6750 = vadd.f32 %v6110, %v6686
    %v6751 = vadd.f32 %v6111, %v6687
    %v6752 = vadd.f32 %v6112, %v6688
    %v6753 = vadd.f32 %v6113, %v6689
    %v6754 = vadd.f32 %v6114, %v6690
    %v6755 = vadd.f32 %v6115, %v6691
    %v6756 = vadd.f32 %v6116, %v6692
    %v6757 = vadd.f32 %v6117, %v6693
    %v6758 = vadd.f32 %v6118, %v6694
    %v6759 = vadd.f32 %v6119, %v6695
    %v6760 = vadd.f32 %v6120, %v6696
    %v6761 = vadd.f32 %v6121, %v6697
    %v6762 = vadd.f32 %v6122, %v6698
    %v6763 = vadd.f32 %v6123, %v6699
    %v6764 = vadd.f32 %v6124, %v6700
    %v6765 = vadd.f32 %v6125, %v6701
    %v6766 = vadd.f32 %v6126, %v6702
    %v6767 = vadd.f32 %v6127, %v6703
    %v6768 = vadd.f32 %v6128, %v6704
    %v6769 = vadd.f32 %v6129, %v6705
    %v6770 = vadd.f32 %v6130, %v6706
    %v6771 = vadd.f32 %v6131, %v6707
    %v6772 = vadd.f32 %v6132, %v6708
    %v6773 = vadd.f32 %v6133, %v6709
    %v6774 = vadd.f32 %v6134, %v6710
    %v6775 = vadd.f32 %v6135, %v6711
    %v6776 = vadd.f32 %v6136, %v6712
    %v6777 = vadd.f32 %v6137, %v6713
    %v6778 = vadd.f32 %v6138, %v6714
    %v6779 = vadd.f32 %v6139, %v6715
    %v6780 = vadd.f32 %v6140, %v6716
    %v6781 = vadd.f32 %v6141, %v6717
    %v6782 = vadd.f32 %v6142, %v6718
    %v6783 = vadd.f32 %v6143, %v6719
    %v6784 = vadd.f32 %v6144, %v6720
    %v6785 = vadd.f32 %v6145, %v6721
    %v6786 = vadd.f32 %v6146, %v6722
    %v6787 = vadd.f32 %v6147, %v6723
    %v6788 = vadd.f32 %v6148, %v6724
    %v6789 = vadd.f32 %v6149, %v6725
    %v6790 = vadd.f32 %v6150, %v6726
    %v6791 = vadd.f32 %v6151, %v6727
    %v6792 = vadd.f32 %v6152, %v6728
    %v6793 = vadd.f32 %v6153, %v6729
    %v6794 = vadd.f32 %v6154, %v6730
    %v6795 = vadd.f32 %v6155, %v6731
    %v6796 = vadd.f32 %v6156, %v6732
    %v6797 = vadd.f32 %v6157, %v6733
    %v6798 = vadd.f32 %v6158, %v6734
    %v6799 = vadd.f32 %v6159, %v6735
    %v6800 = vadd.f32 %v6160, %v6736
    %v6801 = vadd.f32 %v6161, %v6737
    %v6802 = vadd.f32 %v6162, %v6738
    %6803 = vset.pattern.permute.xlu0 7
    %6804 = vperm.xlu0 %6803, %v2259
    %v6805 = vpop.permute.xlu0 %6804
    %6807 = vset.pattern.permute.xlu0 7
    %6808 = vperm.xlu0 %6807, %v2260
    %v6809 = vpop.permute.xlu0 %6808
    %6811 = vset.pattern.permute.xlu0 7
    %6812 = vperm.xlu0 %6811, %v2261
    %v6813 = vpop.permute.xlu0 %6812
    %6815 = vset.pattern.permute.xlu0 7
    %6816 = vperm.xlu0 %6815, %v2262
    %v6817 = vpop.permute.xlu0 %6816
    %6819 = vset.pattern.permute.xlu0 7
    %6820 = vperm.xlu0 %6819, %v2263
    %v6821 = vpop.permute.xlu0 %6820
    %6823 = vset.pattern.permute.xlu0 7
    %6824 = vperm.xlu0 %6823, %v2264
    %v6825 = vpop.permute.xlu0 %6824
    %6827 = vset.pattern.permute.xlu0 7
    %6828 = vperm.xlu0 %6827, %v2265
    %v6829 = vpop.permute.xlu0 %6828
    %6831 = vset.pattern.permute.xlu0 7
    %6832 = vperm.xlu0 %6831, %v2266
    %v6833 = vpop.permute.xlu0 %6832
    %6835 = vset.pattern.permute.xlu0 7
    %6836 = vperm.xlu0 %6835, %v2267
    %v6837 = vpop.permute.xlu0 %6836
    %6839 = vset.pattern.permute.xlu0 7
    %6840 = vperm.xlu0 %6839, %v2268
    %v6841 = vpop.permute.xlu0 %6840
    %6843 = vset.pattern.permute.xlu0 7
    %6844 = vperm.xlu0 %6843, %v2269
    %v6845 = vpop.permute.xlu0 %6844
    %6847 = vset.pattern.permute.xlu0 7
    %6848 = vperm.xlu0 %6847, %v2270
    %v6849 = vpop.permute.xlu0 %6848
    %6851 = vset.pattern.permute.xlu0 7
    %6852 = vperm.xlu0 %6851, %v2271
    %v6853 = vpop.permute.xlu0 %6852
    %6855 = vset.pattern.permute.xlu0 7
    %6856 = vperm.xlu0 %6855, %v2272
    %v6857 = vpop.permute.xlu0 %6856
    %6859 = vset.pattern.permute.xlu0 7
    %6860 = vperm.xlu0 %6859, %v2273
    %v6861 = vpop.permute.xlu0 %6860
    %6863 = vset.pattern.permute.xlu0 7
    %6864 = vperm.xlu0 %6863, %v2274
    %v6865 = vpop.permute.xlu0 %6864
    %6867 = vset.pattern.permute.xlu0 7
    %6868 = vperm.xlu0 %6867, %v2275
    %v6869 = vpop.permute.xlu0 %6868
    %6871 = vset.pattern.permute.xlu0 7
    %6872 = vperm.xlu0 %6871, %v2276
    %v6873 = vpop.permute.xlu0 %6872
    %6875 = vset.pattern.permute.xlu0 7
    %6876 = vperm.xlu0 %6875, %v2277
    %v6877 = vpop.permute.xlu0 %6876
    %6879 = vset.pattern.permute.xlu0 7
    %6880 = vperm.xlu0 %6879, %v2278
    %v6881 = vpop.permute.xlu0 %6880
    %6883 = vset.pattern.permute.xlu0 7
    %6884 = vperm.xlu0 %6883, %v2279
    %v6885 = vpop.permute.xlu0 %6884
    %6887 = vset.pattern.permute.xlu0 7
    %6888 = vperm.xlu0 %6887, %v2280
    %v6889 = vpop.permute.xlu0 %6888
    %6891 = vset.pattern.permute.xlu0 7
    %6892 = vperm.xlu0 %6891, %v2281
    %v6893 = vpop.permute.xlu0 %6892
    %6895 = vset.pattern.permute.xlu0 7
    %6896 = vperm.xlu0 %6895, %v2282
    %v6897 = vpop.permute.xlu0 %6896
    %6899 = vset.pattern.permute.xlu0 7
    %6900 = vperm.xlu0 %6899, %v2283
    %v6901 = vpop.permute.xlu0 %6900
    %6903 = vset.pattern.permute.xlu0 7
    %6904 = vperm.xlu0 %6903, %v2284
    %v6905 = vpop.permute.xlu0 %6904
    %6907 = vset.pattern.permute.xlu0 7
    %6908 = vperm.xlu0 %6907, %v2285
    %v6909 = vpop.permute.xlu0 %6908
    %6911 = vset.pattern.permute.xlu0 7
    %6912 = vperm.xlu0 %6911, %v2286
    %v6913 = vpop.permute.xlu0 %6912
    %6915 = vset.pattern.permute.xlu0 7
    %6916 = vperm.xlu0 %6915, %v2287
    %v6917 = vpop.permute.xlu0 %6916
    %6919 = vset.pattern.permute.xlu0 7
    %6920 = vperm.xlu0 %6919, %v2288
    %v6921 = vpop.permute.xlu0 %6920
    %6923 = vset.pattern.permute.xlu0 7
    %6924 = vperm.xlu0 %6923, %v2289
    %v6925 = vpop.permute.xlu0 %6924
    %6927 = vset.pattern.permute.xlu0 7
    %6928 = vperm.xlu0 %6927, %v2290
    %v6929 = vpop.permute.xlu0 %6928
    %6931 = vset.pattern.permute.xlu0 7
    %6932 = vperm.xlu0 %6931, %v2291
    %v6933 = vpop.permute.xlu0 %6932
    %6935 = vset.pattern.permute.xlu0 7
    %6936 = vperm.xlu0 %6935, %v2292
    %v6937 = vpop.permute.xlu0 %6936
    %6939 = vset.pattern.permute.xlu0 7
    %6940 = vperm.xlu0 %6939, %v2293
    %v6941 = vpop.permute.xlu0 %6940
    %6943 = vset.pattern.permute.xlu0 7
    %6944 = vperm.xlu0 %6943, %v2294
    %v6945 = vpop.permute.xlu0 %6944
    %6947 = vset.pattern.permute.xlu0 7
    %6948 = vperm.xlu0 %6947, %v2295
    %v6949 = vpop.permute.xlu0 %6948
    %6951 = vset.pattern.permute.xlu0 7
    %6952 = vperm.xlu0 %6951, %v2296
    %v6953 = vpop.permute.xlu0 %6952
    %6955 = vset.pattern.permute.xlu0 7
    %6956 = vperm.xlu0 %6955, %v2297
    %v6957 = vpop.permute.xlu0 %6956
    %6959 = vset.pattern.permute.xlu0 7
    %6960 = vperm.xlu0 %6959, %v2298
    %v6961 = vpop.permute.xlu0 %6960
    %6963 = vset.pattern.permute.xlu0 7
    %6964 = vperm.xlu0 %6963, %v2299
    %v6965 = vpop.permute.xlu0 %6964
    %6967 = vset.pattern.permute.xlu0 7
    %6968 = vperm.xlu0 %6967, %v2300
    %v6969 = vpop.permute.xlu0 %6968
    %6971 = vset.pattern.permute.xlu0 7
    %6972 = vperm.xlu0 %6971, %v2301
    %v6973 = vpop.permute.xlu0 %6972
    %6975 = vset.pattern.permute.xlu0 7
    %6976 = vperm.xlu0 %6975, %v2302
    %v6977 = vpop.permute.xlu0 %6976
    %6979 = vset.pattern.permute.xlu0 7
    %6980 = vperm.xlu0 %6979, %v2303
    %v6981 = vpop.permute.xlu0 %6980
    %6983 = vset.pattern.permute.xlu0 7
    %6984 = vperm.xlu0 %6983, %v2304
    %v6985 = vpop.permute.xlu0 %6984
    %6987 = vset.pattern.permute.xlu0 7
    %6988 = vperm.xlu0 %6987, %v2305
    %v6989 = vpop.permute.xlu0 %6988
    %6991 = vset.pattern.permute.xlu0 7
    %6992 = vperm.xlu0 %6991, %v2306
    %v6993 = vpop.permute.xlu0 %6992
    %6995 = vset.pattern.permute.xlu0 7
    %6996 = vperm.xlu0 %6995, %v2307
    %v6997 = vpop.permute.xlu0 %6996
    %6999 = vset.pattern.permute.xlu0 7
    %7000 = vperm.xlu0 %6999, %v2308
    %v7001 = vpop.permute.xlu0 %7000
    %7003 = vset.pattern.permute.xlu0 7
    %7004 = vperm.xlu0 %7003, %v2309
    %v7005 = vpop.permute.xlu0 %7004
    %7007 = vset.pattern.permute.xlu0 7
    %7008 = vperm.xlu0 %7007, %v2310
    %v7009 = vpop.permute.xlu0 %7008
    %7011 = vset.pattern.permute.xlu0 7
    %7012 = vperm.xlu0 %7011, %v2311
    %v7013 = vpop.permute.xlu0 %7012
    %7015 = vset.pattern.permute.xlu0 7
    %7016 = vperm.xlu0 %7015, %v2312
    %v7017 = vpop.permute.xlu0 %7016
    %7019 = vset.pattern.permute.xlu0 7
    %7020 = vperm.xlu0 %7019, %v2313
    %v7021 = vpop.permute.xlu0 %7020
    %7023 = vset.pattern.permute.xlu0 7
    %7024 = vperm.xlu0 %7023, %v2314
    %v7025 = vpop.permute.xlu0 %7024
    %7027 = vset.pattern.permute.xlu0 7
    %7028 = vperm.xlu0 %7027, %v2315
    %v7029 = vpop.permute.xlu0 %7028
    %7031 = vset.pattern.permute.xlu0 7
    %7032 = vperm.xlu0 %7031, %v2316
    %v7033 = vpop.permute.xlu0 %7032
    %7035 = vset.pattern.permute.xlu0 7
    %7036 = vperm.xlu0 %7035, %v2317
    %v7037 = vpop.permute.xlu0 %7036
    %7039 = vset.pattern.permute.xlu0 7
    %7040 = vperm.xlu0 %7039, %v2318
    %v7041 = vpop.permute.xlu0 %7040
    %7043 = vset.pattern.permute.xlu0 7
    %7044 = vperm.xlu0 %7043, %v2319
    %v7045 = vpop.permute.xlu0 %7044
    %7047 = vset.pattern.permute.xlu0 7
    %7048 = vperm.xlu0 %7047, %v2320
    %v7049 = vpop.permute.xlu0 %7048
    %7051 = vset.pattern.permute.xlu0 7
    %7052 = vperm.xlu0 %7051, %v2321
    %v7053 = vpop.permute.xlu0 %7052
    %7055 = vset.pattern.permute.xlu0 7
    %7056 = vperm.xlu0 %7055, %v2322
    %v7057 = vpop.permute.xlu0 %7056
    %v7059 = vlaneseq
    %v7060 = vshrl.u32 %v7059, 7
    %v7061 = vsub.s32 7, %v7060
    %v7062 = vrot.slane %v75, %v7061
    %v7063 = vlaneseq
    %v7064 = vshrl.u32 %v7063, 7
    %v7065 = vsub.s32 7, %v7064
    %v7066 = vrot.slane %v76, %v7065
    %v7067 = vlaneseq
    %v7068 = vshrl.u32 %v7067, 7
    %v7069 = vsub.s32 7, %v7068
    %v7070 = vrot.slane %v77, %v7069
    %v7071 = vlaneseq
    %v7072 = vshrl.u32 %v7071, 7
    %v7073 = vsub.s32 7, %v7072
    %v7074 = vrot.slane %v78, %v7073
    %v7075 = vlaneseq
    %v7076 = vshrl.u32 %v7075, 7
    %v7077 = vsub.s32 7, %v7076
    %v7078 = vrot.slane %v79, %v7077
    %v7079 = vlaneseq
    %v7080 = vshrl.u32 %v7079, 7
    %v7081 = vsub.s32 7, %v7080
    %v7082 = vrot.slane %v80, %v7081
    %v7083 = vlaneseq
    %v7084 = vshrl.u32 %v7083, 7
    %v7085 = vsub.s32 7, %v7084
    %v7086 = vrot.slane %v81, %v7085
    %v7087 = vlaneseq
    %v7088 = vshrl.u32 %v7087, 7
    %v7089 = vsub.s32 7, %v7088
    %v7090 = vrot.slane %v82, %v7089
    %v7091 = vlaneseq
    %v7092 = vshrl.u32 %v7091, 7
    %v7093 = vsub.s32 7, %v7092
    %v7094 = vrot.slane %v83, %v7093
    %v7095 = vlaneseq
    %v7096 = vshrl.u32 %v7095, 7
    %v7097 = vsub.s32 7, %v7096
    %v7098 = vrot.slane %v84, %v7097
    %v7099 = vlaneseq
    %v7100 = vshrl.u32 %v7099, 7
    %v7101 = vsub.s32 7, %v7100
    %v7102 = vrot.slane %v85, %v7101
    %v7103 = vlaneseq
    %v7104 = vshrl.u32 %v7103, 7
    %v7105 = vsub.s32 7, %v7104
    %v7106 = vrot.slane %v86, %v7105
    %v7107 = vlaneseq
    %v7108 = vshrl.u32 %v7107, 7
    %v7109 = vsub.s32 7, %v7108
    %v7110 = vrot.slane %v87, %v7109
    %v7111 = vlaneseq
    %v7112 = vshrl.u32 %v7111, 7
    %v7113 = vsub.s32 7, %v7112
    %v7114 = vrot.slane %v88, %v7113
    %v7115 = vlaneseq
    %v7116 = vshrl.u32 %v7115, 7
    %v7117 = vsub.s32 7, %v7116
    %v7118 = vrot.slane %v89, %v7117
    %v7119 = vlaneseq
    %v7120 = vshrl.u32 %v7119, 7
    %v7121 = vsub.s32 7, %v7120
    %v7122 = vrot.slane %v90, %v7121
    %v7123 = vlaneseq
    %v7124 = vshrl.u32 %v7123, 7
    %v7125 = vsub.s32 7, %v7124
    %v7126 = vrot.slane %v91, %v7125
    %v7127 = vlaneseq
    %v7128 = vshrl.u32 %v7127, 7
    %v7129 = vsub.s32 7, %v7128
    %v7130 = vrot.slane %v92, %v7129
    %v7131 = vlaneseq
    %v7132 = vshrl.u32 %v7131, 7
    %v7133 = vsub.s32 7, %v7132
    %v7134 = vrot.slane %v93, %v7133
    %v7135 = vlaneseq
    %v7136 = vshrl.u32 %v7135, 7
    %v7137 = vsub.s32 7, %v7136
    %v7138 = vrot.slane %v94, %v7137
    %v7139 = vlaneseq
    %v7140 = vshrl.u32 %v7139, 7
    %v7141 = vsub.s32 7, %v7140
    %v7142 = vrot.slane %v95, %v7141
    %v7143 = vlaneseq
    %v7144 = vshrl.u32 %v7143, 7
    %v7145 = vsub.s32 7, %v7144
    %v7146 = vrot.slane %v96, %v7145
    %v7147 = vlaneseq
    %v7148 = vshrl.u32 %v7147, 7
    %v7149 = vsub.s32 7, %v7148
    %v7150 = vrot.slane %v97, %v7149
    %v7151 = vlaneseq
    %v7152 = vshrl.u32 %v7151, 7
    %v7153 = vsub.s32 7, %v7152
    %v7154 = vrot.slane %v98, %v7153
    %v7155 = vlaneseq
    %v7156 = vshrl.u32 %v7155, 7
    %v7157 = vsub.s32 7, %v7156
    %v7158 = vrot.slane %v99, %v7157
    %v7159 = vlaneseq
    %v7160 = vshrl.u32 %v7159, 7
    %v7161 = vsub.s32 7, %v7160
    %v7162 = vrot.slane %v100, %v7161
    %v7163 = vlaneseq
    %v7164 = vshrl.u32 %v7163, 7
    %v7165 = vsub.s32 7, %v7164
    %v7166 = vrot.slane %v101, %v7165
    %v7167 = vlaneseq
    %v7168 = vshrl.u32 %v7167, 7
    %v7169 = vsub.s32 7, %v7168
    %v7170 = vrot.slane %v102, %v7169
    %v7171 = vlaneseq
    %v7172 = vshrl.u32 %v7171, 7
    %v7173 = vsub.s32 7, %v7172
    %v7174 = vrot.slane %v103, %v7173
    %v7175 = vlaneseq
    %v7176 = vshrl.u32 %v7175, 7
    %v7177 = vsub.s32 7, %v7176
    %v7178 = vrot.slane %v104, %v7177
    %v7179 = vlaneseq
    %v7180 = vshrl.u32 %v7179, 7
    %v7181 = vsub.s32 7, %v7180
    %v7182 = vrot.slane %v105, %v7181
    %v7183 = vlaneseq
    %v7184 = vshrl.u32 %v7183, 7
    %v7185 = vsub.s32 7, %v7184
    %v7186 = vrot.slane %v106, %v7185
    %v7187 = vlaneseq
    %v7188 = vshrl.u32 %v7187, 7
    %v7189 = vsub.s32 7, %v7188
    %v7190 = vrot.slane %v107, %v7189
    %v7191 = vlaneseq
    %v7192 = vshrl.u32 %v7191, 7
    %v7193 = vsub.s32 7, %v7192
    %v7194 = vrot.slane %v108, %v7193
    %v7195 = vlaneseq
    %v7196 = vshrl.u32 %v7195, 7
    %v7197 = vsub.s32 7, %v7196
    %v7198 = vrot.slane %v109, %v7197
    %v7199 = vlaneseq
    %v7200 = vshrl.u32 %v7199, 7
    %v7201 = vsub.s32 7, %v7200
    %v7202 = vrot.slane %v110, %v7201
    %v7203 = vlaneseq
    %v7204 = vshrl.u32 %v7203, 7
    %v7205 = vsub.s32 7, %v7204
    %v7206 = vrot.slane %v111, %v7205
    %v7207 = vlaneseq
    %v7208 = vshrl.u32 %v7207, 7
    %v7209 = vsub.s32 7, %v7208
    %v7210 = vrot.slane %v112, %v7209
    %v7211 = vlaneseq
    %v7212 = vshrl.u32 %v7211, 7
    %v7213 = vsub.s32 7, %v7212
    %v7214 = vrot.slane %v113, %v7213
    %v7215 = vlaneseq
    %v7216 = vshrl.u32 %v7215, 7
    %v7217 = vsub.s32 7, %v7216
    %v7218 = vrot.slane %v114, %v7217
    %v7219 = vlaneseq
    %v7220 = vshrl.u32 %v7219, 7
    %v7221 = vsub.s32 7, %v7220
    %v7222 = vrot.slane %v115, %v7221
    %v7223 = vlaneseq
    %v7224 = vshrl.u32 %v7223, 7
    %v7225 = vsub.s32 7, %v7224
    %v7226 = vrot.slane %v116, %v7225
    %v7227 = vlaneseq
    %v7228 = vshrl.u32 %v7227, 7
    %v7229 = vsub.s32 7, %v7228
    %v7230 = vrot.slane %v117, %v7229
    %v7231 = vlaneseq
    %v7232 = vshrl.u32 %v7231, 7
    %v7233 = vsub.s32 7, %v7232
    %v7234 = vrot.slane %v118, %v7233
    %v7235 = vlaneseq
    %v7236 = vshrl.u32 %v7235, 7
    %v7237 = vsub.s32 7, %v7236
    %v7238 = vrot.slane %v119, %v7237
    %v7239 = vlaneseq
    %v7240 = vshrl.u32 %v7239, 7
    %v7241 = vsub.s32 7, %v7240
    %v7242 = vrot.slane %v120, %v7241
    %v7243 = vlaneseq
    %v7244 = vshrl.u32 %v7243, 7
    %v7245 = vsub.s32 7, %v7244
    %v7246 = vrot.slane %v121, %v7245
    %v7247 = vlaneseq
    %v7248 = vshrl.u32 %v7247, 7
    %v7249 = vsub.s32 7, %v7248
    %v7250 = vrot.slane %v122, %v7249
    %v7251 = vlaneseq
    %v7252 = vshrl.u32 %v7251, 7
    %v7253 = vsub.s32 7, %v7252
    %v7254 = vrot.slane %v123, %v7253
    %v7255 = vlaneseq
    %v7256 = vshrl.u32 %v7255, 7
    %v7257 = vsub.s32 7, %v7256
    %v7258 = vrot.slane %v124, %v7257
    %v7259 = vlaneseq
    %v7260 = vshrl.u32 %v7259, 7
    %v7261 = vsub.s32 7, %v7260
    %v7262 = vrot.slane %v125, %v7261
    %v7263 = vlaneseq
    %v7264 = vshrl.u32 %v7263, 7
    %v7265 = vsub.s32 7, %v7264
    %v7266 = vrot.slane %v126, %v7265
    %v7267 = vlaneseq
    %v7268 = vshrl.u32 %v7267, 7
    %v7269 = vsub.s32 7, %v7268
    %v7270 = vrot.slane %v127, %v7269
    %v7271 = vlaneseq
    %v7272 = vshrl.u32 %v7271, 7
    %v7273 = vsub.s32 7, %v7272
    %v7274 = vrot.slane %v128, %v7273
    %v7275 = vlaneseq
    %v7276 = vshrl.u32 %v7275, 7
    %v7277 = vsub.s32 7, %v7276
    %v7278 = vrot.slane %v129, %v7277
    %v7279 = vlaneseq
    %v7280 = vshrl.u32 %v7279, 7
    %v7281 = vsub.s32 7, %v7280
    %v7282 = vrot.slane %v130, %v7281
    %v7283 = vlaneseq
    %v7284 = vshrl.u32 %v7283, 7
    %v7285 = vsub.s32 7, %v7284
    %v7286 = vrot.slane %v131, %v7285
    %v7287 = vlaneseq
    %v7288 = vshrl.u32 %v7287, 7
    %v7289 = vsub.s32 7, %v7288
    %v7290 = vrot.slane %v132, %v7289
    %v7291 = vlaneseq
    %v7292 = vshrl.u32 %v7291, 7
    %v7293 = vsub.s32 7, %v7292
    %v7294 = vrot.slane %v133, %v7293
    %v7295 = vlaneseq
    %v7296 = vshrl.u32 %v7295, 7
    %v7297 = vsub.s32 7, %v7296
    %v7298 = vrot.slane %v134, %v7297
    %v7299 = vlaneseq
    %v7300 = vshrl.u32 %v7299, 7
    %v7301 = vsub.s32 7, %v7300
    %v7302 = vrot.slane %v135, %v7301
    %v7303 = vlaneseq
    %v7304 = vshrl.u32 %v7303, 7
    %v7305 = vsub.s32 7, %v7304
    %v7306 = vrot.slane %v136, %v7305
    %v7307 = vlaneseq
    %v7308 = vshrl.u32 %v7307, 7
    %v7309 = vsub.s32 7, %v7308
    %v7310 = vrot.slane %v137, %v7309
    %v7311 = vlaneseq
    %v7312 = vshrl.u32 %v7311, 7
    %v7313 = vsub.s32 7, %v7312
    %v7314 = vrot.slane %v138, %v7313
    %v7315 = vmul.f32 %v6805, %v7062
    %v7316 = vmul.f32 %v6809, %v7066
    %v7317 = vmul.f32 %v6813, %v7070
    %v7318 = vmul.f32 %v6817, %v7074
    %v7319 = vmul.f32 %v6821, %v7078
    %v7320 = vmul.f32 %v6825, %v7082
    %v7321 = vmul.f32 %v6829, %v7086
    %v7322 = vmul.f32 %v6833, %v7090
    %v7323 = vmul.f32 %v6837, %v7094
    %v7324 = vmul.f32 %v6841, %v7098
    %v7325 = vmul.f32 %v6845, %v7102
    %v7326 = vmul.f32 %v6849, %v7106
    %v7327 = vmul.f32 %v6853, %v7110
    %v7328 = vmul.f32 %v6857, %v7114
    %v7329 = vmul.f32 %v6861, %v7118
    %v7330 = vmul.f32 %v6865, %v7122
    %v7331 = vmul.f32 %v6869, %v7126
    %v7332 = vmul.f32 %v6873, %v7130
    %v7333 = vmul.f32 %v6877, %v7134
    %v7334 = vmul.f32 %v6881, %v7138
    %v7335 = vmul.f32 %v6885, %v7142
    %v7336 = vmul.f32 %v6889, %v7146
    %v7337 = vmul.f32 %v6893, %v7150
    %v7338 = vmul.f32 %v6897, %v7154
    %v7339 = vmul.f32 %v6901, %v7158
    %v7340 = vmul.f32 %v6905, %v7162
    %v7341 = vmul.f32 %v6909, %v7166
    %v7342 = vmul.f32 %v6913, %v7170
    %v7343 = vmul.f32 %v6917, %v7174
    %v7344 = vmul.f32 %v6921, %v7178
    %v7345 = vmul.f32 %v6925, %v7182
    %v7346 = vmul.f32 %v6929, %v7186
    %v7347 = vmul.f32 %v6933, %v7190
    %v7348 = vmul.f32 %v6937, %v7194
    %v7349 = vmul.f32 %v6941, %v7198
    %v7350 = vmul.f32 %v6945, %v7202
    %v7351 = vmul.f32 %v6949, %v7206
    %v7352 = vmul.f32 %v6953, %v7210
    %v7353 = vmul.f32 %v6957, %v7214
    %v7354 = vmul.f32 %v6961, %v7218
    %v7355 = vmul.f32 %v6965, %v7222
    %v7356 = vmul.f32 %v6969, %v7226
    %v7357 = vmul.f32 %v6973, %v7230
    %v7358 = vmul.f32 %v6977, %v7234
    %v7359 = vmul.f32 %v6981, %v7238
    %v7360 = vmul.f32 %v6985, %v7242
    %v7361 = vmul.f32 %v6989, %v7246
    %v7362 = vmul.f32 %v6993, %v7250
    %v7363 = vmul.f32 %v6997, %v7254
    %v7364 = vmul.f32 %v7001, %v7258
    %v7365 = vmul.f32 %v7005, %v7262
    %v7366 = vmul.f32 %v7009, %v7266
    %v7367 = vmul.f32 %v7013, %v7270
    %v7368 = vmul.f32 %v7017, %v7274
    %v7369 = vmul.f32 %v7021, %v7278
    %v7370 = vmul.f32 %v7025, %v7282
    %v7371 = vmul.f32 %v7029, %v7286
    %v7372 = vmul.f32 %v7033, %v7290
    %v7373 = vmul.f32 %v7037, %v7294
    %v7374 = vmul.f32 %v7041, %v7298
    %v7375 = vmul.f32 %v7045, %v7302
    %v7376 = vmul.f32 %v7049, %v7306
    %v7377 = vmul.f32 %v7053, %v7310
    %v7378 = vmul.f32 %v7057, %v7314
    %v7379 = vadd.f32 %v6739, %v7315
    %v7380 = vadd.f32 %v6740, %v7316
    %v7381 = vadd.f32 %v6741, %v7317
    %v7382 = vadd.f32 %v6742, %v7318
    %v7383 = vadd.f32 %v6743, %v7319
    %v7384 = vadd.f32 %v6744, %v7320
    %v7385 = vadd.f32 %v6745, %v7321
    %v7386 = vadd.f32 %v6746, %v7322
    %v7387 = vadd.f32 %v6747, %v7323
    %v7388 = vadd.f32 %v6748, %v7324
    %v7389 = vadd.f32 %v6749, %v7325
    %v7390 = vadd.f32 %v6750, %v7326
    %v7391 = vadd.f32 %v6751, %v7327
    %v7392 = vadd.f32 %v6752, %v7328
    %v7393 = vadd.f32 %v6753, %v7329
    %v7394 = vadd.f32 %v6754, %v7330
    %v7395 = vadd.f32 %v6755, %v7331
    %v7396 = vadd.f32 %v6756, %v7332
    %v7397 = vadd.f32 %v6757, %v7333
    %v7398 = vadd.f32 %v6758, %v7334
    %v7399 = vadd.f32 %v6759, %v7335
    %v7400 = vadd.f32 %v6760, %v7336
    %v7401 = vadd.f32 %v6761, %v7337
    %v7402 = vadd.f32 %v6762, %v7338
    %v7403 = vadd.f32 %v6763, %v7339
    %v7404 = vadd.f32 %v6764, %v7340
    %v7405 = vadd.f32 %v6765, %v7341
    %v7406 = vadd.f32 %v6766, %v7342
    %v7407 = vadd.f32 %v6767, %v7343
    %v7408 = vadd.f32 %v6768, %v7344
    %v7409 = vadd.f32 %v6769, %v7345
    %v7410 = vadd.f32 %v6770, %v7346
    %v7411 = vadd.f32 %v6771, %v7347
    %v7412 = vadd.f32 %v6772, %v7348
    %v7413 = vadd.f32 %v6773, %v7349
    %v7414 = vadd.f32 %v6774, %v7350
    %v7415 = vadd.f32 %v6775, %v7351
    %v7416 = vadd.f32 %v6776, %v7352
    %v7417 = vadd.f32 %v6777, %v7353
    %v7418 = vadd.f32 %v6778, %v7354
    %v7419 = vadd.f32 %v6779, %v7355
    %v7420 = vadd.f32 %v6780, %v7356
    %v7421 = vadd.f32 %v6781, %v7357
    %v7422 = vadd.f32 %v6782, %v7358
    %v7423 = vadd.f32 %v6783, %v7359
    %v7424 = vadd.f32 %v6784, %v7360
    %v7425 = vadd.f32 %v6785, %v7361
    %v7426 = vadd.f32 %v6786, %v7362
    %v7427 = vadd.f32 %v6787, %v7363
    %v7428 = vadd.f32 %v6788, %v7364
    %v7429 = vadd.f32 %v6789, %v7365
    %v7430 = vadd.f32 %v6790, %v7366
    %v7431 = vadd.f32 %v6791, %v7367
    %v7432 = vadd.f32 %v6792, %v7368
    %v7433 = vadd.f32 %v6793, %v7369
    %v7434 = vadd.f32 %v6794, %v7370
    %v7435 = vadd.f32 %v6795, %v7371
    %v7436 = vadd.f32 %v6796, %v7372
    %v7437 = vadd.f32 %v6797, %v7373
    %v7438 = vadd.f32 %v6798, %v7374
    %v7439 = vadd.f32 %v6799, %v7375
    %v7440 = vadd.f32 %v6800, %v7376
    %v7441 = vadd.f32 %v6801, %v7377
    %v7442 = vadd.f32 %v6802, %v7378
    %v7443 = vpack.c.bf16 %v7380, %v7379
    %v7444 = vpack.c.bf16 %v7382, %v7381
    %v7445 = vpack.c.bf16 %v7384, %v7383
    %v7446 = vpack.c.bf16 %v7386, %v7385
    %v7447 = vpack.c.bf16 %v7388, %v7387
    %v7448 = vpack.c.bf16 %v7390, %v7389
    %v7449 = vpack.c.bf16 %v7392, %v7391
    %v7450 = vpack.c.bf16 %v7394, %v7393
    %v7451 = vpack.c.bf16 %v7396, %v7395
    %v7452 = vpack.c.bf16 %v7398, %v7397
    %v7453 = vpack.c.bf16 %v7400, %v7399
    %v7454 = vpack.c.bf16 %v7402, %v7401
    %v7455 = vpack.c.bf16 %v7404, %v7403
    %v7456 = vpack.c.bf16 %v7406, %v7405
    %v7457 = vpack.c.bf16 %v7408, %v7407
    %v7458 = vpack.c.bf16 %v7410, %v7409
    %v7459 = vpack.c.bf16 %v7412, %v7411
    %v7460 = vpack.c.bf16 %v7414, %v7413
    %v7461 = vpack.c.bf16 %v7416, %v7415
    %v7462 = vpack.c.bf16 %v7418, %v7417
    %v7463 = vpack.c.bf16 %v7420, %v7419
    %v7464 = vpack.c.bf16 %v7422, %v7421
    %v7465 = vpack.c.bf16 %v7424, %v7423
    %v7466 = vpack.c.bf16 %v7426, %v7425
    %v7467 = vpack.c.bf16 %v7428, %v7427
    %v7468 = vpack.c.bf16 %v7430, %v7429
    %v7469 = vpack.c.bf16 %v7432, %v7431
    %v7470 = vpack.c.bf16 %v7434, %v7433
    %v7471 = vpack.c.bf16 %v7436, %v7435
    %v7472 = vpack.c.bf16 %v7438, %v7437
    %v7473 = vpack.c.bf16 %v7440, %v7439
    %v7474 = vpack.c.bf16 %v7442, %v7441
    %v7475 = vld [vmem:[%s4] sm:$0xf]
    %v7476 = vld [vmem:[%s4 + $0x4] sm:$0xf]
    %v7477 = vld [vmem:[%s4 + $0x8] sm:$0xf]
    %v7478 = vld [vmem:[%s4 + $0xc] sm:$0xf]
    %v7479 = vld [vmem:[%s4 + $0x10] sm:$0xf]
    %v7480 = vld [vmem:[%s4 + $0x14] sm:$0xf]
    %v7481 = vld [vmem:[%s4 + $0x18] sm:$0xf]
    %v7482 = vld [vmem:[%s4 + $0x1c] sm:$0xf]
    %v7483 = vld [vmem:[%s4 + $0x20] sm:$0xf]
    %v7484 = vld [vmem:[%s4 + $0x24] sm:$0xf]
    %v7485 = vld [vmem:[%s4 + $0x28] sm:$0xf]
    %v7486 = vld [vmem:[%s4 + $0x2c] sm:$0xf]
    %v7487 = vld [vmem:[%s4 + $0x30] sm:$0xf]
    %v7488 = vld [vmem:[%s4 + $0x34] sm:$0xf]
    %v7489 = vld [vmem:[%s4 + $0x38] sm:$0xf]
    %v7490 = vld [vmem:[%s4 + $0x3c] sm:$0xf]
    %v7491 = vld [vmem:[%s5] sm:$0x1]
    %v7493 = vlaneseq
    %v7494 = vshrl.u32 %v7493, 7
    %v7495 = vsub.s32 0, %v7494
    %v7496 = vrot.slane %v7491, %v7495
    %v7514 = vunpack.c.l.b16 %v7475
    %v7515 = vunpack.c.l.b16 %v7476
    %v7516 = vunpack.c.l.b16 %v7477
    %v7517 = vunpack.c.l.b16 %v7478
    %v7518 = vunpack.c.l.b16 %v7479
    %v7519 = vunpack.c.l.b16 %v7480
    %v7520 = vunpack.c.l.b16 %v7481
    %v7521 = vunpack.c.l.b16 %v7482
    %v7522 = vunpack.c.l.b16 %v7483
    %v7523 = vunpack.c.l.b16 %v7484
    %v7524 = vunpack.c.l.b16 %v7485
    %v7525 = vunpack.c.l.b16 %v7486
    %v7526 = vunpack.c.l.b16 %v7487
    %v7527 = vunpack.c.l.b16 %v7488
    %v7528 = vunpack.c.l.b16 %v7489
    %v7529 = vunpack.c.l.b16 %v7490
    %v7530 = vpack.c.b16 %v7515, %v7514
    %v7531 = vpack.c.b16 %v7517, %v7516
    %v7532 = vpack.c.b16 %v7519, %v7518
    %v7533 = vpack.c.b16 %v7521, %v7520
    %v7534 = vpack.c.b16 %v7523, %v7522
    %v7535 = vpack.c.b16 %v7525, %v7524
    %v7536 = vpack.c.b16 %v7527, %v7526
    %v7537 = vpack.c.b16 %v7529, %v7528
    %7546 = vmatprep.subr.bf16.mxu0 0
    %7547 = vmatpush1.bf16.msra.mxu0 %v7530
    %7548 = vmatprep.subr.bf16.mxu0 0
    %7549 = vmatpush1.bf16.msra.mxu0 %v7531
    %7550 = vmatprep.subr.bf16.mxu0 0
    %7551 = vmatpush1.bf16.msra.mxu0 %v7532
    %7552 = vmatprep.subr.bf16.mxu0 0
    %7553 = vmatpush1.bf16.msra.mxu0 %v7533
    %7554 = vmatprep.subr.bf16.mxu0 0
    %7555 = vmatpush1.bf16.msra.mxu0 %v7534
    %7556 = vmatprep.subr.bf16.mxu0 0
    %7557 = vmatpush1.bf16.msra.mxu0 %v7535
    %7558 = vmatprep.subr.bf16.mxu0 0
    %7559 = vmatpush1.bf16.msra.mxu0 %v7536
    %7560 = vmatprep.subr.bf16.mxu0 0
    %7561 = vmatpush1.bf16.msra.mxu0 %v7537
    %7562 = vmatprep.subr.bf16.mxu0 0
    %7563 = vmatpush1.bf16.msra.mxu0 0
    %7564 = vmatprep.subr.bf16.mxu0 0
    %7565 = vmatpush1.bf16.msra.mxu0 0
    %7566 = vmatprep.subr.bf16.mxu0 0
    %7567 = vmatpush1.bf16.msra.mxu0 0
    %7568 = vmatprep.subr.bf16.mxu0 0
    %7569 = vmatpush1.bf16.msra.mxu0 0
    %7570 = vmatprep.subr.bf16.mxu0 0
    %7571 = vmatpush1.bf16.msra.mxu0 0
    %7572 = vmatprep.subr.bf16.mxu0 0
    %7573 = vmatpush1.bf16.msra.mxu0 0
    %7574 = vmatprep.subr.bf16.mxu0 0
    %7575 = vmatpush1.bf16.msra.mxu0 0
    %7576 = vmatprep.subr.bf16.mxu0 0
    %7577 = vmatpush1.bf16.msra.mxu0 0
    %7578 = vmatprep.mubr.bf16.mxu0 0
    %7579 = vmatmul.mubr.bf16.gmra.mrb[0].mxu0 %v7443
    %v7580 = vpop.f32.mrb[0].mxu0
    %v7581 = vadd.f32 %v7496, %v7580
    %v7582 = vpop.f32.mrb[0].mxu0
    %v7583 = vpop.f32.mrb[0].mxu0
    %v7584 = vadd.f32 %v7496, %v7583
    %v7585 = vpop.f32.mrb[0].mxu0
    %7586 = vmatprep.mubr.bf16.mxu0 0
    %7587 = vmatmul.mubr.bf16.gmra.mrb[0].mxu0 %v7444
    %v7588 = vpop.f32.mrb[0].mxu0
    %v7589 = vadd.f32 %v7496, %v7588
    %v7590 = vpop.f32.mrb[0].mxu0
    %v7591 = vpop.f32.mrb[0].mxu0
    %v7592 = vadd.f32 %v7496, %v7591
    %v7593 = vpop.f32.mrb[0].mxu0
    %7594 = vmatprep.mubr.bf16.mxu0 0
    %7595 = vmatmul.mubr.bf16.gmra.mrb[0].mxu0 %v7445
    %v7596 = vpop.f32.mrb[0].mxu0
    %v7597 = vadd.f32 %v7496, %v7596
    %v7598 = vpop.f32.mrb[0].mxu0
    %v7599 = vpop.f32.mrb[0].mxu0
    %v7600 = vadd.f32 %v7496, %v7599
    %v7601 = vpop.f32.mrb[0].mxu0
    %7602 = vmatprep.mubr.bf16.mxu0 0
    %7603 = vmatmul.mubr.bf16.gmra.mrb[0].mxu0 %v7446
    %v7604 = vpop.f32.mrb[0].mxu0
    %v7605 = vadd.f32 %v7496, %v7604
    %v7606 = vpop.f32.mrb[0].mxu0
    %v7607 = vpop.f32.mrb[0].mxu0
    %v7608 = vadd.f32 %v7496, %v7607
    %v7609 = vpop.f32.mrb[0].mxu0
    %7610 = vmatprep.mubr.bf16.mxu0 0
    %7611 = vmatmul.mubr.bf16.gmra.mrb[0].mxu0 %v7447
    %v7612 = vpop.f32.mrb[0].mxu0
    %v7613 = vadd.f32 %v7496, %v7612
    %v7614 = vpop.f32.mrb[0].mxu0
    %v7615 = vpop.f32.mrb[0].mxu0
    %v7616 = vadd.f32 %v7496, %v7615
    %v7617 = vpop.f32.mrb[0].mxu0
    %7618 = vmatprep.mubr.bf16.mxu0 0
    %7619 = vmatmul.mubr.bf16.gmra.mrb[0].mxu0 %v7448
    %v7620 = vpop.f32.mrb[0].mxu0
    %v7621 = vadd.f32 %v7496, %v7620
    %v7622 = vpop.f32.mrb[0].mxu0
    %v7623 = vpop.f32.mrb[0].mxu0
    %v7624 = vadd.f32 %v7496, %v7623
    %v7625 = vpop.f32.mrb[0].mxu0
    %7626 = vmatprep.mubr.bf16.mxu0 0
    %7627 = vmatmul.mubr.bf16.gmra.mrb[0].mxu0 %v7449
    %v7628 = vpop.f32.mrb[0].mxu0
    %v7629 = vadd.f32 %v7496, %v7628
    %v7630 = vpop.f32.mrb[0].mxu0
    %v7631 = vpop.f32.mrb[0].mxu0
    %v7632 = vadd.f32 %v7496, %v7631
    %v7633 = vpop.f32.mrb[0].mxu0
    %7634 = vmatprep.mubr.bf16.mxu0 0
    %7635 = vmatmul.mubr.bf16.gmra.mrb[0].mxu0 %v7450
    %v7636 = vpop.f32.mrb[0].mxu0
    %v7637 = vadd.f32 %v7496, %v7636
    %v7638 = vpop.f32.mrb[0].mxu0
    %v7639 = vpop.f32.mrb[0].mxu0
    %v7640 = vadd.f32 %v7496, %v7639
    %v7641 = vpop.f32.mrb[0].mxu0
    %7642 = vmatprep.mubr.bf16.mxu0 0
    %7643 = vmatmul.mubr.bf16.gmra.mrb[0].mxu0 %v7451
    %v7644 = vpop.f32.mrb[0].mxu0
    %v7645 = vadd.f32 %v7496, %v7644
    %v7646 = vpop.f32.mrb[0].mxu0
    %v7647 = vpop.f32.mrb[0].mxu0
    %v7648 = vadd.f32 %v7496, %v7647
    %v7649 = vpop.f32.mrb[0].mxu0
    %7650 = vmatprep.mubr.bf16.mxu0 0
    %7651 = vmatmul.mubr.bf16.gmra.mrb[0].mxu0 %v7452
    %v7652 = vpop.f32.mrb[0].mxu0
    %v7653 = vadd.f32 %v7496, %v7652
    %v7654 = vpop.f32.mrb[0].mxu0
    %v7655 = vpop.f32.mrb[0].mxu0
    %v7656 = vadd.f32 %v7496, %v7655
    %v7657 = vpop.f32.mrb[0].mxu0
    %7658 = vmatprep.mubr.bf16.mxu0 0
    %7659 = vmatmul.mubr.bf16.gmra.mrb[0].mxu0 %v7453
    %v7660 = vpop.f32.mrb[0].mxu0
    %v7661 = vadd.f32 %v7496, %v7660
    %v7662 = vpop.f32.mrb[0].mxu0
    %v7663 = vpop.f32.mrb[0].mxu0
    %v7664 = vadd.f32 %v7496, %v7663
    %v7665 = vpop.f32.mrb[0].mxu0
    %7666 = vmatprep.mubr.bf16.mxu0 0
    %7667 = vmatmul.mubr.bf16.gmra.mrb[0].mxu0 %v7454
    %v7668 = vpop.f32.mrb[0].mxu0
    %v7669 = vadd.f32 %v7496, %v7668
    %v7670 = vpop.f32.mrb[0].mxu0
    %v7671 = vpop.f32.mrb[0].mxu0
    %v7672 = vadd.f32 %v7496, %v7671
    %v7673 = vpop.f32.mrb[0].mxu0
    %7674 = vmatprep.mubr.bf16.mxu0 0
    %7675 = vmatmul.mubr.bf16.gmra.mrb[0].mxu0 %v7455
    %v7676 = vpop.f32.mrb[0].mxu0
    %v7677 = vadd.f32 %v7496, %v7676
    %v7678 = vpop.f32.mrb[0].mxu0
    %v7679 = vpop.f32.mrb[0].mxu0
    %v7680 = vadd.f32 %v7496, %v7679
    %v7681 = vpop.f32.mrb[0].mxu0
    %7682 = vmatprep.mubr.bf16.mxu0 0
    %7683 = vmatmul.mubr.bf16.gmra.mrb[0].mxu0 %v7456
    %v7684 = vpop.f32.mrb[0].mxu0
    %v7685 = vadd.f32 %v7496, %v7684
    %v7686 = vpop.f32.mrb[0].mxu0
    %v7687 = vpop.f32.mrb[0].mxu0
    %v7688 = vadd.f32 %v7496, %v7687
    %v7689 = vpop.f32.mrb[0].mxu0
    %7690 = vmatprep.mubr.bf16.mxu0 0
    %7691 = vmatmul.mubr.bf16.gmra.mrb[0].mxu0 %v7457
    %v7692 = vpop.f32.mrb[0].mxu0
    %v7693 = vadd.f32 %v7496, %v7692
    %v7694 = vpop.f32.mrb[0].mxu0
    %v7695 = vpop.f32.mrb[0].mxu0
    %v7696 = vadd.f32 %v7496, %v7695
    %v7697 = vpop.f32.mrb[0].mxu0
    %7698 = vmatprep.mubr.bf16.mxu0 0
    %7699 = vmatmul.mubr.bf16.gmra.mrb[0].mxu0 %v7458
    %v7700 = vpop.f32.mrb[0].mxu0
    %v7701 = vadd.f32 %v7496, %v7700
    %v7702 = vpop.f32.mrb[0].mxu0
    %v7703 = vpop.f32.mrb[0].mxu0
    %v7704 = vadd.f32 %v7496, %v7703
    %v7705 = vpop.f32.mrb[0].mxu0
    %7706 = vmatprep.mubr.bf16.mxu0 0
    %7707 = vmatmul.mubr.bf16.gmra.mrb[0].mxu0 %v7459
    %v7708 = vpop.f32.mrb[0].mxu0
    %v7709 = vadd.f32 %v7496, %v7708
    %v7710 = vpop.f32.mrb[0].mxu0
    %v7711 = vpop.f32.mrb[0].mxu0
    %v7712 = vadd.f32 %v7496, %v7711
    %v7713 = vpop.f32.mrb[0].mxu0
    %7714 = vmatprep.mubr.bf16.mxu0 0
    %7715 = vmatmul.mubr.bf16.gmra.mrb[0].mxu0 %v7460
    %v7716 = vpop.f32.mrb[0].mxu0
    %v7717 = vadd.f32 %v7496, %v7716
    %v7718 = vpop.f32.mrb[0].mxu0
    %v7719 = vpop.f32.mrb[0].mxu0
    %v7720 = vadd.f32 %v7496, %v7719
    %v7721 = vpop.f32.mrb[0].mxu0
    %7722 = vmatprep.mubr.bf16.mxu0 0
    %7723 = vmatmul.mubr.bf16.gmra.mrb[0].mxu0 %v7461
    %v7724 = vpop.f32.mrb[0].mxu0
    %v7725 = vadd.f32 %v7496, %v7724
    %v7726 = vpop.f32.mrb[0].mxu0
    %v7727 = vpop.f32.mrb[0].mxu0
    %v7728 = vadd.f32 %v7496, %v7727
    %v7729 = vpop.f32.mrb[0].mxu0
    %7730 = vmatprep.mubr.bf16.mxu0 0
    %7731 = vmatmul.mubr.bf16.gmra.mrb[0].mxu0 %v7462
    %v7732 = vpop.f32.mrb[0].mxu0
    %v7733 = vadd.f32 %v7496, %v7732
    %v7734 = vpop.f32.mrb[0].mxu0
    %v7735 = vpop.f32.mrb[0].mxu0
    %v7736 = vadd.f32 %v7496, %v7735
    %v7737 = vpop.f32.mrb[0].mxu0
    %7738 = vmatprep.mubr.bf16.mxu0 0
    %7739 = vmatmul.mubr.bf16.gmra.mrb[0].mxu0 %v7463
    %v7740 = vpop.f32.mrb[0].mxu0
    %v7741 = vadd.f32 %v7496, %v7740
    %v7742 = vpop.f32.mrb[0].mxu0
    %v7743 = vpop.f32.mrb[0].mxu0
    %v7744 = vadd.f32 %v7496, %v7743
    %v7745 = vpop.f32.mrb[0].mxu0
    %7746 = vmatprep.mubr.bf16.mxu0 0
    %7747 = vmatmul.mubr.bf16.gmra.mrb[0].mxu0 %v7464
    %v7748 = vpop.f32.mrb[0].mxu0
    %v7749 = vadd.f32 %v7496, %v7748
    %v7750 = vpop.f32.mrb[0].mxu0
    %v7751 = vpop.f32.mrb[0].mxu0
    %v7752 = vadd.f32 %v7496, %v7751
    %v7753 = vpop.f32.mrb[0].mxu0
    %7754 = vmatprep.mubr.bf16.mxu0 0
    %7755 = vmatmul.mubr.bf16.gmra.mrb[0].mxu0 %v7465
    %v7756 = vpop.f32.mrb[0].mxu0
    %v7757 = vadd.f32 %v7496, %v7756
    %v7758 = vpop.f32.mrb[0].mxu0
    %v7759 = vpop.f32.mrb[0].mxu0
    %v7760 = vadd.f32 %v7496, %v7759
    %v7761 = vpop.f32.mrb[0].mxu0
    %7762 = vmatprep.mubr.bf16.mxu0 0
    %7763 = vmatmul.mubr.bf16.gmra.mrb[0].mxu0 %v7466
    %v7764 = vpop.f32.mrb[0].mxu0
    %v7765 = vadd.f32 %v7496, %v7764
    %v7766 = vpop.f32.mrb[0].mxu0
    %v7767 = vpop.f32.mrb[0].mxu0
    %v7768 = vadd.f32 %v7496, %v7767
    %v7769 = vpop.f32.mrb[0].mxu0
    %7770 = vmatprep.mubr.bf16.mxu0 0
    %7771 = vmatmul.mubr.bf16.gmra.mrb[0].mxu0 %v7467
    %v7772 = vpop.f32.mrb[0].mxu0
    %v7773 = vadd.f32 %v7496, %v7772
    %v7774 = vpop.f32.mrb[0].mxu0
    %v7775 = vpop.f32.mrb[0].mxu0
    %v7776 = vadd.f32 %v7496, %v7775
    %v7777 = vpop.f32.mrb[0].mxu0
    %7778 = vmatprep.mubr.bf16.mxu0 0
    %7779 = vmatmul.mubr.bf16.gmra.mrb[0].mxu0 %v7468
    %v7780 = vpop.f32.mrb[0].mxu0
    %v7781 = vadd.f32 %v7496, %v7780
    %v7782 = vpop.f32.mrb[0].mxu0
    %v7783 = vpop.f32.mrb[0].mxu0
    %v7784 = vadd.f32 %v7496, %v7783
    %v7785 = vpop.f32.mrb[0].mxu0
    %7786 = vmatprep.mubr.bf16.mxu0 0
    %7787 = vmatmul.mubr.bf16.gmra.mrb[0].mxu0 %v7469
    %v7788 = vpop.f32.mrb[0].mxu0
    %v7789 = vadd.f32 %v7496, %v7788
    %v7790 = vpop.f32.mrb[0].mxu0
    %v7791 = vpop.f32.mrb[0].mxu0
    %v7792 = vadd.f32 %v7496, %v7791
    %v7793 = vpop.f32.mrb[0].mxu0
    %7794 = vmatprep.mubr.bf16.mxu0 0
    %7795 = vmatmul.mubr.bf16.gmra.mrb[0].mxu0 %v7470
    %v7796 = vpop.f32.mrb[0].mxu0
    %v7797 = vadd.f32 %v7496, %v7796
    %v7798 = vpop.f32.mrb[0].mxu0
    %v7799 = vpop.f32.mrb[0].mxu0
    %v7800 = vadd.f32 %v7496, %v7799
    %v7801 = vpop.f32.mrb[0].mxu0
    %7802 = vmatprep.mubr.bf16.mxu0 0
    %7803 = vmatmul.mubr.bf16.gmra.mrb[0].mxu0 %v7471
    %v7804 = vpop.f32.mrb[0].mxu0
    %v7805 = vadd.f32 %v7496, %v7804
    %v7806 = vpop.f32.mrb[0].mxu0
    %v7807 = vpop.f32.mrb[0].mxu0
    %v7808 = vadd.f32 %v7496, %v7807
    %v7809 = vpop.f32.mrb[0].mxu0
    %7810 = vmatprep.mubr.bf16.mxu0 0
    %7811 = vmatmul.mubr.bf16.gmra.mrb[0].mxu0 %v7472
    %v7812 = vpop.f32.mrb[0].mxu0
    %v7813 = vadd.f32 %v7496, %v7812
    %v7814 = vpop.f32.mrb[0].mxu0
    %v7815 = vpop.f32.mrb[0].mxu0
    %v7816 = vadd.f32 %v7496, %v7815
    %v7817 = vpop.f32.mrb[0].mxu0
    %7818 = vmatprep.mubr.bf16.mxu0 0
    %7819 = vmatmul.mubr.bf16.gmra.mrb[0].mxu0 %v7473
    %v7820 = vpop.f32.mrb[0].mxu0
    %v7821 = vadd.f32 %v7496, %v7820
    %v7822 = vpop.f32.mrb[0].mxu0
    %v7823 = vpop.f32.mrb[0].mxu0
    %v7824 = vadd.f32 %v7496, %v7823
    %v7825 = vpop.f32.mrb[0].mxu0
    %7826 = vmatprep.mubr.bf16.mxu0 0
    %7827 = vmatmul.mubr.bf16.gmra.mrb[0].mxu0 %v7474
    %v7828 = vpop.f32.mrb[0].mxu0
    %v7829 = vadd.f32 %v7496, %v7828
    %v7830 = vpop.f32.mrb[0].mxu0
    %v7831 = vpop.f32.mrb[0].mxu0
    %v7832 = vadd.f32 %v7496, %v7831
    %v7833 = vpop.f32.mrb[0].mxu0
    %7834 = vdwg.mxu0
    %v7835 = vmax.f32 %v7581, 0.0
    %v7836 = vmax.f32 %v7584, 0.0
    %v7837 = vmax.f32 %v7589, 0.0
    %v7838 = vmax.f32 %v7592, 0.0
    %v7839 = vmax.f32 %v7597, 0.0
    %v7840 = vmax.f32 %v7600, 0.0
    %v7841 = vmax.f32 %v7605, 0.0
    %v7842 = vmax.f32 %v7608, 0.0
    %v7843 = vmax.f32 %v7613, 0.0
    %v7844 = vmax.f32 %v7616, 0.0
    %v7845 = vmax.f32 %v7621, 0.0
    %v7846 = vmax.f32 %v7624, 0.0
    %v7847 = vmax.f32 %v7629, 0.0
    %v7848 = vmax.f32 %v7632, 0.0
    %v7849 = vmax.f32 %v7637, 0.0
    %v7850 = vmax.f32 %v7640, 0.0
    %v7851 = vmax.f32 %v7645, 0.0
    %v7852 = vmax.f32 %v7648, 0.0
    %v7853 = vmax.f32 %v7653, 0.0
    %v7854 = vmax.f32 %v7656, 0.0
    %v7855 = vmax.f32 %v7661, 0.0
    %v7856 = vmax.f32 %v7664, 0.0
    %v7857 = vmax.f32 %v7669, 0.0
    %v7858 = vmax.f32 %v7672, 0.0
    %v7859 = vmax.f32 %v7677, 0.0
    %v7860 = vmax.f32 %v7680, 0.0
    %v7861 = vmax.f32 %v7685, 0.0
    %v7862 = vmax.f32 %v7688, 0.0
    %v7863 = vmax.f32 %v7693, 0.0
    %v7864 = vmax.f32 %v7696, 0.0
    %v7865 = vmax.f32 %v7701, 0.0
    %v7866 = vmax.f32 %v7704, 0.0
    %v7867 = vmax.f32 %v7709, 0.0
    %v7868 = vmax.f32 %v7712, 0.0
    %v7869 = vmax.f32 %v7717, 0.0
    %v7870 = vmax.f32 %v7720, 0.0
    %v7871 = vmax.f32 %v7725, 0.0
    %v7872 = vmax.f32 %v7728, 0.0
    %v7873 = vmax.f32 %v7733, 0.0
    %v7874 = vmax.f32 %v7736, 0.0
    %v7875 = vmax.f32 %v7741, 0.0
    %v7876 = vmax.f32 %v7744, 0.0
    %v7877 = vmax.f32 %v7749, 0.0
    %v7878 = vmax.f32 %v7752, 0.0
    %v7879 = vmax.f32 %v7757, 0.0
    %v7880 = vmax.f32 %v7760, 0.0
    %v7881 = vmax.f32 %v7765, 0.0
    %v7882 = vmax.f32 %v7768, 0.0
    %v7883 = vmax.f32 %v7773, 0.0
    %v7884 = vmax.f32 %v7776, 0.0
    %v7885 = vmax.f32 %v7781, 0.0
    %v7886 = vmax.f32 %v7784, 0.0
    %v7887 = vmax.f32 %v7789, 0.0
    %v7888 = vmax.f32 %v7792, 0.0
    %v7889 = vmax.f32 %v7797, 0.0
    %v7890 = vmax.f32 %v7800, 0.0
    %v7891 = vmax.f32 %v7805, 0.0
    %v7892 = vmax.f32 %v7808, 0.0
    %v7893 = vmax.f32 %v7813, 0.0
    %v7894 = vmax.f32 %v7816, 0.0
    %v7895 = vmax.f32 %v7821, 0.0
    %v7896 = vmax.f32 %v7824, 0.0
    %v7897 = vmax.f32 %v7829, 0.0
    %v7898 = vmax.f32 %v7832, 0.0
    %v7899 = vpack.c.bf16 %v7836, %v7835
    %v7900 = vpack.c.bf16 %v7838, %v7837
    %v7901 = vpack.c.bf16 %v7840, %v7839
    %v7902 = vpack.c.bf16 %v7842, %v7841
    %v7903 = vpack.c.bf16 %v7844, %v7843
    %v7904 = vpack.c.bf16 %v7846, %v7845
    %v7905 = vpack.c.bf16 %v7848, %v7847
    %v7906 = vpack.c.bf16 %v7850, %v7849
    %v7907 = vpack.c.bf16 %v7852, %v7851
    %v7908 = vpack.c.bf16 %v7854, %v7853
    %v7909 = vpack.c.bf16 %v7856, %v7855
    %v7910 = vpack.c.bf16 %v7858, %v7857
    %v7911 = vpack.c.bf16 %v7860, %v7859
    %v7912 = vpack.c.bf16 %v7862, %v7861
    %v7913 = vpack.c.bf16 %v7864, %v7863
    %v7914 = vpack.c.bf16 %v7866, %v7865
    %v7915 = vpack.c.bf16 %v7868, %v7867
    %v7916 = vpack.c.bf16 %v7870, %v7869
    %v7917 = vpack.c.bf16 %v7872, %v7871
    %v7918 = vpack.c.bf16 %v7874, %v7873
    %v7919 = vpack.c.bf16 %v7876, %v7875
    %v7920 = vpack.c.bf16 %v7878, %v7877
    %v7921 = vpack.c.bf16 %v7880, %v7879
    %v7922 = vpack.c.bf16 %v7882, %v7881
    %v7923 = vpack.c.bf16 %v7884, %v7883
    %v7924 = vpack.c.bf16 %v7886, %v7885
    %v7925 = vpack.c.bf16 %v7888, %v7887
    %v7926 = vpack.c.bf16 %v7890, %v7889
    %v7927 = vpack.c.bf16 %v7892, %v7891
    %v7928 = vpack.c.bf16 %v7894, %v7893
    %v7929 = vpack.c.bf16 %v7896, %v7895
    %v7930 = vpack.c.bf16 %v7898, %v7897
    %v7931 = vld [vmem:[#allocation6] sm:$0xf]
    %v7932 = vld [vmem:[#allocation6 + $0x4] sm:$0xf]
    %v7933 = vld [vmem:[#allocation6 + $0x8] sm:$0xf]
    %v7934 = vld [vmem:[#allocation6 + $0xc] sm:$0xf]
    %v7935 = vld [vmem:[#allocation6 + $0x10] sm:$0xf]
    %v7936 = vld [vmem:[#allocation6 + $0x14] sm:$0xf]
    %v7937 = vld [vmem:[#allocation6 + $0x18] sm:$0xf]
    %v7938 = vld [vmem:[#allocation6 + $0x1c] sm:$0xf]
    %v7939 = vld [vmem:[#allocation6 + $0x20] sm:$0xf]
    %v7940 = vld [vmem:[#allocation6 + $0x24] sm:$0xf]
    %v7941 = vld [vmem:[#allocation6 + $0x28] sm:$0xf]
    %v7942 = vld [vmem:[#allocation6 + $0x2c] sm:$0xf]
    %v7943 = vld [vmem:[#allocation6 + $0x30] sm:$0xf]
    %v7944 = vld [vmem:[#allocation6 + $0x34] sm:$0xf]
    %v7945 = vld [vmem:[#allocation6 + $0x38] sm:$0xf]
    %v7946 = vld [vmem:[#allocation6 + $0x3c] sm:$0xf]
    %v7947 = vld [vmem:[%s7] sm:$0x1]
    %v7949 = vlaneseq
    %v7950 = vshrl.u32 %v7949, 7
    %v7951 = vsub.s32 0, %v7950
    %v7952 = vrot.slane %v7947, %v7951
    %v7970 = vunpack.c.l.b16 %v7931
    %v7971 = vunpack.c.l.b16 %v7932
    %v7972 = vunpack.c.l.b16 %v7933
    %v7973 = vunpack.c.l.b16 %v7934
    %v7974 = vunpack.c.l.b16 %v7935
    %v7975 = vunpack.c.l.b16 %v7936
    %v7976 = vunpack.c.l.b16 %v7937
    %v7977 = vunpack.c.l.b16 %v7938
    %v7978 = vunpack.c.l.b16 %v7939
    %v7979 = vunpack.c.l.b16 %v7940
    %v7980 = vunpack.c.l.b16 %v7941
    %v7981 = vunpack.c.l.b16 %v7942
    %v7982 = vunpack.c.l.b16 %v7943
    %v7983 = vunpack.c.l.b16 %v7944
    %v7984 = vunpack.c.l.b16 %v7945
    %v7985 = vunpack.c.l.b16 %v7946
    %v7986 = vpack.c.b16 %v7971, %v7970
    %v7987 = vpack.c.b16 %v7973, %v7972
    %v7988 = vpack.c.b16 %v7975, %v7974
    %v7989 = vpack.c.b16 %v7977, %v7976
    %v7990 = vpack.c.b16 %v7979, %v7978
    %v7991 = vpack.c.b16 %v7981, %v7980
    %v7992 = vpack.c.b16 %v7983, %v7982
    %v7993 = vpack.c.b16 %v7985, %v7984
    %8002 = vmatprep.subr.bf16.mxu0 0
    %8003 = vmatpush1.bf16.msra.mxu0 %v7986
    %8004 = vmatprep.subr.bf16.mxu0 0
    %8005 = vmatpush1.bf16.msra.mxu0 %v7987
    %8006 = vmatprep.subr.bf16.mxu0 0
    %8007 = vmatpush1.bf16.msra.mxu0 %v7988
    %8008 = vmatprep.subr.bf16.mxu0 0
    %8009 = vmatpush1.bf16.msra.mxu0 %v7989
    %8010 = vmatprep.subr.bf16.mxu0 0
    %8011 = vmatpush1.bf16.msra.mxu0 %v7990
    %8012 = vmatprep.subr.bf16.mxu0 0
    %8013 = vmatpush1.bf16.msra.mxu0 %v7991
    %8014 = vmatprep.subr.bf16.mxu0 0
    %8015 = vmatpush1.bf16.msra.mxu0 %v7992
    %8016 = vmatprep.subr.bf16.mxu0 0
    %8017 = vmatpush1.bf16.msra.mxu0 %v7993
    %8018 = vmatprep.subr.bf16.mxu0 0
    %8019 = vmatpush1.bf16.msra.mxu0 0
    %8020 = vmatprep.subr.bf16.mxu0 0
    %8021 = vmatpush1.bf16.msra.mxu0 0
    %8022 = vmatprep.subr.bf16.mxu0 0
    %8023 = vmatpush1.bf16.msra.mxu0 0
    %8024 = vmatprep.subr.bf16.mxu0 0
    %8025 = vmatpush1.bf16.msra.mxu0 0
    %8026 = vmatprep.subr.bf16.mxu0 0
    %8027 = vmatpush1.bf16.msra.mxu0 0
    %8028 = vmatprep.subr.bf16.mxu0 0
    %8029 = vmatpush1.bf16.msra.mxu0 0
    %8030 = vmatprep.subr.bf16.mxu0 0
    %8031 = vmatpush1.bf16.msra.mxu0 0
    %8032 = vmatprep.subr.bf16.mxu0 0
    %8033 = vmatpush1.bf16.msra.mxu0 0
    %8034 = vmatprep.mubr.bf16.mxu0 0
    %8035 = vmatmul.mubr.bf16.gmra.mrb[0].mxu0 %v7899
    %v8036 = vpop.f32.mrb[0].mxu0
    %v8037 = vadd.f32 %v7952, %v8036
    %v8038 = vpop.f32.mrb[0].mxu0
    %v8039 = vpop.f32.mrb[0].mxu0
    %v8040 = vadd.f32 %v7952, %v8039
    %v8041 = vpop.f32.mrb[0].mxu0
    %8042 = vmatprep.mubr.bf16.mxu0 0
    %8043 = vmatmul.mubr.bf16.gmra.mrb[0].mxu0 %v7900
    %v8044 = vpop.f32.mrb[0].mxu0
    %v8045 = vadd.f32 %v7952, %v8044
    %v8046 = vpop.f32.mrb[0].mxu0
    %v8047 = vpop.f32.mrb[0].mxu0
    %v8048 = vadd.f32 %v7952, %v8047
    %v8049 = vpop.f32.mrb[0].mxu0
    %8050 = vmatprep.mubr.bf16.mxu0 0
    %8051 = vmatmul.mubr.bf16.gmra.mrb[0].mxu0 %v7901
    %v8052 = vpop.f32.mrb[0].mxu0
    %v8053 = vadd.f32 %v7952, %v8052
    %v8054 = vpop.f32.mrb[0].mxu0
    %v8055 = vpop.f32.mrb[0].mxu0
    %v8056 = vadd.f32 %v7952, %v8055
    %v8057 = vpop.f32.mrb[0].mxu0
    %8058 = vmatprep.mubr.bf16.mxu0 0
    %8059 = vmatmul.mubr.bf16.gmra.mrb[0].mxu0 %v7902
    %v8060 = vpop.f32.mrb[0].mxu0
    %v8061 = vadd.f32 %v7952, %v8060
    %v8062 = vpop.f32.mrb[0].mxu0
    %v8063 = vpop.f32.mrb[0].mxu0
    %v8064 = vadd.f32 %v7952, %v8063
    %v8065 = vpop.f32.mrb[0].mxu0
    %8066 = vmatprep.mubr.bf16.mxu0 0
    %8067 = vmatmul.mubr.bf16.gmra.mrb[0].mxu0 %v7903
    %v8068 = vpop.f32.mrb[0].mxu0
    %v8069 = vadd.f32 %v7952, %v8068
    %v8070 = vpop.f32.mrb[0].mxu0
    %v8071 = vpop.f32.mrb[0].mxu0
    %v8072 = vadd.f32 %v7952, %v8071
    %v8073 = vpop.f32.mrb[0].mxu0
    %8074 = vmatprep.mubr.bf16.mxu0 0
    %8075 = vmatmul.mubr.bf16.gmra.mrb[0].mxu0 %v7904
    %v8076 = vpop.f32.mrb[0].mxu0
    %v8077 = vadd.f32 %v7952, %v8076
    %v8078 = vpop.f32.mrb[0].mxu0
    %v8079 = vpop.f32.mrb[0].mxu0
    %v8080 = vadd.f32 %v7952, %v8079
    %v8081 = vpop.f32.mrb[0].mxu0
    %8082 = vmatprep.mubr.bf16.mxu0 0
    %8083 = vmatmul.mubr.bf16.gmra.mrb[0].mxu0 %v7905
    %v8084 = vpop.f32.mrb[0].mxu0
    %v8085 = vadd.f32 %v7952, %v8084
    %v8086 = vpop.f32.mrb[0].mxu0
    %v8087 = vpop.f32.mrb[0].mxu0
    %v8088 = vadd.f32 %v7952, %v8087
    %v8089 = vpop.f32.mrb[0].mxu0
    %8090 = vmatprep.mubr.bf16.mxu0 0
    %8091 = vmatmul.mubr.bf16.gmra.mrb[0].mxu0 %v7906
    %v8092 = vpop.f32.mrb[0].mxu0
    %v8093 = vadd.f32 %v7952, %v8092
    %v8094 = vpop.f32.mrb[0].mxu0
    %v8095 = vpop.f32.mrb[0].mxu0
    %v8096 = vadd.f32 %v7952, %v8095
    %v8097 = vpop.f32.mrb[0].mxu0
    %8098 = vmatprep.mubr.bf16.mxu0 0
    %8099 = vmatmul.mubr.bf16.gmra.mrb[0].mxu0 %v7907
    %v8100 = vpop.f32.mrb[0].mxu0
    %v8101 = vadd.f32 %v7952, %v8100
    %v8102 = vpop.f32.mrb[0].mxu0
    %v8103 = vpop.f32.mrb[0].mxu0
    %v8104 = vadd.f32 %v7952, %v8103
    %v8105 = vpop.f32.mrb[0].mxu0
    %8106 = vmatprep.mubr.bf16.mxu0 0
    %8107 = vmatmul.mubr.bf16.gmra.mrb[0].mxu0 %v7908
    %v8108 = vpop.f32.mrb[0].mxu0
    %v8109 = vadd.f32 %v7952, %v8108
    %v8110 = vpop.f32.mrb[0].mxu0
    %v8111 = vpop.f32.mrb[0].mxu0
    %v8112 = vadd.f32 %v7952, %v8111
    %v8113 = vpop.f32.mrb[0].mxu0
    %8114 = vmatprep.mubr.bf16.mxu0 0
    %8115 = vmatmul.mubr.bf16.gmra.mrb[0].mxu0 %v7909
    %v8116 = vpop.f32.mrb[0].mxu0
    %v8117 = vadd.f32 %v7952, %v8116
    %v8118 = vpop.f32.mrb[0].mxu0
    %v8119 = vpop.f32.mrb[0].mxu0
    %v8120 = vadd.f32 %v7952, %v8119
    %v8121 = vpop.f32.mrb[0].mxu0
    %8122 = vmatprep.mubr.bf16.mxu0 0
    %8123 = vmatmul.mubr.bf16.gmra.mrb[0].mxu0 %v7910
    %v8124 = vpop.f32.mrb[0].mxu0
    %v8125 = vadd.f32 %v7952, %v8124
    %v8126 = vpop.f32.mrb[0].mxu0
    %v8127 = vpop.f32.mrb[0].mxu0
    %v8128 = vadd.f32 %v7952, %v8127
    %v8129 = vpop.f32.mrb[0].mxu0
    %8130 = vmatprep.mubr.bf16.mxu0 0
    %8131 = vmatmul.mubr.bf16.gmra.mrb[0].mxu0 %v7911
    %v8132 = vpop.f32.mrb[0].mxu0
    %v8133 = vadd.f32 %v7952, %v8132
    %v8134 = vpop.f32.mrb[0].mxu0
    %v8135 = vpop.f32.mrb[0].mxu0
    %v8136 = vadd.f32 %v7952, %v8135
    %v8137 = vpop.f32.mrb[0].mxu0
    %8138 = vmatprep.mubr.bf16.mxu0 0
    %8139 = vmatmul.mubr.bf16.gmra.mrb[0].mxu0 %v7912
    %v8140 = vpop.f32.mrb[0].mxu0
    %v8141 = vadd.f32 %v7952, %v8140
    %v8142 = vpop.f32.mrb[0].mxu0
    %v8143 = vpop.f32.mrb[0].mxu0
    %v8144 = vadd.f32 %v7952, %v8143
    %v8145 = vpop.f32.mrb[0].mxu0
    %8146 = vmatprep.mubr.bf16.mxu0 0
    %8147 = vmatmul.mubr.bf16.gmra.mrb[0].mxu0 %v7913
    %v8148 = vpop.f32.mrb[0].mxu0
    %v8149 = vadd.f32 %v7952, %v8148
    %v8150 = vpop.f32.mrb[0].mxu0
    %v8151 = vpop.f32.mrb[0].mxu0
    %v8152 = vadd.f32 %v7952, %v8151
    %v8153 = vpop.f32.mrb[0].mxu0
    %8154 = vmatprep.mubr.bf16.mxu0 0
    %8155 = vmatmul.mubr.bf16.gmra.mrb[0].mxu0 %v7914
    %v8156 = vpop.f32.mrb[0].mxu0
    %v8157 = vadd.f32 %v7952, %v8156
    %v8158 = vpop.f32.mrb[0].mxu0
    %v8159 = vpop.f32.mrb[0].mxu0
    %v8160 = vadd.f32 %v7952, %v8159
    %v8161 = vpop.f32.mrb[0].mxu0
    %8162 = vmatprep.mubr.bf16.mxu0 0
    %8163 = vmatmul.mubr.bf16.gmra.mrb[0].mxu0 %v7915
    %v8164 = vpop.f32.mrb[0].mxu0
    %v8165 = vadd.f32 %v7952, %v8164
    %v8166 = vpop.f32.mrb[0].mxu0
    %v8167 = vpop.f32.mrb[0].mxu0
    %v8168 = vadd.f32 %v7952, %v8167
    %v8169 = vpop.f32.mrb[0].mxu0
    %8170 = vmatprep.mubr.bf16.mxu0 0
    %8171 = vmatmul.mubr.bf16.gmra.mrb[0].mxu0 %v7916
    %v8172 = vpop.f32.mrb[0].mxu0
    %v8173 = vadd.f32 %v7952, %v8172
    %v8174 = vpop.f32.mrb[0].mxu0
    %v8175 = vpop.f32.mrb[0].mxu0
    %v8176 = vadd.f32 %v7952, %v8175
    %v8177 = vpop.f32.mrb[0].mxu0
    %8178 = vmatprep.mubr.bf16.mxu0 0
    %8179 = vmatmul.mubr.bf16.gmra.mrb[0].mxu0 %v7917
    %v8180 = vpop.f32.mrb[0].mxu0
    %v8181 = vadd.f32 %v7952, %v8180
    %v8182 = vpop.f32.mrb[0].mxu0
    %v8183 = vpop.f32.mrb[0].mxu0
    %v8184 = vadd.f32 %v7952, %v8183
    %v8185 = vpop.f32.mrb[0].mxu0
    %8186 = vmatprep.mubr.bf16.mxu0 0
    %8187 = vmatmul.mubr.bf16.gmra.mrb[0].mxu0 %v7918
    %v8188 = vpop.f32.mrb[0].mxu0
    %v8189 = vadd.f32 %v7952, %v8188
    %v8190 = vpop.f32.mrb[0].mxu0
    %v8191 = vpop.f32.mrb[0].mxu0
    %v8192 = vadd.f32 %v7952, %v8191
    %v8193 = vpop.f32.mrb[0].mxu0
    %8194 = vmatprep.mubr.bf16.mxu0 0
    %8195 = vmatmul.mubr.bf16.gmra.mrb[0].mxu0 %v7919
    %v8196 = vpop.f32.mrb[0].mxu0
    %v8197 = vadd.f32 %v7952, %v8196
    %v8198 = vpop.f32.mrb[0].mxu0
    %v8199 = vpop.f32.mrb[0].mxu0
    %v8200 = vadd.f32 %v7952, %v8199
    %v8201 = vpop.f32.mrb[0].mxu0
    %8202 = vmatprep.mubr.bf16.mxu0 0
    %8203 = vmatmul.mubr.bf16.gmra.mrb[0].mxu0 %v7920
    %v8204 = vpop.f32.mrb[0].mxu0
    %v8205 = vadd.f32 %v7952, %v8204
    %v8206 = vpop.f32.mrb[0].mxu0
    %v8207 = vpop.f32.mrb[0].mxu0
    %v8208 = vadd.f32 %v7952, %v8207
    %v8209 = vpop.f32.mrb[0].mxu0
    %8210 = vmatprep.mubr.bf16.mxu0 0
    %8211 = vmatmul.mubr.bf16.gmra.mrb[0].mxu0 %v7921
    %v8212 = vpop.f32.mrb[0].mxu0
    %v8213 = vadd.f32 %v7952, %v8212
    %v8214 = vpop.f32.mrb[0].mxu0
    %v8215 = vpop.f32.mrb[0].mxu0
    %v8216 = vadd.f32 %v7952, %v8215
    %v8217 = vpop.f32.mrb[0].mxu0
    %8218 = vmatprep.mubr.bf16.mxu0 0
    %8219 = vmatmul.mubr.bf16.gmra.mrb[0].mxu0 %v7922
    %v8220 = vpop.f32.mrb[0].mxu0
    %v8221 = vadd.f32 %v7952, %v8220
    %v8222 = vpop.f32.mrb[0].mxu0
    %v8223 = vpop.f32.mrb[0].mxu0
    %v8224 = vadd.f32 %v7952, %v8223
    %v8225 = vpop.f32.mrb[0].mxu0
    %8226 = vmatprep.mubr.bf16.mxu0 0
    %8227 = vmatmul.mubr.bf16.gmra.mrb[0].mxu0 %v7923
    %v8228 = vpop.f32.mrb[0].mxu0
    %v8229 = vadd.f32 %v7952, %v8228
    %v8230 = vpop.f32.mrb[0].mxu0
    %v8231 = vpop.f32.mrb[0].mxu0
    %v8232 = vadd.f32 %v7952, %v8231
    %v8233 = vpop.f32.mrb[0].mxu0
    %8234 = vmatprep.mubr.bf16.mxu0 0
    %8235 = vmatmul.mubr.bf16.gmra.mrb[0].mxu0 %v7924
    %v8236 = vpop.f32.mrb[0].mxu0
    %v8237 = vadd.f32 %v7952, %v8236
    %v8238 = vpop.f32.mrb[0].mxu0
    %v8239 = vpop.f32.mrb[0].mxu0
    %v8240 = vadd.f32 %v7952, %v8239
    %v8241 = vpop.f32.mrb[0].mxu0
    %8242 = vmatprep.mubr.bf16.mxu0 0
    %8243 = vmatmul.mubr.bf16.gmra.mrb[0].mxu0 %v7925
    %v8244 = vpop.f32.mrb[0].mxu0
    %v8245 = vadd.f32 %v7952, %v8244
    %v8246 = vpop.f32.mrb[0].mxu0
    %v8247 = vpop.f32.mrb[0].mxu0
    %v8248 = vadd.f32 %v7952, %v8247
    %v8249 = vpop.f32.mrb[0].mxu0
    %8250 = vmatprep.mubr.bf16.mxu0 0
    %8251 = vmatmul.mubr.bf16.gmra.mrb[0].mxu0 %v7926
    %v8252 = vpop.f32.mrb[0].mxu0
    %v8253 = vadd.f32 %v7952, %v8252
    %v8254 = vpop.f32.mrb[0].mxu0
    %v8255 = vpop.f32.mrb[0].mxu0
    %v8256 = vadd.f32 %v7952, %v8255
    %v8257 = vpop.f32.mrb[0].mxu0
    %8258 = vmatprep.mubr.bf16.mxu0 0
    %8259 = vmatmul.mubr.bf16.gmra.mrb[0].mxu0 %v7927
    %v8260 = vpop.f32.mrb[0].mxu0
    %v8261 = vadd.f32 %v7952, %v8260
    %v8262 = vpop.f32.mrb[0].mxu0
    %v8263 = vpop.f32.mrb[0].mxu0
    %v8264 = vadd.f32 %v7952, %v8263
    %v8265 = vpop.f32.mrb[0].mxu0
    %8266 = vmatprep.mubr.bf16.mxu0 0
    %8267 = vmatmul.mubr.bf16.gmra.mrb[0].mxu0 %v7928
    %v8268 = vpop.f32.mrb[0].mxu0
    %v8269 = vadd.f32 %v7952, %v8268
    %v8270 = vpop.f32.mrb[0].mxu0
    %v8271 = vpop.f32.mrb[0].mxu0
    %v8272 = vadd.f32 %v7952, %v8271
    %v8273 = vpop.f32.mrb[0].mxu0
    %8274 = vmatprep.mubr.bf16.mxu0 0
    %8275 = vmatmul.mubr.bf16.gmra.mrb[0].mxu0 %v7929
    %v8276 = vpop.f32.mrb[0].mxu0
    %v8277 = vadd.f32 %v7952, %v8276
    %v8278 = vpop.f32.mrb[0].mxu0
    %v8279 = vpop.f32.mrb[0].mxu0
    %v8280 = vadd.f32 %v7952, %v8279
    %v8281 = vpop.f32.mrb[0].mxu0
    %8282 = vmatprep.mubr.bf16.mxu0 0
    %8283 = vmatmul.mubr.bf16.gmra.mrb[0].mxu0 %v7930
    %v8284 = vpop.f32.mrb[0].mxu0
    %v8285 = vadd.f32 %v7952, %v8284
    %v8286 = vpop.f32.mrb[0].mxu0
    %v8287 = vpop.f32.mrb[0].mxu0
    %v8288 = vadd.f32 %v7952, %v8287
    %v8289 = vpop.f32.mrb[0].mxu0
    %8290 = vdwg.mxu0
    %v8291 = vld [vmem:[%s3] sm:$0xff]
    %8293 = vset.pattern.permute.xlu0 0
    %8294 = vperm.xlu0 %8293, %v8291
    %v8295 = vpop.permute.xlu0 %8294
    %v8297 = vmul.f32 %v8295, %v75
    %v8298 = vmul.f32 %v8295, %v76
    %v8299 = vmul.f32 %v8295, %v77
    %v8300 = vmul.f32 %v8295, %v78
    %v8301 = vmul.f32 %v8295, %v79
    %v8302 = vmul.f32 %v8295, %v80
    %v8303 = vmul.f32 %v8295, %v81
    %v8304 = vmul.f32 %v8295, %v82
    %v8305 = vmul.f32 %v8295, %v83
    %v8306 = vmul.f32 %v8295, %v84
    %v8307 = vmul.f32 %v8295, %v85
    %v8308 = vmul.f32 %v8295, %v86
    %v8309 = vmul.f32 %v8295, %v87
    %v8310 = vmul.f32 %v8295, %v88
    %v8311 = vmul.f32 %v8295, %v89
    %v8312 = vmul.f32 %v8295, %v90
    %v8313 = vmul.f32 %v8295, %v91
    %v8314 = vmul.f32 %v8295, %v92
    %v8315 = vmul.f32 %v8295, %v93
    %v8316 = vmul.f32 %v8295, %v94
    %v8317 = vmul.f32 %v8295, %v95
    %v8318 = vmul.f32 %v8295, %v96
    %v8319 = vmul.f32 %v8295, %v97
    %v8320 = vmul.f32 %v8295, %v98
    %v8321 = vmul.f32 %v8295, %v99
    %v8322 = vmul.f32 %v8295, %v100
    %v8323 = vmul.f32 %v8295, %v101
    %v8324 = vmul.f32 %v8295, %v102
    %v8325 = vmul.f32 %v8295, %v103
    %v8326 = vmul.f32 %v8295, %v104
    %v8327 = vmul.f32 %v8295, %v105
    %v8328 = vmul.f32 %v8295, %v106
    %v8329 = vmul.f32 %v8295, %v107
    %v8330 = vmul.f32 %v8295, %v108
    %v8331 = vmul.f32 %v8295, %v109
    %v8332 = vmul.f32 %v8295, %v110
    %v8333 = vmul.f32 %v8295, %v111
    %v8334 = vmul.f32 %v8295, %v112
    %v8335 = vmul.f32 %v8295, %v113
    %v8336 = vmul.f32 %v8295, %v114
    %v8337 = vmul.f32 %v8295, %v115
    %v8338 = vmul.f32 %v8295, %v116
    %v8339 = vmul.f32 %v8295, %v117
    %v8340 = vmul.f32 %v8295, %v118
    %v8341 = vmul.f32 %v8295, %v119
    %v8342 = vmul.f32 %v8295, %v120
    %v8343 = vmul.f32 %v8295, %v121
    %v8344 = vmul.f32 %v8295, %v122
    %v8345 = vmul.f32 %v8295, %v123
    %v8346 = vmul.f32 %v8295, %v124
    %v8347 = vmul.f32 %v8295, %v125
    %v8348 = vmul.f32 %v8295, %v126
    %v8349 = vmul.f32 %v8295, %v127
    %v8350 = vmul.f32 %v8295, %v128
    %v8351 = vmul.f32 %v8295, %v129
    %v8352 = vmul.f32 %v8295, %v130
    %v8353 = vmul.f32 %v8295, %v131
    %v8354 = vmul.f32 %v8295, %v132
    %v8355 = vmul.f32 %v8295, %v133
    %v8356 = vmul.f32 %v8295, %v134
    %v8357 = vmul.f32 %v8295, %v135
    %v8358 = vmul.f32 %v8295, %v136
    %v8359 = vmul.f32 %v8295, %v137
    %v8360 = vmul.f32 %v8295, %v138
    %8361 = vset.pattern.permute.xlu0 1
    %8362 = vperm.xlu0 %8361, %v8291
    %v8363 = vpop.permute.xlu0 %8362
    %v8365 = vmul.f32 %v8363, %v7379
    %v8366 = vmul.f32 %v8363, %v7380
    %v8367 = vmul.f32 %v8363, %v7381
    %v8368 = vmul.f32 %v8363, %v7382
    %v8369 = vmul.f32 %v8363, %v7383
    %v8370 = vmul.f32 %v8363, %v7384
    %v8371 = vmul.f32 %v8363, %v7385
    %v8372 = vmul.f32 %v8363, %v7386
    %v8373 = vmul.f32 %v8363, %v7387
    %v8374 = vmul.f32 %v8363, %v7388
    %v8375 = vmul.f32 %v8363, %v7389
    %v8376 = vmul.f32 %v8363, %v7390
    %v8377 = vmul.f32 %v8363, %v7391
    %v8378 = vmul.f32 %v8363, %v7392
    %v8379 = vmul.f32 %v8363, %v7393
    %v8380 = vmul.f32 %v8363, %v7394
    %v8381 = vmul.f32 %v8363, %v7395
    %v8382 = vmul.f32 %v8363, %v7396
    %v8383 = vmul.f32 %v8363, %v7397
    %v8384 = vmul.f32 %v8363, %v7398
    %v8385 = vmul.f32 %v8363, %v7399
    %v8386 = vmul.f32 %v8363, %v7400
    %v8387 = vmul.f32 %v8363, %v7401
    %v8388 = vmul.f32 %v8363, %v7402
    %v8389 = vmul.f32 %v8363, %v7403
    %v8390 = vmul.f32 %v8363, %v7404
    %v8391 = vmul.f32 %v8363, %v7405
    %v8392 = vmul.f32 %v8363, %v7406
    %v8393 = vmul.f32 %v8363, %v7407
    %v8394 = vmul.f32 %v8363, %v7408
    %v8395 = vmul.f32 %v8363, %v7409
    %v8396 = vmul.f32 %v8363, %v7410
    %v8397 = vmul.f32 %v8363, %v7411
    %v8398 = vmul.f32 %v8363, %v7412
    %v8399 = vmul.f32 %v8363, %v7413
    %v8400 = vmul.f32 %v8363, %v7414
    %v8401 = vmul.f32 %v8363, %v7415
    %v8402 = vmul.f32 %v8363, %v7416
    %v8403 = vmul.f32 %v8363, %v7417
    %v8404 = vmul.f32 %v8363, %v7418
    %v8405 = vmul.f32 %v8363, %v7419
    %v8406 = vmul.f32 %v8363, %v7420
    %v8407 = vmul.f32 %v8363, %v7421
    %v8408 = vmul.f32 %v8363, %v7422
    %v8409 = vmul.f32 %v8363, %v7423
    %v8410 = vmul.f32 %v8363, %v7424
    %v8411 = vmul.f32 %v8363, %v7425
    %v8412 = vmul.f32 %v8363, %v7426
    %v8413 = vmul.f32 %v8363, %v7427
    %v8414 = vmul.f32 %v8363, %v7428
    %v8415 = vmul.f32 %v8363, %v7429
    %v8416 = vmul.f32 %v8363, %v7430
    %v8417 = vmul.f32 %v8363, %v7431
    %v8418 = vmul.f32 %v8363, %v7432
    %v8419 = vmul.f32 %v8363, %v7433
    %v8420 = vmul.f32 %v8363, %v7434
    %v8421 = vmul.f32 %v8363, %v7435
    %v8422 = vmul.f32 %v8363, %v7436
    %v8423 = vmul.f32 %v8363, %v7437
    %v8424 = vmul.f32 %v8363, %v7438
    %v8425 = vmul.f32 %v8363, %v7439
    %v8426 = vmul.f32 %v8363, %v7440
    %v8427 = vmul.f32 %v8363, %v7441
    %v8428 = vmul.f32 %v8363, %v7442
    %v8429 = vadd.f32 %v8297, %v8365
    %v8430 = vadd.f32 %v8298, %v8366
    %v8431 = vadd.f32 %v8299, %v8367
    %v8432 = vadd.f32 %v8300, %v8368
    %v8433 = vadd.f32 %v8301, %v8369
    %v8434 = vadd.f32 %v8302, %v8370
    %v8435 = vadd.f32 %v8303, %v8371
    %v8436 = vadd.f32 %v8304, %v8372
    %v8437 = vadd.f32 %v8305, %v8373
    %v8438 = vadd.f32 %v8306, %v8374
    %v8439 = vadd.f32 %v8307, %v8375
    %v8440 = vadd.f32 %v8308, %v8376
    %v8441 = vadd.f32 %v8309, %v8377
    %v8442 = vadd.f32 %v8310, %v8378
    %v8443 = vadd.f32 %v8311, %v8379
    %v8444 = vadd.f32 %v8312, %v8380
    %v8445 = vadd.f32 %v8313, %v8381
    %v8446 = vadd.f32 %v8314, %v8382
    %v8447 = vadd.f32 %v8315, %v8383
    %v8448 = vadd.f32 %v8316, %v8384
    %v8449 = vadd.f32 %v8317, %v8385
    %v8450 = vadd.f32 %v8318, %v8386
    %v8451 = vadd.f32 %v8319, %v8387
    %v8452 = vadd.f32 %v8320, %v8388
    %v8453 = vadd.f32 %v8321, %v8389
    %v8454 = vadd.f32 %v8322, %v8390
    %v8455 = vadd.f32 %v8323, %v8391
    %v8456 = vadd.f32 %v8324, %v8392
    %v8457 = vadd.f32 %v8325, %v8393
    %v8458 = vadd.f32 %v8326, %v8394
    %v8459 = vadd.f32 %v8327, %v8395
    %v8460 = vadd.f32 %v8328, %v8396
    %v8461 = vadd.f32 %v8329, %v8397
    %v8462 = vadd.f32 %v8330, %v8398
    %v8463 = vadd.f32 %v8331, %v8399
    %v8464 = vadd.f32 %v8332, %v8400
    %v8465 = vadd.f32 %v8333, %v8401
    %v8466 = vadd.f32 %v8334, %v8402
    %v8467 = vadd.f32 %v8335, %v8403
    %v8468 = vadd.f32 %v8336, %v8404
    %v8469 = vadd.f32 %v8337, %v8405
    %v8470 = vadd.f32 %v8338, %v8406
    %v8471 = vadd.f32 %v8339, %v8407
    %v8472 = vadd.f32 %v8340, %v8408
    %v8473 = vadd.f32 %v8341, %v8409
    %v8474 = vadd.f32 %v8342, %v8410
    %v8475 = vadd.f32 %v8343, %v8411
    %v8476 = vadd.f32 %v8344, %v8412
    %v8477 = vadd.f32 %v8345, %v8413
    %v8478 = vadd.f32 %v8346, %v8414
    %v8479 = vadd.f32 %v8347, %v8415
    %v8480 = vadd.f32 %v8348, %v8416
    %v8481 = vadd.f32 %v8349, %v8417
    %v8482 = vadd.f32 %v8350, %v8418
    %v8483 = vadd.f32 %v8351, %v8419
    %v8484 = vadd.f32 %v8352, %v8420
    %v8485 = vadd.f32 %v8353, %v8421
    %v8486 = vadd.f32 %v8354, %v8422
    %v8487 = vadd.f32 %v8355, %v8423
    %v8488 = vadd.f32 %v8356, %v8424
    %v8489 = vadd.f32 %v8357, %v8425
    %v8490 = vadd.f32 %v8358, %v8426
    %v8491 = vadd.f32 %v8359, %v8427
    %v8492 = vadd.f32 %v8360, %v8428
    %8493 = vset.pattern.permute.xlu0 2
    %8494 = vperm.xlu0 %8493, %v8291
    %v8495 = vpop.permute.xlu0 %8494
    %v8497 = vmul.f32 %v8495, %v8037
    %v8498 = vmul.f32 %v8495, %v8040
    %v8499 = vmul.f32 %v8495, %v8045
    %v8500 = vmul.f32 %v8495, %v8048
    %v8501 = vmul.f32 %v8495, %v8053
    %v8502 = vmul.f32 %v8495, %v8056
    %v8503 = vmul.f32 %v8495, %v8061
    %v8504 = vmul.f32 %v8495, %v8064
    %v8505 = vmul.f32 %v8495, %v8069
    %v8506 = vmul.f32 %v8495, %v8072
    %v8507 = vmul.f32 %v8495, %v8077
    %v8508 = vmul.f32 %v8495, %v8080
    %v8509 = vmul.f32 %v8495, %v8085
    %v8510 = vmul.f32 %v8495, %v8088
    %v8511 = vmul.f32 %v8495, %v8093
    %v8512 = vmul.f32 %v8495, %v8096
    %v8513 = vmul.f32 %v8495, %v8101
    %v8514 = vmul.f32 %v8495, %v8104
    %v8515 = vmul.f32 %v8495, %v8109
    %v8516 = vmul.f32 %v8495, %v8112
    %v8517 = vmul.f32 %v8495, %v8117
    %v8518 = vmul.f32 %v8495, %v8120
    %v8519 = vmul.f32 %v8495, %v8125
    %v8520 = vmul.f32 %v8495, %v8128
    %v8521 = vmul.f32 %v8495, %v8133
    %v8522 = vmul.f32 %v8495, %v8136
    %v8523 = vmul.f32 %v8495, %v8141
    %v8524 = vmul.f32 %v8495, %v8144
    %v8525 = vmul.f32 %v8495, %v8149
    %v8526 = vmul.f32 %v8495, %v8152
    %v8527 = vmul.f32 %v8495, %v8157
    %v8528 = vmul.f32 %v8495, %v8160
    %v8529 = vmul.f32 %v8495, %v8165
    %v8530 = vmul.f32 %v8495, %v8168
    %v8531 = vmul.f32 %v8495, %v8173
    %v8532 = vmul.f32 %v8495, %v8176
    %v8533 = vmul.f32 %v8495, %v8181
    %v8534 = vmul.f32 %v8495, %v8184
    %v8535 = vmul.f32 %v8495, %v8189
    %v8536 = vmul.f32 %v8495, %v8192
    %v8537 = vmul.f32 %v8495, %v8197
    %v8538 = vmul.f32 %v8495, %v8200
    %v8539 = vmul.f32 %v8495, %v8205
    %v8540 = vmul.f32 %v8495, %v8208
    %v8541 = vmul.f32 %v8495, %v8213
    %v8542 = vmul.f32 %v8495, %v8216
    %v8543 = vmul.f32 %v8495, %v8221
    %v8544 = vmul.f32 %v8495, %v8224
    %v8545 = vmul.f32 %v8495, %v8229
    %v8546 = vmul.f32 %v8495, %v8232
    %v8547 = vmul.f32 %v8495, %v8237
    %v8548 = vmul.f32 %v8495, %v8240
    %v8549 = vmul.f32 %v8495, %v8245
    %v8550 = vmul.f32 %v8495, %v8248
    %v8551 = vmul.f32 %v8495, %v8253
    %v8552 = vmul.f32 %v8495, %v8256
    %v8553 = vmul.f32 %v8495, %v8261
    %v8554 = vmul.f32 %v8495, %v8264
    %v8555 = vmul.f32 %v8495, %v8269
    %v8556 = vmul.f32 %v8495, %v8272
    %v8557 = vmul.f32 %v8495, %v8277
    %v8558 = vmul.f32 %v8495, %v8280
    %v8559 = vmul.f32 %v8495, %v8285
    %v8560 = vmul.f32 %v8495, %v8288
    %v8561 = vadd.f32 %v8429, %v8497
    %v8562 = vadd.f32 %v8430, %v8498
    %v8563 = vadd.f32 %v8431, %v8499
    %v8564 = vadd.f32 %v8432, %v8500
    %v8565 = vadd.f32 %v8433, %v8501
    %v8566 = vadd.f32 %v8434, %v8502
    %v8567 = vadd.f32 %v8435, %v8503
    %v8568 = vadd.f32 %v8436, %v8504
    %v8569 = vadd.f32 %v8437, %v8505
    %v8570 = vadd.f32 %v8438, %v8506
    %v8571 = vadd.f32 %v8439, %v8507
    %v8572 = vadd.f32 %v8440, %v8508
    %v8573 = vadd.f32 %v8441, %v8509
    %v8574 = vadd.f32 %v8442, %v8510
    %v8575 = vadd.f32 %v8443, %v8511
    %v8576 = vadd.f32 %v8444, %v8512
    %v8577 = vadd.f32 %v8445, %v8513
    %v8578 = vadd.f32 %v8446, %v8514
    %v8579 = vadd.f32 %v8447, %v8515
    %v8580 = vadd.f32 %v8448, %v8516
    %v8581 = vadd.f32 %v8449, %v8517
    %v8582 = vadd.f32 %v8450, %v8518
    %v8583 = vadd.f32 %v8451, %v8519
    %v8584 = vadd.f32 %v8452, %v8520
    %v8585 = vadd.f32 %v8453, %v8521
    %v8586 = vadd.f32 %v8454, %v8522
    %v8587 = vadd.f32 %v8455, %v8523
    %v8588 = vadd.f32 %v8456, %v8524
    %v8589 = vadd.f32 %v8457, %v8525
    %v8590 = vadd.f32 %v8458, %v8526
    %v8591 = vadd.f32 %v8459, %v8527
    %v8592 = vadd.f32 %v8460, %v8528
    %v8593 = vadd.f32 %v8461, %v8529
    %v8594 = vadd.f32 %v8462, %v8530
    %v8595 = vadd.f32 %v8463, %v8531
    %v8596 = vadd.f32 %v8464, %v8532
    %v8597 = vadd.f32 %v8465, %v8533
    %v8598 = vadd.f32 %v8466, %v8534
    %v8599 = vadd.f32 %v8467, %v8535
    %v8600 = vadd.f32 %v8468, %v8536
    %v8601 = vadd.f32 %v8469, %v8537
    %v8602 = vadd.f32 %v8470, %v8538
    %v8603 = vadd.f32 %v8471, %v8539
    %v8604 = vadd.f32 %v8472, %v8540
    %v8605 = vadd.f32 %v8473, %v8541
    %v8606 = vadd.f32 %v8474, %v8542
    %v8607 = vadd.f32 %v8475, %v8543
    %v8608 = vadd.f32 %v8476, %v8544
    %v8609 = vadd.f32 %v8477, %v8545
    %v8610 = vadd.f32 %v8478, %v8546
    %v8611 = vadd.f32 %v8479, %v8547
    %v8612 = vadd.f32 %v8480, %v8548
    %v8613 = vadd.f32 %v8481, %v8549
    %v8614 = vadd.f32 %v8482, %v8550
    %v8615 = vadd.f32 %v8483, %v8551
    %v8616 = vadd.f32 %v8484, %v8552
    %v8617 = vadd.f32 %v8485, %v8553
    %v8618 = vadd.f32 %v8486, %v8554
    %v8619 = vadd.f32 %v8487, %v8555
    %v8620 = vadd.f32 %v8488, %v8556
    %v8621 = vadd.f32 %v8489, %v8557
    %v8622 = vadd.f32 %v8490, %v8558
    %v8623 = vadd.f32 %v8491, %v8559
    %v8624 = vadd.f32 %v8492, %v8560
    %8625 = vst [vmem:[#allocation9] sm:$0xff] %v8561
    %8626 = vst [vmem:[#allocation9 + $0x8] sm:$0xff] %v8562
    %8627 = vst [vmem:[#allocation9 + $0x10] sm:$0xff] %v8563
    %8628 = vst [vmem:[#allocation9 + $0x18] sm:$0xff] %v8564
    %8629 = vst [vmem:[#allocation9 + $0x20] sm:$0xff] %v8565
    %8630 = vst [vmem:[#allocation9 + $0x28] sm:$0xff] %v8566
    %8631 = vst [vmem:[#allocation9 + $0x30] sm:$0xff] %v8567
    %8632 = vst [vmem:[#allocation9 + $0x38] sm:$0xff] %v8568
    %8633 = vst [vmem:[#allocation9 + $0x40] sm:$0xff] %v8569
    %8634 = vst [vmem:[#allocation9 + $0x48] sm:$0xff] %v8570
    %8635 = vst [vmem:[#allocation9 + $0x50] sm:$0xff] %v8571
    %8636 = vst [vmem:[#allocation9 + $0x58] sm:$0xff] %v8572
    %8637 = vst [vmem:[#allocation9 + $0x60] sm:$0xff] %v8573
    %8638 = vst [vmem:[#allocation9 + $0x68] sm:$0xff] %v8574
    %8639 = vst [vmem:[#allocation9 + $0x70] sm:$0xff] %v8575
    %8640 = vst [vmem:[#allocation9 + $0x78] sm:$0xff] %v8576
    %8641 = vst [vmem:[#allocation9 + $0x80] sm:$0xff] %v8577
    %8642 = vst [vmem:[#allocation9 + $0x88] sm:$0xff] %v8578
    %8643 = vst [vmem:[#allocation9 + $0x90] sm:$0xff] %v8579
    %8644 = vst [vmem:[#allocation9 + $0x98] sm:$0xff] %v8580
    %8645 = vst [vmem:[#allocation9 + $0xa0] sm:$0xff] %v8581
    %8646 = vst [vmem:[#allocation9 + $0xa8] sm:$0xff] %v8582
    %8647 = vst [vmem:[#allocation9 + $0xb0] sm:$0xff] %v8583
    %8648 = vst [vmem:[#allocation9 + $0xb8] sm:$0xff] %v8584
    %8649 = vst [vmem:[#allocation9 + $0xc0] sm:$0xff] %v8585
    %8650 = vst [vmem:[#allocation9 + $0xc8] sm:$0xff] %v8586
    %8651 = vst [vmem:[#allocation9 + $0xd0] sm:$0xff] %v8587
    %8652 = vst [vmem:[#allocation9 + $0xd8] sm:$0xff] %v8588
    %8653 = vst [vmem:[#allocation9 + $0xe0] sm:$0xff] %v8589
    %8654 = vst [vmem:[#allocation9 + $0xe8] sm:$0xff] %v8590
    %8655 = vst [vmem:[#allocation9 + $0xf0] sm:$0xff] %v8591
    %8656 = vst [vmem:[#allocation9 + $0xf8] sm:$0xff] %v8592
    %8657 = vst [vmem:[#allocation9 + $0x100] sm:$0xff] %v8593
    %8658 = vst [vmem:[#allocation9 + $0x108] sm:$0xff] %v8594
    %8659 = vst [vmem:[#allocation9 + $0x110] sm:$0xff] %v8595
    %8660 = vst [vmem:[#allocation9 + $0x118] sm:$0xff] %v8596
    %8661 = vst [vmem:[#allocation9 + $0x120] sm:$0xff] %v8597
    %8662 = vst [vmem:[#allocation9 + $0x128] sm:$0xff] %v8598
    %8663 = vst [vmem:[#allocation9 + $0x130] sm:$0xff] %v8599
    %8664 = vst [vmem:[#allocation9 + $0x138] sm:$0xff] %v8600
    %8665 = vst [vmem:[#allocation9 + $0x140] sm:$0xff] %v8601
    %8666 = vst [vmem:[#allocation9 + $0x148] sm:$0xff] %v8602
    %8667 = vst [vmem:[#allocation9 + $0x150] sm:$0xff] %v8603
    %8668 = vst [vmem:[#allocation9 + $0x158] sm:$0xff] %v8604
    %8669 = vst [vmem:[#allocation9 + $0x160] sm:$0xff] %v8605
    %8670 = vst [vmem:[#allocation9 + $0x168] sm:$0xff] %v8606
    %8671 = vst [vmem:[#allocation9 + $0x170] sm:$0xff] %v8607
    %8672 = vst [vmem:[#allocation9 + $0x178] sm:$0xff] %v8608
    %8673 = vst [vmem:[#allocation9 + $0x180] sm:$0xff] %v8609
    %8674 = vst [vmem:[#allocation9 + $0x188] sm:$0xff] %v8610
    %8675 = vst [vmem:[#allocation9 + $0x190] sm:$0xff] %v8611
    %8676 = vst [vmem:[#allocation9 + $0x198] sm:$0xff] %v8612
    %8677 = vst [vmem:[#allocation9 + $0x1a0] sm:$0xff] %v8613
    %8678 = vst [vmem:[#allocation9 + $0x1a8] sm:$0xff] %v8614
    %8679 = vst [vmem:[#allocation9 + $0x1b0] sm:$0xff] %v8615
    %8680 = vst [vmem:[#allocation9 + $0x1b8] sm:$0xff] %v8616
    %8681 = vst [vmem:[#allocation9 + $0x1c0] sm:$0xff] %v8617
    %8682 = vst [vmem:[#allocation9 + $0x1c8] sm:$0xff] %v8618
    %8683 = vst [vmem:[#allocation9 + $0x1d0] sm:$0xff] %v8619
    %8684 = vst [vmem:[#allocation9 + $0x1d8] sm:$0xff] %v8620
    %8685 = vst [vmem:[#allocation9 + $0x1e0] sm:$0xff] %v8621
    %8686 = vst [vmem:[#allocation9 + $0x1e8] sm:$0xff] %v8622
    %8687 = vst [vmem:[#allocation9 + $0x1f0] sm:$0xff] %v8623
    %8688 = vst [vmem:[#allocation9 + $0x1f8] sm:$0xff] %v8624
    // Predicated region
    $region50: #{tpu_custom_call.1} parent=1 // pred_check
      _
    $region51: #{tpu_custom_call.1} parent=1 // pred_check_branch
      %8690 = sbr.rel (0) target = $region53
    $region52: #{tpu_custom_call.1} parent=1 // pred_region
      %s8692 = ssub.s32 8192, 8192
      %8693 = vsyncadd [#allocation4], %s8692
      %s8694 = sshll.u32 [#allocation9], 4
      %s8695 = int_to_ptr.vmem [resolvable:$true] %s8694
      %8700 = dma.vmem_to_hbm [thread:$0]  %s8695, 8192, %s9, [#allocation4], 128, 128, 8
    $region53: #{tpu_custom_call.1} parent=1 // pred_fallthru
      _
    // Predicated region
    $region54: #{tpu_custom_call.1} parent=1 // pred_check
      _
    $region55: #{tpu_custom_call.1} parent=1 // pred_check_branch
      %8702 = sbr.rel (0) target = $region57
    $region56: #{tpu_custom_call.1} parent=1 // pred_region
      %8703 = dma.done [#allocation4], 8192
    $region57: #{tpu_custom_call.1} parent=1 // pred_fallthru
      _
    %8704 = vsyncpa [#allocation3], 1
    %8705 = vsyncpa [#allocation7], 1
    %8706 = vsyncpa [#allocation4], 1
    %8707 = vsyncpa [#allocation5], 1

</llo_original>
